<compile_context>
chip_gen: v7x
topology: tpu7x:2x2x1
jax: 0.10.0
libtpu: 0.0.40
codegen_flags: <defaults>
</compile_context>

<pallas_src>
import jax
import jax.numpy as jnp
from jax.experimental import pallas as pl
from jax.experimental.pallas import tpu as pltpu

# Full-f32 matmuls everywhere (kernel and reference) so the correctness check
# is not polluted by default bf16-pass MXU precision.  At this toy size the
# extra MXU passes are irrelevant.
jax.config.update("jax_default_matmul_precision", "highest")

# ---------------- model hyperparameters (small, consistent with the module) ---
B = 2            # batch
N = 8            # sequence length
DIM = 32         # model dim
HEADS = 4
DIM_HEAD = 16
INNER = HEADS * DIM_HEAD          # 64
SCALE = DIM_HEAD ** (-0.5)
LN_EPS = 1e-5                     # PyTorch nn.LayerNorm default

BN = B * N                        # 16 tokens total
G_ATT = B * HEADS                 # 8  (batch, head) attention groups


def attention_kernel(x_ref, gamma_ref, beta_ref, wqkv_ref, wout_ref, bout_ref,
                     o_ref):
    # x_ref: (BN, DIM) — whole problem in one invocation.
    x = x_ref[...].astype(jnp.float32)                        # (16, 32)

    # ---- LayerNorm over last dim (f32 VPU/EUP math; v5e-safe) --------------
    mean = jnp.mean(x, axis=-1, keepdims=True)
    xc = x - mean
    var = jnp.mean(xc * xc, axis=-1, keepdims=True)
    xn = xc * jax.lax.rsqrt(var + LN_EPS)
    xn = xn * gamma_ref[...] + beta_ref[...]                   # (16, 32)

    # ---- fused QKV projection: single MXU matmul ---------------------------
    # Softmax scale already folded into the Q columns of W_qkv in the wrapper.
    qkv = jnp.dot(xn, wqkv_ref[...],
                  preferred_element_type=jnp.float32)          # (16, 192)

    q = qkv[:, 0 * INNER:1 * INNER]                            # (16, 64)
    k = qkv[:, 1 * INNER:2 * INNER]                            # (16, 64)
    v = qkv[:, 2 * INNER:3 * INNER]                            # (16, 64)

    # ---- head split --------------------------------------------------------
    # (B*N, H*dh) -> (B, H, N, dh) -> (B*H, N, dh)
    def to_heads(t):
        return t.reshape(B, N, HEADS, DIM_HEAD).transpose(0, 2, 1, 3).reshape(
            G_ATT, N, DIM_HEAD)

    q_h = to_heads(q)                                          # (8, 8, 16)
    v_h = to_heads(v)                                          # (8, 8, 16)
    # K directly in (g, d, m) layout (single transpose) so the score matmuls
    # consume it without per-group relayouts.
    k_t = k.reshape(B, N, HEADS, DIM_HEAD).transpose(0, 2, 3, 1).reshape(
        G_ATT, DIM_HEAD, N)                                    # (8, 16, 8)

    # ---- scaled dot-product attention for all (batch, head) groups ---------
    dots = jnp.einsum('gnd,gdm->gnm', q_h, k_t,
                      preferred_element_type=jnp.float32)      # (8, 8, 8)
    dots = dots - jnp.max(dots, axis=-1, keepdims=True)
    e = jnp.exp(dots)
    denom = jnp.sum(e, axis=-1, keepdims=True)
    attn = e / denom      # exact divide: only 64 values, nowhere near a slot limit
    # dropout p=0.0 -> identity

    out = jnp.einsum('gnm,gmd->gnd', attn, v_h,
                     preferred_element_type=jnp.float32)       # (8, 8, 16)

    # ---- merge heads into lanes once, then fused output projection ---------
    # (B*H, N, dh) -> (B, N, H*dh) = (16, 64)
    out_m = out.reshape(B, HEADS, N, DIM_HEAD).transpose(0, 2, 1, 3).reshape(
        BN, INNER)

    proj = jnp.dot(out_m, wout_ref[...],
                   preferred_element_type=jnp.float32)         # (16, 32)
    proj = proj + bout_ref[...]

    o_ref[...] = proj.astype(o_ref.dtype)


@jax.jit
def attention_forward(x, gamma, beta, w_qkv, w_out, b_out):
    # ---- wrapper-side (one-time, outside the kernel) ------------------------
    # Fold the softmax scale into the Q columns of W_qkv (zero in-kernel cost).
    w_qkv_scaled = w_qkv.at[:, :INNER].multiply(SCALE)          # (32, 192)
    x2d = x.reshape(BN, DIM)                                    # (16, 32)
    gamma2 = gamma.reshape(1, DIM)
    beta2 = beta.reshape(1, DIM)
    bout2 = b_out.reshape(1, DIM)

    out2d = pl.pallas_call(
        attention_kernel,
        out_shape=jax.ShapeDtypeStruct((BN, DIM), x.dtype),
        grid_spec=pltpu.PrefetchScalarGridSpec(
            num_scalar_prefetch=0,
            grid=(1,),   # fully collapsed: entire working set (~50 KB) fits in VMEM
            in_specs=[
                pl.BlockSpec((BN, DIM), lambda i: (0, 0)),            # x
                pl.BlockSpec((1, DIM), lambda i: (0, 0)),             # gamma
                pl.BlockSpec((1, DIM), lambda i: (0, 0)),             # beta
                pl.BlockSpec((DIM, 3 * INNER), lambda i: (0, 0)),     # W_qkv (raw)
                pl.BlockSpec((INNER, DIM), lambda i: (0, 0)),         # W_out (raw)
                pl.BlockSpec((1, DIM), lambda i: (0, 0)),             # b_out
            ],
            out_specs=pl.BlockSpec((BN, DIM), lambda i: (0, 0)),
        ),
        compiler_params=pltpu.CompilerParams(
            dimension_semantics=("arbitrary",)),
    )(x2d, gamma2, beta2, w_qkv_scaled, w_out, bout2)

    return out2d.reshape(B, N, DIM)


def reference_forward(x, gamma, beta, w_qkv, w_out, b_out):
    # Pure-JAX reference mirroring the PyTorch module.
    mean = jnp.mean(x, axis=-1, keepdims=True)
    var = jnp.mean((x - mean) ** 2, axis=-1, keepdims=True)
    xn = (x - mean) * jax.lax.rsqrt(var + LN_EPS) * gamma + beta
    qkv = xn @ w_qkv
    q, k, v = jnp.split(qkv, 3, axis=-1)

    def to_heads(t):  # (B, N, H*dh) -> (B, H, N, dh)
        return t.reshape(B, N, HEADS, DIM_HEAD).transpose(0, 2, 1, 3)

    q, k, v = map(to_heads, (q, k, v))
    dots = jnp.einsum('bhnd,bhmd->bhnm', q, k) * SCALE
    attn = jax.nn.softmax(dots, axis=-1)
    out = jnp.einsum('bhnm,bhmd->bhnd', attn, v)
    out = out.transpose(0, 2, 1, 3).reshape(B, N, INNER)
    return out @ w_out + b_out


if __name__ == "__main__":
    key = jax.random.PRNGKey(0)
    kx, kq, ko, kb, kg = jax.random.split(key, 5)

    x = jax.random.normal(kx, (B, N, DIM), dtype=jnp.float32)

    # Deterministic parameter init (shapes per nn.Module __init__).
    gamma = jnp.ones((DIM,), jnp.float32)                 # LayerNorm weight
    beta = jnp.zeros((DIM,), jnp.float32)                 # LayerNorm bias
    w_qkv = jax.random.normal(kq, (DIM, 3 * INNER), jnp.float32) * (DIM ** -0.5)
    w_out = jax.random.normal(ko, (INNER, DIM), jnp.float32) * (INNER ** -0.5)
    b_out = jax.random.normal(kb, (DIM,), jnp.float32) * 0.01

    y = attention_forward(x, gamma, beta, w_qkv, w_out, b_out)
    y = jax.block_until_ready(y)

    y_ref = reference_forward(x, gamma, beta, w_qkv, w_out, b_out)
    assert y.shape == (B, N, DIM)
    # Exact softmax divide + full-f32 matmuls -> tight f32 agreement.
    assert jnp.allclose(y, y_ref, atol=1e-4, rtol=1e-4)

    print("KERNEL_OK")
</pallas_src>

<mosaic_0001>
module attributes {stable_mosaic.version = 11 : i64} {
  func.func @attention_kernel(%arg0: i32, %arg1: memref<16x32xf32, #tpu.memory_space<vmem>>, %arg2: memref<1x32xf32, #tpu.memory_space<vmem>>, %arg3: memref<1x32xf32, #tpu.memory_space<vmem>>, %arg4: memref<32x192xf32, #tpu.memory_space<vmem>>, %arg5: memref<64x32xf32, #tpu.memory_space<vmem>>, %arg6: memref<1x32xf32, #tpu.memory_space<vmem>>, %arg7: memref<16x32xf32, #tpu.memory_space<vmem>>) attributes {dimension_semantics = [#tpu.dimension_semantics<arbitrary>], iteration_bounds = array<i64: 1>, scalar_prefetch = 0 : i64, scratch_operands = 0 : i64, tpu.core_type = #tpu.core_type<tc>, window_params = [{pipeline_mode = #tpu.pipeline_mode<synchronous>, transform_indices = @transform_0, window_bounds = array<i64: 16, 32>}, {pipeline_mode = #tpu.pipeline_mode<synchronous>, transform_indices = @transform_1, window_bounds = array<i64: 1, 32>}, {pipeline_mode = #tpu.pipeline_mode<synchronous>, transform_indices = @transform_2, window_bounds = array<i64: 1, 32>}, {pipeline_mode = #tpu.pipeline_mode<synchronous>, transform_indices = @transform_3, window_bounds = array<i64: 32, 192>}, {pipeline_mode = #tpu.pipeline_mode<synchronous>, transform_indices = @transform_4, window_bounds = array<i64: 64, 32>}, {pipeline_mode = #tpu.pipeline_mode<synchronous>, transform_indices = @transform_5, window_bounds = array<i64: 1, 32>}, {pipeline_mode = #tpu.pipeline_mode<synchronous>, transform_indices = @transform_6, window_bounds = array<i64: 16, 32>}]} {
    %c0 = arith.constant 0 : index
    %c0_0 = arith.constant 0 : index
    %0 = vector.load %arg1[%c0, %c0_0] : memref<16x32xf32, #tpu.memory_space<vmem>>, vector<16x32xf32>
    %cst = arith.constant dense<0.000000e+00> : vector<16xf32>
    %1 = vector.multi_reduction <add>, %0, %cst [1] : vector<16x32xf32> to vector<16xf32>
    %2 = vector.shape_cast %1 : vector<16xf32> to vector<16x1xf32>
    %cst_1 = arith.constant 3.200000e+01 : f32
    %3 = vector.broadcast %cst_1 : f32 to vector<16x1xf32>
    %4 = arith.divf %2, %3 : vector<16x1xf32>
    %5 = vector.broadcast %4 : vector<16x1xf32> to vector<16x32xf32>
    %6 = arith.subf %0, %5 : vector<16x32xf32>
    %7 = arith.mulf %6, %6 : vector<16x32xf32>
    %cst_2 = arith.constant dense<0.000000e+00> : vector<16xf32>
    %8 = vector.multi_reduction <add>, %7, %cst_2 [1] : vector<16x32xf32> to vector<16xf32>
    %9 = vector.shape_cast %8 : vector<16xf32> to vector<16x1xf32>
    %cst_3 = arith.constant 3.200000e+01 : f32
    %10 = vector.broadcast %cst_3 : f32 to vector<16x1xf32>
    %11 = arith.divf %9, %10 : vector<16x1xf32>
    %cst_4 = arith.constant 9.99999974E-6 : f32
    %12 = vector.broadcast %cst_4 : f32 to vector<16x1xf32>
    %13 = arith.addf %11, %12 : vector<16x1xf32>
    %14 = math.rsqrt %13 : vector<16x1xf32>
    %15 = vector.broadcast %14 : vector<16x1xf32> to vector<16x32xf32>
    %16 = arith.mulf %6, %15 : vector<16x32xf32>
    %c0_5 = arith.constant 0 : index
    %c0_6 = arith.constant 0 : index
    %17 = vector.load %arg2[%c0_5, %c0_6] : memref<1x32xf32, #tpu.memory_space<vmem>>, vector<1x32xf32>
    %18 = vector.broadcast %17 : vector<1x32xf32> to vector<16x32xf32>
    %19 = arith.mulf %16, %18 : vector<16x32xf32>
    %c0_7 = arith.constant 0 : index
    %c0_8 = arith.constant 0 : index
    %20 = vector.load %arg3[%c0_7, %c0_8] : memref<1x32xf32, #tpu.memory_space<vmem>>, vector<1x32xf32>
    %21 = vector.broadcast %20 : vector<1x32xf32> to vector<16x32xf32>
    %22 = arith.addf %19, %21 : vector<16x32xf32>
    %c0_9 = arith.constant 0 : index
    %c0_10 = arith.constant 0 : index
    %23 = vector.load %arg4[%c0_9, %c0_10] : memref<32x192xf32, #tpu.memory_space<vmem>>, vector<32x192xf32>
    %cst_11 = arith.constant dense<0.000000e+00> : vector<16x192xf32>
    %24 = tpu.matmul %22, %23, %cst_11 {dimension_numbers = #tpu.dot_dimension_numbers<[1], [0], [0], [1], [0, 0, 1, 1], [], []>, precision = #tpu.contract_precision<fp32>} : vector<16x32xf32>, vector<32x192xf32>, vector<16x192xf32> -> vector<16x192xf32>
    %25 = vector.extract_strided_slice %24 {offsets = [0, 0], sizes = [16, 64], strides = [1, 1]} : vector<16x192xf32> to vector<16x64xf32>
    %26 = vector.extract_strided_slice %24 {offsets = [0, 64], sizes = [16, 64], strides = [1, 1]} : vector<16x192xf32> to vector<16x64xf32>
    %27 = vector.extract_strided_slice %24 {offsets = [0, 128], sizes = [16, 64], strides = [1, 1]} : vector<16x192xf32> to vector<16x64xf32>
    %28 = vector.shape_cast %25 : vector<16x64xf32> to vector<2x8x4x16xf32>
    %29 = tpu.transpose %28, [0, 2, 1, 3] : vector<2x8x4x16xf32> -> vector<2x4x8x16xf32>
    %30 = vector.shape_cast %29 : vector<2x4x8x16xf32> to vector<8x8x16xf32>
    %31 = vector.shape_cast %27 : vector<16x64xf32> to vector<2x8x4x16xf32>
    %32 = tpu.transpose %31, [0, 2, 1, 3] : vector<2x8x4x16xf32> -> vector<2x4x8x16xf32>
    %33 = vector.shape_cast %32 : vector<2x4x8x16xf32> to vector<8x8x16xf32>
    %34 = vector.shape_cast %26 : vector<16x64xf32> to vector<2x8x4x16xf32>
    %35 = tpu.transpose %34, [0, 2, 3, 1] : vector<2x8x4x16xf32> -> vector<2x4x16x8xf32>
    %36 = vector.shape_cast %35 : vector<2x4x16x8xf32> to vector<8x16x8xf32>
    "tpu.trace_start"() <{level = 10 : i32, message = "gnd,gdm->gnm"}> : () -> ()
    %cst_12 = arith.constant dense<0.000000e+00> : vector<8x8x8xf32>
    %37 = tpu.matmul %30, %36, %cst_12 {dimension_numbers = #tpu.dot_dimension_numbers<[2], [1], [1], [2], [0, 0, 0, 1, 1, 2], [0], [0]>, precision = #tpu.contract_precision<fp32>} : vector<8x8x16xf32>, vector<8x16x8xf32>, vector<8x8x8xf32> -> vector<8x8x8xf32>
    "tpu.trace_stop"() : () -> ()
    %cst_13 = arith.constant dense<0xFF800000> : vector<8x8xf32>
    %38 = vector.multi_reduction <maximumf>, %37, %cst_13 [2] : vector<8x8x8xf32> to vector<8x8xf32>
    %39 = vector.shape_cast %38 : vector<8x8xf32> to vector<8x8x1xf32>
    %40 = vector.broadcast %39 : vector<8x8x1xf32> to vector<8x8x8xf32>
    %41 = arith.subf %37, %40 : vector<8x8x8xf32>
    %42 = math.exp %41 : vector<8x8x8xf32>
    %cst_14 = arith.constant dense<0.000000e+00> : vector<8x8xf32>
    %43 = vector.multi_reduction <add>, %42, %cst_14 [2] : vector<8x8x8xf32> to vector<8x8xf32>
    %44 = vector.shape_cast %43 : vector<8x8xf32> to vector<8x8x1xf32>
    %45 = vector.broadcast %44 : vector<8x8x1xf32> to vector<8x8x8xf32>
    %46 = arith.divf %42, %45 : vector<8x8x8xf32>
    "tpu.trace_start"() <{level = 10 : i32, message = "gnm,gmd->gnd"}> : () -> ()
    %cst_15 = arith.constant dense<0.000000e+00> : vector<8x8x16xf32>
    %47 = tpu.matmul %46, %33, %cst_15 {dimension_numbers = #tpu.dot_dimension_numbers<[2], [1], [1], [2], [0, 0, 0, 1, 1, 2], [0], [0]>, precision = #tpu.contract_precision<fp32>} : vector<8x8x8xf32>, vector<8x8x16xf32>, vector<8x8x16xf32> -> vector<8x8x16xf32>
    "tpu.trace_stop"() : () -> ()
    %48 = vector.shape_cast %47 : vector<8x8x16xf32> to vector<2x4x8x16xf32>
    %49 = tpu.transpose %48, [0, 2, 1, 3] : vector<2x4x8x16xf32> -> vector<2x8x4x16xf32>
    %50 = vector.shape_cast %49 : vector<2x8x4x16xf32> to vector<16x64xf32>
    %c0_16 = arith.constant 0 : index
    %c0_17 = arith.constant 0 : index
    %51 = vector.load %arg5[%c0_16, %c0_17] : memref<64x32xf32, #tpu.memory_space<vmem>>, vector<64x32xf32>
    %cst_18 = arith.constant dense<0.000000e+00> : vector<16x32xf32>
    %52 = tpu.matmul %50, %51, %cst_18 {dimension_numbers = #tpu.dot_dimension_numbers<[1], [0], [0], [1], [0, 0, 1, 1], [], []>, precision = #tpu.contract_precision<fp32>} : vector<16x64xf32>, vector<64x32xf32>, vector<16x32xf32> -> vector<16x32xf32>
    %c0_19 = arith.constant 0 : index
    %c0_20 = arith.constant 0 : index
    %53 = vector.load %arg6[%c0_19, %c0_20] : memref<1x32xf32, #tpu.memory_space<vmem>>, vector<1x32xf32>
    %54 = vector.broadcast %53 : vector<1x32xf32> to vector<16x32xf32>
    %55 = arith.addf %52, %54 : vector<16x32xf32>
    %c0_21 = arith.constant 0 : index
    %c0_22 = arith.constant 0 : index
    %56 = vector.load %arg7[%c0_21, %c0_22] : memref<16x32xf32, #tpu.memory_space<vmem>>, vector<16x32xf32>
    tpu.vector_store %arg7[%c0_21, %c0_22], %55 {strides = array<i32>} : memref<16x32xf32, #tpu.memory_space<vmem>>, vector<16x32xf32>,
    return
  }
  func.func @transform_0(%arg0: i32) -> (i32, i32) {
    %c0_i32 = arith.constant 0 : i32
    %c0_i32_0 = arith.constant 0 : i32
    %c0_i32_1 = arith.constant 0 : i32
    return %c0_i32, %c0_i32_0 : i32, i32
  }
  func.func @transform_1(%arg0: i32) -> (i32, i32) {
    %c0_i32 = arith.constant 0 : i32
    %c0_i32_0 = arith.constant 0 : i32
    %c0_i32_1 = arith.constant 0 : i32
    return %c0_i32, %c0_i32_0 : i32, i32
  }
  func.func @transform_2(%arg0: i32) -> (i32, i32) {
    %c0_i32 = arith.constant 0 : i32
    %c0_i32_0 = arith.constant 0 : i32
    %c0_i32_1 = arith.constant 0 : i32
    return %c0_i32, %c0_i32_0 : i32, i32
  }
  func.func @transform_3(%arg0: i32) -> (i32, i32) {
    %c0_i32 = arith.constant 0 : i32
    %c0_i32_0 = arith.constant 0 : i32
    %c0_i32_1 = arith.constant 0 : i32
    return %c0_i32, %c0_i32_0 : i32, i32
  }
  func.func @transform_4(%arg0: i32) -> (i32, i32) {
    %c0_i32 = arith.constant 0 : i32
    %c0_i32_0 = arith.constant 0 : i32
    %c0_i32_1 = arith.constant 0 : i32
    return %c0_i32, %c0_i32_0 : i32, i32
  }
  func.func @transform_5(%arg0: i32) -> (i32, i32) {
    %c0_i32 = arith.constant 0 : i32
    %c0_i32_0 = arith.constant 0 : i32
    %c0_i32_1 = arith.constant 0 : i32
    return %c0_i32, %c0_i32_0 : i32, i32
  }
  func.func @transform_6(%arg0: i32) -> (i32, i32) {
    %c0_i32 = arith.constant 0 : i32
    %c0_i32_0 = arith.constant 0 : i32
    %c0_i32_1 = arith.constant 0 : i32
    return %c0_i32, %c0_i32_0 : i32, i32
  }
}

</mosaic_0001>

<llo_original>
// kernel: attention_forward.1
$region0: #{attention_forward.1}
  #allocation0 [shape = 'u32[]', space=smem, size = 0x4, offset = 0x4, fixed_abs, tag = 'smem constant byte address 0x4 - core index']
  #allocation1 [shape = 'u32[144,128]{1,0:T(1,128)}', space=vmem, size = 0x12000, scoped, tag = 'internal scratch']
  %s0 = inlined_call_operand.vmem [shape: f32[16,32], index: 0, kind: input, shape index: {}]
  %s1 = inlined_call_operand.vmem [shape: f32[1,32], index: 1, kind: input, shape index: {}]
  %s2 = inlined_call_operand.vmem [shape: f32[1,32], index: 2, kind: input, shape index: {}]
  %s3 = inlined_call_operand.vmem [shape: f32[32,192], index: 3, kind: input, shape index: {}]
  %s4 = inlined_call_operand.vmem [shape: f32[64,32], index: 4, kind: input, shape index: {}]
  %s5 = inlined_call_operand.vmem [shape: f32[1,32], index: 5, kind: input, shape index: {}]
  %s6 = inlined_call_operand.hbm [shape: f32[16,32], index: 6, kind: output, shape index: {}]
  %s7 = sld [smem:[#allocation0]]
  $region34: #{attention_forward.1} parent=0
    _
  %s9 = ssub.s32 1, %s7
  %s10 = scalar_select 0, %s9, %s7
  $region1: #{attention_forward.1} parent=0
    #allocation2 [shape = 'u8[8192]{0}', space=vmem, size = 0x2000, scoped, tag = 'output window, operand 0, single buffered']
    #allocation3 [shape = 's32[1]{0}', space=sflag, size = 0x4, scoped, tag = 'scoped memory for attention_forward.1']
    %11 = vsyncpa [#allocation3], 0
    // Predicated region
    $region2: #{attention_forward.1} parent=1 // pred_check
      _
    $region3: #{attention_forward.1} parent=1 // pred_check_branch
      %13 = sbr.rel (0) target = $region5
    $region4: #{attention_forward.1} parent=1 // pred_region
      _
    $region5: #{attention_forward.1} parent=1 // pred_fallthru
      _
    // Predicated region
    $region6: #{attention_forward.1} parent=1 // pred_check
      _
    $region7: #{attention_forward.1} parent=1 // pred_check_branch
      %15 = sbr.rel (0) target = $region9
    $region8: #{attention_forward.1} parent=1 // pred_region
      _
    $region9: #{attention_forward.1} parent=1 // pred_fallthru
      _
    // Predicated region
    $region10: #{attention_forward.1} parent=1 // pred_check
      _
    $region11: #{attention_forward.1} parent=1 // pred_check_branch
      %17 = sbr.rel (0) target = $region13
    $region12: #{attention_forward.1} parent=1 // pred_region
      _
    $region13: #{attention_forward.1} parent=1 // pred_fallthru
      _
    // Predicated region
    $region14: #{attention_forward.1} parent=1 // pred_check
      _
    $region15: #{attention_forward.1} parent=1 // pred_check_branch
      %19 = sbr.rel (0) target = $region17
    $region16: #{attention_forward.1} parent=1 // pred_region
      _
    $region17: #{attention_forward.1} parent=1 // pred_fallthru
      _
    // Predicated region
    $region18: #{attention_forward.1} parent=1 // pred_check
      _
    $region19: #{attention_forward.1} parent=1 // pred_check_branch
      %21 = sbr.rel (0) target = $region21
    $region20: #{attention_forward.1} parent=1 // pred_region
      _
    $region21: #{attention_forward.1} parent=1 // pred_fallthru
      _
    // Predicated region
    $region22: #{attention_forward.1} parent=1 // pred_check
      _
    $region23: #{attention_forward.1} parent=1 // pred_check_branch
      %23 = sbr.rel (0) target = $region25
    $region24: #{attention_forward.1} parent=1 // pred_region
      _
    $region25: #{attention_forward.1} parent=1 // pred_fallthru
      _
    %v24 = vld [vmem:[%s0] sm:$0xff]
    %v25 = vld [vmem:[%s0 + $0x8] sm:$0xff]
    %vm26 = vcmask 261120
    %v27 = vsel %vm26, %v24, 0.0
    %28 = vadd.xlane.f32.xlu0 %v27
    %v29 = vpop.xlane.xlu0 %28
    %v30 = vsel %vm26, %v25, 0.0
    %31 = vadd.xlane.f32.xlu0 %v30
    %v32 = vpop.xlane.xlu0 %31
    %v33 = vrcp.pop 32.0
    %v34 = vmul.f32 %v29, %v33
    %v35 = vmul.f32 %v32, %v33
    %v36 = vsub.f32 %v24, %v34
    %v37 = vsub.f32 %v25, %v35
    %v38 = vmul.f32 %v36, %v36
    %v39 = vmul.f32 %v37, %v37
    %v40 = vsel %vm26, %v38, 0.0
    %41 = vadd.xlane.f32.xlu0 %v40
    %v42 = vpop.xlane.xlu0 %41
    %v43 = vsel %vm26, %v39, 0.0
    %44 = vadd.xlane.f32.xlu0 %v43
    %v45 = vpop.xlane.xlu0 %44
    %v46 = vmul.f32 %v42, %v33
    %v47 = vmul.f32 %v45, %v33
    %v48 = vadd.f32 %v46, 1e-05
    %v49 = vadd.f32 %v47, 1e-05
    %v50 = vrsqrt.pop %v48
    %v51 = vrsqrt.pop %v49
    %v52 = vmul.f32 %v36, %v50
    %v53 = vmul.f32 %v37, %v51
    %v54 = vld [vmem:[%s1] sm:$0x1]
    %v56 = vlaneseq
    %v57 = vshrl.u32 %v56, 7
    %v58 = vsub.s32 0, %v57
    %v59 = vrot.slane %v54, %v58
    %v61 = vmul.f32 %v52, %v59
    %v62 = vmul.f32 %v53, %v59
    %v63 = vld [vmem:[%s2] sm:$0x1]
    %v65 = vlaneseq
    %v66 = vshrl.u32 %v65, 7
    %v67 = vsub.s32 0, %v66
    %v68 = vrot.slane %v63, %v67
    %v70 = vadd.f32 %v61, %v68
    %v71 = vadd.f32 %v62, %v68
    %v72 = vld [vmem:[%s3] sm:$0xff]
    %v73 = vld [vmem:[%s3 + $0x8] sm:$0xff]
    %v74 = vld [vmem:[%s3 + $0x10] sm:$0xff]
    %v75 = vld [vmem:[%s3 + $0x18] sm:$0xff]
    %v76 = vld [vmem:[%s3 + $0x20] sm:$0xff]
    %v77 = vld [vmem:[%s3 + $0x28] sm:$0xff]
    %v78 = vld [vmem:[%s3 + $0x30] sm:$0xff]
    %v79 = vld [vmem:[%s3 + $0x38] sm:$0xff]
    %v81 = vsel %vm26, %v70, 0
    %v84 = vsel %vm26, %v71, 0
    %v86 = vand.u32 %v73, 4294901760
    %87 = vmatprep.subr.mxu0 %v86
    %v88 = vand.u32 %v72, 4294901760
    %89 = vmatpush1.msra.mxu0 %v88
    %v90 = vand.u32 %v75, 4294901760
    %91 = vmatprep.subr.mxu0 %v90
    %v92 = vand.u32 %v74, 4294901760
    %93 = vmatpush1.msra.mxu0 %v92
    %v94 = vand.u32 %v77, 4294901760
    %95 = vmatprep.subr.mxu0 %v94
    %v96 = vand.u32 %v76, 4294901760
    %97 = vmatpush1.msra.mxu0 %v96
    %v98 = vand.u32 %v79, 4294901760
    %99 = vmatprep.subr.mxu0 %v98
    %v100 = vand.u32 %v78, 4294901760
    %101 = vmatpush1.msra.mxu0 %v100
    %102 = vmatprep.subr.mxu0 0.0
    %103 = vmatpush1.msra.mxu0 0.0
    %104 = vmatprep.subr.mxu0 0.0
    %105 = vmatpush1.msra.mxu0 0.0
    %106 = vmatprep.subr.mxu0 0.0
    %107 = vmatpush1.msra.mxu0 0.0
    %108 = vmatprep.subr.mxu0 0.0
    %109 = vmatpush1.msra.mxu0 0.0
    %110 = vmatprep.subr.mxu0 0.0
    %111 = vmatpush1.msra.mxu0 0.0
    %112 = vmatprep.subr.mxu0 0.0
    %113 = vmatpush1.msra.mxu0 0.0
    %114 = vmatprep.subr.mxu0 0.0
    %115 = vmatpush1.msra.mxu0 0.0
    %116 = vmatprep.subr.mxu0 0.0
    %117 = vmatpush1.msra.mxu0 0.0
    %118 = vmatprep.subr.mxu0 0.0
    %119 = vmatpush1.msra.mxu0 0.0
    %120 = vmatprep.subr.mxu0 0.0
    %121 = vmatpush1.msra.mxu0 0.0
    %122 = vmatprep.subr.mxu0 0.0
    %123 = vmatpush1.msra.mxu0 0.0
    %124 = vmatprep.subr.mxu0 0.0
    %125 = vmatpush1.msra.mxu0 0.0
    %126 = vmatprep.subr.mxu0 0.0
    %127 = vmatpush1.msra.mxu0 0.0
    %128 = vmatprep.subr.mxu0 0.0
    %129 = vmatpush1.msra.mxu0 0.0
    %130 = vmatprep.subr.mxu0 0.0
    %131 = vmatpush1.msra.mxu0 0.0
    %132 = vmatprep.subr.mxu0 0.0
    %133 = vmatpush1.msra.mxu0 0.0
    %134 = vmatprep.subr.mxu0 0.0
    %135 = vmatpush1.msra.mxu0 0.0
    %136 = vmatprep.subr.mxu0 0.0
    %137 = vmatpush1.msra.mxu0 0.0
    %138 = vmatprep.subr.mxu0 0.0
    %139 = vmatpush1.msra.mxu0 0.0
    %140 = vmatprep.subr.mxu0 0.0
    %141 = vmatpush1.msra.mxu0 0.0
    %142 = vmatprep.subr.mxu0 0.0
    %143 = vmatpush1.msra.mxu0 0.0
    %144 = vmatprep.subr.mxu0 0.0
    %145 = vmatpush1.msra.mxu0 0.0
    %146 = vmatprep.subr.mxu0 0.0
    %147 = vmatpush1.msra.mxu0 0.0
    %148 = vmatprep.subr.mxu0 0.0
    %149 = vmatpush1.msra.mxu0 0.0
    %150 = vmatprep.subr.mxu0 0.0
    %151 = vmatpush1.msra.mxu0 0.0
    %152 = vmatprep.subr.mxu0 0.0
    %153 = vmatpush1.msra.mxu0 0.0
    %154 = vmatprep.subr.mxu0 0.0
    %155 = vmatpush1.msra.mxu0 0.0
    %156 = vmatprep.subr.mxu0 0.0
    %157 = vmatpush1.msra.mxu0 0.0
    %158 = vmatprep.mubr.f32.mxu0 0.0
    %v159 = vand.u32 %v81, 4294901760
    %v160 = vsub.f32 %v81, %v159
    %v161 = vand.u32 %v160, 4294901760
    %v162 = vsub.f32 %v160, %v161
    %v163 = vand.u32 %v162, 4294901760
    %164 = vmatmul.mubr.f32.gmra.mrb[0].mxu0 %v163
    %v165 = vpop.f32.mrb[0].mxu0
    %v166 = vadd.f32 0.0, %v165
    %v167 = vpop.f32.mrb[0].mxu0
    %v168 = vadd.f32 0.0, %v167
    %169 = vmatprep.mubr.f32.mxu0 0.0
    %v170 = vand.u32 %v84, 4294901760
    %v171 = vsub.f32 %v84, %v170
    %v172 = vand.u32 %v171, 4294901760
    %v173 = vsub.f32 %v171, %v172
    %v174 = vand.u32 %v173, 4294901760
    %175 = vmatmul.mubr.f32.gmra.mrb[0].mxu0 %v174
    %v176 = vpop.f32.mrb[0].mxu0
    %v177 = vadd.f32 0.0, %v176
    %v178 = vpop.f32.mrb[0].mxu0
    %v179 = vadd.f32 0.0, %v178
    %180 = vdwg.mxu0
    %v181 = vand.u32 %v73, 4294901760
    %v182 = vsub.f32 %v73, %v181
    %v183 = vand.u32 %v182, 4294901760
    %v184 = vsub.f32 %v182, %v183
    %v185 = vand.u32 %v184, 4294901760
    %186 = vmatprep.subr.mxu0 %v185
    %v187 = vand.u32 %v72, 4294901760
    %v188 = vsub.f32 %v72, %v187
    %v189 = vand.u32 %v188, 4294901760
    %v190 = vsub.f32 %v188, %v189
    %v191 = vand.u32 %v190, 4294901760
    %192 = vmatpush1.msra.mxu0 %v191
    %v193 = vand.u32 %v75, 4294901760
    %v194 = vsub.f32 %v75, %v193
    %v195 = vand.u32 %v194, 4294901760
    %v196 = vsub.f32 %v194, %v195
    %v197 = vand.u32 %v196, 4294901760
    %198 = vmatprep.subr.mxu0 %v197
    %v199 = vand.u32 %v74, 4294901760
    %v200 = vsub.f32 %v74, %v199
    %v201 = vand.u32 %v200, 4294901760
    %v202 = vsub.f32 %v200, %v201
    %v203 = vand.u32 %v202, 4294901760
    %204 = vmatpush1.msra.mxu0 %v203
    %v205 = vand.u32 %v77, 4294901760
    %v206 = vsub.f32 %v77, %v205
    %v207 = vand.u32 %v206, 4294901760
    %v208 = vsub.f32 %v206, %v207
    %v209 = vand.u32 %v208, 4294901760
    %210 = vmatprep.subr.mxu0 %v209
    %v211 = vand.u32 %v76, 4294901760
    %v212 = vsub.f32 %v76, %v211
    %v213 = vand.u32 %v212, 4294901760
    %v214 = vsub.f32 %v212, %v213
    %v215 = vand.u32 %v214, 4294901760
    %216 = vmatpush1.msra.mxu0 %v215
    %v217 = vand.u32 %v79, 4294901760
    %v218 = vsub.f32 %v79, %v217
    %v219 = vand.u32 %v218, 4294901760
    %v220 = vsub.f32 %v218, %v219
    %v221 = vand.u32 %v220, 4294901760
    %222 = vmatprep.subr.mxu0 %v221
    %v223 = vand.u32 %v78, 4294901760
    %v224 = vsub.f32 %v78, %v223
    %v225 = vand.u32 %v224, 4294901760
    %v226 = vsub.f32 %v224, %v225
    %v227 = vand.u32 %v226, 4294901760
    %228 = vmatpush1.msra.mxu0 %v227
    %229 = vmatprep.subr.mxu0 0.0
    %230 = vmatpush1.msra.mxu0 0.0
    %231 = vmatprep.subr.mxu0 0.0
    %232 = vmatpush1.msra.mxu0 0.0
    %233 = vmatprep.subr.mxu0 0.0
    %234 = vmatpush1.msra.mxu0 0.0
    %235 = vmatprep.subr.mxu0 0.0
    %236 = vmatpush1.msra.mxu0 0.0
    %237 = vmatprep.subr.mxu0 0.0
    %238 = vmatpush1.msra.mxu0 0.0
    %239 = vmatprep.subr.mxu0 0.0
    %240 = vmatpush1.msra.mxu0 0.0
    %241 = vmatprep.subr.mxu0 0.0
    %242 = vmatpush1.msra.mxu0 0.0
    %243 = vmatprep.subr.mxu0 0.0
    %244 = vmatpush1.msra.mxu0 0.0
    %245 = vmatprep.subr.mxu0 0.0
    %246 = vmatpush1.msra.mxu0 0.0
    %247 = vmatprep.subr.mxu0 0.0
    %248 = vmatpush1.msra.mxu0 0.0
    %249 = vmatprep.subr.mxu0 0.0
    %250 = vmatpush1.msra.mxu0 0.0
    %251 = vmatprep.subr.mxu0 0.0
    %252 = vmatpush1.msra.mxu0 0.0
    %253 = vmatprep.subr.mxu0 0.0
    %254 = vmatpush1.msra.mxu0 0.0
    %255 = vmatprep.subr.mxu0 0.0
    %256 = vmatpush1.msra.mxu0 0.0
    %257 = vmatprep.subr.mxu0 0.0
    %258 = vmatpush1.msra.mxu0 0.0
    %259 = vmatprep.subr.mxu0 0.0
    %260 = vmatpush1.msra.mxu0 0.0
    %261 = vmatprep.subr.mxu0 0.0
    %262 = vmatpush1.msra.mxu0 0.0
    %263 = vmatprep.subr.mxu0 0.0
    %264 = vmatpush1.msra.mxu0 0.0
    %265 = vmatprep.subr.mxu0 0.0
    %266 = vmatpush1.msra.mxu0 0.0
    %267 = vmatprep.subr.mxu0 0.0
    %268 = vmatpush1.msra.mxu0 0.0
    %269 = vmatprep.subr.mxu0 0.0
    %270 = vmatpush1.msra.mxu0 0.0
    %271 = vmatprep.subr.mxu0 0.0
    %272 = vmatpush1.msra.mxu0 0.0
    %273 = vmatprep.subr.mxu0 0.0
    %274 = vmatpush1.msra.mxu0 0.0
    %275 = vmatprep.subr.mxu0 0.0
    %276 = vmatpush1.msra.mxu0 0.0
    %277 = vmatprep.subr.mxu0 0.0
    %278 = vmatpush1.msra.mxu0 0.0
    %279 = vmatprep.subr.mxu0 0.0
    %280 = vmatpush1.msra.mxu0 0.0
    %281 = vmatprep.subr.mxu0 0.0
    %282 = vmatpush1.msra.mxu0 0.0
    %283 = vmatprep.subr.mxu0 0.0
    %284 = vmatpush1.msra.mxu0 0.0
    %285 = vmatprep.mubr.f32.mxu0 0.0
    %v286 = vand.u32 %v81, 4294901760
    %287 = vmatmul.mubr.f32.gmra.mrb[0].mxu0 %v286
    %v288 = vpop.f32.mrb[0].mxu0
    %v289 = vadd.f32 %v166, %v288
    %v290 = vpop.f32.mrb[0].mxu0
    %v291 = vadd.f32 %v168, %v290
    %292 = vmatprep.mubr.f32.mxu0 0.0
    %v293 = vand.u32 %v84, 4294901760
    %294 = vmatmul.mubr.f32.gmra.mrb[0].mxu0 %v293
    %v295 = vpop.f32.mrb[0].mxu0
    %v296 = vadd.f32 %v177, %v295
    %v297 = vpop.f32.mrb[0].mxu0
    %v298 = vadd.f32 %v179, %v297
    %299 = vdwg.mxu0
    %v300 = vand.u32 %v73, 4294901760
    %v301 = vsub.f32 %v73, %v300
    %302 = vmatprep.subr.mxu0 %v301
    %v303 = vand.u32 %v72, 4294901760
    %v304 = vsub.f32 %v72, %v303
    %305 = vmatpush1.msra.mxu0 %v304
    %v306 = vand.u32 %v75, 4294901760
    %v307 = vsub.f32 %v75, %v306
    %308 = vmatprep.subr.mxu0 %v307
    %v309 = vand.u32 %v74, 4294901760
    %v310 = vsub.f32 %v74, %v309
    %311 = vmatpush1.msra.mxu0 %v310
    %v312 = vand.u32 %v77, 4294901760
    %v313 = vsub.f32 %v77, %v312
    %314 = vmatprep.subr.mxu0 %v313
    %v315 = vand.u32 %v76, 4294901760
    %v316 = vsub.f32 %v76, %v315
    %317 = vmatpush1.msra.mxu0 %v316
    %v318 = vand.u32 %v79, 4294901760
    %v319 = vsub.f32 %v79, %v318
    %320 = vmatprep.subr.mxu0 %v319
    %v321 = vand.u32 %v78, 4294901760
    %v322 = vsub.f32 %v78, %v321
    %323 = vmatpush1.msra.mxu0 %v322
    %324 = vmatprep.subr.mxu0 0.0
    %325 = vmatpush1.msra.mxu0 0.0
    %326 = vmatprep.subr.mxu0 0.0
    %327 = vmatpush1.msra.mxu0 0.0
    %328 = vmatprep.subr.mxu0 0.0
    %329 = vmatpush1.msra.mxu0 0.0
    %330 = vmatprep.subr.mxu0 0.0
    %331 = vmatpush1.msra.mxu0 0.0
    %332 = vmatprep.subr.mxu0 0.0
    %333 = vmatpush1.msra.mxu0 0.0
    %334 = vmatprep.subr.mxu0 0.0
    %335 = vmatpush1.msra.mxu0 0.0
    %336 = vmatprep.subr.mxu0 0.0
    %337 = vmatpush1.msra.mxu0 0.0
    %338 = vmatprep.subr.mxu0 0.0
    %339 = vmatpush1.msra.mxu0 0.0
    %340 = vmatprep.subr.mxu0 0.0
    %341 = vmatpush1.msra.mxu0 0.0
    %342 = vmatprep.subr.mxu0 0.0
    %343 = vmatpush1.msra.mxu0 0.0
    %344 = vmatprep.subr.mxu0 0.0
    %345 = vmatpush1.msra.mxu0 0.0
    %346 = vmatprep.subr.mxu0 0.0
    %347 = vmatpush1.msra.mxu0 0.0
    %348 = vmatprep.subr.mxu0 0.0
    %349 = vmatpush1.msra.mxu0 0.0
    %350 = vmatprep.subr.mxu0 0.0
    %351 = vmatpush1.msra.mxu0 0.0
    %352 = vmatprep.subr.mxu0 0.0
    %353 = vmatpush1.msra.mxu0 0.0
    %354 = vmatprep.subr.mxu0 0.0
    %355 = vmatpush1.msra.mxu0 0.0
    %356 = vmatprep.subr.mxu0 0.0
    %357 = vmatpush1.msra.mxu0 0.0
    %358 = vmatprep.subr.mxu0 0.0
    %359 = vmatpush1.msra.mxu0 0.0
    %360 = vmatprep.subr.mxu0 0.0
    %361 = vmatpush1.msra.mxu0 0.0
    %362 = vmatprep.subr.mxu0 0.0
    %363 = vmatpush1.msra.mxu0 0.0
    %364 = vmatprep.subr.mxu0 0.0
    %365 = vmatpush1.msra.mxu0 0.0
    %366 = vmatprep.subr.mxu0 0.0
    %367 = vmatpush1.msra.mxu0 0.0
    %368 = vmatprep.subr.mxu0 0.0
    %369 = vmatpush1.msra.mxu0 0.0
    %370 = vmatprep.subr.mxu0 0.0
    %371 = vmatpush1.msra.mxu0 0.0
    %372 = vmatprep.subr.mxu0 0.0
    %373 = vmatpush1.msra.mxu0 0.0
    %374 = vmatprep.subr.mxu0 0.0
    %375 = vmatpush1.msra.mxu0 0.0
    %376 = vmatprep.subr.mxu0 0.0
    %377 = vmatpush1.msra.mxu0 0.0
    %378 = vmatprep.subr.mxu0 0.0
    %379 = vmatpush1.msra.mxu0 0.0
    %380 = vmatprep.mubr.f32.mxu0 0.0
    %v381 = vand.u32 %v81, 4294901760
    %v382 = vsub.f32 %v81, %v381
    %383 = vmatmul.mubr.f32.gmra.mrb[0].mxu0 %v382
    %v384 = vpop.f32.mrb[0].mxu0
    %v385 = vadd.f32 %v289, %v384
    %v386 = vpop.f32.mrb[0].mxu0
    %v387 = vadd.f32 %v291, %v386
    %388 = vmatprep.mubr.f32.mxu0 0.0
    %v389 = vand.u32 %v84, 4294901760
    %v390 = vsub.f32 %v84, %v389
    %391 = vmatmul.mubr.f32.gmra.mrb[0].mxu0 %v390
    %v392 = vpop.f32.mrb[0].mxu0
    %v393 = vadd.f32 %v296, %v392
    %v394 = vpop.f32.mrb[0].mxu0
    %v395 = vadd.f32 %v298, %v394
    %396 = vdwg.mxu0
    %v397 = vand.u32 %v73, 4294901760
    %398 = vmatprep.subr.mxu0 %v397
    %v399 = vand.u32 %v72, 4294901760
    %400 = vmatpush1.msra.mxu0 %v399
    %v401 = vand.u32 %v75, 4294901760
    %402 = vmatprep.subr.mxu0 %v401
    %v403 = vand.u32 %v74, 4294901760
    %404 = vmatpush1.msra.mxu0 %v403
    %v405 = vand.u32 %v77, 4294901760
    %406 = vmatprep.subr.mxu0 %v405
    %v407 = vand.u32 %v76, 4294901760
    %408 = vmatpush1.msra.mxu0 %v407
    %v409 = vand.u32 %v79, 4294901760
    %410 = vmatprep.subr.mxu0 %v409
    %v411 = vand.u32 %v78, 4294901760
    %412 = vmatpush1.msra.mxu0 %v411
    %413 = vmatprep.subr.mxu0 0.0
    %414 = vmatpush1.msra.mxu0 0.0
    %415 = vmatprep.subr.mxu0 0.0
    %416 = vmatpush1.msra.mxu0 0.0
    %417 = vmatprep.subr.mxu0 0.0
    %418 = vmatpush1.msra.mxu0 0.0
    %419 = vmatprep.subr.mxu0 0.0
    %420 = vmatpush1.msra.mxu0 0.0
    %421 = vmatprep.subr.mxu0 0.0
    %422 = vmatpush1.msra.mxu0 0.0
    %423 = vmatprep.subr.mxu0 0.0
    %424 = vmatpush1.msra.mxu0 0.0
    %425 = vmatprep.subr.mxu0 0.0
    %426 = vmatpush1.msra.mxu0 0.0
    %427 = vmatprep.subr.mxu0 0.0
    %428 = vmatpush1.msra.mxu0 0.0
    %429 = vmatprep.subr.mxu0 0.0
    %430 = vmatpush1.msra.mxu0 0.0
    %431 = vmatprep.subr.mxu0 0.0
    %432 = vmatpush1.msra.mxu0 0.0
    %433 = vmatprep.subr.mxu0 0.0
    %434 = vmatpush1.msra.mxu0 0.0
    %435 = vmatprep.subr.mxu0 0.0
    %436 = vmatpush1.msra.mxu0 0.0
    %437 = vmatprep.subr.mxu0 0.0
    %438 = vmatpush1.msra.mxu0 0.0
    %439 = vmatprep.subr.mxu0 0.0
    %440 = vmatpush1.msra.mxu0 0.0
    %441 = vmatprep.subr.mxu0 0.0
    %442 = vmatpush1.msra.mxu0 0.0
    %443 = vmatprep.subr.mxu0 0.0
    %444 = vmatpush1.msra.mxu0 0.0
    %445 = vmatprep.subr.mxu0 0.0
    %446 = vmatpush1.msra.mxu0 0.0
    %447 = vmatprep.subr.mxu0 0.0
    %448 = vmatpush1.msra.mxu0 0.0
    %449 = vmatprep.subr.mxu0 0.0
    %450 = vmatpush1.msra.mxu0 0.0
    %451 = vmatprep.subr.mxu0 0.0
    %452 = vmatpush1.msra.mxu0 0.0
    %453 = vmatprep.subr.mxu0 0.0
    %454 = vmatpush1.msra.mxu0 0.0
    %455 = vmatprep.subr.mxu0 0.0
    %456 = vmatpush1.msra.mxu0 0.0
    %457 = vmatprep.subr.mxu0 0.0
    %458 = vmatpush1.msra.mxu0 0.0
    %459 = vmatprep.subr.mxu0 0.0
    %460 = vmatpush1.msra.mxu0 0.0
    %461 = vmatprep.subr.mxu0 0.0
    %462 = vmatpush1.msra.mxu0 0.0
    %463 = vmatprep.subr.mxu0 0.0
    %464 = vmatpush1.msra.mxu0 0.0
    %465 = vmatprep.subr.mxu0 0.0
    %466 = vmatpush1.msra.mxu0 0.0
    %467 = vmatprep.subr.mxu0 0.0
    %468 = vmatpush1.msra.mxu0 0.0
    %469 = vmatprep.mubr.f32.mxu0 0.0
    %v470 = vand.u32 %v81, 4294901760
    %v471 = vsub.f32 %v81, %v470
    %v472 = vand.u32 %v471, 4294901760
    %473 = vmatmul.mubr.f32.gmra.mrb[0].mxu0 %v472
    %v474 = vpop.f32.mrb[0].mxu0
    %v475 = vadd.f32 %v385, %v474
    %v476 = vpop.f32.mrb[0].mxu0
    %v477 = vadd.f32 %v387, %v476
    %478 = vmatprep.mubr.f32.mxu0 0.0
    %v479 = vand.u32 %v84, 4294901760
    %v480 = vsub.f32 %v84, %v479
    %v481 = vand.u32 %v480, 4294901760
    %482 = vmatmul.mubr.f32.gmra.mrb[0].mxu0 %v481
    %v483 = vpop.f32.mrb[0].mxu0
    %v484 = vadd.f32 %v393, %v483
    %v485 = vpop.f32.mrb[0].mxu0
    %v486 = vadd.f32 %v395, %v485
    %487 = vdwg.mxu0
    %v488 = vand.u32 %v73, 4294901760
    %v489 = vsub.f32 %v73, %v488
    %v490 = vand.u32 %v489, 4294901760
    %491 = vmatprep.subr.mxu0 %v490
    %v492 = vand.u32 %v72, 4294901760
    %v493 = vsub.f32 %v72, %v492
    %v494 = vand.u32 %v493, 4294901760
    %495 = vmatpush1.msra.mxu0 %v494
    %v496 = vand.u32 %v75, 4294901760
    %v497 = vsub.f32 %v75, %v496
    %v498 = vand.u32 %v497, 4294901760
    %499 = vmatprep.subr.mxu0 %v498
    %v500 = vand.u32 %v74, 4294901760
    %v501 = vsub.f32 %v74, %v500
    %v502 = vand.u32 %v501, 4294901760
    %503 = vmatpush1.msra.mxu0 %v502
    %v504 = vand.u32 %v77, 4294901760
    %v505 = vsub.f32 %v77, %v504
    %v506 = vand.u32 %v505, 4294901760
    %507 = vmatprep.subr.mxu0 %v506
    %v508 = vand.u32 %v76, 4294901760
    %v509 = vsub.f32 %v76, %v508
    %v510 = vand.u32 %v509, 4294901760
    %511 = vmatpush1.msra.mxu0 %v510
    %v512 = vand.u32 %v79, 4294901760
    %v513 = vsub.f32 %v79, %v512
    %v514 = vand.u32 %v513, 4294901760
    %515 = vmatprep.subr.mxu0 %v514
    %v516 = vand.u32 %v78, 4294901760
    %v517 = vsub.f32 %v78, %v516
    %v518 = vand.u32 %v517, 4294901760
    %519 = vmatpush1.msra.mxu0 %v518
    %520 = vmatprep.subr.mxu0 0.0
    %521 = vmatpush1.msra.mxu0 0.0
    %522 = vmatprep.subr.mxu0 0.0
    %523 = vmatpush1.msra.mxu0 0.0
    %524 = vmatprep.subr.mxu0 0.0
    %525 = vmatpush1.msra.mxu0 0.0
    %526 = vmatprep.subr.mxu0 0.0
    %527 = vmatpush1.msra.mxu0 0.0
    %528 = vmatprep.subr.mxu0 0.0
    %529 = vmatpush1.msra.mxu0 0.0
    %530 = vmatprep.subr.mxu0 0.0
    %531 = vmatpush1.msra.mxu0 0.0
    %532 = vmatprep.subr.mxu0 0.0
    %533 = vmatpush1.msra.mxu0 0.0
    %534 = vmatprep.subr.mxu0 0.0
    %535 = vmatpush1.msra.mxu0 0.0
    %536 = vmatprep.subr.mxu0 0.0
    %537 = vmatpush1.msra.mxu0 0.0
    %538 = vmatprep.subr.mxu0 0.0
    %539 = vmatpush1.msra.mxu0 0.0
    %540 = vmatprep.subr.mxu0 0.0
    %541 = vmatpush1.msra.mxu0 0.0
    %542 = vmatprep.subr.mxu0 0.0
    %543 = vmatpush1.msra.mxu0 0.0
    %544 = vmatprep.subr.mxu0 0.0
    %545 = vmatpush1.msra.mxu0 0.0
    %546 = vmatprep.subr.mxu0 0.0
    %547 = vmatpush1.msra.mxu0 0.0
    %548 = vmatprep.subr.mxu0 0.0
    %549 = vmatpush1.msra.mxu0 0.0
    %550 = vmatprep.subr.mxu0 0.0
    %551 = vmatpush1.msra.mxu0 0.0
    %552 = vmatprep.subr.mxu0 0.0
    %553 = vmatpush1.msra.mxu0 0.0
    %554 = vmatprep.subr.mxu0 0.0
    %555 = vmatpush1.msra.mxu0 0.0
    %556 = vmatprep.subr.mxu0 0.0
    %557 = vmatpush1.msra.mxu0 0.0
    %558 = vmatprep.subr.mxu0 0.0
    %559 = vmatpush1.msra.mxu0 0.0
    %560 = vmatprep.subr.mxu0 0.0
    %561 = vmatpush1.msra.mxu0 0.0
    %562 = vmatprep.subr.mxu0 0.0
    %563 = vmatpush1.msra.mxu0 0.0
    %564 = vmatprep.subr.mxu0 0.0
    %565 = vmatpush1.msra.mxu0 0.0
    %566 = vmatprep.subr.mxu0 0.0
    %567 = vmatpush1.msra.mxu0 0.0
    %568 = vmatprep.subr.mxu0 0.0
    %569 = vmatpush1.msra.mxu0 0.0
    %570 = vmatprep.subr.mxu0 0.0
    %571 = vmatpush1.msra.mxu0 0.0
    %572 = vmatprep.subr.mxu0 0.0
    %573 = vmatpush1.msra.mxu0 0.0
    %574 = vmatprep.subr.mxu0 0.0
    %575 = vmatpush1.msra.mxu0 0.0
    %576 = vmatprep.mubr.f32.mxu0 0.0
    %v577 = vand.u32 %v81, 4294901760
    %578 = vmatmul.mubr.f32.gmra.mrb[0].mxu0 %v577
    %v579 = vpop.f32.mrb[0].mxu0
    %v580 = vadd.f32 %v475, %v579
    %v581 = vpop.f32.mrb[0].mxu0
    %v582 = vadd.f32 %v477, %v581
    %583 = vmatprep.mubr.f32.mxu0 0.0
    %v584 = vand.u32 %v84, 4294901760
    %585 = vmatmul.mubr.f32.gmra.mrb[0].mxu0 %v584
    %v586 = vpop.f32.mrb[0].mxu0
    %v587 = vadd.f32 %v484, %v586
    %v588 = vpop.f32.mrb[0].mxu0
    %v589 = vadd.f32 %v486, %v588
    %590 = vdwg.mxu0
    %v591 = vand.u32 %v73, 4294901760
    %592 = vmatprep.subr.mxu0 %v591
    %v593 = vand.u32 %v72, 4294901760
    %594 = vmatpush1.msra.mxu0 %v593
    %v595 = vand.u32 %v75, 4294901760
    %596 = vmatprep.subr.mxu0 %v595
    %v597 = vand.u32 %v74, 4294901760
    %598 = vmatpush1.msra.mxu0 %v597
    %v599 = vand.u32 %v77, 4294901760
    %600 = vmatprep.subr.mxu0 %v599
    %v601 = vand.u32 %v76, 4294901760
    %602 = vmatpush1.msra.mxu0 %v601
    %v603 = vand.u32 %v79, 4294901760
    %604 = vmatprep.subr.mxu0 %v603
    %v605 = vand.u32 %v78, 4294901760
    %606 = vmatpush1.msra.mxu0 %v605
    %607 = vmatprep.subr.mxu0 0.0
    %608 = vmatpush1.msra.mxu0 0.0
    %609 = vmatprep.subr.mxu0 0.0
    %610 = vmatpush1.msra.mxu0 0.0
    %611 = vmatprep.subr.mxu0 0.0
    %612 = vmatpush1.msra.mxu0 0.0
    %613 = vmatprep.subr.mxu0 0.0
    %614 = vmatpush1.msra.mxu0 0.0
    %615 = vmatprep.subr.mxu0 0.0
    %616 = vmatpush1.msra.mxu0 0.0
    %617 = vmatprep.subr.mxu0 0.0
    %618 = vmatpush1.msra.mxu0 0.0
    %619 = vmatprep.subr.mxu0 0.0
    %620 = vmatpush1.msra.mxu0 0.0
    %621 = vmatprep.subr.mxu0 0.0
    %622 = vmatpush1.msra.mxu0 0.0
    %623 = vmatprep.subr.mxu0 0.0
    %624 = vmatpush1.msra.mxu0 0.0
    %625 = vmatprep.subr.mxu0 0.0
    %626 = vmatpush1.msra.mxu0 0.0
    %627 = vmatprep.subr.mxu0 0.0
    %628 = vmatpush1.msra.mxu0 0.0
    %629 = vmatprep.subr.mxu0 0.0
    %630 = vmatpush1.msra.mxu0 0.0
    %631 = vmatprep.subr.mxu0 0.0
    %632 = vmatpush1.msra.mxu0 0.0
    %633 = vmatprep.subr.mxu0 0.0
    %634 = vmatpush1.msra.mxu0 0.0
    %635 = vmatprep.subr.mxu0 0.0
    %636 = vmatpush1.msra.mxu0 0.0
    %637 = vmatprep.subr.mxu0 0.0
    %638 = vmatpush1.msra.mxu0 0.0
    %639 = vmatprep.subr.mxu0 0.0
    %640 = vmatpush1.msra.mxu0 0.0
    %641 = vmatprep.subr.mxu0 0.0
    %642 = vmatpush1.msra.mxu0 0.0
    %643 = vmatprep.subr.mxu0 0.0
    %644 = vmatpush1.msra.mxu0 0.0
    %645 = vmatprep.subr.mxu0 0.0
    %646 = vmatpush1.msra.mxu0 0.0
    %647 = vmatprep.subr.mxu0 0.0
    %648 = vmatpush1.msra.mxu0 0.0
    %649 = vmatprep.subr.mxu0 0.0
    %650 = vmatpush1.msra.mxu0 0.0
    %651 = vmatprep.subr.mxu0 0.0
    %652 = vmatpush1.msra.mxu0 0.0
    %653 = vmatprep.subr.mxu0 0.0
    %654 = vmatpush1.msra.mxu0 0.0
    %655 = vmatprep.subr.mxu0 0.0
    %656 = vmatpush1.msra.mxu0 0.0
    %657 = vmatprep.subr.mxu0 0.0
    %658 = vmatpush1.msra.mxu0 0.0
    %659 = vmatprep.subr.mxu0 0.0
    %660 = vmatpush1.msra.mxu0 0.0
    %661 = vmatprep.subr.mxu0 0.0
    %662 = vmatpush1.msra.mxu0 0.0
    %663 = vmatprep.mubr.f32.mxu0 0.0
    %v664 = vand.u32 %v81, 4294901760
    %665 = vmatmul.mubr.f32.gmra.mrb[0].mxu0 %v664
    %v666 = vpop.f32.mrb[0].mxu0
    %v667 = vadd.f32 %v580, %v666
    %v668 = vpop.f32.mrb[0].mxu0
    %v669 = vadd.f32 %v582, %v668
    %670 = vmatprep.mubr.f32.mxu0 0.0
    %v671 = vand.u32 %v84, 4294901760
    %672 = vmatmul.mubr.f32.gmra.mrb[0].mxu0 %v671
    %v673 = vpop.f32.mrb[0].mxu0
    %v674 = vadd.f32 %v587, %v673
    %v675 = vpop.f32.mrb[0].mxu0
    %v676 = vadd.f32 %v589, %v675
    %677 = vdwg.mxu0
    %680 = vrot.lane.b32.xlu0 %v667, 112
    %v681 = vpop.permute.xlu0 %680
    %682 = vrot.lane.b32.xlu0 %v674, 112
    %v683 = vpop.permute.xlu0 %682
    %686 = vrot.lane.b32.xlu0 %v667, 96
    %v687 = vpop.permute.xlu0 %686
    %688 = vrot.lane.b32.xlu0 %v674, 96
    %v689 = vpop.permute.xlu0 %688
    %692 = vrot.lane.b32.xlu0 %v667, 80
    %v693 = vpop.permute.xlu0 %692
    %694 = vrot.lane.b32.xlu0 %v674, 80
    %v695 = vpop.permute.xlu0 %694
    %v698 = vcombine.low %v667, %v687
    %v699 = vcombine.high %v667, %v687
    %v701 = vunpack.c.l.s4 1983009808
    %v702 = vunpack.c.0.s8 %v701
    %v703 = vlaneseq
    %v704 = vshrl.u32 %v703, 7
    %v705 = vsub.s32 %v702, %v704
    %v706 = vrot.slane %v698, %v705
    %v708 = vunpack.c.l.s4 1983009808
    %v709 = vunpack.c.0.s8 %v708
    %v710 = vlaneseq
    %v711 = vshrl.u32 %v710, 7
    %v712 = vsub.s32 %v709, %v711
    %v713 = vrot.slane %v699, %v712
    %v714 = vcombine.low %v681, %v693
    %v715 = vcombine.high %v681, %v693
    %v717 = vunpack.c.l.s4 1983009808
    %v718 = vunpack.c.0.s8 %v717
    %v719 = vlaneseq
    %v720 = vshrl.u32 %v719, 7
    %v721 = vsub.s32 %v718, %v720
    %v722 = vrot.slane %v714, %v721
    %v724 = vunpack.c.l.s4 1983009808
    %v725 = vunpack.c.0.s8 %v724
    %v726 = vlaneseq
    %v727 = vshrl.u32 %v726, 7
    %v728 = vsub.s32 %v725, %v727
    %v729 = vrot.slane %v715, %v728
    %v730 = vcombine.low %v706, %v722
    %v731 = vcombine.high %v706, %v722
    %v733 = vunpack.c.l.s4 1934713408
    %v734 = vunpack.c.0.s8 %v733
    %v735 = vlaneseq
    %v736 = vshrl.u32 %v735, 7
    %v737 = vsub.s32 %v734, %v736
    %v738 = vrot.slane %v730, %v737
    %v740 = vunpack.c.l.s4 1934713408
    %v741 = vunpack.c.0.s8 %v740
    %v742 = vlaneseq
    %v743 = vshrl.u32 %v742, 7
    %v744 = vsub.s32 %v741, %v743
    %v745 = vrot.slane %v731, %v744
    %v746 = vcombine.low %v713, %v729
    %v747 = vcombine.high %v713, %v729
    %v749 = vunpack.c.l.s4 1934713408
    %v750 = vunpack.c.0.s8 %v749
    %v751 = vlaneseq
    %v752 = vshrl.u32 %v751, 7
    %v753 = vsub.s32 %v750, %v752
    %v754 = vrot.slane %v746, %v753
    %v756 = vunpack.c.l.s4 1934713408
    %v757 = vunpack.c.0.s8 %v756
    %v758 = vlaneseq
    %v759 = vshrl.u32 %v758, 7
    %v760 = vsub.s32 %v757, %v759
    %v761 = vrot.slane %v747, %v760
    %v762 = vcombine.high %v738, 0.0
    %v763 = vcombine.high %v745, 0.0
    %v764 = vcombine.high %v754, 0.0
    %v765 = vcombine.high %v761, 0.0
    %v766 = vcombine.low %v674, %v689
    %v767 = vcombine.high %v674, %v689
    %v769 = vunpack.c.l.s4 1983009808
    %v770 = vunpack.c.0.s8 %v769
    %v771 = vlaneseq
    %v772 = vshrl.u32 %v771, 7
    %v773 = vsub.s32 %v770, %v772
    %v774 = vrot.slane %v766, %v773
    %v776 = vunpack.c.l.s4 1983009808
    %v777 = vunpack.c.0.s8 %v776
    %v778 = vlaneseq
    %v779 = vshrl.u32 %v778, 7
    %v780 = vsub.s32 %v777, %v779
    %v781 = vrot.slane %v767, %v780
    %v782 = vcombine.low %v683, %v695
    %v783 = vcombine.high %v683, %v695
    %v785 = vunpack.c.l.s4 1983009808
    %v786 = vunpack.c.0.s8 %v785
    %v787 = vlaneseq
    %v788 = vshrl.u32 %v787, 7
    %v789 = vsub.s32 %v786, %v788
    %v790 = vrot.slane %v782, %v789
    %v792 = vunpack.c.l.s4 1983009808
    %v793 = vunpack.c.0.s8 %v792
    %v794 = vlaneseq
    %v795 = vshrl.u32 %v794, 7
    %v796 = vsub.s32 %v793, %v795
    %v797 = vrot.slane %v783, %v796
    %v798 = vcombine.low %v774, %v790
    %v799 = vcombine.high %v774, %v790
    %v801 = vunpack.c.l.s4 1934713408
    %v802 = vunpack.c.0.s8 %v801
    %v803 = vlaneseq
    %v804 = vshrl.u32 %v803, 7
    %v805 = vsub.s32 %v802, %v804
    %v806 = vrot.slane %v798, %v805
    %v808 = vunpack.c.l.s4 1934713408
    %v809 = vunpack.c.0.s8 %v808
    %v810 = vlaneseq
    %v811 = vshrl.u32 %v810, 7
    %v812 = vsub.s32 %v809, %v811
    %v813 = vrot.slane %v799, %v812
    %v814 = vcombine.low %v781, %v797
    %v815 = vcombine.high %v781, %v797
    %v817 = vunpack.c.l.s4 1934713408
    %v818 = vunpack.c.0.s8 %v817
    %v819 = vlaneseq
    %v820 = vshrl.u32 %v819, 7
    %v821 = vsub.s32 %v818, %v820
    %v822 = vrot.slane %v814, %v821
    %v824 = vunpack.c.l.s4 1934713408
    %v825 = vunpack.c.0.s8 %v824
    %v826 = vlaneseq
    %v827 = vshrl.u32 %v826, 7
    %v828 = vsub.s32 %v825, %v827
    %v829 = vrot.slane %v815, %v828
    %v830 = vcombine.high %v806, 0.0
    %v831 = vcombine.high %v813, 0.0
    %v832 = vcombine.high %v822, 0.0
    %v833 = vcombine.high %v829, 0.0
    %v834 = vcombine.low %v738, %v745
    %v836 = vunpack.c.l.s4 1983009808
    %v837 = vunpack.c.0.s8 %v836
    %v838 = vlaneseq
    %v839 = vshrl.u32 %v838, 7
    %v840 = vsub.s32 %v837, %v839
    %v841 = vrot.slane %v834, %v840
    %v842 = vcombine.low %v762, %v763
    %v844 = vunpack.c.l.s4 1983009808
    %v845 = vunpack.c.0.s8 %v844
    %v846 = vlaneseq
    %v847 = vshrl.u32 %v846, 7
    %v848 = vsub.s32 %v845, %v847
    %v849 = vrot.slane %v842, %v848
    %v850 = vcombine.low %v754, %v761
    %v852 = vunpack.c.l.s4 1983009808
    %v853 = vunpack.c.0.s8 %v852
    %v854 = vlaneseq
    %v855 = vshrl.u32 %v854, 7
    %v856 = vsub.s32 %v853, %v855
    %v857 = vrot.slane %v850, %v856
    %v858 = vcombine.low %v764, %v765
    %v860 = vunpack.c.l.s4 1983009808
    %v861 = vunpack.c.0.s8 %v860
    %v862 = vlaneseq
    %v863 = vshrl.u32 %v862, 7
    %v864 = vsub.s32 %v861, %v863
    %v865 = vrot.slane %v858, %v864
    %v866 = vcombine.low %v841, %v849
    %v867 = vcombine.high %v841, %v849
    %v869 = vunpack.c.l.s4 1934713408
    %v870 = vunpack.c.0.s8 %v869
    %v871 = vlaneseq
    %v872 = vshrl.u32 %v871, 7
    %v873 = vsub.s32 %v870, %v872
    %v874 = vrot.slane %v866, %v873
    %v876 = vunpack.c.l.s4 1934713408
    %v877 = vunpack.c.0.s8 %v876
    %v878 = vlaneseq
    %v879 = vshrl.u32 %v878, 7
    %v880 = vsub.s32 %v877, %v879
    %v881 = vrot.slane %v867, %v880
    %v882 = vcombine.low %v857, %v865
    %v883 = vcombine.high %v857, %v865
    %v885 = vunpack.c.l.s4 1934713408
    %v886 = vunpack.c.0.s8 %v885
    %v887 = vlaneseq
    %v888 = vshrl.u32 %v887, 7
    %v889 = vsub.s32 %v886, %v888
    %v890 = vrot.slane %v882, %v889
    %v892 = vunpack.c.l.s4 1934713408
    %v893 = vunpack.c.0.s8 %v892
    %v894 = vlaneseq
    %v895 = vshrl.u32 %v894, 7
    %v896 = vsub.s32 %v893, %v895
    %v897 = vrot.slane %v883, %v896
    %v898 = vcombine.low %v874, %v890
    %v899 = vcombine.high %v874, %v890
    %v900 = vcombine.low %v881, %v897
    %v901 = vcombine.high %v881, %v897
    %v902 = vcombine.low %v806, %v813
    %v904 = vunpack.c.l.s4 1983009808
    %v905 = vunpack.c.0.s8 %v904
    %v906 = vlaneseq
    %v907 = vshrl.u32 %v906, 7
    %v908 = vsub.s32 %v905, %v907
    %v909 = vrot.slane %v902, %v908
    %v910 = vcombine.low %v830, %v831
    %v912 = vunpack.c.l.s4 1983009808
    %v913 = vunpack.c.0.s8 %v912
    %v914 = vlaneseq
    %v915 = vshrl.u32 %v914, 7
    %v916 = vsub.s32 %v913, %v915
    %v917 = vrot.slane %v910, %v916
    %v918 = vcombine.low %v822, %v829
    %v920 = vunpack.c.l.s4 1983009808
    %v921 = vunpack.c.0.s8 %v920
    %v922 = vlaneseq
    %v923 = vshrl.u32 %v922, 7
    %v924 = vsub.s32 %v921, %v923
    %v925 = vrot.slane %v918, %v924
    %v926 = vcombine.low %v832, %v833
    %v928 = vunpack.c.l.s4 1983009808
    %v929 = vunpack.c.0.s8 %v928
    %v930 = vlaneseq
    %v931 = vshrl.u32 %v930, 7
    %v932 = vsub.s32 %v929, %v931
    %v933 = vrot.slane %v926, %v932
    %v934 = vcombine.low %v909, %v917
    %v935 = vcombine.high %v909, %v917
    %v937 = vunpack.c.l.s4 1934713408
    %v938 = vunpack.c.0.s8 %v937
    %v939 = vlaneseq
    %v940 = vshrl.u32 %v939, 7
    %v941 = vsub.s32 %v938, %v940
    %v942 = vrot.slane %v934, %v941
    %v944 = vunpack.c.l.s4 1934713408
    %v945 = vunpack.c.0.s8 %v944
    %v946 = vlaneseq
    %v947 = vshrl.u32 %v946, 7
    %v948 = vsub.s32 %v945, %v947
    %v949 = vrot.slane %v935, %v948
    %v950 = vcombine.low %v925, %v933
    %v951 = vcombine.high %v925, %v933
    %v953 = vunpack.c.l.s4 1934713408
    %v954 = vunpack.c.0.s8 %v953
    %v955 = vlaneseq
    %v956 = vshrl.u32 %v955, 7
    %v957 = vsub.s32 %v954, %v956
    %v958 = vrot.slane %v950, %v957
    %v960 = vunpack.c.l.s4 1934713408
    %v961 = vunpack.c.0.s8 %v960
    %v962 = vlaneseq
    %v963 = vshrl.u32 %v962, 7
    %v964 = vsub.s32 %v961, %v963
    %v965 = vrot.slane %v951, %v964
    %v966 = vcombine.low %v942, %v958
    %v967 = vcombine.high %v942, %v958
    %v968 = vcombine.low %v949, %v965
    %v969 = vcombine.high %v949, %v965
    %972 = vrot.lane.b32.xlu0 %v669, 112
    %v973 = vpop.permute.xlu0 %972
    %974 = vrot.lane.b32.xlu0 %v676, 112
    %v975 = vpop.permute.xlu0 %974
    %978 = vrot.lane.b32.xlu0 %v669, 96
    %v979 = vpop.permute.xlu0 %978
    %980 = vrot.lane.b32.xlu0 %v676, 96
    %v981 = vpop.permute.xlu0 %980
    %984 = vrot.lane.b32.xlu0 %v669, 80
    %v985 = vpop.permute.xlu0 %984
    %986 = vrot.lane.b32.xlu0 %v676, 80
    %v987 = vpop.permute.xlu0 %986
    %v990 = vcombine.low %v669, %v979
    %v991 = vcombine.high %v669, %v979
    %v993 = vunpack.c.l.s4 1983009808
    %v994 = vunpack.c.0.s8 %v993
    %v995 = vlaneseq
    %v996 = vshrl.u32 %v995, 7
    %v997 = vsub.s32 %v994, %v996
    %v998 = vrot.slane %v990, %v997
    %v1000 = vunpack.c.l.s4 1983009808
    %v1001 = vunpack.c.0.s8 %v1000
    %v1002 = vlaneseq
    %v1003 = vshrl.u32 %v1002, 7
    %v1004 = vsub.s32 %v1001, %v1003
    %v1005 = vrot.slane %v991, %v1004
    %v1006 = vcombine.low %v973, %v985
    %v1007 = vcombine.high %v973, %v985
    %v1009 = vunpack.c.l.s4 1983009808
    %v1010 = vunpack.c.0.s8 %v1009
    %v1011 = vlaneseq
    %v1012 = vshrl.u32 %v1011, 7
    %v1013 = vsub.s32 %v1010, %v1012
    %v1014 = vrot.slane %v1006, %v1013
    %v1016 = vunpack.c.l.s4 1983009808
    %v1017 = vunpack.c.0.s8 %v1016
    %v1018 = vlaneseq
    %v1019 = vshrl.u32 %v1018, 7
    %v1020 = vsub.s32 %v1017, %v1019
    %v1021 = vrot.slane %v1007, %v1020
    %v1022 = vcombine.low %v998, %v1014
    %v1023 = vcombine.high %v998, %v1014
    %v1025 = vunpack.c.l.s4 1934713408
    %v1026 = vunpack.c.0.s8 %v1025
    %v1027 = vlaneseq
    %v1028 = vshrl.u32 %v1027, 7
    %v1029 = vsub.s32 %v1026, %v1028
    %v1030 = vrot.slane %v1022, %v1029
    %v1032 = vunpack.c.l.s4 1934713408
    %v1033 = vunpack.c.0.s8 %v1032
    %v1034 = vlaneseq
    %v1035 = vshrl.u32 %v1034, 7
    %v1036 = vsub.s32 %v1033, %v1035
    %v1037 = vrot.slane %v1023, %v1036
    %v1038 = vcombine.low %v1005, %v1021
    %v1039 = vcombine.high %v1005, %v1021
    %v1041 = vunpack.c.l.s4 1934713408
    %v1042 = vunpack.c.0.s8 %v1041
    %v1043 = vlaneseq
    %v1044 = vshrl.u32 %v1043, 7
    %v1045 = vsub.s32 %v1042, %v1044
    %v1046 = vrot.slane %v1038, %v1045
    %v1048 = vunpack.c.l.s4 1934713408
    %v1049 = vunpack.c.0.s8 %v1048
    %v1050 = vlaneseq
    %v1051 = vshrl.u32 %v1050, 7
    %v1052 = vsub.s32 %v1049, %v1051
    %v1053 = vrot.slane %v1039, %v1052
    %v1054 = vcombine.high %v1030, 0.0
    %v1055 = vcombine.high %v1037, 0.0
    %v1056 = vcombine.high %v1046, 0.0
    %v1057 = vcombine.high %v1053, 0.0
    %v1058 = vcombine.low %v676, %v981
    %v1059 = vcombine.high %v676, %v981
    %v1061 = vunpack.c.l.s4 1983009808
    %v1062 = vunpack.c.0.s8 %v1061
    %v1063 = vlaneseq
    %v1064 = vshrl.u32 %v1063, 7
    %v1065 = vsub.s32 %v1062, %v1064
    %v1066 = vrot.slane %v1058, %v1065
    %v1068 = vunpack.c.l.s4 1983009808
    %v1069 = vunpack.c.0.s8 %v1068
    %v1070 = vlaneseq
    %v1071 = vshrl.u32 %v1070, 7
    %v1072 = vsub.s32 %v1069, %v1071
    %v1073 = vrot.slane %v1059, %v1072
    %v1074 = vcombine.low %v975, %v987
    %v1075 = vcombine.high %v975, %v987
    %v1077 = vunpack.c.l.s4 1983009808
    %v1078 = vunpack.c.0.s8 %v1077
    %v1079 = vlaneseq
    %v1080 = vshrl.u32 %v1079, 7
    %v1081 = vsub.s32 %v1078, %v1080
    %v1082 = vrot.slane %v1074, %v1081
    %v1084 = vunpack.c.l.s4 1983009808
    %v1085 = vunpack.c.0.s8 %v1084
    %v1086 = vlaneseq
    %v1087 = vshrl.u32 %v1086, 7
    %v1088 = vsub.s32 %v1085, %v1087
    %v1089 = vrot.slane %v1075, %v1088
    %v1090 = vcombine.low %v1066, %v1082
    %v1091 = vcombine.high %v1066, %v1082
    %v1093 = vunpack.c.l.s4 1934713408
    %v1094 = vunpack.c.0.s8 %v1093
    %v1095 = vlaneseq
    %v1096 = vshrl.u32 %v1095, 7
    %v1097 = vsub.s32 %v1094, %v1096
    %v1098 = vrot.slane %v1090, %v1097
    %v1100 = vunpack.c.l.s4 1934713408
    %v1101 = vunpack.c.0.s8 %v1100
    %v1102 = vlaneseq
    %v1103 = vshrl.u32 %v1102, 7
    %v1104 = vsub.s32 %v1101, %v1103
    %v1105 = vrot.slane %v1091, %v1104
    %v1106 = vcombine.low %v1073, %v1089
    %v1107 = vcombine.high %v1073, %v1089
    %v1109 = vunpack.c.l.s4 1934713408
    %v1110 = vunpack.c.0.s8 %v1109
    %v1111 = vlaneseq
    %v1112 = vshrl.u32 %v1111, 7
    %v1113 = vsub.s32 %v1110, %v1112
    %v1114 = vrot.slane %v1106, %v1113
    %v1116 = vunpack.c.l.s4 1934713408
    %v1117 = vunpack.c.0.s8 %v1116
    %v1118 = vlaneseq
    %v1119 = vshrl.u32 %v1118, 7
    %v1120 = vsub.s32 %v1117, %v1119
    %v1121 = vrot.slane %v1107, %v1120
    %v1122 = vcombine.high %v1098, 0.0
    %v1123 = vcombine.high %v1105, 0.0
    %v1124 = vcombine.high %v1114, 0.0
    %v1125 = vcombine.high %v1121, 0.0
    %v1126 = vcombine.low %v1030, %v1037
    %v1128 = vunpack.c.l.s4 1983009808
    %v1129 = vunpack.c.0.s8 %v1128
    %v1130 = vlaneseq
    %v1131 = vshrl.u32 %v1130, 7
    %v1132 = vsub.s32 %v1129, %v1131
    %v1133 = vrot.slane %v1126, %v1132
    %v1134 = vcombine.low %v1054, %v1055
    %v1136 = vunpack.c.l.s4 1983009808
    %v1137 = vunpack.c.0.s8 %v1136
    %v1138 = vlaneseq
    %v1139 = vshrl.u32 %v1138, 7
    %v1140 = vsub.s32 %v1137, %v1139
    %v1141 = vrot.slane %v1134, %v1140
    %v1142 = vcombine.low %v1046, %v1053
    %v1144 = vunpack.c.l.s4 1983009808
    %v1145 = vunpack.c.0.s8 %v1144
    %v1146 = vlaneseq
    %v1147 = vshrl.u32 %v1146, 7
    %v1148 = vsub.s32 %v1145, %v1147
    %v1149 = vrot.slane %v1142, %v1148
    %v1150 = vcombine.low %v1056, %v1057
    %v1152 = vunpack.c.l.s4 1983009808
    %v1153 = vunpack.c.0.s8 %v1152
    %v1154 = vlaneseq
    %v1155 = vshrl.u32 %v1154, 7
    %v1156 = vsub.s32 %v1153, %v1155
    %v1157 = vrot.slane %v1150, %v1156
    %v1158 = vcombine.low %v1133, %v1141
    %v1159 = vcombine.high %v1133, %v1141
    %v1161 = vunpack.c.l.s4 1934713408
    %v1162 = vunpack.c.0.s8 %v1161
    %v1163 = vlaneseq
    %v1164 = vshrl.u32 %v1163, 7
    %v1165 = vsub.s32 %v1162, %v1164
    %v1166 = vrot.slane %v1158, %v1165
    %v1168 = vunpack.c.l.s4 1934713408
    %v1169 = vunpack.c.0.s8 %v1168
    %v1170 = vlaneseq
    %v1171 = vshrl.u32 %v1170, 7
    %v1172 = vsub.s32 %v1169, %v1171
    %v1173 = vrot.slane %v1159, %v1172
    %v1174 = vcombine.low %v1149, %v1157
    %v1175 = vcombine.high %v1149, %v1157
    %v1177 = vunpack.c.l.s4 1934713408
    %v1178 = vunpack.c.0.s8 %v1177
    %v1179 = vlaneseq
    %v1180 = vshrl.u32 %v1179, 7
    %v1181 = vsub.s32 %v1178, %v1180
    %v1182 = vrot.slane %v1174, %v1181
    %v1184 = vunpack.c.l.s4 1934713408
    %v1185 = vunpack.c.0.s8 %v1184
    %v1186 = vlaneseq
    %v1187 = vshrl.u32 %v1186, 7
    %v1188 = vsub.s32 %v1185, %v1187
    %v1189 = vrot.slane %v1175, %v1188
    %v1190 = vcombine.low %v1166, %v1182
    %v1191 = vcombine.high %v1166, %v1182
    %v1192 = vcombine.low %v1173, %v1189
    %v1193 = vcombine.high %v1173, %v1189
    %v1194 = vcombine.low %v1098, %v1105
    %v1196 = vunpack.c.l.s4 1983009808
    %v1197 = vunpack.c.0.s8 %v1196
    %v1198 = vlaneseq
    %v1199 = vshrl.u32 %v1198, 7
    %v1200 = vsub.s32 %v1197, %v1199
    %v1201 = vrot.slane %v1194, %v1200
    %v1202 = vcombine.low %v1122, %v1123
    %v1204 = vunpack.c.l.s4 1983009808
    %v1205 = vunpack.c.0.s8 %v1204
    %v1206 = vlaneseq
    %v1207 = vshrl.u32 %v1206, 7
    %v1208 = vsub.s32 %v1205, %v1207
    %v1209 = vrot.slane %v1202, %v1208
    %v1210 = vcombine.low %v1114, %v1121
    %v1212 = vunpack.c.l.s4 1983009808
    %v1213 = vunpack.c.0.s8 %v1212
    %v1214 = vlaneseq
    %v1215 = vshrl.u32 %v1214, 7
    %v1216 = vsub.s32 %v1213, %v1215
    %v1217 = vrot.slane %v1210, %v1216
    %v1218 = vcombine.low %v1124, %v1125
    %v1220 = vunpack.c.l.s4 1983009808
    %v1221 = vunpack.c.0.s8 %v1220
    %v1222 = vlaneseq
    %v1223 = vshrl.u32 %v1222, 7
    %v1224 = vsub.s32 %v1221, %v1223
    %v1225 = vrot.slane %v1218, %v1224
    %v1226 = vcombine.low %v1201, %v1209
    %v1227 = vcombine.high %v1201, %v1209
    %v1229 = vunpack.c.l.s4 1934713408
    %v1230 = vunpack.c.0.s8 %v1229
    %v1231 = vlaneseq
    %v1232 = vshrl.u32 %v1231, 7
    %v1233 = vsub.s32 %v1230, %v1232
    %v1234 = vrot.slane %v1226, %v1233
    %v1236 = vunpack.c.l.s4 1934713408
    %v1237 = vunpack.c.0.s8 %v1236
    %v1238 = vlaneseq
    %v1239 = vshrl.u32 %v1238, 7
    %v1240 = vsub.s32 %v1237, %v1239
    %v1241 = vrot.slane %v1227, %v1240
    %v1242 = vcombine.low %v1217, %v1225
    %v1243 = vcombine.high %v1217, %v1225
    %v1245 = vunpack.c.l.s4 1934713408
    %v1246 = vunpack.c.0.s8 %v1245
    %v1247 = vlaneseq
    %v1248 = vshrl.u32 %v1247, 7
    %v1249 = vsub.s32 %v1246, %v1248
    %v1250 = vrot.slane %v1242, %v1249
    %v1252 = vunpack.c.l.s4 1934713408
    %v1253 = vunpack.c.0.s8 %v1252
    %v1254 = vlaneseq
    %v1255 = vshrl.u32 %v1254, 7
    %v1256 = vsub.s32 %v1253, %v1255
    %v1257 = vrot.slane %v1243, %v1256
    %v1258 = vcombine.low %v1234, %v1250
    %v1259 = vcombine.high %v1234, %v1250
    %v1260 = vcombine.low %v1241, %v1257
    %v1261 = vcombine.high %v1241, %v1257
    %1262 = vrot.lane.b32.xlu0 %v667, 64
    %v1263 = vpop.permute.xlu0 %1262
    %1264 = vrot.lane.b32.xlu0 %v674, 64
    %v1265 = vpop.permute.xlu0 %1264
    %1266 = vrot.lane.b32.xlu0 %v681, 64
    %v1267 = vpop.permute.xlu0 %1266
    %1268 = vrot.lane.b32.xlu0 %v683, 64
    %v1269 = vpop.permute.xlu0 %1268
    %1270 = vrot.lane.b32.xlu0 %v687, 64
    %v1271 = vpop.permute.xlu0 %1270
    %1272 = vrot.lane.b32.xlu0 %v689, 64
    %v1273 = vpop.permute.xlu0 %1272
    %1274 = vrot.lane.b32.xlu0 %v693, 64
    %v1275 = vpop.permute.xlu0 %1274
    %1276 = vrot.lane.b32.xlu0 %v695, 64
    %v1277 = vpop.permute.xlu0 %1276
    %v1286 = vcombine.low %v1263, %v1271
    %v1287 = vcombine.high %v1263, %v1271
    %v1289 = vunpack.c.l.s4 1983009808
    %v1290 = vunpack.c.0.s8 %v1289
    %v1291 = vlaneseq
    %v1292 = vshrl.u32 %v1291, 7
    %v1293 = vsub.s32 %v1290, %v1292
    %v1294 = vrot.slane %v1286, %v1293
    %v1296 = vunpack.c.l.s4 1983009808
    %v1297 = vunpack.c.0.s8 %v1296
    %v1298 = vlaneseq
    %v1299 = vshrl.u32 %v1298, 7
    %v1300 = vsub.s32 %v1297, %v1299
    %v1301 = vrot.slane %v1287, %v1300
    %v1302 = vcombine.low %v1267, %v1275
    %v1303 = vcombine.high %v1267, %v1275
    %v1305 = vunpack.c.l.s4 1983009808
    %v1306 = vunpack.c.0.s8 %v1305
    %v1307 = vlaneseq
    %v1308 = vshrl.u32 %v1307, 7
    %v1309 = vsub.s32 %v1306, %v1308
    %v1310 = vrot.slane %v1302, %v1309
    %v1312 = vunpack.c.l.s4 1983009808
    %v1313 = vunpack.c.0.s8 %v1312
    %v1314 = vlaneseq
    %v1315 = vshrl.u32 %v1314, 7
    %v1316 = vsub.s32 %v1313, %v1315
    %v1317 = vrot.slane %v1303, %v1316
    %v1318 = vcombine.low %v1294, %v1310
    %v1319 = vcombine.high %v1294, %v1310
    %v1321 = vunpack.c.l.s4 1934713408
    %v1322 = vunpack.c.0.s8 %v1321
    %v1323 = vlaneseq
    %v1324 = vshrl.u32 %v1323, 7
    %v1325 = vsub.s32 %v1322, %v1324
    %v1326 = vrot.slane %v1318, %v1325
    %v1328 = vunpack.c.l.s4 1934713408
    %v1329 = vunpack.c.0.s8 %v1328
    %v1330 = vlaneseq
    %v1331 = vshrl.u32 %v1330, 7
    %v1332 = vsub.s32 %v1329, %v1331
    %v1333 = vrot.slane %v1319, %v1332
    %v1334 = vcombine.low %v1301, %v1317
    %v1335 = vcombine.high %v1301, %v1317
    %v1337 = vunpack.c.l.s4 1934713408
    %v1338 = vunpack.c.0.s8 %v1337
    %v1339 = vlaneseq
    %v1340 = vshrl.u32 %v1339, 7
    %v1341 = vsub.s32 %v1338, %v1340
    %v1342 = vrot.slane %v1334, %v1341
    %v1344 = vunpack.c.l.s4 1934713408
    %v1345 = vunpack.c.0.s8 %v1344
    %v1346 = vlaneseq
    %v1347 = vshrl.u32 %v1346, 7
    %v1348 = vsub.s32 %v1345, %v1347
    %v1349 = vrot.slane %v1335, %v1348
    %v1350 = vcombine.high %v1326, 0.0
    %v1351 = vcombine.high %v1333, 0.0
    %v1352 = vcombine.high %v1342, 0.0
    %v1353 = vcombine.high %v1349, 0.0
    %v1354 = vcombine.low %v1265, %v1273
    %v1355 = vcombine.high %v1265, %v1273
    %v1357 = vunpack.c.l.s4 1983009808
    %v1358 = vunpack.c.0.s8 %v1357
    %v1359 = vlaneseq
    %v1360 = vshrl.u32 %v1359, 7
    %v1361 = vsub.s32 %v1358, %v1360
    %v1362 = vrot.slane %v1354, %v1361
    %v1364 = vunpack.c.l.s4 1983009808
    %v1365 = vunpack.c.0.s8 %v1364
    %v1366 = vlaneseq
    %v1367 = vshrl.u32 %v1366, 7
    %v1368 = vsub.s32 %v1365, %v1367
    %v1369 = vrot.slane %v1355, %v1368
    %v1370 = vcombine.low %v1269, %v1277
    %v1371 = vcombine.high %v1269, %v1277
    %v1373 = vunpack.c.l.s4 1983009808
    %v1374 = vunpack.c.0.s8 %v1373
    %v1375 = vlaneseq
    %v1376 = vshrl.u32 %v1375, 7
    %v1377 = vsub.s32 %v1374, %v1376
    %v1378 = vrot.slane %v1370, %v1377
    %v1380 = vunpack.c.l.s4 1983009808
    %v1381 = vunpack.c.0.s8 %v1380
    %v1382 = vlaneseq
    %v1383 = vshrl.u32 %v1382, 7
    %v1384 = vsub.s32 %v1381, %v1383
    %v1385 = vrot.slane %v1371, %v1384
    %v1386 = vcombine.low %v1362, %v1378
    %v1387 = vcombine.high %v1362, %v1378
    %v1389 = vunpack.c.l.s4 1934713408
    %v1390 = vunpack.c.0.s8 %v1389
    %v1391 = vlaneseq
    %v1392 = vshrl.u32 %v1391, 7
    %v1393 = vsub.s32 %v1390, %v1392
    %v1394 = vrot.slane %v1386, %v1393
    %v1396 = vunpack.c.l.s4 1934713408
    %v1397 = vunpack.c.0.s8 %v1396
    %v1398 = vlaneseq
    %v1399 = vshrl.u32 %v1398, 7
    %v1400 = vsub.s32 %v1397, %v1399
    %v1401 = vrot.slane %v1387, %v1400
    %v1402 = vcombine.low %v1369, %v1385
    %v1403 = vcombine.high %v1369, %v1385
    %v1405 = vunpack.c.l.s4 1934713408
    %v1406 = vunpack.c.0.s8 %v1405
    %v1407 = vlaneseq
    %v1408 = vshrl.u32 %v1407, 7
    %v1409 = vsub.s32 %v1406, %v1408
    %v1410 = vrot.slane %v1402, %v1409
    %v1412 = vunpack.c.l.s4 1934713408
    %v1413 = vunpack.c.0.s8 %v1412
    %v1414 = vlaneseq
    %v1415 = vshrl.u32 %v1414, 7
    %v1416 = vsub.s32 %v1413, %v1415
    %v1417 = vrot.slane %v1403, %v1416
    %v1418 = vcombine.high %v1394, 0.0
    %v1419 = vcombine.high %v1401, 0.0
    %v1420 = vcombine.high %v1410, 0.0
    %v1421 = vcombine.high %v1417, 0.0
    %1422 = vxpose.xlu0.b32.start [1/16] %v1326, 128
    %1423 = vxpose.xlu0.b32.cont [2/16] 0.0, 128
    %1424 = vxpose.xlu0.b32.cont [3/16] 0.0, 128
    %1425 = vxpose.xlu0.b32.cont [4/16] 0.0, 128
    %1426 = vxpose.xlu0.b32.cont [5/16] 0.0, 128
    %1427 = vxpose.xlu0.b32.cont [6/16] 0.0, 128
    %1428 = vxpose.xlu0.b32.cont [7/16] 0.0, 128
    %1429 = vxpose.xlu0.b32.cont [8/16] 0.0, 128
    %1430 = vxpose.xlu0.b32.cont [9/16] 0.0, 128
    %1431 = vxpose.xlu0.b32.cont [10/16] 0.0, 128
    %1432 = vxpose.xlu0.b32.cont [11/16] 0.0, 128
    %1433 = vxpose.xlu0.b32.cont [12/16] 0.0, 128
    %1434 = vxpose.xlu0.b32.cont [13/16] 0.0, 128
    %1435 = vxpose.xlu0.b32.cont [14/16] 0.0, 128
    %1436 = vxpose.xlu0.b32.cont [15/16] 0.0, 128
    %1437 = vxpose.xlu0.b32.end [16/16] 0.0, 128
    %v1438 = vpop.trf.xlu0
    %v1439 = vpop.trf.xlu0
    %v1440 = vpop.trf.xlu0
    %v1441 = vpop.trf.xlu0
    %v1442 = vpop.trf.xlu0
    %v1443 = vpop.trf.xlu0
    %v1444 = vpop.trf.xlu0
    %v1445 = vpop.trf.xlu0
    %v1446 = vpop.trf.xlu0
    %v1447 = vpop.trf.xlu0
    %v1448 = vpop.trf.xlu0
    %v1449 = vpop.trf.xlu0
    %v1450 = vpop.trf.xlu0
    %v1451 = vpop.trf.xlu0
    %v1452 = vpop.trf.xlu0
    %v1453 = vpop.trf.xlu0
    %1454 = vxpose.xlu0.b32.start [1/16] %v1350, 128
    %1455 = vxpose.xlu0.b32.cont [2/16] 0.0, 128
    %1456 = vxpose.xlu0.b32.cont [3/16] 0.0, 128
    %1457 = vxpose.xlu0.b32.cont [4/16] 0.0, 128
    %1458 = vxpose.xlu0.b32.cont [5/16] 0.0, 128
    %1459 = vxpose.xlu0.b32.cont [6/16] 0.0, 128
    %1460 = vxpose.xlu0.b32.cont [7/16] 0.0, 128
    %1461 = vxpose.xlu0.b32.cont [8/16] 0.0, 128
    %1462 = vxpose.xlu0.b32.cont [9/16] 0.0, 128
    %1463 = vxpose.xlu0.b32.cont [10/16] 0.0, 128
    %1464 = vxpose.xlu0.b32.cont [11/16] 0.0, 128
    %1465 = vxpose.xlu0.b32.cont [12/16] 0.0, 128
    %1466 = vxpose.xlu0.b32.cont [13/16] 0.0, 128
    %1467 = vxpose.xlu0.b32.cont [14/16] 0.0, 128
    %1468 = vxpose.xlu0.b32.cont [15/16] 0.0, 128
    %1469 = vxpose.xlu0.b32.end [16/16] 0.0, 128
    %v1470 = vpop.trf.xlu0
    %v1471 = vpop.trf.xlu0
    %v1472 = vpop.trf.xlu0
    %v1473 = vpop.trf.xlu0
    %v1474 = vpop.trf.xlu0
    %v1475 = vpop.trf.xlu0
    %v1476 = vpop.trf.xlu0
    %v1477 = vpop.trf.xlu0
    %v1478 = vpop.trf.xlu0
    %v1479 = vpop.trf.xlu0
    %v1480 = vpop.trf.xlu0
    %v1481 = vpop.trf.xlu0
    %v1482 = vpop.trf.xlu0
    %v1483 = vpop.trf.xlu0
    %v1484 = vpop.trf.xlu0
    %v1485 = vpop.trf.xlu0
    %1486 = vxpose.xlu0.b32.start [1/16] %v1333, 128
    %1487 = vxpose.xlu0.b32.cont [2/16] 0.0, 128
    %1488 = vxpose.xlu0.b32.cont [3/16] 0.0, 128
    %1489 = vxpose.xlu0.b32.cont [4/16] 0.0, 128
    %1490 = vxpose.xlu0.b32.cont [5/16] 0.0, 128
    %1491 = vxpose.xlu0.b32.cont [6/16] 0.0, 128
    %1492 = vxpose.xlu0.b32.cont [7/16] 0.0, 128
    %1493 = vxpose.xlu0.b32.cont [8/16] 0.0, 128
    %1494 = vxpose.xlu0.b32.cont [9/16] 0.0, 128
    %1495 = vxpose.xlu0.b32.cont [10/16] 0.0, 128
    %1496 = vxpose.xlu0.b32.cont [11/16] 0.0, 128
    %1497 = vxpose.xlu0.b32.cont [12/16] 0.0, 128
    %1498 = vxpose.xlu0.b32.cont [13/16] 0.0, 128
    %1499 = vxpose.xlu0.b32.cont [14/16] 0.0, 128
    %1500 = vxpose.xlu0.b32.cont [15/16] 0.0, 128
    %1501 = vxpose.xlu0.b32.end [16/16] 0.0, 128
    %v1502 = vpop.trf.xlu0
    %v1503 = vpop.trf.xlu0
    %v1504 = vpop.trf.xlu0
    %v1505 = vpop.trf.xlu0
    %v1506 = vpop.trf.xlu0
    %v1507 = vpop.trf.xlu0
    %v1508 = vpop.trf.xlu0
    %v1509 = vpop.trf.xlu0
    %v1510 = vpop.trf.xlu0
    %v1511 = vpop.trf.xlu0
    %v1512 = vpop.trf.xlu0
    %v1513 = vpop.trf.xlu0
    %v1514 = vpop.trf.xlu0
    %v1515 = vpop.trf.xlu0
    %v1516 = vpop.trf.xlu0
    %v1517 = vpop.trf.xlu0
    %1518 = vxpose.xlu0.b32.start [1/16] %v1351, 128
    %1519 = vxpose.xlu0.b32.cont [2/16] 0.0, 128
    %1520 = vxpose.xlu0.b32.cont [3/16] 0.0, 128
    %1521 = vxpose.xlu0.b32.cont [4/16] 0.0, 128
    %1522 = vxpose.xlu0.b32.cont [5/16] 0.0, 128
    %1523 = vxpose.xlu0.b32.cont [6/16] 0.0, 128
    %1524 = vxpose.xlu0.b32.cont [7/16] 0.0, 128
    %1525 = vxpose.xlu0.b32.cont [8/16] 0.0, 128
    %1526 = vxpose.xlu0.b32.cont [9/16] 0.0, 128
    %1527 = vxpose.xlu0.b32.cont [10/16] 0.0, 128
    %1528 = vxpose.xlu0.b32.cont [11/16] 0.0, 128
    %1529 = vxpose.xlu0.b32.cont [12/16] 0.0, 128
    %1530 = vxpose.xlu0.b32.cont [13/16] 0.0, 128
    %1531 = vxpose.xlu0.b32.cont [14/16] 0.0, 128
    %1532 = vxpose.xlu0.b32.cont [15/16] 0.0, 128
    %1533 = vxpose.xlu0.b32.end [16/16] 0.0, 128
    %v1534 = vpop.trf.xlu0
    %v1535 = vpop.trf.xlu0
    %v1536 = vpop.trf.xlu0
    %v1537 = vpop.trf.xlu0
    %v1538 = vpop.trf.xlu0
    %v1539 = vpop.trf.xlu0
    %v1540 = vpop.trf.xlu0
    %v1541 = vpop.trf.xlu0
    %v1542 = vpop.trf.xlu0
    %v1543 = vpop.trf.xlu0
    %v1544 = vpop.trf.xlu0
    %v1545 = vpop.trf.xlu0
    %v1546 = vpop.trf.xlu0
    %v1547 = vpop.trf.xlu0
    %v1548 = vpop.trf.xlu0
    %v1549 = vpop.trf.xlu0
    %1550 = vxpose.xlu0.b32.start [1/16] %v1342, 128
    %1551 = vxpose.xlu0.b32.cont [2/16] 0.0, 128
    %1552 = vxpose.xlu0.b32.cont [3/16] 0.0, 128
    %1553 = vxpose.xlu0.b32.cont [4/16] 0.0, 128
    %1554 = vxpose.xlu0.b32.cont [5/16] 0.0, 128
    %1555 = vxpose.xlu0.b32.cont [6/16] 0.0, 128
    %1556 = vxpose.xlu0.b32.cont [7/16] 0.0, 128
    %1557 = vxpose.xlu0.b32.cont [8/16] 0.0, 128
    %1558 = vxpose.xlu0.b32.cont [9/16] 0.0, 128
    %1559 = vxpose.xlu0.b32.cont [10/16] 0.0, 128
    %1560 = vxpose.xlu0.b32.cont [11/16] 0.0, 128
    %1561 = vxpose.xlu0.b32.cont [12/16] 0.0, 128
    %1562 = vxpose.xlu0.b32.cont [13/16] 0.0, 128
    %1563 = vxpose.xlu0.b32.cont [14/16] 0.0, 128
    %1564 = vxpose.xlu0.b32.cont [15/16] 0.0, 128
    %1565 = vxpose.xlu0.b32.end [16/16] 0.0, 128
    %v1566 = vpop.trf.xlu0
    %v1567 = vpop.trf.xlu0
    %v1568 = vpop.trf.xlu0
    %v1569 = vpop.trf.xlu0
    %v1570 = vpop.trf.xlu0
    %v1571 = vpop.trf.xlu0
    %v1572 = vpop.trf.xlu0
    %v1573 = vpop.trf.xlu0
    %v1574 = vpop.trf.xlu0
    %v1575 = vpop.trf.xlu0
    %v1576 = vpop.trf.xlu0
    %v1577 = vpop.trf.xlu0
    %v1578 = vpop.trf.xlu0
    %v1579 = vpop.trf.xlu0
    %v1580 = vpop.trf.xlu0
    %v1581 = vpop.trf.xlu0
    %1582 = vxpose.xlu0.b32.start [1/16] %v1352, 128
    %1583 = vxpose.xlu0.b32.cont [2/16] 0.0, 128
    %1584 = vxpose.xlu0.b32.cont [3/16] 0.0, 128
    %1585 = vxpose.xlu0.b32.cont [4/16] 0.0, 128
    %1586 = vxpose.xlu0.b32.cont [5/16] 0.0, 128
    %1587 = vxpose.xlu0.b32.cont [6/16] 0.0, 128
    %1588 = vxpose.xlu0.b32.cont [7/16] 0.0, 128
    %1589 = vxpose.xlu0.b32.cont [8/16] 0.0, 128
    %1590 = vxpose.xlu0.b32.cont [9/16] 0.0, 128
    %1591 = vxpose.xlu0.b32.cont [10/16] 0.0, 128
    %1592 = vxpose.xlu0.b32.cont [11/16] 0.0, 128
    %1593 = vxpose.xlu0.b32.cont [12/16] 0.0, 128
    %1594 = vxpose.xlu0.b32.cont [13/16] 0.0, 128
    %1595 = vxpose.xlu0.b32.cont [14/16] 0.0, 128
    %1596 = vxpose.xlu0.b32.cont [15/16] 0.0, 128
    %1597 = vxpose.xlu0.b32.end [16/16] 0.0, 128
    %v1598 = vpop.trf.xlu0
    %v1599 = vpop.trf.xlu0
    %v1600 = vpop.trf.xlu0
    %v1601 = vpop.trf.xlu0
    %v1602 = vpop.trf.xlu0
    %v1603 = vpop.trf.xlu0
    %v1604 = vpop.trf.xlu0
    %v1605 = vpop.trf.xlu0
    %v1606 = vpop.trf.xlu0
    %v1607 = vpop.trf.xlu0
    %v1608 = vpop.trf.xlu0
    %v1609 = vpop.trf.xlu0
    %v1610 = vpop.trf.xlu0
    %v1611 = vpop.trf.xlu0
    %v1612 = vpop.trf.xlu0
    %v1613 = vpop.trf.xlu0
    %1614 = vxpose.xlu0.b32.start [1/16] %v1349, 128
    %1615 = vxpose.xlu0.b32.cont [2/16] 0.0, 128
    %1616 = vxpose.xlu0.b32.cont [3/16] 0.0, 128
    %1617 = vxpose.xlu0.b32.cont [4/16] 0.0, 128
    %1618 = vxpose.xlu0.b32.cont [5/16] 0.0, 128
    %1619 = vxpose.xlu0.b32.cont [6/16] 0.0, 128
    %1620 = vxpose.xlu0.b32.cont [7/16] 0.0, 128
    %1621 = vxpose.xlu0.b32.cont [8/16] 0.0, 128
    %1622 = vxpose.xlu0.b32.cont [9/16] 0.0, 128
    %1623 = vxpose.xlu0.b32.cont [10/16] 0.0, 128
    %1624 = vxpose.xlu0.b32.cont [11/16] 0.0, 128
    %1625 = vxpose.xlu0.b32.cont [12/16] 0.0, 128
    %1626 = vxpose.xlu0.b32.cont [13/16] 0.0, 128
    %1627 = vxpose.xlu0.b32.cont [14/16] 0.0, 128
    %1628 = vxpose.xlu0.b32.cont [15/16] 0.0, 128
    %1629 = vxpose.xlu0.b32.end [16/16] 0.0, 128
    %v1630 = vpop.trf.xlu0
    %v1631 = vpop.trf.xlu0
    %v1632 = vpop.trf.xlu0
    %v1633 = vpop.trf.xlu0
    %v1634 = vpop.trf.xlu0
    %v1635 = vpop.trf.xlu0
    %v1636 = vpop.trf.xlu0
    %v1637 = vpop.trf.xlu0
    %v1638 = vpop.trf.xlu0
    %v1639 = vpop.trf.xlu0
    %v1640 = vpop.trf.xlu0
    %v1641 = vpop.trf.xlu0
    %v1642 = vpop.trf.xlu0
    %v1643 = vpop.trf.xlu0
    %v1644 = vpop.trf.xlu0
    %v1645 = vpop.trf.xlu0
    %1646 = vxpose.xlu0.b32.start [1/16] %v1353, 128
    %1647 = vxpose.xlu0.b32.cont [2/16] 0.0, 128
    %1648 = vxpose.xlu0.b32.cont [3/16] 0.0, 128
    %1649 = vxpose.xlu0.b32.cont [4/16] 0.0, 128
    %1650 = vxpose.xlu0.b32.cont [5/16] 0.0, 128
    %1651 = vxpose.xlu0.b32.cont [6/16] 0.0, 128
    %1652 = vxpose.xlu0.b32.cont [7/16] 0.0, 128
    %1653 = vxpose.xlu0.b32.cont [8/16] 0.0, 128
    %1654 = vxpose.xlu0.b32.cont [9/16] 0.0, 128
    %1655 = vxpose.xlu0.b32.cont [10/16] 0.0, 128
    %1656 = vxpose.xlu0.b32.cont [11/16] 0.0, 128
    %1657 = vxpose.xlu0.b32.cont [12/16] 0.0, 128
    %1658 = vxpose.xlu0.b32.cont [13/16] 0.0, 128
    %1659 = vxpose.xlu0.b32.cont [14/16] 0.0, 128
    %1660 = vxpose.xlu0.b32.cont [15/16] 0.0, 128
    %1661 = vxpose.xlu0.b32.end [16/16] 0.0, 128
    %v1662 = vpop.trf.xlu0
    %v1663 = vpop.trf.xlu0
    %v1664 = vpop.trf.xlu0
    %v1665 = vpop.trf.xlu0
    %v1666 = vpop.trf.xlu0
    %v1667 = vpop.trf.xlu0
    %v1668 = vpop.trf.xlu0
    %v1669 = vpop.trf.xlu0
    %v1670 = vpop.trf.xlu0
    %v1671 = vpop.trf.xlu0
    %v1672 = vpop.trf.xlu0
    %v1673 = vpop.trf.xlu0
    %v1674 = vpop.trf.xlu0
    %v1675 = vpop.trf.xlu0
    %v1676 = vpop.trf.xlu0
    %v1677 = vpop.trf.xlu0
    %1678 = vxpose.xlu0.b32.start [1/16] %v1394, 128
    %1679 = vxpose.xlu0.b32.cont [2/16] 0.0, 128
    %1680 = vxpose.xlu0.b32.cont [3/16] 0.0, 128
    %1681 = vxpose.xlu0.b32.cont [4/16] 0.0, 128
    %1682 = vxpose.xlu0.b32.cont [5/16] 0.0, 128
    %1683 = vxpose.xlu0.b32.cont [6/16] 0.0, 128
    %1684 = vxpose.xlu0.b32.cont [7/16] 0.0, 128
    %1685 = vxpose.xlu0.b32.cont [8/16] 0.0, 128
    %1686 = vxpose.xlu0.b32.cont [9/16] 0.0, 128
    %1687 = vxpose.xlu0.b32.cont [10/16] 0.0, 128
    %1688 = vxpose.xlu0.b32.cont [11/16] 0.0, 128
    %1689 = vxpose.xlu0.b32.cont [12/16] 0.0, 128
    %1690 = vxpose.xlu0.b32.cont [13/16] 0.0, 128
    %1691 = vxpose.xlu0.b32.cont [14/16] 0.0, 128
    %1692 = vxpose.xlu0.b32.cont [15/16] 0.0, 128
    %1693 = vxpose.xlu0.b32.end [16/16] 0.0, 128
    %v1694 = vpop.trf.xlu0
    %v1695 = vpop.trf.xlu0
    %v1696 = vpop.trf.xlu0
    %v1697 = vpop.trf.xlu0
    %v1698 = vpop.trf.xlu0
    %v1699 = vpop.trf.xlu0
    %v1700 = vpop.trf.xlu0
    %v1701 = vpop.trf.xlu0
    %v1702 = vpop.trf.xlu0
    %v1703 = vpop.trf.xlu0
    %v1704 = vpop.trf.xlu0
    %v1705 = vpop.trf.xlu0
    %v1706 = vpop.trf.xlu0
    %v1707 = vpop.trf.xlu0
    %v1708 = vpop.trf.xlu0
    %v1709 = vpop.trf.xlu0
    %1710 = vxpose.xlu0.b32.start [1/16] %v1418, 128
    %1711 = vxpose.xlu0.b32.cont [2/16] 0.0, 128
    %1712 = vxpose.xlu0.b32.cont [3/16] 0.0, 128
    %1713 = vxpose.xlu0.b32.cont [4/16] 0.0, 128
    %1714 = vxpose.xlu0.b32.cont [5/16] 0.0, 128
    %1715 = vxpose.xlu0.b32.cont [6/16] 0.0, 128
    %1716 = vxpose.xlu0.b32.cont [7/16] 0.0, 128
    %1717 = vxpose.xlu0.b32.cont [8/16] 0.0, 128
    %1718 = vxpose.xlu0.b32.cont [9/16] 0.0, 128
    %1719 = vxpose.xlu0.b32.cont [10/16] 0.0, 128
    %1720 = vxpose.xlu0.b32.cont [11/16] 0.0, 128
    %1721 = vxpose.xlu0.b32.cont [12/16] 0.0, 128
    %1722 = vxpose.xlu0.b32.cont [13/16] 0.0, 128
    %1723 = vxpose.xlu0.b32.cont [14/16] 0.0, 128
    %1724 = vxpose.xlu0.b32.cont [15/16] 0.0, 128
    %1725 = vxpose.xlu0.b32.end [16/16] 0.0, 128
    %v1726 = vpop.trf.xlu0
    %v1727 = vpop.trf.xlu0
    %v1728 = vpop.trf.xlu0
    %v1729 = vpop.trf.xlu0
    %v1730 = vpop.trf.xlu0
    %v1731 = vpop.trf.xlu0
    %v1732 = vpop.trf.xlu0
    %v1733 = vpop.trf.xlu0
    %v1734 = vpop.trf.xlu0
    %v1735 = vpop.trf.xlu0
    %v1736 = vpop.trf.xlu0
    %v1737 = vpop.trf.xlu0
    %v1738 = vpop.trf.xlu0
    %v1739 = vpop.trf.xlu0
    %v1740 = vpop.trf.xlu0
    %v1741 = vpop.trf.xlu0
    %1742 = vxpose.xlu0.b32.start [1/16] %v1401, 128
    %1743 = vxpose.xlu0.b32.cont [2/16] 0.0, 128
    %1744 = vxpose.xlu0.b32.cont [3/16] 0.0, 128
    %1745 = vxpose.xlu0.b32.cont [4/16] 0.0, 128
    %1746 = vxpose.xlu0.b32.cont [5/16] 0.0, 128
    %1747 = vxpose.xlu0.b32.cont [6/16] 0.0, 128
    %1748 = vxpose.xlu0.b32.cont [7/16] 0.0, 128
    %1749 = vxpose.xlu0.b32.cont [8/16] 0.0, 128
    %1750 = vxpose.xlu0.b32.cont [9/16] 0.0, 128
    %1751 = vxpose.xlu0.b32.cont [10/16] 0.0, 128
    %1752 = vxpose.xlu0.b32.cont [11/16] 0.0, 128
    %1753 = vxpose.xlu0.b32.cont [12/16] 0.0, 128
    %1754 = vxpose.xlu0.b32.cont [13/16] 0.0, 128
    %1755 = vxpose.xlu0.b32.cont [14/16] 0.0, 128
    %1756 = vxpose.xlu0.b32.cont [15/16] 0.0, 128
    %1757 = vxpose.xlu0.b32.end [16/16] 0.0, 128
    %v1758 = vpop.trf.xlu0
    %v1759 = vpop.trf.xlu0
    %v1760 = vpop.trf.xlu0
    %v1761 = vpop.trf.xlu0
    %v1762 = vpop.trf.xlu0
    %v1763 = vpop.trf.xlu0
    %v1764 = vpop.trf.xlu0
    %v1765 = vpop.trf.xlu0
    %v1766 = vpop.trf.xlu0
    %v1767 = vpop.trf.xlu0
    %v1768 = vpop.trf.xlu0
    %v1769 = vpop.trf.xlu0
    %v1770 = vpop.trf.xlu0
    %v1771 = vpop.trf.xlu0
    %v1772 = vpop.trf.xlu0
    %v1773 = vpop.trf.xlu0
    %1774 = vxpose.xlu0.b32.start [1/16] %v1419, 128
    %1775 = vxpose.xlu0.b32.cont [2/16] 0.0, 128
    %1776 = vxpose.xlu0.b32.cont [3/16] 0.0, 128
    %1777 = vxpose.xlu0.b32.cont [4/16] 0.0, 128
    %1778 = vxpose.xlu0.b32.cont [5/16] 0.0, 128
    %1779 = vxpose.xlu0.b32.cont [6/16] 0.0, 128
    %1780 = vxpose.xlu0.b32.cont [7/16] 0.0, 128
    %1781 = vxpose.xlu0.b32.cont [8/16] 0.0, 128
    %1782 = vxpose.xlu0.b32.cont [9/16] 0.0, 128
    %1783 = vxpose.xlu0.b32.cont [10/16] 0.0, 128
    %1784 = vxpose.xlu0.b32.cont [11/16] 0.0, 128
    %1785 = vxpose.xlu0.b32.cont [12/16] 0.0, 128
    %1786 = vxpose.xlu0.b32.cont [13/16] 0.0, 128
    %1787 = vxpose.xlu0.b32.cont [14/16] 0.0, 128
    %1788 = vxpose.xlu0.b32.cont [15/16] 0.0, 128
    %1789 = vxpose.xlu0.b32.end [16/16] 0.0, 128
    %v1790 = vpop.trf.xlu0
    %v1791 = vpop.trf.xlu0
    %v1792 = vpop.trf.xlu0
    %v1793 = vpop.trf.xlu0
    %v1794 = vpop.trf.xlu0
    %v1795 = vpop.trf.xlu0
    %v1796 = vpop.trf.xlu0
    %v1797 = vpop.trf.xlu0
    %v1798 = vpop.trf.xlu0
    %v1799 = vpop.trf.xlu0
    %v1800 = vpop.trf.xlu0
    %v1801 = vpop.trf.xlu0
    %v1802 = vpop.trf.xlu0
    %v1803 = vpop.trf.xlu0
    %v1804 = vpop.trf.xlu0
    %v1805 = vpop.trf.xlu0
    %1806 = vxpose.xlu0.b32.start [1/16] %v1410, 128
    %1807 = vxpose.xlu0.b32.cont [2/16] 0.0, 128
    %1808 = vxpose.xlu0.b32.cont [3/16] 0.0, 128
    %1809 = vxpose.xlu0.b32.cont [4/16] 0.0, 128
    %1810 = vxpose.xlu0.b32.cont [5/16] 0.0, 128
    %1811 = vxpose.xlu0.b32.cont [6/16] 0.0, 128
    %1812 = vxpose.xlu0.b32.cont [7/16] 0.0, 128
    %1813 = vxpose.xlu0.b32.cont [8/16] 0.0, 128
    %1814 = vxpose.xlu0.b32.cont [9/16] 0.0, 128
    %1815 = vxpose.xlu0.b32.cont [10/16] 0.0, 128
    %1816 = vxpose.xlu0.b32.cont [11/16] 0.0, 128
    %1817 = vxpose.xlu0.b32.cont [12/16] 0.0, 128
    %1818 = vxpose.xlu0.b32.cont [13/16] 0.0, 128
    %1819 = vxpose.xlu0.b32.cont [14/16] 0.0, 128
    %1820 = vxpose.xlu0.b32.cont [15/16] 0.0, 128
    %1821 = vxpose.xlu0.b32.end [16/16] 0.0, 128
    %v1822 = vpop.trf.xlu0
    %v1823 = vpop.trf.xlu0
    %v1824 = vpop.trf.xlu0
    %v1825 = vpop.trf.xlu0
    %v1826 = vpop.trf.xlu0
    %v1827 = vpop.trf.xlu0
    %v1828 = vpop.trf.xlu0
    %v1829 = vpop.trf.xlu0
    %v1830 = vpop.trf.xlu0
    %v1831 = vpop.trf.xlu0
    %v1832 = vpop.trf.xlu0
    %v1833 = vpop.trf.xlu0
    %v1834 = vpop.trf.xlu0
    %v1835 = vpop.trf.xlu0
    %v1836 = vpop.trf.xlu0
    %v1837 = vpop.trf.xlu0
    %1838 = vxpose.xlu0.b32.start [1/16] %v1420, 128
    %1839 = vxpose.xlu0.b32.cont [2/16] 0.0, 128
    %1840 = vxpose.xlu0.b32.cont [3/16] 0.0, 128
    %1841 = vxpose.xlu0.b32.cont [4/16] 0.0, 128
    %1842 = vxpose.xlu0.b32.cont [5/16] 0.0, 128
    %1843 = vxpose.xlu0.b32.cont [6/16] 0.0, 128
    %1844 = vxpose.xlu0.b32.cont [7/16] 0.0, 128
    %1845 = vxpose.xlu0.b32.cont [8/16] 0.0, 128
    %1846 = vxpose.xlu0.b32.cont [9/16] 0.0, 128
    %1847 = vxpose.xlu0.b32.cont [10/16] 0.0, 128
    %1848 = vxpose.xlu0.b32.cont [11/16] 0.0, 128
    %1849 = vxpose.xlu0.b32.cont [12/16] 0.0, 128
    %1850 = vxpose.xlu0.b32.cont [13/16] 0.0, 128
    %1851 = vxpose.xlu0.b32.cont [14/16] 0.0, 128
    %1852 = vxpose.xlu0.b32.cont [15/16] 0.0, 128
    %1853 = vxpose.xlu0.b32.end [16/16] 0.0, 128
    %v1854 = vpop.trf.xlu0
    %v1855 = vpop.trf.xlu0
    %v1856 = vpop.trf.xlu0
    %v1857 = vpop.trf.xlu0
    %v1858 = vpop.trf.xlu0
    %v1859 = vpop.trf.xlu0
    %v1860 = vpop.trf.xlu0
    %v1861 = vpop.trf.xlu0
    %v1862 = vpop.trf.xlu0
    %v1863 = vpop.trf.xlu0
    %v1864 = vpop.trf.xlu0
    %v1865 = vpop.trf.xlu0
    %v1866 = vpop.trf.xlu0
    %v1867 = vpop.trf.xlu0
    %v1868 = vpop.trf.xlu0
    %v1869 = vpop.trf.xlu0
    %1870 = vxpose.xlu0.b32.start [1/16] %v1417, 128
    %1871 = vxpose.xlu0.b32.cont [2/16] 0.0, 128
    %1872 = vxpose.xlu0.b32.cont [3/16] 0.0, 128
    %1873 = vxpose.xlu0.b32.cont [4/16] 0.0, 128
    %1874 = vxpose.xlu0.b32.cont [5/16] 0.0, 128
    %1875 = vxpose.xlu0.b32.cont [6/16] 0.0, 128
    %1876 = vxpose.xlu0.b32.cont [7/16] 0.0, 128
    %1877 = vxpose.xlu0.b32.cont [8/16] 0.0, 128
    %1878 = vxpose.xlu0.b32.cont [9/16] 0.0, 128
    %1879 = vxpose.xlu0.b32.cont [10/16] 0.0, 128
    %1880 = vxpose.xlu0.b32.cont [11/16] 0.0, 128
    %1881 = vxpose.xlu0.b32.cont [12/16] 0.0, 128
    %1882 = vxpose.xlu0.b32.cont [13/16] 0.0, 128
    %1883 = vxpose.xlu0.b32.cont [14/16] 0.0, 128
    %1884 = vxpose.xlu0.b32.cont [15/16] 0.0, 128
    %1885 = vxpose.xlu0.b32.end [16/16] 0.0, 128
    %v1886 = vpop.trf.xlu0
    %v1887 = vpop.trf.xlu0
    %v1888 = vpop.trf.xlu0
    %v1889 = vpop.trf.xlu0
    %v1890 = vpop.trf.xlu0
    %v1891 = vpop.trf.xlu0
    %v1892 = vpop.trf.xlu0
    %v1893 = vpop.trf.xlu0
    %v1894 = vpop.trf.xlu0
    %v1895 = vpop.trf.xlu0
    %v1896 = vpop.trf.xlu0
    %v1897 = vpop.trf.xlu0
    %v1898 = vpop.trf.xlu0
    %v1899 = vpop.trf.xlu0
    %v1900 = vpop.trf.xlu0
    %v1901 = vpop.trf.xlu0
    %1902 = vxpose.xlu0.b32.start [1/16] %v1421, 128
    %1903 = vxpose.xlu0.b32.cont [2/16] 0.0, 128
    %1904 = vxpose.xlu0.b32.cont [3/16] 0.0, 128
    %1905 = vxpose.xlu0.b32.cont [4/16] 0.0, 128
    %1906 = vxpose.xlu0.b32.cont [5/16] 0.0, 128
    %1907 = vxpose.xlu0.b32.cont [6/16] 0.0, 128
    %1908 = vxpose.xlu0.b32.cont [7/16] 0.0, 128
    %1909 = vxpose.xlu0.b32.cont [8/16] 0.0, 128
    %1910 = vxpose.xlu0.b32.cont [9/16] 0.0, 128
    %1911 = vxpose.xlu0.b32.cont [10/16] 0.0, 128
    %1912 = vxpose.xlu0.b32.cont [11/16] 0.0, 128
    %1913 = vxpose.xlu0.b32.cont [12/16] 0.0, 128
    %1914 = vxpose.xlu0.b32.cont [13/16] 0.0, 128
    %1915 = vxpose.xlu0.b32.cont [14/16] 0.0, 128
    %1916 = vxpose.xlu0.b32.cont [15/16] 0.0, 128
    %1917 = vxpose.xlu0.b32.end [16/16] 0.0, 128
    %v1918 = vpop.trf.xlu0
    %v1919 = vpop.trf.xlu0
    %v1920 = vpop.trf.xlu0
    %v1921 = vpop.trf.xlu0
    %v1922 = vpop.trf.xlu0
    %v1923 = vpop.trf.xlu0
    %v1924 = vpop.trf.xlu0
    %v1925 = vpop.trf.xlu0
    %v1926 = vpop.trf.xlu0
    %v1927 = vpop.trf.xlu0
    %v1928 = vpop.trf.xlu0
    %v1929 = vpop.trf.xlu0
    %v1930 = vpop.trf.xlu0
    %v1931 = vpop.trf.xlu0
    %v1932 = vpop.trf.xlu0
    %v1933 = vpop.trf.xlu0
    %v1934 = vcombine.low %v1438, %v1502
    %v1935 = vcombine.high %v1438, %v1502
    %v1937 = vunpack.c.l.s4 1983009808
    %v1938 = vunpack.c.0.s8 %v1937
    %v1939 = vlaneseq
    %v1940 = vshrl.u32 %v1939, 7
    %v1941 = vsub.s32 %v1938, %v1940
    %v1942 = vrot.slane %v1934, %v1941
    %v1944 = vunpack.c.l.s4 1983009808
    %v1945 = vunpack.c.0.s8 %v1944
    %v1946 = vlaneseq
    %v1947 = vshrl.u32 %v1946, 7
    %v1948 = vsub.s32 %v1945, %v1947
    %v1949 = vrot.slane %v1935, %v1948
    %v1950 = vcombine.low %v1470, %v1534
    %v1951 = vcombine.high %v1470, %v1534
    %v1953 = vunpack.c.l.s4 1983009808
    %v1954 = vunpack.c.0.s8 %v1953
    %v1955 = vlaneseq
    %v1956 = vshrl.u32 %v1955, 7
    %v1957 = vsub.s32 %v1954, %v1956
    %v1958 = vrot.slane %v1950, %v1957
    %v1960 = vunpack.c.l.s4 1983009808
    %v1961 = vunpack.c.0.s8 %v1960
    %v1962 = vlaneseq
    %v1963 = vshrl.u32 %v1962, 7
    %v1964 = vsub.s32 %v1961, %v1963
    %v1965 = vrot.slane %v1951, %v1964
    %v1966 = vcombine.low %v1566, %v1630
    %v1967 = vcombine.high %v1566, %v1630
    %v1969 = vunpack.c.l.s4 1983009808
    %v1970 = vunpack.c.0.s8 %v1969
    %v1971 = vlaneseq
    %v1972 = vshrl.u32 %v1971, 7
    %v1973 = vsub.s32 %v1970, %v1972
    %v1974 = vrot.slane %v1966, %v1973
    %v1976 = vunpack.c.l.s4 1983009808
    %v1977 = vunpack.c.0.s8 %v1976
    %v1978 = vlaneseq
    %v1979 = vshrl.u32 %v1978, 7
    %v1980 = vsub.s32 %v1977, %v1979
    %v1981 = vrot.slane %v1967, %v1980
    %v1982 = vcombine.low %v1598, %v1662
    %v1983 = vcombine.high %v1598, %v1662
    %v1985 = vunpack.c.l.s4 1983009808
    %v1986 = vunpack.c.0.s8 %v1985
    %v1987 = vlaneseq
    %v1988 = vshrl.u32 %v1987, 7
    %v1989 = vsub.s32 %v1986, %v1988
    %v1990 = vrot.slane %v1982, %v1989
    %v1992 = vunpack.c.l.s4 1983009808
    %v1993 = vunpack.c.0.s8 %v1992
    %v1994 = vlaneseq
    %v1995 = vshrl.u32 %v1994, 7
    %v1996 = vsub.s32 %v1993, %v1995
    %v1997 = vrot.slane %v1983, %v1996
    %v1998 = vcombine.low %v1942, %v1958
    %v1999 = vcombine.high %v1942, %v1958
    %v2001 = vunpack.c.l.s4 1934713408
    %v2002 = vunpack.c.0.s8 %v2001
    %v2003 = vlaneseq
    %v2004 = vshrl.u32 %v2003, 7
    %v2005 = vsub.s32 %v2002, %v2004
    %v2006 = vrot.slane %v1998, %v2005
    %v2008 = vunpack.c.l.s4 1934713408
    %v2009 = vunpack.c.0.s8 %v2008
    %v2010 = vlaneseq
    %v2011 = vshrl.u32 %v2010, 7
    %v2012 = vsub.s32 %v2009, %v2011
    %v2013 = vrot.slane %v1999, %v2012
    %v2014 = vcombine.low %v1949, %v1965
    %v2015 = vcombine.high %v1949, %v1965
    %v2017 = vunpack.c.l.s4 1934713408
    %v2018 = vunpack.c.0.s8 %v2017
    %v2019 = vlaneseq
    %v2020 = vshrl.u32 %v2019, 7
    %v2021 = vsub.s32 %v2018, %v2020
    %v2022 = vrot.slane %v2014, %v2021
    %v2024 = vunpack.c.l.s4 1934713408
    %v2025 = vunpack.c.0.s8 %v2024
    %v2026 = vlaneseq
    %v2027 = vshrl.u32 %v2026, 7
    %v2028 = vsub.s32 %v2025, %v2027
    %v2029 = vrot.slane %v2015, %v2028
    %v2030 = vcombine.low %v1974, %v1990
    %v2031 = vcombine.high %v1974, %v1990
    %v2033 = vunpack.c.l.s4 1934713408
    %v2034 = vunpack.c.0.s8 %v2033
    %v2035 = vlaneseq
    %v2036 = vshrl.u32 %v2035, 7
    %v2037 = vsub.s32 %v2034, %v2036
    %v2038 = vrot.slane %v2030, %v2037
    %v2040 = vunpack.c.l.s4 1934713408
    %v2041 = vunpack.c.0.s8 %v2040
    %v2042 = vlaneseq
    %v2043 = vshrl.u32 %v2042, 7
    %v2044 = vsub.s32 %v2041, %v2043
    %v2045 = vrot.slane %v2031, %v2044
    %v2046 = vcombine.low %v1981, %v1997
    %v2047 = vcombine.high %v1981, %v1997
    %v2049 = vunpack.c.l.s4 1934713408
    %v2050 = vunpack.c.0.s8 %v2049
    %v2051 = vlaneseq
    %v2052 = vshrl.u32 %v2051, 7
    %v2053 = vsub.s32 %v2050, %v2052
    %v2054 = vrot.slane %v2046, %v2053
    %v2056 = vunpack.c.l.s4 1934713408
    %v2057 = vunpack.c.0.s8 %v2056
    %v2058 = vlaneseq
    %v2059 = vshrl.u32 %v2058, 7
    %v2060 = vsub.s32 %v2057, %v2059
    %v2061 = vrot.slane %v2047, %v2060
    %v2062 = vcombine.low %v2006, %v2038
    %v2063 = vcombine.high %v2006, %v2038
    %v2064 = vcombine.low %v2013, %v2045
    %v2065 = vcombine.high %v2013, %v2045
    %v2066 = vcombine.low %v2022, %v2054
    %v2067 = vcombine.high %v2022, %v2054
    %v2068 = vcombine.low %v2029, %v2061
    %v2069 = vcombine.high %v2029, %v2061
    %v2070 = vcombine.low %v1439, %v1503
    %v2071 = vcombine.high %v1439, %v1503
    %v2073 = vunpack.c.l.s4 1983009808
    %v2074 = vunpack.c.0.s8 %v2073
    %v2075 = vlaneseq
    %v2076 = vshrl.u32 %v2075, 7
    %v2077 = vsub.s32 %v2074, %v2076
    %v2078 = vrot.slane %v2070, %v2077
    %v2080 = vunpack.c.l.s4 1983009808
    %v2081 = vunpack.c.0.s8 %v2080
    %v2082 = vlaneseq
    %v2083 = vshrl.u32 %v2082, 7
    %v2084 = vsub.s32 %v2081, %v2083
    %v2085 = vrot.slane %v2071, %v2084
    %v2086 = vcombine.low %v1471, %v1535
    %v2087 = vcombine.high %v1471, %v1535
    %v2089 = vunpack.c.l.s4 1983009808
    %v2090 = vunpack.c.0.s8 %v2089
    %v2091 = vlaneseq
    %v2092 = vshrl.u32 %v2091, 7
    %v2093 = vsub.s32 %v2090, %v2092
    %v2094 = vrot.slane %v2086, %v2093
    %v2096 = vunpack.c.l.s4 1983009808
    %v2097 = vunpack.c.0.s8 %v2096
    %v2098 = vlaneseq
    %v2099 = vshrl.u32 %v2098, 7
    %v2100 = vsub.s32 %v2097, %v2099
    %v2101 = vrot.slane %v2087, %v2100
    %v2102 = vcombine.low %v1567, %v1631
    %v2103 = vcombine.high %v1567, %v1631
    %v2105 = vunpack.c.l.s4 1983009808
    %v2106 = vunpack.c.0.s8 %v2105
    %v2107 = vlaneseq
    %v2108 = vshrl.u32 %v2107, 7
    %v2109 = vsub.s32 %v2106, %v2108
    %v2110 = vrot.slane %v2102, %v2109
    %v2112 = vunpack.c.l.s4 1983009808
    %v2113 = vunpack.c.0.s8 %v2112
    %v2114 = vlaneseq
    %v2115 = vshrl.u32 %v2114, 7
    %v2116 = vsub.s32 %v2113, %v2115
    %v2117 = vrot.slane %v2103, %v2116
    %v2118 = vcombine.low %v1599, %v1663
    %v2119 = vcombine.high %v1599, %v1663
    %v2121 = vunpack.c.l.s4 1983009808
    %v2122 = vunpack.c.0.s8 %v2121
    %v2123 = vlaneseq
    %v2124 = vshrl.u32 %v2123, 7
    %v2125 = vsub.s32 %v2122, %v2124
    %v2126 = vrot.slane %v2118, %v2125
    %v2128 = vunpack.c.l.s4 1983009808
    %v2129 = vunpack.c.0.s8 %v2128
    %v2130 = vlaneseq
    %v2131 = vshrl.u32 %v2130, 7
    %v2132 = vsub.s32 %v2129, %v2131
    %v2133 = vrot.slane %v2119, %v2132
    %v2134 = vcombine.low %v2078, %v2094
    %v2135 = vcombine.high %v2078, %v2094
    %v2137 = vunpack.c.l.s4 1934713408
    %v2138 = vunpack.c.0.s8 %v2137
    %v2139 = vlaneseq
    %v2140 = vshrl.u32 %v2139, 7
    %v2141 = vsub.s32 %v2138, %v2140
    %v2142 = vrot.slane %v2134, %v2141
    %v2144 = vunpack.c.l.s4 1934713408
    %v2145 = vunpack.c.0.s8 %v2144
    %v2146 = vlaneseq
    %v2147 = vshrl.u32 %v2146, 7
    %v2148 = vsub.s32 %v2145, %v2147
    %v2149 = vrot.slane %v2135, %v2148
    %v2150 = vcombine.low %v2085, %v2101
    %v2151 = vcombine.high %v2085, %v2101
    %v2153 = vunpack.c.l.s4 1934713408
    %v2154 = vunpack.c.0.s8 %v2153
    %v2155 = vlaneseq
    %v2156 = vshrl.u32 %v2155, 7
    %v2157 = vsub.s32 %v2154, %v2156
    %v2158 = vrot.slane %v2150, %v2157
    %v2160 = vunpack.c.l.s4 1934713408
    %v2161 = vunpack.c.0.s8 %v2160
    %v2162 = vlaneseq
    %v2163 = vshrl.u32 %v2162, 7
    %v2164 = vsub.s32 %v2161, %v2163
    %v2165 = vrot.slane %v2151, %v2164
    %v2166 = vcombine.low %v2110, %v2126
    %v2167 = vcombine.high %v2110, %v2126
    %v2169 = vunpack.c.l.s4 1934713408
    %v2170 = vunpack.c.0.s8 %v2169
    %v2171 = vlaneseq
    %v2172 = vshrl.u32 %v2171, 7
    %v2173 = vsub.s32 %v2170, %v2172
    %v2174 = vrot.slane %v2166, %v2173
    %v2176 = vunpack.c.l.s4 1934713408
    %v2177 = vunpack.c.0.s8 %v2176
    %v2178 = vlaneseq
    %v2179 = vshrl.u32 %v2178, 7
    %v2180 = vsub.s32 %v2177, %v2179
    %v2181 = vrot.slane %v2167, %v2180
    %v2182 = vcombine.low %v2117, %v2133
    %v2183 = vcombine.high %v2117, %v2133
    %v2185 = vunpack.c.l.s4 1934713408
    %v2186 = vunpack.c.0.s8 %v2185
    %v2187 = vlaneseq
    %v2188 = vshrl.u32 %v2187, 7
    %v2189 = vsub.s32 %v2186, %v2188
    %v2190 = vrot.slane %v2182, %v2189
    %v2192 = vunpack.c.l.s4 1934713408
    %v2193 = vunpack.c.0.s8 %v2192
    %v2194 = vlaneseq
    %v2195 = vshrl.u32 %v2194, 7
    %v2196 = vsub.s32 %v2193, %v2195
    %v2197 = vrot.slane %v2183, %v2196
    %v2198 = vcombine.low %v2142, %v2174
    %v2199 = vcombine.high %v2142, %v2174
    %v2200 = vcombine.low %v2149, %v2181
    %v2201 = vcombine.high %v2149, %v2181
    %v2202 = vcombine.low %v2158, %v2190
    %v2203 = vcombine.high %v2158, %v2190
    %v2204 = vcombine.low %v2165, %v2197
    %v2205 = vcombine.high %v2165, %v2197
    %v2206 = vcombine.low %v1694, %v1758
    %v2207 = vcombine.high %v1694, %v1758
    %v2209 = vunpack.c.l.s4 1983009808
    %v2210 = vunpack.c.0.s8 %v2209
    %v2211 = vlaneseq
    %v2212 = vshrl.u32 %v2211, 7
    %v2213 = vsub.s32 %v2210, %v2212
    %v2214 = vrot.slane %v2206, %v2213
    %v2216 = vunpack.c.l.s4 1983009808
    %v2217 = vunpack.c.0.s8 %v2216
    %v2218 = vlaneseq
    %v2219 = vshrl.u32 %v2218, 7
    %v2220 = vsub.s32 %v2217, %v2219
    %v2221 = vrot.slane %v2207, %v2220
    %v2222 = vcombine.low %v1726, %v1790
    %v2223 = vcombine.high %v1726, %v1790
    %v2225 = vunpack.c.l.s4 1983009808
    %v2226 = vunpack.c.0.s8 %v2225
    %v2227 = vlaneseq
    %v2228 = vshrl.u32 %v2227, 7
    %v2229 = vsub.s32 %v2226, %v2228
    %v2230 = vrot.slane %v2222, %v2229
    %v2232 = vunpack.c.l.s4 1983009808
    %v2233 = vunpack.c.0.s8 %v2232
    %v2234 = vlaneseq
    %v2235 = vshrl.u32 %v2234, 7
    %v2236 = vsub.s32 %v2233, %v2235
    %v2237 = vrot.slane %v2223, %v2236
    %v2238 = vcombine.low %v1822, %v1886
    %v2239 = vcombine.high %v1822, %v1886
    %v2241 = vunpack.c.l.s4 1983009808
    %v2242 = vunpack.c.0.s8 %v2241
    %v2243 = vlaneseq
    %v2244 = vshrl.u32 %v2243, 7
    %v2245 = vsub.s32 %v2242, %v2244
    %v2246 = vrot.slane %v2238, %v2245
    %v2248 = vunpack.c.l.s4 1983009808
    %v2249 = vunpack.c.0.s8 %v2248
    %v2250 = vlaneseq
    %v2251 = vshrl.u32 %v2250, 7
    %v2252 = vsub.s32 %v2249, %v2251
    %v2253 = vrot.slane %v2239, %v2252
    %v2254 = vcombine.low %v1854, %v1918
    %v2255 = vcombine.high %v1854, %v1918
    %v2257 = vunpack.c.l.s4 1983009808
    %v2258 = vunpack.c.0.s8 %v2257
    %v2259 = vlaneseq
    %v2260 = vshrl.u32 %v2259, 7
    %v2261 = vsub.s32 %v2258, %v2260
    %v2262 = vrot.slane %v2254, %v2261
    %v2264 = vunpack.c.l.s4 1983009808
    %v2265 = vunpack.c.0.s8 %v2264
    %v2266 = vlaneseq
    %v2267 = vshrl.u32 %v2266, 7
    %v2268 = vsub.s32 %v2265, %v2267
    %v2269 = vrot.slane %v2255, %v2268
    %v2270 = vcombine.low %v2214, %v2230
    %v2271 = vcombine.high %v2214, %v2230
    %v2273 = vunpack.c.l.s4 1934713408
    %v2274 = vunpack.c.0.s8 %v2273
    %v2275 = vlaneseq
    %v2276 = vshrl.u32 %v2275, 7
    %v2277 = vsub.s32 %v2274, %v2276
    %v2278 = vrot.slane %v2270, %v2277
    %v2280 = vunpack.c.l.s4 1934713408
    %v2281 = vunpack.c.0.s8 %v2280
    %v2282 = vlaneseq
    %v2283 = vshrl.u32 %v2282, 7
    %v2284 = vsub.s32 %v2281, %v2283
    %v2285 = vrot.slane %v2271, %v2284
    %v2286 = vcombine.low %v2221, %v2237
    %v2287 = vcombine.high %v2221, %v2237
    %v2289 = vunpack.c.l.s4 1934713408
    %v2290 = vunpack.c.0.s8 %v2289
    %v2291 = vlaneseq
    %v2292 = vshrl.u32 %v2291, 7
    %v2293 = vsub.s32 %v2290, %v2292
    %v2294 = vrot.slane %v2286, %v2293
    %v2296 = vunpack.c.l.s4 1934713408
    %v2297 = vunpack.c.0.s8 %v2296
    %v2298 = vlaneseq
    %v2299 = vshrl.u32 %v2298, 7
    %v2300 = vsub.s32 %v2297, %v2299
    %v2301 = vrot.slane %v2287, %v2300
    %v2302 = vcombine.low %v2246, %v2262
    %v2303 = vcombine.high %v2246, %v2262
    %v2305 = vunpack.c.l.s4 1934713408
    %v2306 = vunpack.c.0.s8 %v2305
    %v2307 = vlaneseq
    %v2308 = vshrl.u32 %v2307, 7
    %v2309 = vsub.s32 %v2306, %v2308
    %v2310 = vrot.slane %v2302, %v2309
    %v2312 = vunpack.c.l.s4 1934713408
    %v2313 = vunpack.c.0.s8 %v2312
    %v2314 = vlaneseq
    %v2315 = vshrl.u32 %v2314, 7
    %v2316 = vsub.s32 %v2313, %v2315
    %v2317 = vrot.slane %v2303, %v2316
    %v2318 = vcombine.low %v2253, %v2269
    %v2319 = vcombine.high %v2253, %v2269
    %v2321 = vunpack.c.l.s4 1934713408
    %v2322 = vunpack.c.0.s8 %v2321
    %v2323 = vlaneseq
    %v2324 = vshrl.u32 %v2323, 7
    %v2325 = vsub.s32 %v2322, %v2324
    %v2326 = vrot.slane %v2318, %v2325
    %v2328 = vunpack.c.l.s4 1934713408
    %v2329 = vunpack.c.0.s8 %v2328
    %v2330 = vlaneseq
    %v2331 = vshrl.u32 %v2330, 7
    %v2332 = vsub.s32 %v2329, %v2331
    %v2333 = vrot.slane %v2319, %v2332
    %v2334 = vcombine.low %v2278, %v2310
    %v2335 = vcombine.high %v2278, %v2310
    %v2336 = vcombine.low %v2285, %v2317
    %v2337 = vcombine.high %v2285, %v2317
    %v2338 = vcombine.low %v2294, %v2326
    %v2339 = vcombine.high %v2294, %v2326
    %v2340 = vcombine.low %v2301, %v2333
    %v2341 = vcombine.high %v2301, %v2333
    %v2342 = vcombine.low %v1695, %v1759
    %v2343 = vcombine.high %v1695, %v1759
    %v2345 = vunpack.c.l.s4 1983009808
    %v2346 = vunpack.c.0.s8 %v2345
    %v2347 = vlaneseq
    %v2348 = vshrl.u32 %v2347, 7
    %v2349 = vsub.s32 %v2346, %v2348
    %v2350 = vrot.slane %v2342, %v2349
    %v2352 = vunpack.c.l.s4 1983009808
    %v2353 = vunpack.c.0.s8 %v2352
    %v2354 = vlaneseq
    %v2355 = vshrl.u32 %v2354, 7
    %v2356 = vsub.s32 %v2353, %v2355
    %v2357 = vrot.slane %v2343, %v2356
    %v2358 = vcombine.low %v1727, %v1791
    %v2359 = vcombine.high %v1727, %v1791
    %v2361 = vunpack.c.l.s4 1983009808
    %v2362 = vunpack.c.0.s8 %v2361
    %v2363 = vlaneseq
    %v2364 = vshrl.u32 %v2363, 7
    %v2365 = vsub.s32 %v2362, %v2364
    %v2366 = vrot.slane %v2358, %v2365
    %v2368 = vunpack.c.l.s4 1983009808
    %v2369 = vunpack.c.0.s8 %v2368
    %v2370 = vlaneseq
    %v2371 = vshrl.u32 %v2370, 7
    %v2372 = vsub.s32 %v2369, %v2371
    %v2373 = vrot.slane %v2359, %v2372
    %v2374 = vcombine.low %v1823, %v1887
    %v2375 = vcombine.high %v1823, %v1887
    %v2377 = vunpack.c.l.s4 1983009808
    %v2378 = vunpack.c.0.s8 %v2377
    %v2379 = vlaneseq
    %v2380 = vshrl.u32 %v2379, 7
    %v2381 = vsub.s32 %v2378, %v2380
    %v2382 = vrot.slane %v2374, %v2381
    %v2384 = vunpack.c.l.s4 1983009808
    %v2385 = vunpack.c.0.s8 %v2384
    %v2386 = vlaneseq
    %v2387 = vshrl.u32 %v2386, 7
    %v2388 = vsub.s32 %v2385, %v2387
    %v2389 = vrot.slane %v2375, %v2388
    %v2390 = vcombine.low %v1855, %v1919
    %v2391 = vcombine.high %v1855, %v1919
    %v2393 = vunpack.c.l.s4 1983009808
    %v2394 = vunpack.c.0.s8 %v2393
    %v2395 = vlaneseq
    %v2396 = vshrl.u32 %v2395, 7
    %v2397 = vsub.s32 %v2394, %v2396
    %v2398 = vrot.slane %v2390, %v2397
    %v2400 = vunpack.c.l.s4 1983009808
    %v2401 = vunpack.c.0.s8 %v2400
    %v2402 = vlaneseq
    %v2403 = vshrl.u32 %v2402, 7
    %v2404 = vsub.s32 %v2401, %v2403
    %v2405 = vrot.slane %v2391, %v2404
    %v2406 = vcombine.low %v2350, %v2366
    %v2407 = vcombine.high %v2350, %v2366
    %v2409 = vunpack.c.l.s4 1934713408
    %v2410 = vunpack.c.0.s8 %v2409
    %v2411 = vlaneseq
    %v2412 = vshrl.u32 %v2411, 7
    %v2413 = vsub.s32 %v2410, %v2412
    %v2414 = vrot.slane %v2406, %v2413
    %v2416 = vunpack.c.l.s4 1934713408
    %v2417 = vunpack.c.0.s8 %v2416
    %v2418 = vlaneseq
    %v2419 = vshrl.u32 %v2418, 7
    %v2420 = vsub.s32 %v2417, %v2419
    %v2421 = vrot.slane %v2407, %v2420
    %v2422 = vcombine.low %v2357, %v2373
    %v2423 = vcombine.high %v2357, %v2373
    %v2425 = vunpack.c.l.s4 1934713408
    %v2426 = vunpack.c.0.s8 %v2425
    %v2427 = vlaneseq
    %v2428 = vshrl.u32 %v2427, 7
    %v2429 = vsub.s32 %v2426, %v2428
    %v2430 = vrot.slane %v2422, %v2429
    %v2432 = vunpack.c.l.s4 1934713408
    %v2433 = vunpack.c.0.s8 %v2432
    %v2434 = vlaneseq
    %v2435 = vshrl.u32 %v2434, 7
    %v2436 = vsub.s32 %v2433, %v2435
    %v2437 = vrot.slane %v2423, %v2436
    %v2438 = vcombine.low %v2382, %v2398
    %v2439 = vcombine.high %v2382, %v2398
    %v2441 = vunpack.c.l.s4 1934713408
    %v2442 = vunpack.c.0.s8 %v2441
    %v2443 = vlaneseq
    %v2444 = vshrl.u32 %v2443, 7
    %v2445 = vsub.s32 %v2442, %v2444
    %v2446 = vrot.slane %v2438, %v2445
    %v2448 = vunpack.c.l.s4 1934713408
    %v2449 = vunpack.c.0.s8 %v2448
    %v2450 = vlaneseq
    %v2451 = vshrl.u32 %v2450, 7
    %v2452 = vsub.s32 %v2449, %v2451
    %v2453 = vrot.slane %v2439, %v2452
    %v2454 = vcombine.low %v2389, %v2405
    %v2455 = vcombine.high %v2389, %v2405
    %v2457 = vunpack.c.l.s4 1934713408
    %v2458 = vunpack.c.0.s8 %v2457
    %v2459 = vlaneseq
    %v2460 = vshrl.u32 %v2459, 7
    %v2461 = vsub.s32 %v2458, %v2460
    %v2462 = vrot.slane %v2454, %v2461
    %v2464 = vunpack.c.l.s4 1934713408
    %v2465 = vunpack.c.0.s8 %v2464
    %v2466 = vlaneseq
    %v2467 = vshrl.u32 %v2466, 7
    %v2468 = vsub.s32 %v2465, %v2467
    %v2469 = vrot.slane %v2455, %v2468
    %v2470 = vcombine.low %v2414, %v2446
    %v2471 = vcombine.high %v2414, %v2446
    %v2472 = vcombine.low %v2421, %v2453
    %v2473 = vcombine.high %v2421, %v2453
    %v2474 = vcombine.low %v2430, %v2462
    %v2475 = vcombine.high %v2430, %v2462
    %v2476 = vcombine.low %v2437, %v2469
    %v2477 = vcombine.high %v2437, %v2469
    %2478 = vxpose.xlu0.b32.start [1/16] %v2062, 128
    %2479 = vxpose.xlu0.b32.cont [2/16] 0.0, 128
    %2480 = vxpose.xlu0.b32.cont [3/16] 0.0, 128
    %2481 = vxpose.xlu0.b32.cont [4/16] 0.0, 128
    %2482 = vxpose.xlu0.b32.cont [5/16] 0.0, 128
    %2483 = vxpose.xlu0.b32.cont [6/16] 0.0, 128
    %2484 = vxpose.xlu0.b32.cont [7/16] 0.0, 128
    %2485 = vxpose.xlu0.b32.cont [8/16] 0.0, 128
    %2486 = vxpose.xlu0.b32.cont [9/16] 0.0, 128
    %2487 = vxpose.xlu0.b32.cont [10/16] 0.0, 128
    %2488 = vxpose.xlu0.b32.cont [11/16] 0.0, 128
    %2489 = vxpose.xlu0.b32.cont [12/16] 0.0, 128
    %2490 = vxpose.xlu0.b32.cont [13/16] 0.0, 128
    %2491 = vxpose.xlu0.b32.cont [14/16] 0.0, 128
    %2492 = vxpose.xlu0.b32.cont [15/16] 0.0, 128
    %2493 = vxpose.xlu0.b32.end [16/16] 0.0, 128
    %v2494 = vpop.trf.xlu0
    %v2495 = vpop.trf.xlu0
    %v2496 = vpop.trf.xlu0
    %v2497 = vpop.trf.xlu0
    %v2498 = vpop.trf.xlu0
    %v2499 = vpop.trf.xlu0
    %v2500 = vpop.trf.xlu0
    %v2501 = vpop.trf.xlu0
    %v2502 = vpop.trf.xlu0
    %v2503 = vpop.trf.xlu0
    %v2504 = vpop.trf.xlu0
    %v2505 = vpop.trf.xlu0
    %v2506 = vpop.trf.xlu0
    %v2507 = vpop.trf.xlu0
    %v2508 = vpop.trf.xlu0
    %v2509 = vpop.trf.xlu0
    %2510 = vxpose.xlu0.b32.start [1/16] %v2063, 128
    %2511 = vxpose.xlu0.b32.cont [2/16] 0.0, 128
    %2512 = vxpose.xlu0.b32.cont [3/16] 0.0, 128
    %2513 = vxpose.xlu0.b32.cont [4/16] 0.0, 128
    %2514 = vxpose.xlu0.b32.cont [5/16] 0.0, 128
    %2515 = vxpose.xlu0.b32.cont [6/16] 0.0, 128
    %2516 = vxpose.xlu0.b32.cont [7/16] 0.0, 128
    %2517 = vxpose.xlu0.b32.cont [8/16] 0.0, 128
    %2518 = vxpose.xlu0.b32.cont [9/16] 0.0, 128
    %2519 = vxpose.xlu0.b32.cont [10/16] 0.0, 128
    %2520 = vxpose.xlu0.b32.cont [11/16] 0.0, 128
    %2521 = vxpose.xlu0.b32.cont [12/16] 0.0, 128
    %2522 = vxpose.xlu0.b32.cont [13/16] 0.0, 128
    %2523 = vxpose.xlu0.b32.cont [14/16] 0.0, 128
    %2524 = vxpose.xlu0.b32.cont [15/16] 0.0, 128
    %2525 = vxpose.xlu0.b32.end [16/16] 0.0, 128
    %v2526 = vpop.trf.xlu0
    %v2527 = vpop.trf.xlu0
    %v2528 = vpop.trf.xlu0
    %v2529 = vpop.trf.xlu0
    %v2530 = vpop.trf.xlu0
    %v2531 = vpop.trf.xlu0
    %v2532 = vpop.trf.xlu0
    %v2533 = vpop.trf.xlu0
    %v2534 = vpop.trf.xlu0
    %v2535 = vpop.trf.xlu0
    %v2536 = vpop.trf.xlu0
    %v2537 = vpop.trf.xlu0
    %v2538 = vpop.trf.xlu0
    %v2539 = vpop.trf.xlu0
    %v2540 = vpop.trf.xlu0
    %v2541 = vpop.trf.xlu0
    %2542 = vxpose.xlu0.b32.start [1/16] %v2064, 128
    %2543 = vxpose.xlu0.b32.cont [2/16] 0.0, 128
    %2544 = vxpose.xlu0.b32.cont [3/16] 0.0, 128
    %2545 = vxpose.xlu0.b32.cont [4/16] 0.0, 128
    %2546 = vxpose.xlu0.b32.cont [5/16] 0.0, 128
    %2547 = vxpose.xlu0.b32.cont [6/16] 0.0, 128
    %2548 = vxpose.xlu0.b32.cont [7/16] 0.0, 128
    %2549 = vxpose.xlu0.b32.cont [8/16] 0.0, 128
    %2550 = vxpose.xlu0.b32.cont [9/16] 0.0, 128
    %2551 = vxpose.xlu0.b32.cont [10/16] 0.0, 128
    %2552 = vxpose.xlu0.b32.cont [11/16] 0.0, 128
    %2553 = vxpose.xlu0.b32.cont [12/16] 0.0, 128
    %2554 = vxpose.xlu0.b32.cont [13/16] 0.0, 128
    %2555 = vxpose.xlu0.b32.cont [14/16] 0.0, 128
    %2556 = vxpose.xlu0.b32.cont [15/16] 0.0, 128
    %2557 = vxpose.xlu0.b32.end [16/16] 0.0, 128
    %v2558 = vpop.trf.xlu0
    %v2559 = vpop.trf.xlu0
    %v2560 = vpop.trf.xlu0
    %v2561 = vpop.trf.xlu0
    %v2562 = vpop.trf.xlu0
    %v2563 = vpop.trf.xlu0
    %v2564 = vpop.trf.xlu0
    %v2565 = vpop.trf.xlu0
    %v2566 = vpop.trf.xlu0
    %v2567 = vpop.trf.xlu0
    %v2568 = vpop.trf.xlu0
    %v2569 = vpop.trf.xlu0
    %v2570 = vpop.trf.xlu0
    %v2571 = vpop.trf.xlu0
    %v2572 = vpop.trf.xlu0
    %v2573 = vpop.trf.xlu0
    %2574 = vxpose.xlu0.b32.start [1/16] %v2065, 128
    %2575 = vxpose.xlu0.b32.cont [2/16] 0.0, 128
    %2576 = vxpose.xlu0.b32.cont [3/16] 0.0, 128
    %2577 = vxpose.xlu0.b32.cont [4/16] 0.0, 128
    %2578 = vxpose.xlu0.b32.cont [5/16] 0.0, 128
    %2579 = vxpose.xlu0.b32.cont [6/16] 0.0, 128
    %2580 = vxpose.xlu0.b32.cont [7/16] 0.0, 128
    %2581 = vxpose.xlu0.b32.cont [8/16] 0.0, 128
    %2582 = vxpose.xlu0.b32.cont [9/16] 0.0, 128
    %2583 = vxpose.xlu0.b32.cont [10/16] 0.0, 128
    %2584 = vxpose.xlu0.b32.cont [11/16] 0.0, 128
    %2585 = vxpose.xlu0.b32.cont [12/16] 0.0, 128
    %2586 = vxpose.xlu0.b32.cont [13/16] 0.0, 128
    %2587 = vxpose.xlu0.b32.cont [14/16] 0.0, 128
    %2588 = vxpose.xlu0.b32.cont [15/16] 0.0, 128
    %2589 = vxpose.xlu0.b32.end [16/16] 0.0, 128
    %v2590 = vpop.trf.xlu0
    %v2591 = vpop.trf.xlu0
    %v2592 = vpop.trf.xlu0
    %v2593 = vpop.trf.xlu0
    %v2594 = vpop.trf.xlu0
    %v2595 = vpop.trf.xlu0
    %v2596 = vpop.trf.xlu0
    %v2597 = vpop.trf.xlu0
    %v2598 = vpop.trf.xlu0
    %v2599 = vpop.trf.xlu0
    %v2600 = vpop.trf.xlu0
    %v2601 = vpop.trf.xlu0
    %v2602 = vpop.trf.xlu0
    %v2603 = vpop.trf.xlu0
    %v2604 = vpop.trf.xlu0
    %v2605 = vpop.trf.xlu0
    %2606 = vxpose.xlu0.b32.start [1/16] %v2066, 128
    %2607 = vxpose.xlu0.b32.cont [2/16] 0.0, 128
    %2608 = vxpose.xlu0.b32.cont [3/16] 0.0, 128
    %2609 = vxpose.xlu0.b32.cont [4/16] 0.0, 128
    %2610 = vxpose.xlu0.b32.cont [5/16] 0.0, 128
    %2611 = vxpose.xlu0.b32.cont [6/16] 0.0, 128
    %2612 = vxpose.xlu0.b32.cont [7/16] 0.0, 128
    %2613 = vxpose.xlu0.b32.cont [8/16] 0.0, 128
    %2614 = vxpose.xlu0.b32.cont [9/16] 0.0, 128
    %2615 = vxpose.xlu0.b32.cont [10/16] 0.0, 128
    %2616 = vxpose.xlu0.b32.cont [11/16] 0.0, 128
    %2617 = vxpose.xlu0.b32.cont [12/16] 0.0, 128
    %2618 = vxpose.xlu0.b32.cont [13/16] 0.0, 128
    %2619 = vxpose.xlu0.b32.cont [14/16] 0.0, 128
    %2620 = vxpose.xlu0.b32.cont [15/16] 0.0, 128
    %2621 = vxpose.xlu0.b32.end [16/16] 0.0, 128
    %v2622 = vpop.trf.xlu0
    %v2623 = vpop.trf.xlu0
    %v2624 = vpop.trf.xlu0
    %v2625 = vpop.trf.xlu0
    %v2626 = vpop.trf.xlu0
    %v2627 = vpop.trf.xlu0
    %v2628 = vpop.trf.xlu0
    %v2629 = vpop.trf.xlu0
    %v2630 = vpop.trf.xlu0
    %v2631 = vpop.trf.xlu0
    %v2632 = vpop.trf.xlu0
    %v2633 = vpop.trf.xlu0
    %v2634 = vpop.trf.xlu0
    %v2635 = vpop.trf.xlu0
    %v2636 = vpop.trf.xlu0
    %v2637 = vpop.trf.xlu0
    %2638 = vxpose.xlu0.b32.start [1/16] %v2067, 128
    %2639 = vxpose.xlu0.b32.cont [2/16] 0.0, 128
    %2640 = vxpose.xlu0.b32.cont [3/16] 0.0, 128
    %2641 = vxpose.xlu0.b32.cont [4/16] 0.0, 128
    %2642 = vxpose.xlu0.b32.cont [5/16] 0.0, 128
    %2643 = vxpose.xlu0.b32.cont [6/16] 0.0, 128
    %2644 = vxpose.xlu0.b32.cont [7/16] 0.0, 128
    %2645 = vxpose.xlu0.b32.cont [8/16] 0.0, 128
    %2646 = vxpose.xlu0.b32.cont [9/16] 0.0, 128
    %2647 = vxpose.xlu0.b32.cont [10/16] 0.0, 128
    %2648 = vxpose.xlu0.b32.cont [11/16] 0.0, 128
    %2649 = vxpose.xlu0.b32.cont [12/16] 0.0, 128
    %2650 = vxpose.xlu0.b32.cont [13/16] 0.0, 128
    %2651 = vxpose.xlu0.b32.cont [14/16] 0.0, 128
    %2652 = vxpose.xlu0.b32.cont [15/16] 0.0, 128
    %2653 = vxpose.xlu0.b32.end [16/16] 0.0, 128
    %v2654 = vpop.trf.xlu0
    %v2655 = vpop.trf.xlu0
    %v2656 = vpop.trf.xlu0
    %v2657 = vpop.trf.xlu0
    %v2658 = vpop.trf.xlu0
    %v2659 = vpop.trf.xlu0
    %v2660 = vpop.trf.xlu0
    %v2661 = vpop.trf.xlu0
    %v2662 = vpop.trf.xlu0
    %v2663 = vpop.trf.xlu0
    %v2664 = vpop.trf.xlu0
    %v2665 = vpop.trf.xlu0
    %v2666 = vpop.trf.xlu0
    %v2667 = vpop.trf.xlu0
    %v2668 = vpop.trf.xlu0
    %v2669 = vpop.trf.xlu0
    %2670 = vxpose.xlu0.b32.start [1/16] %v2068, 128
    %2671 = vxpose.xlu0.b32.cont [2/16] 0.0, 128
    %2672 = vxpose.xlu0.b32.cont [3/16] 0.0, 128
    %2673 = vxpose.xlu0.b32.cont [4/16] 0.0, 128
    %2674 = vxpose.xlu0.b32.cont [5/16] 0.0, 128
    %2675 = vxpose.xlu0.b32.cont [6/16] 0.0, 128
    %2676 = vxpose.xlu0.b32.cont [7/16] 0.0, 128
    %2677 = vxpose.xlu0.b32.cont [8/16] 0.0, 128
    %2678 = vxpose.xlu0.b32.cont [9/16] 0.0, 128
    %2679 = vxpose.xlu0.b32.cont [10/16] 0.0, 128
    %2680 = vxpose.xlu0.b32.cont [11/16] 0.0, 128
    %2681 = vxpose.xlu0.b32.cont [12/16] 0.0, 128
    %2682 = vxpose.xlu0.b32.cont [13/16] 0.0, 128
    %2683 = vxpose.xlu0.b32.cont [14/16] 0.0, 128
    %2684 = vxpose.xlu0.b32.cont [15/16] 0.0, 128
    %2685 = vxpose.xlu0.b32.end [16/16] 0.0, 128
    %v2686 = vpop.trf.xlu0
    %v2687 = vpop.trf.xlu0
    %v2688 = vpop.trf.xlu0
    %v2689 = vpop.trf.xlu0
    %v2690 = vpop.trf.xlu0
    %v2691 = vpop.trf.xlu0
    %v2692 = vpop.trf.xlu0
    %v2693 = vpop.trf.xlu0
    %v2694 = vpop.trf.xlu0
    %v2695 = vpop.trf.xlu0
    %v2696 = vpop.trf.xlu0
    %v2697 = vpop.trf.xlu0
    %v2698 = vpop.trf.xlu0
    %v2699 = vpop.trf.xlu0
    %v2700 = vpop.trf.xlu0
    %v2701 = vpop.trf.xlu0
    %2702 = vxpose.xlu0.b32.start [1/16] %v2069, 128
    %2703 = vxpose.xlu0.b32.cont [2/16] 0.0, 128
    %2704 = vxpose.xlu0.b32.cont [3/16] 0.0, 128
    %2705 = vxpose.xlu0.b32.cont [4/16] 0.0, 128
    %2706 = vxpose.xlu0.b32.cont [5/16] 0.0, 128
    %2707 = vxpose.xlu0.b32.cont [6/16] 0.0, 128
    %2708 = vxpose.xlu0.b32.cont [7/16] 0.0, 128
    %2709 = vxpose.xlu0.b32.cont [8/16] 0.0, 128
    %2710 = vxpose.xlu0.b32.cont [9/16] 0.0, 128
    %2711 = vxpose.xlu0.b32.cont [10/16] 0.0, 128
    %2712 = vxpose.xlu0.b32.cont [11/16] 0.0, 128
    %2713 = vxpose.xlu0.b32.cont [12/16] 0.0, 128
    %2714 = vxpose.xlu0.b32.cont [13/16] 0.0, 128
    %2715 = vxpose.xlu0.b32.cont [14/16] 0.0, 128
    %2716 = vxpose.xlu0.b32.cont [15/16] 0.0, 128
    %2717 = vxpose.xlu0.b32.end [16/16] 0.0, 128
    %v2718 = vpop.trf.xlu0
    %v2719 = vpop.trf.xlu0
    %v2720 = vpop.trf.xlu0
    %v2721 = vpop.trf.xlu0
    %v2722 = vpop.trf.xlu0
    %v2723 = vpop.trf.xlu0
    %v2724 = vpop.trf.xlu0
    %v2725 = vpop.trf.xlu0
    %v2726 = vpop.trf.xlu0
    %v2727 = vpop.trf.xlu0
    %v2728 = vpop.trf.xlu0
    %v2729 = vpop.trf.xlu0
    %v2730 = vpop.trf.xlu0
    %v2731 = vpop.trf.xlu0
    %v2732 = vpop.trf.xlu0
    %v2733 = vpop.trf.xlu0
    %2734 = vxpose.xlu0.b32.start [1/16] %v2198, 128
    %2735 = vxpose.xlu0.b32.cont [2/16] 0.0, 128
    %2736 = vxpose.xlu0.b32.cont [3/16] 0.0, 128
    %2737 = vxpose.xlu0.b32.cont [4/16] 0.0, 128
    %2738 = vxpose.xlu0.b32.cont [5/16] 0.0, 128
    %2739 = vxpose.xlu0.b32.cont [6/16] 0.0, 128
    %2740 = vxpose.xlu0.b32.cont [7/16] 0.0, 128
    %2741 = vxpose.xlu0.b32.cont [8/16] 0.0, 128
    %2742 = vxpose.xlu0.b32.cont [9/16] 0.0, 128
    %2743 = vxpose.xlu0.b32.cont [10/16] 0.0, 128
    %2744 = vxpose.xlu0.b32.cont [11/16] 0.0, 128
    %2745 = vxpose.xlu0.b32.cont [12/16] 0.0, 128
    %2746 = vxpose.xlu0.b32.cont [13/16] 0.0, 128
    %2747 = vxpose.xlu0.b32.cont [14/16] 0.0, 128
    %2748 = vxpose.xlu0.b32.cont [15/16] 0.0, 128
    %2749 = vxpose.xlu0.b32.end [16/16] 0.0, 128
    %v2750 = vpop.trf.xlu0
    %v2751 = vpop.trf.xlu0
    %v2752 = vpop.trf.xlu0
    %v2753 = vpop.trf.xlu0
    %v2754 = vpop.trf.xlu0
    %v2755 = vpop.trf.xlu0
    %v2756 = vpop.trf.xlu0
    %v2757 = vpop.trf.xlu0
    %v2758 = vpop.trf.xlu0
    %v2759 = vpop.trf.xlu0
    %v2760 = vpop.trf.xlu0
    %v2761 = vpop.trf.xlu0
    %v2762 = vpop.trf.xlu0
    %v2763 = vpop.trf.xlu0
    %v2764 = vpop.trf.xlu0
    %v2765 = vpop.trf.xlu0
    %2766 = vxpose.xlu0.b32.start [1/16] %v2199, 128
    %2767 = vxpose.xlu0.b32.cont [2/16] 0.0, 128
    %2768 = vxpose.xlu0.b32.cont [3/16] 0.0, 128
    %2769 = vxpose.xlu0.b32.cont [4/16] 0.0, 128
    %2770 = vxpose.xlu0.b32.cont [5/16] 0.0, 128
    %2771 = vxpose.xlu0.b32.cont [6/16] 0.0, 128
    %2772 = vxpose.xlu0.b32.cont [7/16] 0.0, 128
    %2773 = vxpose.xlu0.b32.cont [8/16] 0.0, 128
    %2774 = vxpose.xlu0.b32.cont [9/16] 0.0, 128
    %2775 = vxpose.xlu0.b32.cont [10/16] 0.0, 128
    %2776 = vxpose.xlu0.b32.cont [11/16] 0.0, 128
    %2777 = vxpose.xlu0.b32.cont [12/16] 0.0, 128
    %2778 = vxpose.xlu0.b32.cont [13/16] 0.0, 128
    %2779 = vxpose.xlu0.b32.cont [14/16] 0.0, 128
    %2780 = vxpose.xlu0.b32.cont [15/16] 0.0, 128
    %2781 = vxpose.xlu0.b32.end [16/16] 0.0, 128
    %v2782 = vpop.trf.xlu0
    %v2783 = vpop.trf.xlu0
    %v2784 = vpop.trf.xlu0
    %v2785 = vpop.trf.xlu0
    %v2786 = vpop.trf.xlu0
    %v2787 = vpop.trf.xlu0
    %v2788 = vpop.trf.xlu0
    %v2789 = vpop.trf.xlu0
    %v2790 = vpop.trf.xlu0
    %v2791 = vpop.trf.xlu0
    %v2792 = vpop.trf.xlu0
    %v2793 = vpop.trf.xlu0
    %v2794 = vpop.trf.xlu0
    %v2795 = vpop.trf.xlu0
    %v2796 = vpop.trf.xlu0
    %v2797 = vpop.trf.xlu0
    %2798 = vxpose.xlu0.b32.start [1/16] %v2200, 128
    %2799 = vxpose.xlu0.b32.cont [2/16] 0.0, 128
    %2800 = vxpose.xlu0.b32.cont [3/16] 0.0, 128
    %2801 = vxpose.xlu0.b32.cont [4/16] 0.0, 128
    %2802 = vxpose.xlu0.b32.cont [5/16] 0.0, 128
    %2803 = vxpose.xlu0.b32.cont [6/16] 0.0, 128
    %2804 = vxpose.xlu0.b32.cont [7/16] 0.0, 128
    %2805 = vxpose.xlu0.b32.cont [8/16] 0.0, 128
    %2806 = vxpose.xlu0.b32.cont [9/16] 0.0, 128
    %2807 = vxpose.xlu0.b32.cont [10/16] 0.0, 128
    %2808 = vxpose.xlu0.b32.cont [11/16] 0.0, 128
    %2809 = vxpose.xlu0.b32.cont [12/16] 0.0, 128
    %2810 = vxpose.xlu0.b32.cont [13/16] 0.0, 128
    %2811 = vxpose.xlu0.b32.cont [14/16] 0.0, 128
    %2812 = vxpose.xlu0.b32.cont [15/16] 0.0, 128
    %2813 = vxpose.xlu0.b32.end [16/16] 0.0, 128
    %v2814 = vpop.trf.xlu0
    %v2815 = vpop.trf.xlu0
    %v2816 = vpop.trf.xlu0
    %v2817 = vpop.trf.xlu0
    %v2818 = vpop.trf.xlu0
    %v2819 = vpop.trf.xlu0
    %v2820 = vpop.trf.xlu0
    %v2821 = vpop.trf.xlu0
    %v2822 = vpop.trf.xlu0
    %v2823 = vpop.trf.xlu0
    %v2824 = vpop.trf.xlu0
    %v2825 = vpop.trf.xlu0
    %v2826 = vpop.trf.xlu0
    %v2827 = vpop.trf.xlu0
    %v2828 = vpop.trf.xlu0
    %v2829 = vpop.trf.xlu0
    %2830 = vxpose.xlu0.b32.start [1/16] %v2201, 128
    %2831 = vxpose.xlu0.b32.cont [2/16] 0.0, 128
    %2832 = vxpose.xlu0.b32.cont [3/16] 0.0, 128
    %2833 = vxpose.xlu0.b32.cont [4/16] 0.0, 128
    %2834 = vxpose.xlu0.b32.cont [5/16] 0.0, 128
    %2835 = vxpose.xlu0.b32.cont [6/16] 0.0, 128
    %2836 = vxpose.xlu0.b32.cont [7/16] 0.0, 128
    %2837 = vxpose.xlu0.b32.cont [8/16] 0.0, 128
    %2838 = vxpose.xlu0.b32.cont [9/16] 0.0, 128
    %2839 = vxpose.xlu0.b32.cont [10/16] 0.0, 128
    %2840 = vxpose.xlu0.b32.cont [11/16] 0.0, 128
    %2841 = vxpose.xlu0.b32.cont [12/16] 0.0, 128
    %2842 = vxpose.xlu0.b32.cont [13/16] 0.0, 128
    %2843 = vxpose.xlu0.b32.cont [14/16] 0.0, 128
    %2844 = vxpose.xlu0.b32.cont [15/16] 0.0, 128
    %2845 = vxpose.xlu0.b32.end [16/16] 0.0, 128
    %v2846 = vpop.trf.xlu0
    %v2847 = vpop.trf.xlu0
    %v2848 = vpop.trf.xlu0
    %v2849 = vpop.trf.xlu0
    %v2850 = vpop.trf.xlu0
    %v2851 = vpop.trf.xlu0
    %v2852 = vpop.trf.xlu0
    %v2853 = vpop.trf.xlu0
    %v2854 = vpop.trf.xlu0
    %v2855 = vpop.trf.xlu0
    %v2856 = vpop.trf.xlu0
    %v2857 = vpop.trf.xlu0
    %v2858 = vpop.trf.xlu0
    %v2859 = vpop.trf.xlu0
    %v2860 = vpop.trf.xlu0
    %v2861 = vpop.trf.xlu0
    %2862 = vxpose.xlu0.b32.start [1/16] %v2202, 128
    %2863 = vxpose.xlu0.b32.cont [2/16] 0.0, 128
    %2864 = vxpose.xlu0.b32.cont [3/16] 0.0, 128
    %2865 = vxpose.xlu0.b32.cont [4/16] 0.0, 128
    %2866 = vxpose.xlu0.b32.cont [5/16] 0.0, 128
    %2867 = vxpose.xlu0.b32.cont [6/16] 0.0, 128
    %2868 = vxpose.xlu0.b32.cont [7/16] 0.0, 128
    %2869 = vxpose.xlu0.b32.cont [8/16] 0.0, 128
    %2870 = vxpose.xlu0.b32.cont [9/16] 0.0, 128
    %2871 = vxpose.xlu0.b32.cont [10/16] 0.0, 128
    %2872 = vxpose.xlu0.b32.cont [11/16] 0.0, 128
    %2873 = vxpose.xlu0.b32.cont [12/16] 0.0, 128
    %2874 = vxpose.xlu0.b32.cont [13/16] 0.0, 128
    %2875 = vxpose.xlu0.b32.cont [14/16] 0.0, 128
    %2876 = vxpose.xlu0.b32.cont [15/16] 0.0, 128
    %2877 = vxpose.xlu0.b32.end [16/16] 0.0, 128
    %v2878 = vpop.trf.xlu0
    %v2879 = vpop.trf.xlu0
    %v2880 = vpop.trf.xlu0
    %v2881 = vpop.trf.xlu0
    %v2882 = vpop.trf.xlu0
    %v2883 = vpop.trf.xlu0
    %v2884 = vpop.trf.xlu0
    %v2885 = vpop.trf.xlu0
    %v2886 = vpop.trf.xlu0
    %v2887 = vpop.trf.xlu0
    %v2888 = vpop.trf.xlu0
    %v2889 = vpop.trf.xlu0
    %v2890 = vpop.trf.xlu0
    %v2891 = vpop.trf.xlu0
    %v2892 = vpop.trf.xlu0
    %v2893 = vpop.trf.xlu0
    %2894 = vxpose.xlu0.b32.start [1/16] %v2203, 128
    %2895 = vxpose.xlu0.b32.cont [2/16] 0.0, 128
    %2896 = vxpose.xlu0.b32.cont [3/16] 0.0, 128
    %2897 = vxpose.xlu0.b32.cont [4/16] 0.0, 128
    %2898 = vxpose.xlu0.b32.cont [5/16] 0.0, 128
    %2899 = vxpose.xlu0.b32.cont [6/16] 0.0, 128
    %2900 = vxpose.xlu0.b32.cont [7/16] 0.0, 128
    %2901 = vxpose.xlu0.b32.cont [8/16] 0.0, 128
    %2902 = vxpose.xlu0.b32.cont [9/16] 0.0, 128
    %2903 = vxpose.xlu0.b32.cont [10/16] 0.0, 128
    %2904 = vxpose.xlu0.b32.cont [11/16] 0.0, 128
    %2905 = vxpose.xlu0.b32.cont [12/16] 0.0, 128
    %2906 = vxpose.xlu0.b32.cont [13/16] 0.0, 128
    %2907 = vxpose.xlu0.b32.cont [14/16] 0.0, 128
    %2908 = vxpose.xlu0.b32.cont [15/16] 0.0, 128
    %2909 = vxpose.xlu0.b32.end [16/16] 0.0, 128
    %v2910 = vpop.trf.xlu0
    %v2911 = vpop.trf.xlu0
    %v2912 = vpop.trf.xlu0
    %v2913 = vpop.trf.xlu0
    %v2914 = vpop.trf.xlu0
    %v2915 = vpop.trf.xlu0
    %v2916 = vpop.trf.xlu0
    %v2917 = vpop.trf.xlu0
    %v2918 = vpop.trf.xlu0
    %v2919 = vpop.trf.xlu0
    %v2920 = vpop.trf.xlu0
    %v2921 = vpop.trf.xlu0
    %v2922 = vpop.trf.xlu0
    %v2923 = vpop.trf.xlu0
    %v2924 = vpop.trf.xlu0
    %v2925 = vpop.trf.xlu0
    %2926 = vxpose.xlu0.b32.start [1/16] %v2204, 128
    %2927 = vxpose.xlu0.b32.cont [2/16] 0.0, 128
    %2928 = vxpose.xlu0.b32.cont [3/16] 0.0, 128
    %2929 = vxpose.xlu0.b32.cont [4/16] 0.0, 128
    %2930 = vxpose.xlu0.b32.cont [5/16] 0.0, 128
    %2931 = vxpose.xlu0.b32.cont [6/16] 0.0, 128
    %2932 = vxpose.xlu0.b32.cont [7/16] 0.0, 128
    %2933 = vxpose.xlu0.b32.cont [8/16] 0.0, 128
    %2934 = vxpose.xlu0.b32.cont [9/16] 0.0, 128
    %2935 = vxpose.xlu0.b32.cont [10/16] 0.0, 128
    %2936 = vxpose.xlu0.b32.cont [11/16] 0.0, 128
    %2937 = vxpose.xlu0.b32.cont [12/16] 0.0, 128
    %2938 = vxpose.xlu0.b32.cont [13/16] 0.0, 128
    %2939 = vxpose.xlu0.b32.cont [14/16] 0.0, 128
    %2940 = vxpose.xlu0.b32.cont [15/16] 0.0, 128
    %2941 = vxpose.xlu0.b32.end [16/16] 0.0, 128
    %v2942 = vpop.trf.xlu0
    %v2943 = vpop.trf.xlu0
    %v2944 = vpop.trf.xlu0
    %v2945 = vpop.trf.xlu0
    %v2946 = vpop.trf.xlu0
    %v2947 = vpop.trf.xlu0
    %v2948 = vpop.trf.xlu0
    %v2949 = vpop.trf.xlu0
    %v2950 = vpop.trf.xlu0
    %v2951 = vpop.trf.xlu0
    %v2952 = vpop.trf.xlu0
    %v2953 = vpop.trf.xlu0
    %v2954 = vpop.trf.xlu0
    %v2955 = vpop.trf.xlu0
    %v2956 = vpop.trf.xlu0
    %v2957 = vpop.trf.xlu0
    %2958 = vxpose.xlu0.b32.start [1/16] %v2205, 128
    %2959 = vxpose.xlu0.b32.cont [2/16] 0.0, 128
    %2960 = vxpose.xlu0.b32.cont [3/16] 0.0, 128
    %2961 = vxpose.xlu0.b32.cont [4/16] 0.0, 128
    %2962 = vxpose.xlu0.b32.cont [5/16] 0.0, 128
    %2963 = vxpose.xlu0.b32.cont [6/16] 0.0, 128
    %2964 = vxpose.xlu0.b32.cont [7/16] 0.0, 128
    %2965 = vxpose.xlu0.b32.cont [8/16] 0.0, 128
    %2966 = vxpose.xlu0.b32.cont [9/16] 0.0, 128
    %2967 = vxpose.xlu0.b32.cont [10/16] 0.0, 128
    %2968 = vxpose.xlu0.b32.cont [11/16] 0.0, 128
    %2969 = vxpose.xlu0.b32.cont [12/16] 0.0, 128
    %2970 = vxpose.xlu0.b32.cont [13/16] 0.0, 128
    %2971 = vxpose.xlu0.b32.cont [14/16] 0.0, 128
    %2972 = vxpose.xlu0.b32.cont [15/16] 0.0, 128
    %2973 = vxpose.xlu0.b32.end [16/16] 0.0, 128
    %v2974 = vpop.trf.xlu0
    %v2975 = vpop.trf.xlu0
    %v2976 = vpop.trf.xlu0
    %v2977 = vpop.trf.xlu0
    %v2978 = vpop.trf.xlu0
    %v2979 = vpop.trf.xlu0
    %v2980 = vpop.trf.xlu0
    %v2981 = vpop.trf.xlu0
    %v2982 = vpop.trf.xlu0
    %v2983 = vpop.trf.xlu0
    %v2984 = vpop.trf.xlu0
    %v2985 = vpop.trf.xlu0
    %v2986 = vpop.trf.xlu0
    %v2987 = vpop.trf.xlu0
    %v2988 = vpop.trf.xlu0
    %v2989 = vpop.trf.xlu0
    %2990 = vxpose.xlu0.b32.start [1/16] %v2334, 128
    %2991 = vxpose.xlu0.b32.cont [2/16] 0.0, 128
    %2992 = vxpose.xlu0.b32.cont [3/16] 0.0, 128
    %2993 = vxpose.xlu0.b32.cont [4/16] 0.0, 128
    %2994 = vxpose.xlu0.b32.cont [5/16] 0.0, 128
    %2995 = vxpose.xlu0.b32.cont [6/16] 0.0, 128
    %2996 = vxpose.xlu0.b32.cont [7/16] 0.0, 128
    %2997 = vxpose.xlu0.b32.cont [8/16] 0.0, 128
    %2998 = vxpose.xlu0.b32.cont [9/16] 0.0, 128
    %2999 = vxpose.xlu0.b32.cont [10/16] 0.0, 128
    %3000 = vxpose.xlu0.b32.cont [11/16] 0.0, 128
    %3001 = vxpose.xlu0.b32.cont [12/16] 0.0, 128
    %3002 = vxpose.xlu0.b32.cont [13/16] 0.0, 128
    %3003 = vxpose.xlu0.b32.cont [14/16] 0.0, 128
    %3004 = vxpose.xlu0.b32.cont [15/16] 0.0, 128
    %3005 = vxpose.xlu0.b32.end [16/16] 0.0, 128
    %v3006 = vpop.trf.xlu0
    %v3007 = vpop.trf.xlu0
    %v3008 = vpop.trf.xlu0
    %v3009 = vpop.trf.xlu0
    %v3010 = vpop.trf.xlu0
    %v3011 = vpop.trf.xlu0
    %v3012 = vpop.trf.xlu0
    %v3013 = vpop.trf.xlu0
    %v3014 = vpop.trf.xlu0
    %v3015 = vpop.trf.xlu0
    %v3016 = vpop.trf.xlu0
    %v3017 = vpop.trf.xlu0
    %v3018 = vpop.trf.xlu0
    %v3019 = vpop.trf.xlu0
    %v3020 = vpop.trf.xlu0
    %v3021 = vpop.trf.xlu0
    %3022 = vxpose.xlu0.b32.start [1/16] %v2335, 128
    %3023 = vxpose.xlu0.b32.cont [2/16] 0.0, 128
    %3024 = vxpose.xlu0.b32.cont [3/16] 0.0, 128
    %3025 = vxpose.xlu0.b32.cont [4/16] 0.0, 128
    %3026 = vxpose.xlu0.b32.cont [5/16] 0.0, 128
    %3027 = vxpose.xlu0.b32.cont [6/16] 0.0, 128
    %3028 = vxpose.xlu0.b32.cont [7/16] 0.0, 128
    %3029 = vxpose.xlu0.b32.cont [8/16] 0.0, 128
    %3030 = vxpose.xlu0.b32.cont [9/16] 0.0, 128
    %3031 = vxpose.xlu0.b32.cont [10/16] 0.0, 128
    %3032 = vxpose.xlu0.b32.cont [11/16] 0.0, 128
    %3033 = vxpose.xlu0.b32.cont [12/16] 0.0, 128
    %3034 = vxpose.xlu0.b32.cont [13/16] 0.0, 128
    %3035 = vxpose.xlu0.b32.cont [14/16] 0.0, 128
    %3036 = vxpose.xlu0.b32.cont [15/16] 0.0, 128
    %3037 = vxpose.xlu0.b32.end [16/16] 0.0, 128
    %v3038 = vpop.trf.xlu0
    %v3039 = vpop.trf.xlu0
    %v3040 = vpop.trf.xlu0
    %v3041 = vpop.trf.xlu0
    %v3042 = vpop.trf.xlu0
    %v3043 = vpop.trf.xlu0
    %v3044 = vpop.trf.xlu0
    %v3045 = vpop.trf.xlu0
    %v3046 = vpop.trf.xlu0
    %v3047 = vpop.trf.xlu0
    %v3048 = vpop.trf.xlu0
    %v3049 = vpop.trf.xlu0
    %v3050 = vpop.trf.xlu0
    %v3051 = vpop.trf.xlu0
    %v3052 = vpop.trf.xlu0
    %v3053 = vpop.trf.xlu0
    %3054 = vxpose.xlu0.b32.start [1/16] %v2336, 128
    %3055 = vxpose.xlu0.b32.cont [2/16] 0.0, 128
    %3056 = vxpose.xlu0.b32.cont [3/16] 0.0, 128
    %3057 = vxpose.xlu0.b32.cont [4/16] 0.0, 128
    %3058 = vxpose.xlu0.b32.cont [5/16] 0.0, 128
    %3059 = vxpose.xlu0.b32.cont [6/16] 0.0, 128
    %3060 = vxpose.xlu0.b32.cont [7/16] 0.0, 128
    %3061 = vxpose.xlu0.b32.cont [8/16] 0.0, 128
    %3062 = vxpose.xlu0.b32.cont [9/16] 0.0, 128
    %3063 = vxpose.xlu0.b32.cont [10/16] 0.0, 128
    %3064 = vxpose.xlu0.b32.cont [11/16] 0.0, 128
    %3065 = vxpose.xlu0.b32.cont [12/16] 0.0, 128
    %3066 = vxpose.xlu0.b32.cont [13/16] 0.0, 128
    %3067 = vxpose.xlu0.b32.cont [14/16] 0.0, 128
    %3068 = vxpose.xlu0.b32.cont [15/16] 0.0, 128
    %3069 = vxpose.xlu0.b32.end [16/16] 0.0, 128
    %v3070 = vpop.trf.xlu0
    %v3071 = vpop.trf.xlu0
    %v3072 = vpop.trf.xlu0
    %v3073 = vpop.trf.xlu0
    %v3074 = vpop.trf.xlu0
    %v3075 = vpop.trf.xlu0
    %v3076 = vpop.trf.xlu0
    %v3077 = vpop.trf.xlu0
    %v3078 = vpop.trf.xlu0
    %v3079 = vpop.trf.xlu0
    %v3080 = vpop.trf.xlu0
    %v3081 = vpop.trf.xlu0
    %v3082 = vpop.trf.xlu0
    %v3083 = vpop.trf.xlu0
    %v3084 = vpop.trf.xlu0
    %v3085 = vpop.trf.xlu0
    %3086 = vxpose.xlu0.b32.start [1/16] %v2337, 128
    %3087 = vxpose.xlu0.b32.cont [2/16] 0.0, 128
    %3088 = vxpose.xlu0.b32.cont [3/16] 0.0, 128
    %3089 = vxpose.xlu0.b32.cont [4/16] 0.0, 128
    %3090 = vxpose.xlu0.b32.cont [5/16] 0.0, 128
    %3091 = vxpose.xlu0.b32.cont [6/16] 0.0, 128
    %3092 = vxpose.xlu0.b32.cont [7/16] 0.0, 128
    %3093 = vxpose.xlu0.b32.cont [8/16] 0.0, 128
    %3094 = vxpose.xlu0.b32.cont [9/16] 0.0, 128
    %3095 = vxpose.xlu0.b32.cont [10/16] 0.0, 128
    %3096 = vxpose.xlu0.b32.cont [11/16] 0.0, 128
    %3097 = vxpose.xlu0.b32.cont [12/16] 0.0, 128
    %3098 = vxpose.xlu0.b32.cont [13/16] 0.0, 128
    %3099 = vxpose.xlu0.b32.cont [14/16] 0.0, 128
    %3100 = vxpose.xlu0.b32.cont [15/16] 0.0, 128
    %3101 = vxpose.xlu0.b32.end [16/16] 0.0, 128
    %v3102 = vpop.trf.xlu0
    %v3103 = vpop.trf.xlu0
    %v3104 = vpop.trf.xlu0
    %v3105 = vpop.trf.xlu0
    %v3106 = vpop.trf.xlu0
    %v3107 = vpop.trf.xlu0
    %v3108 = vpop.trf.xlu0
    %v3109 = vpop.trf.xlu0
    %v3110 = vpop.trf.xlu0
    %v3111 = vpop.trf.xlu0
    %v3112 = vpop.trf.xlu0
    %v3113 = vpop.trf.xlu0
    %v3114 = vpop.trf.xlu0
    %v3115 = vpop.trf.xlu0
    %v3116 = vpop.trf.xlu0
    %v3117 = vpop.trf.xlu0
    %3118 = vxpose.xlu0.b32.start [1/16] %v2338, 128
    %3119 = vxpose.xlu0.b32.cont [2/16] 0.0, 128
    %3120 = vxpose.xlu0.b32.cont [3/16] 0.0, 128
    %3121 = vxpose.xlu0.b32.cont [4/16] 0.0, 128
    %3122 = vxpose.xlu0.b32.cont [5/16] 0.0, 128
    %3123 = vxpose.xlu0.b32.cont [6/16] 0.0, 128
    %3124 = vxpose.xlu0.b32.cont [7/16] 0.0, 128
    %3125 = vxpose.xlu0.b32.cont [8/16] 0.0, 128
    %3126 = vxpose.xlu0.b32.cont [9/16] 0.0, 128
    %3127 = vxpose.xlu0.b32.cont [10/16] 0.0, 128
    %3128 = vxpose.xlu0.b32.cont [11/16] 0.0, 128
    %3129 = vxpose.xlu0.b32.cont [12/16] 0.0, 128
    %3130 = vxpose.xlu0.b32.cont [13/16] 0.0, 128
    %3131 = vxpose.xlu0.b32.cont [14/16] 0.0, 128
    %3132 = vxpose.xlu0.b32.cont [15/16] 0.0, 128
    %3133 = vxpose.xlu0.b32.end [16/16] 0.0, 128
    %v3134 = vpop.trf.xlu0
    %v3135 = vpop.trf.xlu0
    %v3136 = vpop.trf.xlu0
    %v3137 = vpop.trf.xlu0
    %v3138 = vpop.trf.xlu0
    %v3139 = vpop.trf.xlu0
    %v3140 = vpop.trf.xlu0
    %v3141 = vpop.trf.xlu0
    %v3142 = vpop.trf.xlu0
    %v3143 = vpop.trf.xlu0
    %v3144 = vpop.trf.xlu0
    %v3145 = vpop.trf.xlu0
    %v3146 = vpop.trf.xlu0
    %v3147 = vpop.trf.xlu0
    %v3148 = vpop.trf.xlu0
    %v3149 = vpop.trf.xlu0
    %3150 = vxpose.xlu0.b32.start [1/16] %v2339, 128
    %3151 = vxpose.xlu0.b32.cont [2/16] 0.0, 128
    %3152 = vxpose.xlu0.b32.cont [3/16] 0.0, 128
    %3153 = vxpose.xlu0.b32.cont [4/16] 0.0, 128
    %3154 = vxpose.xlu0.b32.cont [5/16] 0.0, 128
    %3155 = vxpose.xlu0.b32.cont [6/16] 0.0, 128
    %3156 = vxpose.xlu0.b32.cont [7/16] 0.0, 128
    %3157 = vxpose.xlu0.b32.cont [8/16] 0.0, 128
    %3158 = vxpose.xlu0.b32.cont [9/16] 0.0, 128
    %3159 = vxpose.xlu0.b32.cont [10/16] 0.0, 128
    %3160 = vxpose.xlu0.b32.cont [11/16] 0.0, 128
    %3161 = vxpose.xlu0.b32.cont [12/16] 0.0, 128
    %3162 = vxpose.xlu0.b32.cont [13/16] 0.0, 128
    %3163 = vxpose.xlu0.b32.cont [14/16] 0.0, 128
    %3164 = vxpose.xlu0.b32.cont [15/16] 0.0, 128
    %3165 = vxpose.xlu0.b32.end [16/16] 0.0, 128
    %v3166 = vpop.trf.xlu0
    %v3167 = vpop.trf.xlu0
    %v3168 = vpop.trf.xlu0
    %v3169 = vpop.trf.xlu0
    %v3170 = vpop.trf.xlu0
    %v3171 = vpop.trf.xlu0
    %v3172 = vpop.trf.xlu0
    %v3173 = vpop.trf.xlu0
    %v3174 = vpop.trf.xlu0
    %v3175 = vpop.trf.xlu0
    %v3176 = vpop.trf.xlu0
    %v3177 = vpop.trf.xlu0
    %v3178 = vpop.trf.xlu0
    %v3179 = vpop.trf.xlu0
    %v3180 = vpop.trf.xlu0
    %v3181 = vpop.trf.xlu0
    %3182 = vxpose.xlu0.b32.start [1/16] %v2340, 128
    %3183 = vxpose.xlu0.b32.cont [2/16] 0.0, 128
    %3184 = vxpose.xlu0.b32.cont [3/16] 0.0, 128
    %3185 = vxpose.xlu0.b32.cont [4/16] 0.0, 128
    %3186 = vxpose.xlu0.b32.cont [5/16] 0.0, 128
    %3187 = vxpose.xlu0.b32.cont [6/16] 0.0, 128
    %3188 = vxpose.xlu0.b32.cont [7/16] 0.0, 128
    %3189 = vxpose.xlu0.b32.cont [8/16] 0.0, 128
    %3190 = vxpose.xlu0.b32.cont [9/16] 0.0, 128
    %3191 = vxpose.xlu0.b32.cont [10/16] 0.0, 128
    %3192 = vxpose.xlu0.b32.cont [11/16] 0.0, 128
    %3193 = vxpose.xlu0.b32.cont [12/16] 0.0, 128
    %3194 = vxpose.xlu0.b32.cont [13/16] 0.0, 128
    %3195 = vxpose.xlu0.b32.cont [14/16] 0.0, 128
    %3196 = vxpose.xlu0.b32.cont [15/16] 0.0, 128
    %3197 = vxpose.xlu0.b32.end [16/16] 0.0, 128
    %v3198 = vpop.trf.xlu0
    %v3199 = vpop.trf.xlu0
    %v3200 = vpop.trf.xlu0
    %v3201 = vpop.trf.xlu0
    %v3202 = vpop.trf.xlu0
    %v3203 = vpop.trf.xlu0
    %v3204 = vpop.trf.xlu0
    %v3205 = vpop.trf.xlu0
    %v3206 = vpop.trf.xlu0
    %v3207 = vpop.trf.xlu0
    %v3208 = vpop.trf.xlu0
    %v3209 = vpop.trf.xlu0
    %v3210 = vpop.trf.xlu0
    %v3211 = vpop.trf.xlu0
    %v3212 = vpop.trf.xlu0
    %v3213 = vpop.trf.xlu0
    %3214 = vxpose.xlu0.b32.start [1/16] %v2341, 128
    %3215 = vxpose.xlu0.b32.cont [2/16] 0.0, 128
    %3216 = vxpose.xlu0.b32.cont [3/16] 0.0, 128
    %3217 = vxpose.xlu0.b32.cont [4/16] 0.0, 128
    %3218 = vxpose.xlu0.b32.cont [5/16] 0.0, 128
    %3219 = vxpose.xlu0.b32.cont [6/16] 0.0, 128
    %3220 = vxpose.xlu0.b32.cont [7/16] 0.0, 128
    %3221 = vxpose.xlu0.b32.cont [8/16] 0.0, 128
    %3222 = vxpose.xlu0.b32.cont [9/16] 0.0, 128
    %3223 = vxpose.xlu0.b32.cont [10/16] 0.0, 128
    %3224 = vxpose.xlu0.b32.cont [11/16] 0.0, 128
    %3225 = vxpose.xlu0.b32.cont [12/16] 0.0, 128
    %3226 = vxpose.xlu0.b32.cont [13/16] 0.0, 128
    %3227 = vxpose.xlu0.b32.cont [14/16] 0.0, 128
    %3228 = vxpose.xlu0.b32.cont [15/16] 0.0, 128
    %3229 = vxpose.xlu0.b32.end [16/16] 0.0, 128
    %v3230 = vpop.trf.xlu0
    %v3231 = vpop.trf.xlu0
    %v3232 = vpop.trf.xlu0
    %v3233 = vpop.trf.xlu0
    %v3234 = vpop.trf.xlu0
    %v3235 = vpop.trf.xlu0
    %v3236 = vpop.trf.xlu0
    %v3237 = vpop.trf.xlu0
    %v3238 = vpop.trf.xlu0
    %v3239 = vpop.trf.xlu0
    %v3240 = vpop.trf.xlu0
    %v3241 = vpop.trf.xlu0
    %v3242 = vpop.trf.xlu0
    %v3243 = vpop.trf.xlu0
    %v3244 = vpop.trf.xlu0
    %v3245 = vpop.trf.xlu0
    %3246 = vxpose.xlu0.b32.start [1/16] %v2470, 128
    %3247 = vxpose.xlu0.b32.cont [2/16] 0.0, 128
    %3248 = vxpose.xlu0.b32.cont [3/16] 0.0, 128
    %3249 = vxpose.xlu0.b32.cont [4/16] 0.0, 128
    %3250 = vxpose.xlu0.b32.cont [5/16] 0.0, 128
    %3251 = vxpose.xlu0.b32.cont [6/16] 0.0, 128
    %3252 = vxpose.xlu0.b32.cont [7/16] 0.0, 128
    %3253 = vxpose.xlu0.b32.cont [8/16] 0.0, 128
    %3254 = vxpose.xlu0.b32.cont [9/16] 0.0, 128
    %3255 = vxpose.xlu0.b32.cont [10/16] 0.0, 128
    %3256 = vxpose.xlu0.b32.cont [11/16] 0.0, 128
    %3257 = vxpose.xlu0.b32.cont [12/16] 0.0, 128
    %3258 = vxpose.xlu0.b32.cont [13/16] 0.0, 128
    %3259 = vxpose.xlu0.b32.cont [14/16] 0.0, 128
    %3260 = vxpose.xlu0.b32.cont [15/16] 0.0, 128
    %3261 = vxpose.xlu0.b32.end [16/16] 0.0, 128
    %v3262 = vpop.trf.xlu0
    %v3263 = vpop.trf.xlu0
    %v3264 = vpop.trf.xlu0
    %v3265 = vpop.trf.xlu0
    %v3266 = vpop.trf.xlu0
    %v3267 = vpop.trf.xlu0
    %v3268 = vpop.trf.xlu0
    %v3269 = vpop.trf.xlu0
    %v3270 = vpop.trf.xlu0
    %v3271 = vpop.trf.xlu0
    %v3272 = vpop.trf.xlu0
    %v3273 = vpop.trf.xlu0
    %v3274 = vpop.trf.xlu0
    %v3275 = vpop.trf.xlu0
    %v3276 = vpop.trf.xlu0
    %v3277 = vpop.trf.xlu0
    %3278 = vxpose.xlu0.b32.start [1/16] %v2471, 128
    %3279 = vxpose.xlu0.b32.cont [2/16] 0.0, 128
    %3280 = vxpose.xlu0.b32.cont [3/16] 0.0, 128
    %3281 = vxpose.xlu0.b32.cont [4/16] 0.0, 128
    %3282 = vxpose.xlu0.b32.cont [5/16] 0.0, 128
    %3283 = vxpose.xlu0.b32.cont [6/16] 0.0, 128
    %3284 = vxpose.xlu0.b32.cont [7/16] 0.0, 128
    %3285 = vxpose.xlu0.b32.cont [8/16] 0.0, 128
    %3286 = vxpose.xlu0.b32.cont [9/16] 0.0, 128
    %3287 = vxpose.xlu0.b32.cont [10/16] 0.0, 128
    %3288 = vxpose.xlu0.b32.cont [11/16] 0.0, 128
    %3289 = vxpose.xlu0.b32.cont [12/16] 0.0, 128
    %3290 = vxpose.xlu0.b32.cont [13/16] 0.0, 128
    %3291 = vxpose.xlu0.b32.cont [14/16] 0.0, 128
    %3292 = vxpose.xlu0.b32.cont [15/16] 0.0, 128
    %3293 = vxpose.xlu0.b32.end [16/16] 0.0, 128
    %v3294 = vpop.trf.xlu0
    %v3295 = vpop.trf.xlu0
    %v3296 = vpop.trf.xlu0
    %v3297 = vpop.trf.xlu0
    %v3298 = vpop.trf.xlu0
    %v3299 = vpop.trf.xlu0
    %v3300 = vpop.trf.xlu0
    %v3301 = vpop.trf.xlu0
    %v3302 = vpop.trf.xlu0
    %v3303 = vpop.trf.xlu0
    %v3304 = vpop.trf.xlu0
    %v3305 = vpop.trf.xlu0
    %v3306 = vpop.trf.xlu0
    %v3307 = vpop.trf.xlu0
    %v3308 = vpop.trf.xlu0
    %v3309 = vpop.trf.xlu0
    %3310 = vxpose.xlu0.b32.start [1/16] %v2472, 128
    %3311 = vxpose.xlu0.b32.cont [2/16] 0.0, 128
    %3312 = vxpose.xlu0.b32.cont [3/16] 0.0, 128
    %3313 = vxpose.xlu0.b32.cont [4/16] 0.0, 128
    %3314 = vxpose.xlu0.b32.cont [5/16] 0.0, 128
    %3315 = vxpose.xlu0.b32.cont [6/16] 0.0, 128
    %3316 = vxpose.xlu0.b32.cont [7/16] 0.0, 128
    %3317 = vxpose.xlu0.b32.cont [8/16] 0.0, 128
    %3318 = vxpose.xlu0.b32.cont [9/16] 0.0, 128
    %3319 = vxpose.xlu0.b32.cont [10/16] 0.0, 128
    %3320 = vxpose.xlu0.b32.cont [11/16] 0.0, 128
    %3321 = vxpose.xlu0.b32.cont [12/16] 0.0, 128
    %3322 = vxpose.xlu0.b32.cont [13/16] 0.0, 128
    %3323 = vxpose.xlu0.b32.cont [14/16] 0.0, 128
    %3324 = vxpose.xlu0.b32.cont [15/16] 0.0, 128
    %3325 = vxpose.xlu0.b32.end [16/16] 0.0, 128
    %v3326 = vpop.trf.xlu0
    %v3327 = vpop.trf.xlu0
    %v3328 = vpop.trf.xlu0
    %v3329 = vpop.trf.xlu0
    %v3330 = vpop.trf.xlu0
    %v3331 = vpop.trf.xlu0
    %v3332 = vpop.trf.xlu0
    %v3333 = vpop.trf.xlu0
    %v3334 = vpop.trf.xlu0
    %v3335 = vpop.trf.xlu0
    %v3336 = vpop.trf.xlu0
    %v3337 = vpop.trf.xlu0
    %v3338 = vpop.trf.xlu0
    %v3339 = vpop.trf.xlu0
    %v3340 = vpop.trf.xlu0
    %v3341 = vpop.trf.xlu0
    %3342 = vxpose.xlu0.b32.start [1/16] %v2473, 128
    %3343 = vxpose.xlu0.b32.cont [2/16] 0.0, 128
    %3344 = vxpose.xlu0.b32.cont [3/16] 0.0, 128
    %3345 = vxpose.xlu0.b32.cont [4/16] 0.0, 128
    %3346 = vxpose.xlu0.b32.cont [5/16] 0.0, 128
    %3347 = vxpose.xlu0.b32.cont [6/16] 0.0, 128
    %3348 = vxpose.xlu0.b32.cont [7/16] 0.0, 128
    %3349 = vxpose.xlu0.b32.cont [8/16] 0.0, 128
    %3350 = vxpose.xlu0.b32.cont [9/16] 0.0, 128
    %3351 = vxpose.xlu0.b32.cont [10/16] 0.0, 128
    %3352 = vxpose.xlu0.b32.cont [11/16] 0.0, 128
    %3353 = vxpose.xlu0.b32.cont [12/16] 0.0, 128
    %3354 = vxpose.xlu0.b32.cont [13/16] 0.0, 128
    %3355 = vxpose.xlu0.b32.cont [14/16] 0.0, 128
    %3356 = vxpose.xlu0.b32.cont [15/16] 0.0, 128
    %3357 = vxpose.xlu0.b32.end [16/16] 0.0, 128
    %v3358 = vpop.trf.xlu0
    %v3359 = vpop.trf.xlu0
    %v3360 = vpop.trf.xlu0
    %v3361 = vpop.trf.xlu0
    %v3362 = vpop.trf.xlu0
    %v3363 = vpop.trf.xlu0
    %v3364 = vpop.trf.xlu0
    %v3365 = vpop.trf.xlu0
    %v3366 = vpop.trf.xlu0
    %v3367 = vpop.trf.xlu0
    %v3368 = vpop.trf.xlu0
    %v3369 = vpop.trf.xlu0
    %v3370 = vpop.trf.xlu0
    %v3371 = vpop.trf.xlu0
    %v3372 = vpop.trf.xlu0
    %v3373 = vpop.trf.xlu0
    %3374 = vxpose.xlu0.b32.start [1/16] %v2474, 128
    %3375 = vxpose.xlu0.b32.cont [2/16] 0.0, 128
    %3376 = vxpose.xlu0.b32.cont [3/16] 0.0, 128
    %3377 = vxpose.xlu0.b32.cont [4/16] 0.0, 128
    %3378 = vxpose.xlu0.b32.cont [5/16] 0.0, 128
    %3379 = vxpose.xlu0.b32.cont [6/16] 0.0, 128
    %3380 = vxpose.xlu0.b32.cont [7/16] 0.0, 128
    %3381 = vxpose.xlu0.b32.cont [8/16] 0.0, 128
    %3382 = vxpose.xlu0.b32.cont [9/16] 0.0, 128
    %3383 = vxpose.xlu0.b32.cont [10/16] 0.0, 128
    %3384 = vxpose.xlu0.b32.cont [11/16] 0.0, 128
    %3385 = vxpose.xlu0.b32.cont [12/16] 0.0, 128
    %3386 = vxpose.xlu0.b32.cont [13/16] 0.0, 128
    %3387 = vxpose.xlu0.b32.cont [14/16] 0.0, 128
    %3388 = vxpose.xlu0.b32.cont [15/16] 0.0, 128
    %3389 = vxpose.xlu0.b32.end [16/16] 0.0, 128
    %v3390 = vpop.trf.xlu0
    %v3391 = vpop.trf.xlu0
    %v3392 = vpop.trf.xlu0
    %v3393 = vpop.trf.xlu0
    %v3394 = vpop.trf.xlu0
    %v3395 = vpop.trf.xlu0
    %v3396 = vpop.trf.xlu0
    %v3397 = vpop.trf.xlu0
    %v3398 = vpop.trf.xlu0
    %v3399 = vpop.trf.xlu0
    %v3400 = vpop.trf.xlu0
    %v3401 = vpop.trf.xlu0
    %v3402 = vpop.trf.xlu0
    %v3403 = vpop.trf.xlu0
    %v3404 = vpop.trf.xlu0
    %v3405 = vpop.trf.xlu0
    %3406 = vxpose.xlu0.b32.start [1/16] %v2475, 128
    %3407 = vxpose.xlu0.b32.cont [2/16] 0.0, 128
    %3408 = vxpose.xlu0.b32.cont [3/16] 0.0, 128
    %3409 = vxpose.xlu0.b32.cont [4/16] 0.0, 128
    %3410 = vxpose.xlu0.b32.cont [5/16] 0.0, 128
    %3411 = vxpose.xlu0.b32.cont [6/16] 0.0, 128
    %3412 = vxpose.xlu0.b32.cont [7/16] 0.0, 128
    %3413 = vxpose.xlu0.b32.cont [8/16] 0.0, 128
    %3414 = vxpose.xlu0.b32.cont [9/16] 0.0, 128
    %3415 = vxpose.xlu0.b32.cont [10/16] 0.0, 128
    %3416 = vxpose.xlu0.b32.cont [11/16] 0.0, 128
    %3417 = vxpose.xlu0.b32.cont [12/16] 0.0, 128
    %3418 = vxpose.xlu0.b32.cont [13/16] 0.0, 128
    %3419 = vxpose.xlu0.b32.cont [14/16] 0.0, 128
    %3420 = vxpose.xlu0.b32.cont [15/16] 0.0, 128
    %3421 = vxpose.xlu0.b32.end [16/16] 0.0, 128
    %v3422 = vpop.trf.xlu0
    %v3423 = vpop.trf.xlu0
    %v3424 = vpop.trf.xlu0
    %v3425 = vpop.trf.xlu0
    %v3426 = vpop.trf.xlu0
    %v3427 = vpop.trf.xlu0
    %v3428 = vpop.trf.xlu0
    %v3429 = vpop.trf.xlu0
    %v3430 = vpop.trf.xlu0
    %v3431 = vpop.trf.xlu0
    %v3432 = vpop.trf.xlu0
    %v3433 = vpop.trf.xlu0
    %v3434 = vpop.trf.xlu0
    %v3435 = vpop.trf.xlu0
    %v3436 = vpop.trf.xlu0
    %v3437 = vpop.trf.xlu0
    %3438 = vxpose.xlu0.b32.start [1/16] %v2476, 128
    %3439 = vxpose.xlu0.b32.cont [2/16] 0.0, 128
    %3440 = vxpose.xlu0.b32.cont [3/16] 0.0, 128
    %3441 = vxpose.xlu0.b32.cont [4/16] 0.0, 128
    %3442 = vxpose.xlu0.b32.cont [5/16] 0.0, 128
    %3443 = vxpose.xlu0.b32.cont [6/16] 0.0, 128
    %3444 = vxpose.xlu0.b32.cont [7/16] 0.0, 128
    %3445 = vxpose.xlu0.b32.cont [8/16] 0.0, 128
    %3446 = vxpose.xlu0.b32.cont [9/16] 0.0, 128
    %3447 = vxpose.xlu0.b32.cont [10/16] 0.0, 128
    %3448 = vxpose.xlu0.b32.cont [11/16] 0.0, 128
    %3449 = vxpose.xlu0.b32.cont [12/16] 0.0, 128
    %3450 = vxpose.xlu0.b32.cont [13/16] 0.0, 128
    %3451 = vxpose.xlu0.b32.cont [14/16] 0.0, 128
    %3452 = vxpose.xlu0.b32.cont [15/16] 0.0, 128
    %3453 = vxpose.xlu0.b32.end [16/16] 0.0, 128
    %v3454 = vpop.trf.xlu0
    %v3455 = vpop.trf.xlu0
    %v3456 = vpop.trf.xlu0
    %v3457 = vpop.trf.xlu0
    %v3458 = vpop.trf.xlu0
    %v3459 = vpop.trf.xlu0
    %v3460 = vpop.trf.xlu0
    %v3461 = vpop.trf.xlu0
    %v3462 = vpop.trf.xlu0
    %v3463 = vpop.trf.xlu0
    %v3464 = vpop.trf.xlu0
    %v3465 = vpop.trf.xlu0
    %v3466 = vpop.trf.xlu0
    %v3467 = vpop.trf.xlu0
    %v3468 = vpop.trf.xlu0
    %v3469 = vpop.trf.xlu0
    %3470 = vxpose.xlu0.b32.start [1/16] %v2477, 128
    %3471 = vxpose.xlu0.b32.cont [2/16] 0.0, 128
    %3472 = vxpose.xlu0.b32.cont [3/16] 0.0, 128
    %3473 = vxpose.xlu0.b32.cont [4/16] 0.0, 128
    %3474 = vxpose.xlu0.b32.cont [5/16] 0.0, 128
    %3475 = vxpose.xlu0.b32.cont [6/16] 0.0, 128
    %3476 = vxpose.xlu0.b32.cont [7/16] 0.0, 128
    %3477 = vxpose.xlu0.b32.cont [8/16] 0.0, 128
    %3478 = vxpose.xlu0.b32.cont [9/16] 0.0, 128
    %3479 = vxpose.xlu0.b32.cont [10/16] 0.0, 128
    %3480 = vxpose.xlu0.b32.cont [11/16] 0.0, 128
    %3481 = vxpose.xlu0.b32.cont [12/16] 0.0, 128
    %3482 = vxpose.xlu0.b32.cont [13/16] 0.0, 128
    %3483 = vxpose.xlu0.b32.cont [14/16] 0.0, 128
    %3484 = vxpose.xlu0.b32.cont [15/16] 0.0, 128
    %3485 = vxpose.xlu0.b32.end [16/16] 0.0, 128
    %v3486 = vpop.trf.xlu0
    %v3487 = vpop.trf.xlu0
    %v3488 = vpop.trf.xlu0
    %v3489 = vpop.trf.xlu0
    %v3490 = vpop.trf.xlu0
    %v3491 = vpop.trf.xlu0
    %v3492 = vpop.trf.xlu0
    %v3493 = vpop.trf.xlu0
    %v3494 = vpop.trf.xlu0
    %v3495 = vpop.trf.xlu0
    %v3496 = vpop.trf.xlu0
    %v3497 = vpop.trf.xlu0
    %v3498 = vpop.trf.xlu0
    %v3499 = vpop.trf.xlu0
    %v3500 = vpop.trf.xlu0
    %v3501 = vpop.trf.xlu0
    %v3502 = vcombine.low %v2494, %v2558
    %v3504 = vunpack.c.l.s4 1983009808
    %v3505 = vunpack.c.0.s8 %v3504
    %v3506 = vlaneseq
    %v3507 = vshrl.u32 %v3506, 7
    %v3508 = vsub.s32 %v3505, %v3507
    %v3509 = vrot.slane %v3502, %v3508
    %v3510 = vcombine.low %v2526, %v2590
    %v3512 = vunpack.c.l.s4 1983009808
    %v3513 = vunpack.c.0.s8 %v3512
    %v3514 = vlaneseq
    %v3515 = vshrl.u32 %v3514, 7
    %v3516 = vsub.s32 %v3513, %v3515
    %v3517 = vrot.slane %v3510, %v3516
    %v3518 = vcombine.low %v2622, %v2686
    %v3520 = vunpack.c.l.s4 1983009808
    %v3521 = vunpack.c.0.s8 %v3520
    %v3522 = vlaneseq
    %v3523 = vshrl.u32 %v3522, 7
    %v3524 = vsub.s32 %v3521, %v3523
    %v3525 = vrot.slane %v3518, %v3524
    %v3526 = vcombine.low %v2654, %v2718
    %v3528 = vunpack.c.l.s4 1983009808
    %v3529 = vunpack.c.0.s8 %v3528
    %v3530 = vlaneseq
    %v3531 = vshrl.u32 %v3530, 7
    %v3532 = vsub.s32 %v3529, %v3531
    %v3533 = vrot.slane %v3526, %v3532
    %v3534 = vcombine.low %v3509, %v3517
    %v3535 = vcombine.high %v3509, %v3517
    %v3537 = vunpack.c.l.s4 1934713408
    %v3538 = vunpack.c.0.s8 %v3537
    %v3539 = vlaneseq
    %v3540 = vshrl.u32 %v3539, 7
    %v3541 = vsub.s32 %v3538, %v3540
    %v3542 = vrot.slane %v3534, %v3541
    %v3544 = vunpack.c.l.s4 1934713408
    %v3545 = vunpack.c.0.s8 %v3544
    %v3546 = vlaneseq
    %v3547 = vshrl.u32 %v3546, 7
    %v3548 = vsub.s32 %v3545, %v3547
    %v3549 = vrot.slane %v3535, %v3548
    %v3550 = vcombine.low %v3525, %v3533
    %v3551 = vcombine.high %v3525, %v3533
    %v3553 = vunpack.c.l.s4 1934713408
    %v3554 = vunpack.c.0.s8 %v3553
    %v3555 = vlaneseq
    %v3556 = vshrl.u32 %v3555, 7
    %v3557 = vsub.s32 %v3554, %v3556
    %v3558 = vrot.slane %v3550, %v3557
    %v3560 = vunpack.c.l.s4 1934713408
    %v3561 = vunpack.c.0.s8 %v3560
    %v3562 = vlaneseq
    %v3563 = vshrl.u32 %v3562, 7
    %v3564 = vsub.s32 %v3561, %v3563
    %v3565 = vrot.slane %v3551, %v3564
    %v3566 = vcombine.low %v3542, %v3558
    %v3567 = vcombine.high %v3542, %v3558
    %v3568 = vcombine.low %v3549, %v3565
    %v3569 = vcombine.high %v3549, %v3565
    %v3570 = vcombine.low %v2750, %v2814
    %v3572 = vunpack.c.l.s4 1983009808
    %v3573 = vunpack.c.0.s8 %v3572
    %v3574 = vlaneseq
    %v3575 = vshrl.u32 %v3574, 7
    %v3576 = vsub.s32 %v3573, %v3575
    %v3577 = vrot.slane %v3570, %v3576
    %v3578 = vcombine.low %v2782, %v2846
    %v3580 = vunpack.c.l.s4 1983009808
    %v3581 = vunpack.c.0.s8 %v3580
    %v3582 = vlaneseq
    %v3583 = vshrl.u32 %v3582, 7
    %v3584 = vsub.s32 %v3581, %v3583
    %v3585 = vrot.slane %v3578, %v3584
    %v3586 = vcombine.low %v2878, %v2942
    %v3588 = vunpack.c.l.s4 1983009808
    %v3589 = vunpack.c.0.s8 %v3588
    %v3590 = vlaneseq
    %v3591 = vshrl.u32 %v3590, 7
    %v3592 = vsub.s32 %v3589, %v3591
    %v3593 = vrot.slane %v3586, %v3592
    %v3594 = vcombine.low %v2910, %v2974
    %v3596 = vunpack.c.l.s4 1983009808
    %v3597 = vunpack.c.0.s8 %v3596
    %v3598 = vlaneseq
    %v3599 = vshrl.u32 %v3598, 7
    %v3600 = vsub.s32 %v3597, %v3599
    %v3601 = vrot.slane %v3594, %v3600
    %v3602 = vcombine.low %v3577, %v3585
    %v3603 = vcombine.high %v3577, %v3585
    %v3605 = vunpack.c.l.s4 1934713408
    %v3606 = vunpack.c.0.s8 %v3605
    %v3607 = vlaneseq
    %v3608 = vshrl.u32 %v3607, 7
    %v3609 = vsub.s32 %v3606, %v3608
    %v3610 = vrot.slane %v3602, %v3609
    %v3612 = vunpack.c.l.s4 1934713408
    %v3613 = vunpack.c.0.s8 %v3612
    %v3614 = vlaneseq
    %v3615 = vshrl.u32 %v3614, 7
    %v3616 = vsub.s32 %v3613, %v3615
    %v3617 = vrot.slane %v3603, %v3616
    %v3618 = vcombine.low %v3593, %v3601
    %v3619 = vcombine.high %v3593, %v3601
    %v3621 = vunpack.c.l.s4 1934713408
    %v3622 = vunpack.c.0.s8 %v3621
    %v3623 = vlaneseq
    %v3624 = vshrl.u32 %v3623, 7
    %v3625 = vsub.s32 %v3622, %v3624
    %v3626 = vrot.slane %v3618, %v3625
    %v3628 = vunpack.c.l.s4 1934713408
    %v3629 = vunpack.c.0.s8 %v3628
    %v3630 = vlaneseq
    %v3631 = vshrl.u32 %v3630, 7
    %v3632 = vsub.s32 %v3629, %v3631
    %v3633 = vrot.slane %v3619, %v3632
    %v3634 = vcombine.low %v3610, %v3626
    %v3635 = vcombine.high %v3610, %v3626
    %v3636 = vcombine.low %v3617, %v3633
    %v3637 = vcombine.high %v3617, %v3633
    %v3638 = vcombine.low %v3006, %v3070
    %v3640 = vunpack.c.l.s4 1983009808
    %v3641 = vunpack.c.0.s8 %v3640
    %v3642 = vlaneseq
    %v3643 = vshrl.u32 %v3642, 7
    %v3644 = vsub.s32 %v3641, %v3643
    %v3645 = vrot.slane %v3638, %v3644
    %v3646 = vcombine.low %v3038, %v3102
    %v3648 = vunpack.c.l.s4 1983009808
    %v3649 = vunpack.c.0.s8 %v3648
    %v3650 = vlaneseq
    %v3651 = vshrl.u32 %v3650, 7
    %v3652 = vsub.s32 %v3649, %v3651
    %v3653 = vrot.slane %v3646, %v3652
    %v3654 = vcombine.low %v3134, %v3198
    %v3656 = vunpack.c.l.s4 1983009808
    %v3657 = vunpack.c.0.s8 %v3656
    %v3658 = vlaneseq
    %v3659 = vshrl.u32 %v3658, 7
    %v3660 = vsub.s32 %v3657, %v3659
    %v3661 = vrot.slane %v3654, %v3660
    %v3662 = vcombine.low %v3166, %v3230
    %v3664 = vunpack.c.l.s4 1983009808
    %v3665 = vunpack.c.0.s8 %v3664
    %v3666 = vlaneseq
    %v3667 = vshrl.u32 %v3666, 7
    %v3668 = vsub.s32 %v3665, %v3667
    %v3669 = vrot.slane %v3662, %v3668
    %v3670 = vcombine.low %v3645, %v3653
    %v3671 = vcombine.high %v3645, %v3653
    %v3673 = vunpack.c.l.s4 1934713408
    %v3674 = vunpack.c.0.s8 %v3673
    %v3675 = vlaneseq
    %v3676 = vshrl.u32 %v3675, 7
    %v3677 = vsub.s32 %v3674, %v3676
    %v3678 = vrot.slane %v3670, %v3677
    %v3680 = vunpack.c.l.s4 1934713408
    %v3681 = vunpack.c.0.s8 %v3680
    %v3682 = vlaneseq
    %v3683 = vshrl.u32 %v3682, 7
    %v3684 = vsub.s32 %v3681, %v3683
    %v3685 = vrot.slane %v3671, %v3684
    %v3686 = vcombine.low %v3661, %v3669
    %v3687 = vcombine.high %v3661, %v3669
    %v3689 = vunpack.c.l.s4 1934713408
    %v3690 = vunpack.c.0.s8 %v3689
    %v3691 = vlaneseq
    %v3692 = vshrl.u32 %v3691, 7
    %v3693 = vsub.s32 %v3690, %v3692
    %v3694 = vrot.slane %v3686, %v3693
    %v3696 = vunpack.c.l.s4 1934713408
    %v3697 = vunpack.c.0.s8 %v3696
    %v3698 = vlaneseq
    %v3699 = vshrl.u32 %v3698, 7
    %v3700 = vsub.s32 %v3697, %v3699
    %v3701 = vrot.slane %v3687, %v3700
    %v3702 = vcombine.low %v3678, %v3694
    %v3703 = vcombine.high %v3678, %v3694
    %v3704 = vcombine.low %v3685, %v3701
    %v3705 = vcombine.high %v3685, %v3701
    %v3706 = vcombine.low %v3262, %v3326
    %v3708 = vunpack.c.l.s4 1983009808
    %v3709 = vunpack.c.0.s8 %v3708
    %v3710 = vlaneseq
    %v3711 = vshrl.u32 %v3710, 7
    %v3712 = vsub.s32 %v3709, %v3711
    %v3713 = vrot.slane %v3706, %v3712
    %v3714 = vcombine.low %v3294, %v3358
    %v3716 = vunpack.c.l.s4 1983009808
    %v3717 = vunpack.c.0.s8 %v3716
    %v3718 = vlaneseq
    %v3719 = vshrl.u32 %v3718, 7
    %v3720 = vsub.s32 %v3717, %v3719
    %v3721 = vrot.slane %v3714, %v3720
    %v3722 = vcombine.low %v3390, %v3454
    %v3724 = vunpack.c.l.s4 1983009808
    %v3725 = vunpack.c.0.s8 %v3724
    %v3726 = vlaneseq
    %v3727 = vshrl.u32 %v3726, 7
    %v3728 = vsub.s32 %v3725, %v3727
    %v3729 = vrot.slane %v3722, %v3728
    %v3730 = vcombine.low %v3422, %v3486
    %v3732 = vunpack.c.l.s4 1983009808
    %v3733 = vunpack.c.0.s8 %v3732
    %v3734 = vlaneseq
    %v3735 = vshrl.u32 %v3734, 7
    %v3736 = vsub.s32 %v3733, %v3735
    %v3737 = vrot.slane %v3730, %v3736
    %v3738 = vcombine.low %v3713, %v3721
    %v3739 = vcombine.high %v3713, %v3721
    %v3741 = vunpack.c.l.s4 1934713408
    %v3742 = vunpack.c.0.s8 %v3741
    %v3743 = vlaneseq
    %v3744 = vshrl.u32 %v3743, 7
    %v3745 = vsub.s32 %v3742, %v3744
    %v3746 = vrot.slane %v3738, %v3745
    %v3748 = vunpack.c.l.s4 1934713408
    %v3749 = vunpack.c.0.s8 %v3748
    %v3750 = vlaneseq
    %v3751 = vshrl.u32 %v3750, 7
    %v3752 = vsub.s32 %v3749, %v3751
    %v3753 = vrot.slane %v3739, %v3752
    %v3754 = vcombine.low %v3729, %v3737
    %v3755 = vcombine.high %v3729, %v3737
    %v3757 = vunpack.c.l.s4 1934713408
    %v3758 = vunpack.c.0.s8 %v3757
    %v3759 = vlaneseq
    %v3760 = vshrl.u32 %v3759, 7
    %v3761 = vsub.s32 %v3758, %v3760
    %v3762 = vrot.slane %v3754, %v3761
    %v3764 = vunpack.c.l.s4 1934713408
    %v3765 = vunpack.c.0.s8 %v3764
    %v3766 = vlaneseq
    %v3767 = vshrl.u32 %v3766, 7
    %v3768 = vsub.s32 %v3765, %v3767
    %v3769 = vrot.slane %v3755, %v3768
    %v3770 = vcombine.low %v3746, %v3762
    %v3771 = vcombine.high %v3746, %v3762
    %v3772 = vcombine.low %v3753, %v3769
    %v3773 = vcombine.high %v3753, %v3769
    %vm3774 = vcmask 130048
    %v3776 = vsel %vm3774, %v898, 0
    %3778 = vmatprep.subr.mxu0 0.0
    %v3779 = vand.u32 %v3566, 4294901760
    %3780 = vmatpush1.msra.mxu0 %v3779
    %3781 = vmatprep.subr.mxu0 0.0
    %v3782 = vand.u32 %v3634, 4294901760
    %3783 = vmatpush1.msra.mxu0 %v3782
    %3784 = vmatprep.subr.mxu0 0.0
    %3785 = vmatpush1.msra.mxu0 0.0
    %3786 = vmatprep.subr.mxu0 0.0
    %3787 = vmatpush1.msra.mxu0 0.0
    %3788 = vmatprep.subr.mxu0 0.0
    %3789 = vmatpush1.msra.mxu0 0.0
    %3790 = vmatprep.subr.mxu0 0.0
    %3791 = vmatpush1.msra.mxu0 0.0
    %3792 = vmatprep.subr.mxu0 0.0
    %3793 = vmatpush1.msra.mxu0 0.0
    %3794 = vmatprep.subr.mxu0 0.0
    %3795 = vmatpush1.msra.mxu0 0.0
    %3796 = vmatprep.subr.mxu0 0.0
    %3797 = vmatpush1.msra.mxu0 0.0
    %3798 = vmatprep.subr.mxu0 0.0
    %3799 = vmatpush1.msra.mxu0 0.0
    %3800 = vmatprep.subr.mxu0 0.0
    %3801 = vmatpush1.msra.mxu0 0.0
    %3802 = vmatprep.subr.mxu0 0.0
    %3803 = vmatpush1.msra.mxu0 0.0
    %3804 = vmatprep.subr.mxu0 0.0
    %3805 = vmatpush1.msra.mxu0 0.0
    %3806 = vmatprep.subr.mxu0 0.0
    %3807 = vmatpush1.msra.mxu0 0.0
    %3808 = vmatprep.subr.mxu0 0.0
    %3809 = vmatpush1.msra.mxu0 0.0
    %3810 = vmatprep.subr.mxu0 0.0
    %3811 = vmatpush1.msra.mxu0 0.0
    %3812 = vmatprep.subr.mxu0 0.0
    %3813 = vmatpush1.msra.mxu0 0.0
    %3814 = vmatprep.subr.mxu0 0.0
    %3815 = vmatpush1.msra.mxu0 0.0
    %3816 = vmatprep.subr.mxu0 0.0
    %3817 = vmatpush1.msra.mxu0 0.0
    %3818 = vmatprep.subr.mxu0 0.0
    %3819 = vmatpush1.msra.mxu0 0.0
    %3820 = vmatprep.subr.mxu0 0.0
    %3821 = vmatpush1.msra.mxu0 0.0
    %3822 = vmatprep.subr.mxu0 0.0
    %3823 = vmatpush1.msra.mxu0 0.0
    %3824 = vmatprep.subr.mxu0 0.0
    %3825 = vmatpush1.msra.mxu0 0.0
    %3826 = vmatprep.subr.mxu0 0.0
    %3827 = vmatpush1.msra.mxu0 0.0
    %3828 = vmatprep.subr.mxu0 0.0
    %3829 = vmatpush1.msra.mxu0 0.0
    %3830 = vmatprep.subr.mxu0 0.0
    %3831 = vmatpush1.msra.mxu0 0.0
    %3832 = vmatprep.subr.mxu0 0.0
    %3833 = vmatpush1.msra.mxu0 0.0
    %3834 = vmatprep.subr.mxu0 0.0
    %3835 = vmatpush1.msra.mxu0 0.0
    %3836 = vmatprep.subr.mxu0 0.0
    %3837 = vmatpush1.msra.mxu0 0.0
    %3838 = vmatprep.subr.mxu0 0.0
    %3839 = vmatpush1.msra.mxu0 0.0
    %3840 = vmatprep.subr.mxu0 0.0
    %3841 = vmatpush1.msra.mxu0 0.0
    %3842 = vmatprep.subr.mxu0 0.0
    %3843 = vmatpush1.msra.mxu0 0.0
    %3844 = vmatprep.mubr.f32.mxu0 0.0
    %v3845 = vand.u32 %v3776, 4294901760
    %v3846 = vsub.f32 %v3776, %v3845
    %v3847 = vand.u32 %v3846, 4294901760
    %v3848 = vsub.f32 %v3846, %v3847
    %v3849 = vand.u32 %v3848, 4294901760
    %3850 = vmatmul.mubr.f32.gmra.mrb[0].mxu0 %v3849
    %v3851 = vpop.f32.mrb[0].mxu0
    %v3852 = vadd.f32 0.0, %v3851
    %v3853 = vpop.f32.mrb[0].mxu0
    %3854 = vdwg.mxu0
    %3855 = vmatprep.subr.mxu0 0.0
    %v3856 = vand.u32 %v3566, 4294901760
    %v3857 = vsub.f32 %v3566, %v3856
    %v3858 = vand.u32 %v3857, 4294901760
    %v3859 = vsub.f32 %v3857, %v3858
    %v3860 = vand.u32 %v3859, 4294901760
    %3861 = vmatpush1.msra.mxu0 %v3860
    %3862 = vmatprep.subr.mxu0 0.0
    %v3863 = vand.u32 %v3634, 4294901760
    %v3864 = vsub.f32 %v3634, %v3863
    %v3865 = vand.u32 %v3864, 4294901760
    %v3866 = vsub.f32 %v3864, %v3865
    %v3867 = vand.u32 %v3866, 4294901760
    %3868 = vmatpush1.msra.mxu0 %v3867
    %3869 = vmatprep.subr.mxu0 0.0
    %3870 = vmatpush1.msra.mxu0 0.0
    %3871 = vmatprep.subr.mxu0 0.0
    %3872 = vmatpush1.msra.mxu0 0.0
    %3873 = vmatprep.subr.mxu0 0.0
    %3874 = vmatpush1.msra.mxu0 0.0
    %3875 = vmatprep.subr.mxu0 0.0
    %3876 = vmatpush1.msra.mxu0 0.0
    %3877 = vmatprep.subr.mxu0 0.0
    %3878 = vmatpush1.msra.mxu0 0.0
    %3879 = vmatprep.subr.mxu0 0.0
    %3880 = vmatpush1.msra.mxu0 0.0
    %3881 = vmatprep.subr.mxu0 0.0
    %3882 = vmatpush1.msra.mxu0 0.0
    %3883 = vmatprep.subr.mxu0 0.0
    %3884 = vmatpush1.msra.mxu0 0.0
    %3885 = vmatprep.subr.mxu0 0.0
    %3886 = vmatpush1.msra.mxu0 0.0
    %3887 = vmatprep.subr.mxu0 0.0
    %3888 = vmatpush1.msra.mxu0 0.0
    %3889 = vmatprep.subr.mxu0 0.0
    %3890 = vmatpush1.msra.mxu0 0.0
    %3891 = vmatprep.subr.mxu0 0.0
    %3892 = vmatpush1.msra.mxu0 0.0
    %3893 = vmatprep.subr.mxu0 0.0
    %3894 = vmatpush1.msra.mxu0 0.0
    %3895 = vmatprep.subr.mxu0 0.0
    %3896 = vmatpush1.msra.mxu0 0.0
    %3897 = vmatprep.subr.mxu0 0.0
    %3898 = vmatpush1.msra.mxu0 0.0
    %3899 = vmatprep.subr.mxu0 0.0
    %3900 = vmatpush1.msra.mxu0 0.0
    %3901 = vmatprep.subr.mxu0 0.0
    %3902 = vmatpush1.msra.mxu0 0.0
    %3903 = vmatprep.subr.mxu0 0.0
    %3904 = vmatpush1.msra.mxu0 0.0
    %3905 = vmatprep.subr.mxu0 0.0
    %3906 = vmatpush1.msra.mxu0 0.0
    %3907 = vmatprep.subr.mxu0 0.0
    %3908 = vmatpush1.msra.mxu0 0.0
    %3909 = vmatprep.subr.mxu0 0.0
    %3910 = vmatpush1.msra.mxu0 0.0
    %3911 = vmatprep.subr.mxu0 0.0
    %3912 = vmatpush1.msra.mxu0 0.0
    %3913 = vmatprep.subr.mxu0 0.0
    %3914 = vmatpush1.msra.mxu0 0.0
    %3915 = vmatprep.subr.mxu0 0.0
    %3916 = vmatpush1.msra.mxu0 0.0
    %3917 = vmatprep.subr.mxu0 0.0
    %3918 = vmatpush1.msra.mxu0 0.0
    %3919 = vmatprep.subr.mxu0 0.0
    %3920 = vmatpush1.msra.mxu0 0.0
    %3921 = vmatprep.subr.mxu0 0.0
    %3922 = vmatpush1.msra.mxu0 0.0
    %3923 = vmatprep.subr.mxu0 0.0
    %3924 = vmatpush1.msra.mxu0 0.0
    %3925 = vmatprep.subr.mxu0 0.0
    %3926 = vmatpush1.msra.mxu0 0.0
    %3927 = vmatprep.subr.mxu0 0.0
    %3928 = vmatpush1.msra.mxu0 0.0
    %3929 = vmatprep.mubr.f32.mxu0 0.0
    %v3930 = vand.u32 %v3776, 4294901760
    %3931 = vmatmul.mubr.f32.gmra.mrb[0].mxu0 %v3930
    %v3932 = vpop.f32.mrb[0].mxu0
    %v3933 = vadd.f32 %v3852, %v3932
    %v3934 = vpop.f32.mrb[0].mxu0
    %3935 = vdwg.mxu0
    %3936 = vmatprep.subr.mxu0 0.0
    %v3937 = vand.u32 %v3566, 4294901760
    %v3938 = vsub.f32 %v3566, %v3937
    %3939 = vmatpush1.msra.mxu0 %v3938
    %3940 = vmatprep.subr.mxu0 0.0
    %v3941 = vand.u32 %v3634, 4294901760
    %v3942 = vsub.f32 %v3634, %v3941
    %3943 = vmatpush1.msra.mxu0 %v3942
    %3944 = vmatprep.subr.mxu0 0.0
    %3945 = vmatpush1.msra.mxu0 0.0
    %3946 = vmatprep.subr.mxu0 0.0
    %3947 = vmatpush1.msra.mxu0 0.0
    %3948 = vmatprep.subr.mxu0 0.0
    %3949 = vmatpush1.msra.mxu0 0.0
    %3950 = vmatprep.subr.mxu0 0.0
    %3951 = vmatpush1.msra.mxu0 0.0
    %3952 = vmatprep.subr.mxu0 0.0
    %3953 = vmatpush1.msra.mxu0 0.0
    %3954 = vmatprep.subr.mxu0 0.0
    %3955 = vmatpush1.msra.mxu0 0.0
    %3956 = vmatprep.subr.mxu0 0.0
    %3957 = vmatpush1.msra.mxu0 0.0
    %3958 = vmatprep.subr.mxu0 0.0
    %3959 = vmatpush1.msra.mxu0 0.0
    %3960 = vmatprep.subr.mxu0 0.0
    %3961 = vmatpush1.msra.mxu0 0.0
    %3962 = vmatprep.subr.mxu0 0.0
    %3963 = vmatpush1.msra.mxu0 0.0
    %3964 = vmatprep.subr.mxu0 0.0
    %3965 = vmatpush1.msra.mxu0 0.0
    %3966 = vmatprep.subr.mxu0 0.0
    %3967 = vmatpush1.msra.mxu0 0.0
    %3968 = vmatprep.subr.mxu0 0.0
    %3969 = vmatpush1.msra.mxu0 0.0
    %3970 = vmatprep.subr.mxu0 0.0
    %3971 = vmatpush1.msra.mxu0 0.0
    %3972 = vmatprep.subr.mxu0 0.0
    %3973 = vmatpush1.msra.mxu0 0.0
    %3974 = vmatprep.subr.mxu0 0.0
    %3975 = vmatpush1.msra.mxu0 0.0
    %3976 = vmatprep.subr.mxu0 0.0
    %3977 = vmatpush1.msra.mxu0 0.0
    %3978 = vmatprep.subr.mxu0 0.0
    %3979 = vmatpush1.msra.mxu0 0.0
    %3980 = vmatprep.subr.mxu0 0.0
    %3981 = vmatpush1.msra.mxu0 0.0
    %3982 = vmatprep.subr.mxu0 0.0
    %3983 = vmatpush1.msra.mxu0 0.0
    %3984 = vmatprep.subr.mxu0 0.0
    %3985 = vmatpush1.msra.mxu0 0.0
    %3986 = vmatprep.subr.mxu0 0.0
    %3987 = vmatpush1.msra.mxu0 0.0
    %3988 = vmatprep.subr.mxu0 0.0
    %3989 = vmatpush1.msra.mxu0 0.0
    %3990 = vmatprep.subr.mxu0 0.0
    %3991 = vmatpush1.msra.mxu0 0.0
    %3992 = vmatprep.subr.mxu0 0.0
    %3993 = vmatpush1.msra.mxu0 0.0
    %3994 = vmatprep.subr.mxu0 0.0
    %3995 = vmatpush1.msra.mxu0 0.0
    %3996 = vmatprep.subr.mxu0 0.0
    %3997 = vmatpush1.msra.mxu0 0.0
    %3998 = vmatprep.subr.mxu0 0.0
    %3999 = vmatpush1.msra.mxu0 0.0
    %4000 = vmatprep.subr.mxu0 0.0
    %4001 = vmatpush1.msra.mxu0 0.0
    %4002 = vmatprep.subr.mxu0 0.0
    %4003 = vmatpush1.msra.mxu0 0.0
    %4004 = vmatprep.mubr.f32.mxu0 0.0
    %v4005 = vand.u32 %v3776, 4294901760
    %v4006 = vsub.f32 %v3776, %v4005
    %4007 = vmatmul.mubr.f32.gmra.mrb[0].mxu0 %v4006
    %v4008 = vpop.f32.mrb[0].mxu0
    %v4009 = vadd.f32 %v3933, %v4008
    %v4010 = vpop.f32.mrb[0].mxu0
    %4011 = vdwg.mxu0
    %4012 = vmatprep.subr.mxu0 0.0
    %v4013 = vand.u32 %v3566, 4294901760
    %4014 = vmatpush1.msra.mxu0 %v4013
    %4015 = vmatprep.subr.mxu0 0.0
    %v4016 = vand.u32 %v3634, 4294901760
    %4017 = vmatpush1.msra.mxu0 %v4016
    %4018 = vmatprep.subr.mxu0 0.0
    %4019 = vmatpush1.msra.mxu0 0.0
    %4020 = vmatprep.subr.mxu0 0.0
    %4021 = vmatpush1.msra.mxu0 0.0
    %4022 = vmatprep.subr.mxu0 0.0
    %4023 = vmatpush1.msra.mxu0 0.0
    %4024 = vmatprep.subr.mxu0 0.0
    %4025 = vmatpush1.msra.mxu0 0.0
    %4026 = vmatprep.subr.mxu0 0.0
    %4027 = vmatpush1.msra.mxu0 0.0
    %4028 = vmatprep.subr.mxu0 0.0
    %4029 = vmatpush1.msra.mxu0 0.0
    %4030 = vmatprep.subr.mxu0 0.0
    %4031 = vmatpush1.msra.mxu0 0.0
    %4032 = vmatprep.subr.mxu0 0.0
    %4033 = vmatpush1.msra.mxu0 0.0
    %4034 = vmatprep.subr.mxu0 0.0
    %4035 = vmatpush1.msra.mxu0 0.0
    %4036 = vmatprep.subr.mxu0 0.0
    %4037 = vmatpush1.msra.mxu0 0.0
    %4038 = vmatprep.subr.mxu0 0.0
    %4039 = vmatpush1.msra.mxu0 0.0
    %4040 = vmatprep.subr.mxu0 0.0
    %4041 = vmatpush1.msra.mxu0 0.0
    %4042 = vmatprep.subr.mxu0 0.0
    %4043 = vmatpush1.msra.mxu0 0.0
    %4044 = vmatprep.subr.mxu0 0.0
    %4045 = vmatpush1.msra.mxu0 0.0
    %4046 = vmatprep.subr.mxu0 0.0
    %4047 = vmatpush1.msra.mxu0 0.0
    %4048 = vmatprep.subr.mxu0 0.0
    %4049 = vmatpush1.msra.mxu0 0.0
    %4050 = vmatprep.subr.mxu0 0.0
    %4051 = vmatpush1.msra.mxu0 0.0
    %4052 = vmatprep.subr.mxu0 0.0
    %4053 = vmatpush1.msra.mxu0 0.0
    %4054 = vmatprep.subr.mxu0 0.0
    %4055 = vmatpush1.msra.mxu0 0.0
    %4056 = vmatprep.subr.mxu0 0.0
    %4057 = vmatpush1.msra.mxu0 0.0
    %4058 = vmatprep.subr.mxu0 0.0
    %4059 = vmatpush1.msra.mxu0 0.0
    %4060 = vmatprep.subr.mxu0 0.0
    %4061 = vmatpush1.msra.mxu0 0.0
    %4062 = vmatprep.subr.mxu0 0.0
    %4063 = vmatpush1.msra.mxu0 0.0
    %4064 = vmatprep.subr.mxu0 0.0
    %4065 = vmatpush1.msra.mxu0 0.0
    %4066 = vmatprep.subr.mxu0 0.0
    %4067 = vmatpush1.msra.mxu0 0.0
    %4068 = vmatprep.subr.mxu0 0.0
    %4069 = vmatpush1.msra.mxu0 0.0
    %4070 = vmatprep.subr.mxu0 0.0
    %4071 = vmatpush1.msra.mxu0 0.0
    %4072 = vmatprep.subr.mxu0 0.0
    %4073 = vmatpush1.msra.mxu0 0.0
    %4074 = vmatprep.subr.mxu0 0.0
    %4075 = vmatpush1.msra.mxu0 0.0
    %4076 = vmatprep.subr.mxu0 0.0
    %4077 = vmatpush1.msra.mxu0 0.0
    %4078 = vmatprep.mubr.f32.mxu0 0.0
    %v4079 = vand.u32 %v3776, 4294901760
    %v4080 = vsub.f32 %v3776, %v4079
    %v4081 = vand.u32 %v4080, 4294901760
    %4082 = vmatmul.mubr.f32.gmra.mrb[0].mxu0 %v4081
    %v4083 = vpop.f32.mrb[0].mxu0
    %v4084 = vadd.f32 %v4009, %v4083
    %v4085 = vpop.f32.mrb[0].mxu0
    %4086 = vdwg.mxu0
    %4087 = vmatprep.subr.mxu0 0.0
    %v4088 = vand.u32 %v3566, 4294901760
    %v4089 = vsub.f32 %v3566, %v4088
    %v4090 = vand.u32 %v4089, 4294901760
    %4091 = vmatpush1.msra.mxu0 %v4090
    %4092 = vmatprep.subr.mxu0 0.0
    %v4093 = vand.u32 %v3634, 4294901760
    %v4094 = vsub.f32 %v3634, %v4093
    %v4095 = vand.u32 %v4094, 4294901760
    %4096 = vmatpush1.msra.mxu0 %v4095
    %4097 = vmatprep.subr.mxu0 0.0
    %4098 = vmatpush1.msra.mxu0 0.0
    %4099 = vmatprep.subr.mxu0 0.0
    %4100 = vmatpush1.msra.mxu0 0.0
    %4101 = vmatprep.subr.mxu0 0.0
    %4102 = vmatpush1.msra.mxu0 0.0
    %4103 = vmatprep.subr.mxu0 0.0
    %4104 = vmatpush1.msra.mxu0 0.0
    %4105 = vmatprep.subr.mxu0 0.0
    %4106 = vmatpush1.msra.mxu0 0.0
    %4107 = vmatprep.subr.mxu0 0.0
    %4108 = vmatpush1.msra.mxu0 0.0
    %4109 = vmatprep.subr.mxu0 0.0
    %4110 = vmatpush1.msra.mxu0 0.0
    %4111 = vmatprep.subr.mxu0 0.0
    %4112 = vmatpush1.msra.mxu0 0.0
    %4113 = vmatprep.subr.mxu0 0.0
    %4114 = vmatpush1.msra.mxu0 0.0
    %4115 = vmatprep.subr.mxu0 0.0
    %4116 = vmatpush1.msra.mxu0 0.0
    %4117 = vmatprep.subr.mxu0 0.0
    %4118 = vmatpush1.msra.mxu0 0.0
    %4119 = vmatprep.subr.mxu0 0.0
    %4120 = vmatpush1.msra.mxu0 0.0
    %4121 = vmatprep.subr.mxu0 0.0
    %4122 = vmatpush1.msra.mxu0 0.0
    %4123 = vmatprep.subr.mxu0 0.0
    %4124 = vmatpush1.msra.mxu0 0.0
    %4125 = vmatprep.subr.mxu0 0.0
    %4126 = vmatpush1.msra.mxu0 0.0
    %4127 = vmatprep.subr.mxu0 0.0
    %4128 = vmatpush1.msra.mxu0 0.0
    %4129 = vmatprep.subr.mxu0 0.0
    %4130 = vmatpush1.msra.mxu0 0.0
    %4131 = vmatprep.subr.mxu0 0.0
    %4132 = vmatpush1.msra.mxu0 0.0
    %4133 = vmatprep.subr.mxu0 0.0
    %4134 = vmatpush1.msra.mxu0 0.0
    %4135 = vmatprep.subr.mxu0 0.0
    %4136 = vmatpush1.msra.mxu0 0.0
    %4137 = vmatprep.subr.mxu0 0.0
    %4138 = vmatpush1.msra.mxu0 0.0
    %4139 = vmatprep.subr.mxu0 0.0
    %4140 = vmatpush1.msra.mxu0 0.0
    %4141 = vmatprep.subr.mxu0 0.0
    %4142 = vmatpush1.msra.mxu0 0.0
    %4143 = vmatprep.subr.mxu0 0.0
    %4144 = vmatpush1.msra.mxu0 0.0
    %4145 = vmatprep.subr.mxu0 0.0
    %4146 = vmatpush1.msra.mxu0 0.0
    %4147 = vmatprep.subr.mxu0 0.0
    %4148 = vmatpush1.msra.mxu0 0.0
    %4149 = vmatprep.subr.mxu0 0.0
    %4150 = vmatpush1.msra.mxu0 0.0
    %4151 = vmatprep.subr.mxu0 0.0
    %4152 = vmatpush1.msra.mxu0 0.0
    %4153 = vmatprep.subr.mxu0 0.0
    %4154 = vmatpush1.msra.mxu0 0.0
    %4155 = vmatprep.subr.mxu0 0.0
    %4156 = vmatpush1.msra.mxu0 0.0
    %4157 = vmatprep.mubr.f32.mxu0 0.0
    %v4158 = vand.u32 %v3776, 4294901760
    %4159 = vmatmul.mubr.f32.gmra.mrb[0].mxu0 %v4158
    %v4160 = vpop.f32.mrb[0].mxu0
    %v4161 = vadd.f32 %v4084, %v4160
    %v4162 = vpop.f32.mrb[0].mxu0
    %4163 = vdwg.mxu0
    %4164 = vmatprep.subr.mxu0 0.0
    %v4165 = vand.u32 %v3566, 4294901760
    %4166 = vmatpush1.msra.mxu0 %v4165
    %4167 = vmatprep.subr.mxu0 0.0
    %v4168 = vand.u32 %v3634, 4294901760
    %4169 = vmatpush1.msra.mxu0 %v4168
    %4170 = vmatprep.subr.mxu0 0.0
    %4171 = vmatpush1.msra.mxu0 0.0
    %4172 = vmatprep.subr.mxu0 0.0
    %4173 = vmatpush1.msra.mxu0 0.0
    %4174 = vmatprep.subr.mxu0 0.0
    %4175 = vmatpush1.msra.mxu0 0.0
    %4176 = vmatprep.subr.mxu0 0.0
    %4177 = vmatpush1.msra.mxu0 0.0
    %4178 = vmatprep.subr.mxu0 0.0
    %4179 = vmatpush1.msra.mxu0 0.0
    %4180 = vmatprep.subr.mxu0 0.0
    %4181 = vmatpush1.msra.mxu0 0.0
    %4182 = vmatprep.subr.mxu0 0.0
    %4183 = vmatpush1.msra.mxu0 0.0
    %4184 = vmatprep.subr.mxu0 0.0
    %4185 = vmatpush1.msra.mxu0 0.0
    %4186 = vmatprep.subr.mxu0 0.0
    %4187 = vmatpush1.msra.mxu0 0.0
    %4188 = vmatprep.subr.mxu0 0.0
    %4189 = vmatpush1.msra.mxu0 0.0
    %4190 = vmatprep.subr.mxu0 0.0
    %4191 = vmatpush1.msra.mxu0 0.0
    %4192 = vmatprep.subr.mxu0 0.0
    %4193 = vmatpush1.msra.mxu0 0.0
    %4194 = vmatprep.subr.mxu0 0.0
    %4195 = vmatpush1.msra.mxu0 0.0
    %4196 = vmatprep.subr.mxu0 0.0
    %4197 = vmatpush1.msra.mxu0 0.0
    %4198 = vmatprep.subr.mxu0 0.0
    %4199 = vmatpush1.msra.mxu0 0.0
    %4200 = vmatprep.subr.mxu0 0.0
    %4201 = vmatpush1.msra.mxu0 0.0
    %4202 = vmatprep.subr.mxu0 0.0
    %4203 = vmatpush1.msra.mxu0 0.0
    %4204 = vmatprep.subr.mxu0 0.0
    %4205 = vmatpush1.msra.mxu0 0.0
    %4206 = vmatprep.subr.mxu0 0.0
    %4207 = vmatpush1.msra.mxu0 0.0
    %4208 = vmatprep.subr.mxu0 0.0
    %4209 = vmatpush1.msra.mxu0 0.0
    %4210 = vmatprep.subr.mxu0 0.0
    %4211 = vmatpush1.msra.mxu0 0.0
    %4212 = vmatprep.subr.mxu0 0.0
    %4213 = vmatpush1.msra.mxu0 0.0
    %4214 = vmatprep.subr.mxu0 0.0
    %4215 = vmatpush1.msra.mxu0 0.0
    %4216 = vmatprep.subr.mxu0 0.0
    %4217 = vmatpush1.msra.mxu0 0.0
    %4218 = vmatprep.subr.mxu0 0.0
    %4219 = vmatpush1.msra.mxu0 0.0
    %4220 = vmatprep.subr.mxu0 0.0
    %4221 = vmatpush1.msra.mxu0 0.0
    %4222 = vmatprep.subr.mxu0 0.0
    %4223 = vmatpush1.msra.mxu0 0.0
    %4224 = vmatprep.subr.mxu0 0.0
    %4225 = vmatpush1.msra.mxu0 0.0
    %4226 = vmatprep.subr.mxu0 0.0
    %4227 = vmatpush1.msra.mxu0 0.0
    %4228 = vmatprep.subr.mxu0 0.0
    %4229 = vmatpush1.msra.mxu0 0.0
    %4230 = vmatprep.mubr.f32.mxu0 0.0
    %v4231 = vand.u32 %v3776, 4294901760
    %4232 = vmatmul.mubr.f32.gmra.mrb[0].mxu0 %v4231
    %v4233 = vpop.f32.mrb[0].mxu0
    %v4234 = vadd.f32 %v4161, %v4233
    %v4235 = vpop.f32.mrb[0].mxu0
    %4236 = vdwg.mxu0
    %v4238 = vsel %vm3774, %v899, 0
    %4240 = vmatprep.subr.mxu0 0.0
    %v4241 = vand.u32 %v3567, 4294901760
    %4242 = vmatpush1.msra.mxu0 %v4241
    %4243 = vmatprep.subr.mxu0 0.0
    %v4244 = vand.u32 %v3635, 4294901760
    %4245 = vmatpush1.msra.mxu0 %v4244
    %4246 = vmatprep.subr.mxu0 0.0
    %4247 = vmatpush1.msra.mxu0 0.0
    %4248 = vmatprep.subr.mxu0 0.0
    %4249 = vmatpush1.msra.mxu0 0.0
    %4250 = vmatprep.subr.mxu0 0.0
    %4251 = vmatpush1.msra.mxu0 0.0
    %4252 = vmatprep.subr.mxu0 0.0
    %4253 = vmatpush1.msra.mxu0 0.0
    %4254 = vmatprep.subr.mxu0 0.0
    %4255 = vmatpush1.msra.mxu0 0.0
    %4256 = vmatprep.subr.mxu0 0.0
    %4257 = vmatpush1.msra.mxu0 0.0
    %4258 = vmatprep.subr.mxu0 0.0
    %4259 = vmatpush1.msra.mxu0 0.0
    %4260 = vmatprep.subr.mxu0 0.0
    %4261 = vmatpush1.msra.mxu0 0.0
    %4262 = vmatprep.subr.mxu0 0.0
    %4263 = vmatpush1.msra.mxu0 0.0
    %4264 = vmatprep.subr.mxu0 0.0
    %4265 = vmatpush1.msra.mxu0 0.0
    %4266 = vmatprep.subr.mxu0 0.0
    %4267 = vmatpush1.msra.mxu0 0.0
    %4268 = vmatprep.subr.mxu0 0.0
    %4269 = vmatpush1.msra.mxu0 0.0
    %4270 = vmatprep.subr.mxu0 0.0
    %4271 = vmatpush1.msra.mxu0 0.0
    %4272 = vmatprep.subr.mxu0 0.0
    %4273 = vmatpush1.msra.mxu0 0.0
    %4274 = vmatprep.subr.mxu0 0.0
    %4275 = vmatpush1.msra.mxu0 0.0
    %4276 = vmatprep.subr.mxu0 0.0
    %4277 = vmatpush1.msra.mxu0 0.0
    %4278 = vmatprep.subr.mxu0 0.0
    %4279 = vmatpush1.msra.mxu0 0.0
    %4280 = vmatprep.subr.mxu0 0.0
    %4281 = vmatpush1.msra.mxu0 0.0
    %4282 = vmatprep.subr.mxu0 0.0
    %4283 = vmatpush1.msra.mxu0 0.0
    %4284 = vmatprep.subr.mxu0 0.0
    %4285 = vmatpush1.msra.mxu0 0.0
    %4286 = vmatprep.subr.mxu0 0.0
    %4287 = vmatpush1.msra.mxu0 0.0
    %4288 = vmatprep.subr.mxu0 0.0
    %4289 = vmatpush1.msra.mxu0 0.0
    %4290 = vmatprep.subr.mxu0 0.0
    %4291 = vmatpush1.msra.mxu0 0.0
    %4292 = vmatprep.subr.mxu0 0.0
    %4293 = vmatpush1.msra.mxu0 0.0
    %4294 = vmatprep.subr.mxu0 0.0
    %4295 = vmatpush1.msra.mxu0 0.0
    %4296 = vmatprep.subr.mxu0 0.0
    %4297 = vmatpush1.msra.mxu0 0.0
    %4298 = vmatprep.subr.mxu0 0.0
    %4299 = vmatpush1.msra.mxu0 0.0
    %4300 = vmatprep.subr.mxu0 0.0
    %4301 = vmatpush1.msra.mxu0 0.0
    %4302 = vmatprep.subr.mxu0 0.0
    %4303 = vmatpush1.msra.mxu0 0.0
    %4304 = vmatprep.subr.mxu0 0.0
    %4305 = vmatpush1.msra.mxu0 0.0
    %4306 = vmatprep.mubr.f32.mxu0 0.0
    %v4307 = vand.u32 %v4238, 4294901760
    %v4308 = vsub.f32 %v4238, %v4307
    %v4309 = vand.u32 %v4308, 4294901760
    %v4310 = vsub.f32 %v4308, %v4309
    %v4311 = vand.u32 %v4310, 4294901760
    %4312 = vmatmul.mubr.f32.gmra.mrb[0].mxu0 %v4311
    %v4313 = vpop.f32.mrb[0].mxu0
    %v4314 = vadd.f32 0.0, %v4313
    %v4315 = vpop.f32.mrb[0].mxu0
    %4316 = vdwg.mxu0
    %4317 = vmatprep.subr.mxu0 0.0
    %v4318 = vand.u32 %v3567, 4294901760
    %v4319 = vsub.f32 %v3567, %v4318
    %v4320 = vand.u32 %v4319, 4294901760
    %v4321 = vsub.f32 %v4319, %v4320
    %v4322 = vand.u32 %v4321, 4294901760
    %4323 = vmatpush1.msra.mxu0 %v4322
    %4324 = vmatprep.subr.mxu0 0.0
    %v4325 = vand.u32 %v3635, 4294901760
    %v4326 = vsub.f32 %v3635, %v4325
    %v4327 = vand.u32 %v4326, 4294901760
    %v4328 = vsub.f32 %v4326, %v4327
    %v4329 = vand.u32 %v4328, 4294901760
    %4330 = vmatpush1.msra.mxu0 %v4329
    %4331 = vmatprep.subr.mxu0 0.0
    %4332 = vmatpush1.msra.mxu0 0.0
    %4333 = vmatprep.subr.mxu0 0.0
    %4334 = vmatpush1.msra.mxu0 0.0
    %4335 = vmatprep.subr.mxu0 0.0
    %4336 = vmatpush1.msra.mxu0 0.0
    %4337 = vmatprep.subr.mxu0 0.0
    %4338 = vmatpush1.msra.mxu0 0.0
    %4339 = vmatprep.subr.mxu0 0.0
    %4340 = vmatpush1.msra.mxu0 0.0
    %4341 = vmatprep.subr.mxu0 0.0
    %4342 = vmatpush1.msra.mxu0 0.0
    %4343 = vmatprep.subr.mxu0 0.0
    %4344 = vmatpush1.msra.mxu0 0.0
    %4345 = vmatprep.subr.mxu0 0.0
    %4346 = vmatpush1.msra.mxu0 0.0
    %4347 = vmatprep.subr.mxu0 0.0
    %4348 = vmatpush1.msra.mxu0 0.0
    %4349 = vmatprep.subr.mxu0 0.0
    %4350 = vmatpush1.msra.mxu0 0.0
    %4351 = vmatprep.subr.mxu0 0.0
    %4352 = vmatpush1.msra.mxu0 0.0
    %4353 = vmatprep.subr.mxu0 0.0
    %4354 = vmatpush1.msra.mxu0 0.0
    %4355 = vmatprep.subr.mxu0 0.0
    %4356 = vmatpush1.msra.mxu0 0.0
    %4357 = vmatprep.subr.mxu0 0.0
    %4358 = vmatpush1.msra.mxu0 0.0
    %4359 = vmatprep.subr.mxu0 0.0
    %4360 = vmatpush1.msra.mxu0 0.0
    %4361 = vmatprep.subr.mxu0 0.0
    %4362 = vmatpush1.msra.mxu0 0.0
    %4363 = vmatprep.subr.mxu0 0.0
    %4364 = vmatpush1.msra.mxu0 0.0
    %4365 = vmatprep.subr.mxu0 0.0
    %4366 = vmatpush1.msra.mxu0 0.0
    %4367 = vmatprep.subr.mxu0 0.0
    %4368 = vmatpush1.msra.mxu0 0.0
    %4369 = vmatprep.subr.mxu0 0.0
    %4370 = vmatpush1.msra.mxu0 0.0
    %4371 = vmatprep.subr.mxu0 0.0
    %4372 = vmatpush1.msra.mxu0 0.0
    %4373 = vmatprep.subr.mxu0 0.0
    %4374 = vmatpush1.msra.mxu0 0.0
    %4375 = vmatprep.subr.mxu0 0.0
    %4376 = vmatpush1.msra.mxu0 0.0
    %4377 = vmatprep.subr.mxu0 0.0
    %4378 = vmatpush1.msra.mxu0 0.0
    %4379 = vmatprep.subr.mxu0 0.0
    %4380 = vmatpush1.msra.mxu0 0.0
    %4381 = vmatprep.subr.mxu0 0.0
    %4382 = vmatpush1.msra.mxu0 0.0
    %4383 = vmatprep.subr.mxu0 0.0
    %4384 = vmatpush1.msra.mxu0 0.0
    %4385 = vmatprep.subr.mxu0 0.0
    %4386 = vmatpush1.msra.mxu0 0.0
    %4387 = vmatprep.subr.mxu0 0.0
    %4388 = vmatpush1.msra.mxu0 0.0
    %4389 = vmatprep.subr.mxu0 0.0
    %4390 = vmatpush1.msra.mxu0 0.0
    %4391 = vmatprep.mubr.f32.mxu0 0.0
    %v4392 = vand.u32 %v4238, 4294901760
    %4393 = vmatmul.mubr.f32.gmra.mrb[0].mxu0 %v4392
    %v4394 = vpop.f32.mrb[0].mxu0
    %v4395 = vadd.f32 %v4314, %v4394
    %v4396 = vpop.f32.mrb[0].mxu0
    %4397 = vdwg.mxu0
    %4398 = vmatprep.subr.mxu0 0.0
    %v4399 = vand.u32 %v3567, 4294901760
    %v4400 = vsub.f32 %v3567, %v4399
    %4401 = vmatpush1.msra.mxu0 %v4400
    %4402 = vmatprep.subr.mxu0 0.0
    %v4403 = vand.u32 %v3635, 4294901760
    %v4404 = vsub.f32 %v3635, %v4403
    %4405 = vmatpush1.msra.mxu0 %v4404
    %4406 = vmatprep.subr.mxu0 0.0
    %4407 = vmatpush1.msra.mxu0 0.0
    %4408 = vmatprep.subr.mxu0 0.0
    %4409 = vmatpush1.msra.mxu0 0.0
    %4410 = vmatprep.subr.mxu0 0.0
    %4411 = vmatpush1.msra.mxu0 0.0
    %4412 = vmatprep.subr.mxu0 0.0
    %4413 = vmatpush1.msra.mxu0 0.0
    %4414 = vmatprep.subr.mxu0 0.0
    %4415 = vmatpush1.msra.mxu0 0.0
    %4416 = vmatprep.subr.mxu0 0.0
    %4417 = vmatpush1.msra.mxu0 0.0
    %4418 = vmatprep.subr.mxu0 0.0
    %4419 = vmatpush1.msra.mxu0 0.0
    %4420 = vmatprep.subr.mxu0 0.0
    %4421 = vmatpush1.msra.mxu0 0.0
    %4422 = vmatprep.subr.mxu0 0.0
    %4423 = vmatpush1.msra.mxu0 0.0
    %4424 = vmatprep.subr.mxu0 0.0
    %4425 = vmatpush1.msra.mxu0 0.0
    %4426 = vmatprep.subr.mxu0 0.0
    %4427 = vmatpush1.msra.mxu0 0.0
    %4428 = vmatprep.subr.mxu0 0.0
    %4429 = vmatpush1.msra.mxu0 0.0
    %4430 = vmatprep.subr.mxu0 0.0
    %4431 = vmatpush1.msra.mxu0 0.0
    %4432 = vmatprep.subr.mxu0 0.0
    %4433 = vmatpush1.msra.mxu0 0.0
    %4434 = vmatprep.subr.mxu0 0.0
    %4435 = vmatpush1.msra.mxu0 0.0
    %4436 = vmatprep.subr.mxu0 0.0
    %4437 = vmatpush1.msra.mxu0 0.0
    %4438 = vmatprep.subr.mxu0 0.0
    %4439 = vmatpush1.msra.mxu0 0.0
    %4440 = vmatprep.subr.mxu0 0.0
    %4441 = vmatpush1.msra.mxu0 0.0
    %4442 = vmatprep.subr.mxu0 0.0
    %4443 = vmatpush1.msra.mxu0 0.0
    %4444 = vmatprep.subr.mxu0 0.0
    %4445 = vmatpush1.msra.mxu0 0.0
    %4446 = vmatprep.subr.mxu0 0.0
    %4447 = vmatpush1.msra.mxu0 0.0
    %4448 = vmatprep.subr.mxu0 0.0
    %4449 = vmatpush1.msra.mxu0 0.0
    %4450 = vmatprep.subr.mxu0 0.0
    %4451 = vmatpush1.msra.mxu0 0.0
    %4452 = vmatprep.subr.mxu0 0.0
    %4453 = vmatpush1.msra.mxu0 0.0
    %4454 = vmatprep.subr.mxu0 0.0
    %4455 = vmatpush1.msra.mxu0 0.0
    %4456 = vmatprep.subr.mxu0 0.0
    %4457 = vmatpush1.msra.mxu0 0.0
    %4458 = vmatprep.subr.mxu0 0.0
    %4459 = vmatpush1.msra.mxu0 0.0
    %4460 = vmatprep.subr.mxu0 0.0
    %4461 = vmatpush1.msra.mxu0 0.0
    %4462 = vmatprep.subr.mxu0 0.0
    %4463 = vmatpush1.msra.mxu0 0.0
    %4464 = vmatprep.subr.mxu0 0.0
    %4465 = vmatpush1.msra.mxu0 0.0
    %4466 = vmatprep.mubr.f32.mxu0 0.0
    %v4467 = vand.u32 %v4238, 4294901760
    %v4468 = vsub.f32 %v4238, %v4467
    %4469 = vmatmul.mubr.f32.gmra.mrb[0].mxu0 %v4468
    %v4470 = vpop.f32.mrb[0].mxu0
    %v4471 = vadd.f32 %v4395, %v4470
    %v4472 = vpop.f32.mrb[0].mxu0
    %4473 = vdwg.mxu0
    %4474 = vmatprep.subr.mxu0 0.0
    %v4475 = vand.u32 %v3567, 4294901760
    %4476 = vmatpush1.msra.mxu0 %v4475
    %4477 = vmatprep.subr.mxu0 0.0
    %v4478 = vand.u32 %v3635, 4294901760
    %4479 = vmatpush1.msra.mxu0 %v4478
    %4480 = vmatprep.subr.mxu0 0.0
    %4481 = vmatpush1.msra.mxu0 0.0
    %4482 = vmatprep.subr.mxu0 0.0
    %4483 = vmatpush1.msra.mxu0 0.0
    %4484 = vmatprep.subr.mxu0 0.0
    %4485 = vmatpush1.msra.mxu0 0.0
    %4486 = vmatprep.subr.mxu0 0.0
    %4487 = vmatpush1.msra.mxu0 0.0
    %4488 = vmatprep.subr.mxu0 0.0
    %4489 = vmatpush1.msra.mxu0 0.0
    %4490 = vmatprep.subr.mxu0 0.0
    %4491 = vmatpush1.msra.mxu0 0.0
    %4492 = vmatprep.subr.mxu0 0.0
    %4493 = vmatpush1.msra.mxu0 0.0
    %4494 = vmatprep.subr.mxu0 0.0
    %4495 = vmatpush1.msra.mxu0 0.0
    %4496 = vmatprep.subr.mxu0 0.0
    %4497 = vmatpush1.msra.mxu0 0.0
    %4498 = vmatprep.subr.mxu0 0.0
    %4499 = vmatpush1.msra.mxu0 0.0
    %4500 = vmatprep.subr.mxu0 0.0
    %4501 = vmatpush1.msra.mxu0 0.0
    %4502 = vmatprep.subr.mxu0 0.0
    %4503 = vmatpush1.msra.mxu0 0.0
    %4504 = vmatprep.subr.mxu0 0.0
    %4505 = vmatpush1.msra.mxu0 0.0
    %4506 = vmatprep.subr.mxu0 0.0
    %4507 = vmatpush1.msra.mxu0 0.0
    %4508 = vmatprep.subr.mxu0 0.0
    %4509 = vmatpush1.msra.mxu0 0.0
    %4510 = vmatprep.subr.mxu0 0.0
    %4511 = vmatpush1.msra.mxu0 0.0
    %4512 = vmatprep.subr.mxu0 0.0
    %4513 = vmatpush1.msra.mxu0 0.0
    %4514 = vmatprep.subr.mxu0 0.0
    %4515 = vmatpush1.msra.mxu0 0.0
    %4516 = vmatprep.subr.mxu0 0.0
    %4517 = vmatpush1.msra.mxu0 0.0
    %4518 = vmatprep.subr.mxu0 0.0
    %4519 = vmatpush1.msra.mxu0 0.0
    %4520 = vmatprep.subr.mxu0 0.0
    %4521 = vmatpush1.msra.mxu0 0.0
    %4522 = vmatprep.subr.mxu0 0.0
    %4523 = vmatpush1.msra.mxu0 0.0
    %4524 = vmatprep.subr.mxu0 0.0
    %4525 = vmatpush1.msra.mxu0 0.0
    %4526 = vmatprep.subr.mxu0 0.0
    %4527 = vmatpush1.msra.mxu0 0.0
    %4528 = vmatprep.subr.mxu0 0.0
    %4529 = vmatpush1.msra.mxu0 0.0
    %4530 = vmatprep.subr.mxu0 0.0
    %4531 = vmatpush1.msra.mxu0 0.0
    %4532 = vmatprep.subr.mxu0 0.0
    %4533 = vmatpush1.msra.mxu0 0.0
    %4534 = vmatprep.subr.mxu0 0.0
    %4535 = vmatpush1.msra.mxu0 0.0
    %4536 = vmatprep.subr.mxu0 0.0
    %4537 = vmatpush1.msra.mxu0 0.0
    %4538 = vmatprep.subr.mxu0 0.0
    %4539 = vmatpush1.msra.mxu0 0.0
    %4540 = vmatprep.mubr.f32.mxu0 0.0
    %v4541 = vand.u32 %v4238, 4294901760
    %v4542 = vsub.f32 %v4238, %v4541
    %v4543 = vand.u32 %v4542, 4294901760
    %4544 = vmatmul.mubr.f32.gmra.mrb[0].mxu0 %v4543
    %v4545 = vpop.f32.mrb[0].mxu0
    %v4546 = vadd.f32 %v4471, %v4545
    %v4547 = vpop.f32.mrb[0].mxu0
    %4548 = vdwg.mxu0
    %4549 = vmatprep.subr.mxu0 0.0
    %v4550 = vand.u32 %v3567, 4294901760
    %v4551 = vsub.f32 %v3567, %v4550
    %v4552 = vand.u32 %v4551, 4294901760
    %4553 = vmatpush1.msra.mxu0 %v4552
    %4554 = vmatprep.subr.mxu0 0.0
    %v4555 = vand.u32 %v3635, 4294901760
    %v4556 = vsub.f32 %v3635, %v4555
    %v4557 = vand.u32 %v4556, 4294901760
    %4558 = vmatpush1.msra.mxu0 %v4557
    %4559 = vmatprep.subr.mxu0 0.0
    %4560 = vmatpush1.msra.mxu0 0.0
    %4561 = vmatprep.subr.mxu0 0.0
    %4562 = vmatpush1.msra.mxu0 0.0
    %4563 = vmatprep.subr.mxu0 0.0
    %4564 = vmatpush1.msra.mxu0 0.0
    %4565 = vmatprep.subr.mxu0 0.0
    %4566 = vmatpush1.msra.mxu0 0.0
    %4567 = vmatprep.subr.mxu0 0.0
    %4568 = vmatpush1.msra.mxu0 0.0
    %4569 = vmatprep.subr.mxu0 0.0
    %4570 = vmatpush1.msra.mxu0 0.0
    %4571 = vmatprep.subr.mxu0 0.0
    %4572 = vmatpush1.msra.mxu0 0.0
    %4573 = vmatprep.subr.mxu0 0.0
    %4574 = vmatpush1.msra.mxu0 0.0
    %4575 = vmatprep.subr.mxu0 0.0
    %4576 = vmatpush1.msra.mxu0 0.0
    %4577 = vmatprep.subr.mxu0 0.0
    %4578 = vmatpush1.msra.mxu0 0.0
    %4579 = vmatprep.subr.mxu0 0.0
    %4580 = vmatpush1.msra.mxu0 0.0
    %4581 = vmatprep.subr.mxu0 0.0
    %4582 = vmatpush1.msra.mxu0 0.0
    %4583 = vmatprep.subr.mxu0 0.0
    %4584 = vmatpush1.msra.mxu0 0.0
    %4585 = vmatprep.subr.mxu0 0.0
    %4586 = vmatpush1.msra.mxu0 0.0
    %4587 = vmatprep.subr.mxu0 0.0
    %4588 = vmatpush1.msra.mxu0 0.0
    %4589 = vmatprep.subr.mxu0 0.0
    %4590 = vmatpush1.msra.mxu0 0.0
    %4591 = vmatprep.subr.mxu0 0.0
    %4592 = vmatpush1.msra.mxu0 0.0
    %4593 = vmatprep.subr.mxu0 0.0
    %4594 = vmatpush1.msra.mxu0 0.0
    %4595 = vmatprep.subr.mxu0 0.0
    %4596 = vmatpush1.msra.mxu0 0.0
    %4597 = vmatprep.subr.mxu0 0.0
    %4598 = vmatpush1.msra.mxu0 0.0
    %4599 = vmatprep.subr.mxu0 0.0
    %4600 = vmatpush1.msra.mxu0 0.0
    %4601 = vmatprep.subr.mxu0 0.0
    %4602 = vmatpush1.msra.mxu0 0.0
    %4603 = vmatprep.subr.mxu0 0.0
    %4604 = vmatpush1.msra.mxu0 0.0
    %4605 = vmatprep.subr.mxu0 0.0
    %4606 = vmatpush1.msra.mxu0 0.0
    %4607 = vmatprep.subr.mxu0 0.0
    %4608 = vmatpush1.msra.mxu0 0.0
    %4609 = vmatprep.subr.mxu0 0.0
    %4610 = vmatpush1.msra.mxu0 0.0
    %4611 = vmatprep.subr.mxu0 0.0
    %4612 = vmatpush1.msra.mxu0 0.0
    %4613 = vmatprep.subr.mxu0 0.0
    %4614 = vmatpush1.msra.mxu0 0.0
    %4615 = vmatprep.subr.mxu0 0.0
    %4616 = vmatpush1.msra.mxu0 0.0
    %4617 = vmatprep.subr.mxu0 0.0
    %4618 = vmatpush1.msra.mxu0 0.0
    %4619 = vmatprep.mubr.f32.mxu0 0.0
    %v4620 = vand.u32 %v4238, 4294901760
    %4621 = vmatmul.mubr.f32.gmra.mrb[0].mxu0 %v4620
    %v4622 = vpop.f32.mrb[0].mxu0
    %v4623 = vadd.f32 %v4546, %v4622
    %v4624 = vpop.f32.mrb[0].mxu0
    %4625 = vdwg.mxu0
    %4626 = vmatprep.subr.mxu0 0.0
    %v4627 = vand.u32 %v3567, 4294901760
    %4628 = vmatpush1.msra.mxu0 %v4627
    %4629 = vmatprep.subr.mxu0 0.0
    %v4630 = vand.u32 %v3635, 4294901760
    %4631 = vmatpush1.msra.mxu0 %v4630
    %4632 = vmatprep.subr.mxu0 0.0
    %4633 = vmatpush1.msra.mxu0 0.0
    %4634 = vmatprep.subr.mxu0 0.0
    %4635 = vmatpush1.msra.mxu0 0.0
    %4636 = vmatprep.subr.mxu0 0.0
    %4637 = vmatpush1.msra.mxu0 0.0
    %4638 = vmatprep.subr.mxu0 0.0
    %4639 = vmatpush1.msra.mxu0 0.0
    %4640 = vmatprep.subr.mxu0 0.0
    %4641 = vmatpush1.msra.mxu0 0.0
    %4642 = vmatprep.subr.mxu0 0.0
    %4643 = vmatpush1.msra.mxu0 0.0
    %4644 = vmatprep.subr.mxu0 0.0
    %4645 = vmatpush1.msra.mxu0 0.0
    %4646 = vmatprep.subr.mxu0 0.0
    %4647 = vmatpush1.msra.mxu0 0.0
    %4648 = vmatprep.subr.mxu0 0.0
    %4649 = vmatpush1.msra.mxu0 0.0
    %4650 = vmatprep.subr.mxu0 0.0
    %4651 = vmatpush1.msra.mxu0 0.0
    %4652 = vmatprep.subr.mxu0 0.0
    %4653 = vmatpush1.msra.mxu0 0.0
    %4654 = vmatprep.subr.mxu0 0.0
    %4655 = vmatpush1.msra.mxu0 0.0
    %4656 = vmatprep.subr.mxu0 0.0
    %4657 = vmatpush1.msra.mxu0 0.0
    %4658 = vmatprep.subr.mxu0 0.0
    %4659 = vmatpush1.msra.mxu0 0.0
    %4660 = vmatprep.subr.mxu0 0.0
    %4661 = vmatpush1.msra.mxu0 0.0
    %4662 = vmatprep.subr.mxu0 0.0
    %4663 = vmatpush1.msra.mxu0 0.0
    %4664 = vmatprep.subr.mxu0 0.0
    %4665 = vmatpush1.msra.mxu0 0.0
    %4666 = vmatprep.subr.mxu0 0.0
    %4667 = vmatpush1.msra.mxu0 0.0
    %4668 = vmatprep.subr.mxu0 0.0
    %4669 = vmatpush1.msra.mxu0 0.0
    %4670 = vmatprep.subr.mxu0 0.0
    %4671 = vmatpush1.msra.mxu0 0.0
    %4672 = vmatprep.subr.mxu0 0.0
    %4673 = vmatpush1.msra.mxu0 0.0
    %4674 = vmatprep.subr.mxu0 0.0
    %4675 = vmatpush1.msra.mxu0 0.0
    %4676 = vmatprep.subr.mxu0 0.0
    %4677 = vmatpush1.msra.mxu0 0.0
    %4678 = vmatprep.subr.mxu0 0.0
    %4679 = vmatpush1.msra.mxu0 0.0
    %4680 = vmatprep.subr.mxu0 0.0
    %4681 = vmatpush1.msra.mxu0 0.0
    %4682 = vmatprep.subr.mxu0 0.0
    %4683 = vmatpush1.msra.mxu0 0.0
    %4684 = vmatprep.subr.mxu0 0.0
    %4685 = vmatpush1.msra.mxu0 0.0
    %4686 = vmatprep.subr.mxu0 0.0
    %4687 = vmatpush1.msra.mxu0 0.0
    %4688 = vmatprep.subr.mxu0 0.0
    %4689 = vmatpush1.msra.mxu0 0.0
    %4690 = vmatprep.subr.mxu0 0.0
    %4691 = vmatpush1.msra.mxu0 0.0
    %4692 = vmatprep.mubr.f32.mxu0 0.0
    %v4693 = vand.u32 %v4238, 4294901760
    %4694 = vmatmul.mubr.f32.gmra.mrb[0].mxu0 %v4693
    %v4695 = vpop.f32.mrb[0].mxu0
    %v4696 = vadd.f32 %v4623, %v4695
    %v4697 = vpop.f32.mrb[0].mxu0
    %4698 = vdwg.mxu0
    %v4700 = vsel %vm3774, %v900, 0
    %4702 = vmatprep.subr.mxu0 0.0
    %v4703 = vand.u32 %v3568, 4294901760
    %4704 = vmatpush1.msra.mxu0 %v4703
    %4705 = vmatprep.subr.mxu0 0.0
    %v4706 = vand.u32 %v3636, 4294901760
    %4707 = vmatpush1.msra.mxu0 %v4706
    %4708 = vmatprep.subr.mxu0 0.0
    %4709 = vmatpush1.msra.mxu0 0.0
    %4710 = vmatprep.subr.mxu0 0.0
    %4711 = vmatpush1.msra.mxu0 0.0
    %4712 = vmatprep.subr.mxu0 0.0
    %4713 = vmatpush1.msra.mxu0 0.0
    %4714 = vmatprep.subr.mxu0 0.0
    %4715 = vmatpush1.msra.mxu0 0.0
    %4716 = vmatprep.subr.mxu0 0.0
    %4717 = vmatpush1.msra.mxu0 0.0
    %4718 = vmatprep.subr.mxu0 0.0
    %4719 = vmatpush1.msra.mxu0 0.0
    %4720 = vmatprep.subr.mxu0 0.0
    %4721 = vmatpush1.msra.mxu0 0.0
    %4722 = vmatprep.subr.mxu0 0.0
    %4723 = vmatpush1.msra.mxu0 0.0
    %4724 = vmatprep.subr.mxu0 0.0
    %4725 = vmatpush1.msra.mxu0 0.0
    %4726 = vmatprep.subr.mxu0 0.0
    %4727 = vmatpush1.msra.mxu0 0.0
    %4728 = vmatprep.subr.mxu0 0.0
    %4729 = vmatpush1.msra.mxu0 0.0
    %4730 = vmatprep.subr.mxu0 0.0
    %4731 = vmatpush1.msra.mxu0 0.0
    %4732 = vmatprep.subr.mxu0 0.0
    %4733 = vmatpush1.msra.mxu0 0.0
    %4734 = vmatprep.subr.mxu0 0.0
    %4735 = vmatpush1.msra.mxu0 0.0
    %4736 = vmatprep.subr.mxu0 0.0
    %4737 = vmatpush1.msra.mxu0 0.0
    %4738 = vmatprep.subr.mxu0 0.0
    %4739 = vmatpush1.msra.mxu0 0.0
    %4740 = vmatprep.subr.mxu0 0.0
    %4741 = vmatpush1.msra.mxu0 0.0
    %4742 = vmatprep.subr.mxu0 0.0
    %4743 = vmatpush1.msra.mxu0 0.0
    %4744 = vmatprep.subr.mxu0 0.0
    %4745 = vmatpush1.msra.mxu0 0.0
    %4746 = vmatprep.subr.mxu0 0.0
    %4747 = vmatpush1.msra.mxu0 0.0
    %4748 = vmatprep.subr.mxu0 0.0
    %4749 = vmatpush1.msra.mxu0 0.0
    %4750 = vmatprep.subr.mxu0 0.0
    %4751 = vmatpush1.msra.mxu0 0.0
    %4752 = vmatprep.subr.mxu0 0.0
    %4753 = vmatpush1.msra.mxu0 0.0
    %4754 = vmatprep.subr.mxu0 0.0
    %4755 = vmatpush1.msra.mxu0 0.0
    %4756 = vmatprep.subr.mxu0 0.0
    %4757 = vmatpush1.msra.mxu0 0.0
    %4758 = vmatprep.subr.mxu0 0.0
    %4759 = vmatpush1.msra.mxu0 0.0
    %4760 = vmatprep.subr.mxu0 0.0
    %4761 = vmatpush1.msra.mxu0 0.0
    %4762 = vmatprep.subr.mxu0 0.0
    %4763 = vmatpush1.msra.mxu0 0.0
    %4764 = vmatprep.subr.mxu0 0.0
    %4765 = vmatpush1.msra.mxu0 0.0
    %4766 = vmatprep.subr.mxu0 0.0
    %4767 = vmatpush1.msra.mxu0 0.0
    %4768 = vmatprep.mubr.f32.mxu0 0.0
    %v4769 = vand.u32 %v4700, 4294901760
    %v4770 = vsub.f32 %v4700, %v4769
    %v4771 = vand.u32 %v4770, 4294901760
    %v4772 = vsub.f32 %v4770, %v4771
    %v4773 = vand.u32 %v4772, 4294901760
    %4774 = vmatmul.mubr.f32.gmra.mrb[0].mxu0 %v4773
    %v4775 = vpop.f32.mrb[0].mxu0
    %v4776 = vadd.f32 0.0, %v4775
    %v4777 = vpop.f32.mrb[0].mxu0
    %4778 = vdwg.mxu0
    %4779 = vmatprep.subr.mxu0 0.0
    %v4780 = vand.u32 %v3568, 4294901760
    %v4781 = vsub.f32 %v3568, %v4780
    %v4782 = vand.u32 %v4781, 4294901760
    %v4783 = vsub.f32 %v4781, %v4782
    %v4784 = vand.u32 %v4783, 4294901760
    %4785 = vmatpush1.msra.mxu0 %v4784
    %4786 = vmatprep.subr.mxu0 0.0
    %v4787 = vand.u32 %v3636, 4294901760
    %v4788 = vsub.f32 %v3636, %v4787
    %v4789 = vand.u32 %v4788, 4294901760
    %v4790 = vsub.f32 %v4788, %v4789
    %v4791 = vand.u32 %v4790, 4294901760
    %4792 = vmatpush1.msra.mxu0 %v4791
    %4793 = vmatprep.subr.mxu0 0.0
    %4794 = vmatpush1.msra.mxu0 0.0
    %4795 = vmatprep.subr.mxu0 0.0
    %4796 = vmatpush1.msra.mxu0 0.0
    %4797 = vmatprep.subr.mxu0 0.0
    %4798 = vmatpush1.msra.mxu0 0.0
    %4799 = vmatprep.subr.mxu0 0.0
    %4800 = vmatpush1.msra.mxu0 0.0
    %4801 = vmatprep.subr.mxu0 0.0
    %4802 = vmatpush1.msra.mxu0 0.0
    %4803 = vmatprep.subr.mxu0 0.0
    %4804 = vmatpush1.msra.mxu0 0.0
    %4805 = vmatprep.subr.mxu0 0.0
    %4806 = vmatpush1.msra.mxu0 0.0
    %4807 = vmatprep.subr.mxu0 0.0
    %4808 = vmatpush1.msra.mxu0 0.0
    %4809 = vmatprep.subr.mxu0 0.0
    %4810 = vmatpush1.msra.mxu0 0.0
    %4811 = vmatprep.subr.mxu0 0.0
    %4812 = vmatpush1.msra.mxu0 0.0
    %4813 = vmatprep.subr.mxu0 0.0
    %4814 = vmatpush1.msra.mxu0 0.0
    %4815 = vmatprep.subr.mxu0 0.0
    %4816 = vmatpush1.msra.mxu0 0.0
    %4817 = vmatprep.subr.mxu0 0.0
    %4818 = vmatpush1.msra.mxu0 0.0
    %4819 = vmatprep.subr.mxu0 0.0
    %4820 = vmatpush1.msra.mxu0 0.0
    %4821 = vmatprep.subr.mxu0 0.0
    %4822 = vmatpush1.msra.mxu0 0.0
    %4823 = vmatprep.subr.mxu0 0.0
    %4824 = vmatpush1.msra.mxu0 0.0
    %4825 = vmatprep.subr.mxu0 0.0
    %4826 = vmatpush1.msra.mxu0 0.0
    %4827 = vmatprep.subr.mxu0 0.0
    %4828 = vmatpush1.msra.mxu0 0.0
    %4829 = vmatprep.subr.mxu0 0.0
    %4830 = vmatpush1.msra.mxu0 0.0
    %4831 = vmatprep.subr.mxu0 0.0
    %4832 = vmatpush1.msra.mxu0 0.0
    %4833 = vmatprep.subr.mxu0 0.0
    %4834 = vmatpush1.msra.mxu0 0.0
    %4835 = vmatprep.subr.mxu0 0.0
    %4836 = vmatpush1.msra.mxu0 0.0
    %4837 = vmatprep.subr.mxu0 0.0
    %4838 = vmatpush1.msra.mxu0 0.0
    %4839 = vmatprep.subr.mxu0 0.0
    %4840 = vmatpush1.msra.mxu0 0.0
    %4841 = vmatprep.subr.mxu0 0.0
    %4842 = vmatpush1.msra.mxu0 0.0
    %4843 = vmatprep.subr.mxu0 0.0
    %4844 = vmatpush1.msra.mxu0 0.0
    %4845 = vmatprep.subr.mxu0 0.0
    %4846 = vmatpush1.msra.mxu0 0.0
    %4847 = vmatprep.subr.mxu0 0.0
    %4848 = vmatpush1.msra.mxu0 0.0
    %4849 = vmatprep.subr.mxu0 0.0
    %4850 = vmatpush1.msra.mxu0 0.0
    %4851 = vmatprep.subr.mxu0 0.0
    %4852 = vmatpush1.msra.mxu0 0.0
    %4853 = vmatprep.mubr.f32.mxu0 0.0
    %v4854 = vand.u32 %v4700, 4294901760
    %4855 = vmatmul.mubr.f32.gmra.mrb[0].mxu0 %v4854
    %v4856 = vpop.f32.mrb[0].mxu0
    %v4857 = vadd.f32 %v4776, %v4856
    %v4858 = vpop.f32.mrb[0].mxu0
    %4859 = vdwg.mxu0
    %4860 = vmatprep.subr.mxu0 0.0
    %v4861 = vand.u32 %v3568, 4294901760
    %v4862 = vsub.f32 %v3568, %v4861
    %4863 = vmatpush1.msra.mxu0 %v4862
    %4864 = vmatprep.subr.mxu0 0.0
    %v4865 = vand.u32 %v3636, 4294901760
    %v4866 = vsub.f32 %v3636, %v4865
    %4867 = vmatpush1.msra.mxu0 %v4866
    %4868 = vmatprep.subr.mxu0 0.0
    %4869 = vmatpush1.msra.mxu0 0.0
    %4870 = vmatprep.subr.mxu0 0.0
    %4871 = vmatpush1.msra.mxu0 0.0
    %4872 = vmatprep.subr.mxu0 0.0
    %4873 = vmatpush1.msra.mxu0 0.0
    %4874 = vmatprep.subr.mxu0 0.0
    %4875 = vmatpush1.msra.mxu0 0.0
    %4876 = vmatprep.subr.mxu0 0.0
    %4877 = vmatpush1.msra.mxu0 0.0
    %4878 = vmatprep.subr.mxu0 0.0
    %4879 = vmatpush1.msra.mxu0 0.0
    %4880 = vmatprep.subr.mxu0 0.0
    %4881 = vmatpush1.msra.mxu0 0.0
    %4882 = vmatprep.subr.mxu0 0.0
    %4883 = vmatpush1.msra.mxu0 0.0
    %4884 = vmatprep.subr.mxu0 0.0
    %4885 = vmatpush1.msra.mxu0 0.0
    %4886 = vmatprep.subr.mxu0 0.0
    %4887 = vmatpush1.msra.mxu0 0.0
    %4888 = vmatprep.subr.mxu0 0.0
    %4889 = vmatpush1.msra.mxu0 0.0
    %4890 = vmatprep.subr.mxu0 0.0
    %4891 = vmatpush1.msra.mxu0 0.0
    %4892 = vmatprep.subr.mxu0 0.0
    %4893 = vmatpush1.msra.mxu0 0.0
    %4894 = vmatprep.subr.mxu0 0.0
    %4895 = vmatpush1.msra.mxu0 0.0
    %4896 = vmatprep.subr.mxu0 0.0
    %4897 = vmatpush1.msra.mxu0 0.0
    %4898 = vmatprep.subr.mxu0 0.0
    %4899 = vmatpush1.msra.mxu0 0.0
    %4900 = vmatprep.subr.mxu0 0.0
    %4901 = vmatpush1.msra.mxu0 0.0
    %4902 = vmatprep.subr.mxu0 0.0
    %4903 = vmatpush1.msra.mxu0 0.0
    %4904 = vmatprep.subr.mxu0 0.0
    %4905 = vmatpush1.msra.mxu0 0.0
    %4906 = vmatprep.subr.mxu0 0.0
    %4907 = vmatpush1.msra.mxu0 0.0
    %4908 = vmatprep.subr.mxu0 0.0
    %4909 = vmatpush1.msra.mxu0 0.0
    %4910 = vmatprep.subr.mxu0 0.0
    %4911 = vmatpush1.msra.mxu0 0.0
    %4912 = vmatprep.subr.mxu0 0.0
    %4913 = vmatpush1.msra.mxu0 0.0
    %4914 = vmatprep.subr.mxu0 0.0
    %4915 = vmatpush1.msra.mxu0 0.0
    %4916 = vmatprep.subr.mxu0 0.0
    %4917 = vmatpush1.msra.mxu0 0.0
    %4918 = vmatprep.subr.mxu0 0.0
    %4919 = vmatpush1.msra.mxu0 0.0
    %4920 = vmatprep.subr.mxu0 0.0
    %4921 = vmatpush1.msra.mxu0 0.0
    %4922 = vmatprep.subr.mxu0 0.0
    %4923 = vmatpush1.msra.mxu0 0.0
    %4924 = vmatprep.subr.mxu0 0.0
    %4925 = vmatpush1.msra.mxu0 0.0
    %4926 = vmatprep.subr.mxu0 0.0
    %4927 = vmatpush1.msra.mxu0 0.0
    %4928 = vmatprep.mubr.f32.mxu0 0.0
    %v4929 = vand.u32 %v4700, 4294901760
    %v4930 = vsub.f32 %v4700, %v4929
    %4931 = vmatmul.mubr.f32.gmra.mrb[0].mxu0 %v4930
    %v4932 = vpop.f32.mrb[0].mxu0
    %v4933 = vadd.f32 %v4857, %v4932
    %v4934 = vpop.f32.mrb[0].mxu0
    %4935 = vdwg.mxu0
    %4936 = vmatprep.subr.mxu0 0.0
    %v4937 = vand.u32 %v3568, 4294901760
    %4938 = vmatpush1.msra.mxu0 %v4937
    %4939 = vmatprep.subr.mxu0 0.0
    %v4940 = vand.u32 %v3636, 4294901760
    %4941 = vmatpush1.msra.mxu0 %v4940
    %4942 = vmatprep.subr.mxu0 0.0
    %4943 = vmatpush1.msra.mxu0 0.0
    %4944 = vmatprep.subr.mxu0 0.0
    %4945 = vmatpush1.msra.mxu0 0.0
    %4946 = vmatprep.subr.mxu0 0.0
    %4947 = vmatpush1.msra.mxu0 0.0
    %4948 = vmatprep.subr.mxu0 0.0
    %4949 = vmatpush1.msra.mxu0 0.0
    %4950 = vmatprep.subr.mxu0 0.0
    %4951 = vmatpush1.msra.mxu0 0.0
    %4952 = vmatprep.subr.mxu0 0.0
    %4953 = vmatpush1.msra.mxu0 0.0
    %4954 = vmatprep.subr.mxu0 0.0
    %4955 = vmatpush1.msra.mxu0 0.0
    %4956 = vmatprep.subr.mxu0 0.0
    %4957 = vmatpush1.msra.mxu0 0.0
    %4958 = vmatprep.subr.mxu0 0.0
    %4959 = vmatpush1.msra.mxu0 0.0
    %4960 = vmatprep.subr.mxu0 0.0
    %4961 = vmatpush1.msra.mxu0 0.0
    %4962 = vmatprep.subr.mxu0 0.0
    %4963 = vmatpush1.msra.mxu0 0.0
    %4964 = vmatprep.subr.mxu0 0.0
    %4965 = vmatpush1.msra.mxu0 0.0
    %4966 = vmatprep.subr.mxu0 0.0
    %4967 = vmatpush1.msra.mxu0 0.0
    %4968 = vmatprep.subr.mxu0 0.0
    %4969 = vmatpush1.msra.mxu0 0.0
    %4970 = vmatprep.subr.mxu0 0.0
    %4971 = vmatpush1.msra.mxu0 0.0
    %4972 = vmatprep.subr.mxu0 0.0
    %4973 = vmatpush1.msra.mxu0 0.0
    %4974 = vmatprep.subr.mxu0 0.0
    %4975 = vmatpush1.msra.mxu0 0.0
    %4976 = vmatprep.subr.mxu0 0.0
    %4977 = vmatpush1.msra.mxu0 0.0
    %4978 = vmatprep.subr.mxu0 0.0
    %4979 = vmatpush1.msra.mxu0 0.0
    %4980 = vmatprep.subr.mxu0 0.0
    %4981 = vmatpush1.msra.mxu0 0.0
    %4982 = vmatprep.subr.mxu0 0.0
    %4983 = vmatpush1.msra.mxu0 0.0
    %4984 = vmatprep.subr.mxu0 0.0
    %4985 = vmatpush1.msra.mxu0 0.0
    %4986 = vmatprep.subr.mxu0 0.0
    %4987 = vmatpush1.msra.mxu0 0.0
    %4988 = vmatprep.subr.mxu0 0.0
    %4989 = vmatpush1.msra.mxu0 0.0
    %4990 = vmatprep.subr.mxu0 0.0
    %4991 = vmatpush1.msra.mxu0 0.0
    %4992 = vmatprep.subr.mxu0 0.0
    %4993 = vmatpush1.msra.mxu0 0.0
    %4994 = vmatprep.subr.mxu0 0.0
    %4995 = vmatpush1.msra.mxu0 0.0
    %4996 = vmatprep.subr.mxu0 0.0
    %4997 = vmatpush1.msra.mxu0 0.0
    %4998 = vmatprep.subr.mxu0 0.0
    %4999 = vmatpush1.msra.mxu0 0.0
    %5000 = vmatprep.subr.mxu0 0.0
    %5001 = vmatpush1.msra.mxu0 0.0
    %5002 = vmatprep.mubr.f32.mxu0 0.0
    %v5003 = vand.u32 %v4700, 4294901760
    %v5004 = vsub.f32 %v4700, %v5003
    %v5005 = vand.u32 %v5004, 4294901760
    %5006 = vmatmul.mubr.f32.gmra.mrb[0].mxu0 %v5005
    %v5007 = vpop.f32.mrb[0].mxu0
    %v5008 = vadd.f32 %v4933, %v5007
    %v5009 = vpop.f32.mrb[0].mxu0
    %5010 = vdwg.mxu0
    %5011 = vmatprep.subr.mxu0 0.0
    %v5012 = vand.u32 %v3568, 4294901760
    %v5013 = vsub.f32 %v3568, %v5012
    %v5014 = vand.u32 %v5013, 4294901760
    %5015 = vmatpush1.msra.mxu0 %v5014
    %5016 = vmatprep.subr.mxu0 0.0
    %v5017 = vand.u32 %v3636, 4294901760
    %v5018 = vsub.f32 %v3636, %v5017
    %v5019 = vand.u32 %v5018, 4294901760
    %5020 = vmatpush1.msra.mxu0 %v5019
    %5021 = vmatprep.subr.mxu0 0.0
    %5022 = vmatpush1.msra.mxu0 0.0
    %5023 = vmatprep.subr.mxu0 0.0
    %5024 = vmatpush1.msra.mxu0 0.0
    %5025 = vmatprep.subr.mxu0 0.0
    %5026 = vmatpush1.msra.mxu0 0.0
    %5027 = vmatprep.subr.mxu0 0.0
    %5028 = vmatpush1.msra.mxu0 0.0
    %5029 = vmatprep.subr.mxu0 0.0
    %5030 = vmatpush1.msra.mxu0 0.0
    %5031 = vmatprep.subr.mxu0 0.0
    %5032 = vmatpush1.msra.mxu0 0.0
    %5033 = vmatprep.subr.mxu0 0.0
    %5034 = vmatpush1.msra.mxu0 0.0
    %5035 = vmatprep.subr.mxu0 0.0
    %5036 = vmatpush1.msra.mxu0 0.0
    %5037 = vmatprep.subr.mxu0 0.0
    %5038 = vmatpush1.msra.mxu0 0.0
    %5039 = vmatprep.subr.mxu0 0.0
    %5040 = vmatpush1.msra.mxu0 0.0
    %5041 = vmatprep.subr.mxu0 0.0
    %5042 = vmatpush1.msra.mxu0 0.0
    %5043 = vmatprep.subr.mxu0 0.0
    %5044 = vmatpush1.msra.mxu0 0.0
    %5045 = vmatprep.subr.mxu0 0.0
    %5046 = vmatpush1.msra.mxu0 0.0
    %5047 = vmatprep.subr.mxu0 0.0
    %5048 = vmatpush1.msra.mxu0 0.0
    %5049 = vmatprep.subr.mxu0 0.0
    %5050 = vmatpush1.msra.mxu0 0.0
    %5051 = vmatprep.subr.mxu0 0.0
    %5052 = vmatpush1.msra.mxu0 0.0
    %5053 = vmatprep.subr.mxu0 0.0
    %5054 = vmatpush1.msra.mxu0 0.0
    %5055 = vmatprep.subr.mxu0 0.0
    %5056 = vmatpush1.msra.mxu0 0.0
    %5057 = vmatprep.subr.mxu0 0.0
    %5058 = vmatpush1.msra.mxu0 0.0
    %5059 = vmatprep.subr.mxu0 0.0
    %5060 = vmatpush1.msra.mxu0 0.0
    %5061 = vmatprep.subr.mxu0 0.0
    %5062 = vmatpush1.msra.mxu0 0.0
    %5063 = vmatprep.subr.mxu0 0.0
    %5064 = vmatpush1.msra.mxu0 0.0
    %5065 = vmatprep.subr.mxu0 0.0
    %5066 = vmatpush1.msra.mxu0 0.0
    %5067 = vmatprep.subr.mxu0 0.0
    %5068 = vmatpush1.msra.mxu0 0.0
    %5069 = vmatprep.subr.mxu0 0.0
    %5070 = vmatpush1.msra.mxu0 0.0
    %5071 = vmatprep.subr.mxu0 0.0
    %5072 = vmatpush1.msra.mxu0 0.0
    %5073 = vmatprep.subr.mxu0 0.0
    %5074 = vmatpush1.msra.mxu0 0.0
    %5075 = vmatprep.subr.mxu0 0.0
    %5076 = vmatpush1.msra.mxu0 0.0
    %5077 = vmatprep.subr.mxu0 0.0
    %5078 = vmatpush1.msra.mxu0 0.0
    %5079 = vmatprep.subr.mxu0 0.0
    %5080 = vmatpush1.msra.mxu0 0.0
    %5081 = vmatprep.mubr.f32.mxu0 0.0
    %v5082 = vand.u32 %v4700, 4294901760
    %5083 = vmatmul.mubr.f32.gmra.mrb[0].mxu0 %v5082
    %v5084 = vpop.f32.mrb[0].mxu0
    %v5085 = vadd.f32 %v5008, %v5084
    %v5086 = vpop.f32.mrb[0].mxu0
    %5087 = vdwg.mxu0
    %5088 = vmatprep.subr.mxu0 0.0
    %v5089 = vand.u32 %v3568, 4294901760
    %5090 = vmatpush1.msra.mxu0 %v5089
    %5091 = vmatprep.subr.mxu0 0.0
    %v5092 = vand.u32 %v3636, 4294901760
    %5093 = vmatpush1.msra.mxu0 %v5092
    %5094 = vmatprep.subr.mxu0 0.0
    %5095 = vmatpush1.msra.mxu0 0.0
    %5096 = vmatprep.subr.mxu0 0.0
    %5097 = vmatpush1.msra.mxu0 0.0
    %5098 = vmatprep.subr.mxu0 0.0
    %5099 = vmatpush1.msra.mxu0 0.0
    %5100 = vmatprep.subr.mxu0 0.0
    %5101 = vmatpush1.msra.mxu0 0.0
    %5102 = vmatprep.subr.mxu0 0.0
    %5103 = vmatpush1.msra.mxu0 0.0
    %5104 = vmatprep.subr.mxu0 0.0
    %5105 = vmatpush1.msra.mxu0 0.0
    %5106 = vmatprep.subr.mxu0 0.0
    %5107 = vmatpush1.msra.mxu0 0.0
    %5108 = vmatprep.subr.mxu0 0.0
    %5109 = vmatpush1.msra.mxu0 0.0
    %5110 = vmatprep.subr.mxu0 0.0
    %5111 = vmatpush1.msra.mxu0 0.0
    %5112 = vmatprep.subr.mxu0 0.0
    %5113 = vmatpush1.msra.mxu0 0.0
    %5114 = vmatprep.subr.mxu0 0.0
    %5115 = vmatpush1.msra.mxu0 0.0
    %5116 = vmatprep.subr.mxu0 0.0
    %5117 = vmatpush1.msra.mxu0 0.0
    %5118 = vmatprep.subr.mxu0 0.0
    %5119 = vmatpush1.msra.mxu0 0.0
    %5120 = vmatprep.subr.mxu0 0.0
    %5121 = vmatpush1.msra.mxu0 0.0
    %5122 = vmatprep.subr.mxu0 0.0
    %5123 = vmatpush1.msra.mxu0 0.0
    %5124 = vmatprep.subr.mxu0 0.0
    %5125 = vmatpush1.msra.mxu0 0.0
    %5126 = vmatprep.subr.mxu0 0.0
    %5127 = vmatpush1.msra.mxu0 0.0
    %5128 = vmatprep.subr.mxu0 0.0
    %5129 = vmatpush1.msra.mxu0 0.0
    %5130 = vmatprep.subr.mxu0 0.0
    %5131 = vmatpush1.msra.mxu0 0.0
    %5132 = vmatprep.subr.mxu0 0.0
    %5133 = vmatpush1.msra.mxu0 0.0
    %5134 = vmatprep.subr.mxu0 0.0
    %5135 = vmatpush1.msra.mxu0 0.0
    %5136 = vmatprep.subr.mxu0 0.0
    %5137 = vmatpush1.msra.mxu0 0.0
    %5138 = vmatprep.subr.mxu0 0.0
    %5139 = vmatpush1.msra.mxu0 0.0
    %5140 = vmatprep.subr.mxu0 0.0
    %5141 = vmatpush1.msra.mxu0 0.0
    %5142 = vmatprep.subr.mxu0 0.0
    %5143 = vmatpush1.msra.mxu0 0.0
    %5144 = vmatprep.subr.mxu0 0.0
    %5145 = vmatpush1.msra.mxu0 0.0
    %5146 = vmatprep.subr.mxu0 0.0
    %5147 = vmatpush1.msra.mxu0 0.0
    %5148 = vmatprep.subr.mxu0 0.0
    %5149 = vmatpush1.msra.mxu0 0.0
    %5150 = vmatprep.subr.mxu0 0.0
    %5151 = vmatpush1.msra.mxu0 0.0
    %5152 = vmatprep.subr.mxu0 0.0
    %5153 = vmatpush1.msra.mxu0 0.0
    %5154 = vmatprep.mubr.f32.mxu0 0.0
    %v5155 = vand.u32 %v4700, 4294901760
    %5156 = vmatmul.mubr.f32.gmra.mrb[0].mxu0 %v5155
    %v5157 = vpop.f32.mrb[0].mxu0
    %v5158 = vadd.f32 %v5085, %v5157
    %v5159 = vpop.f32.mrb[0].mxu0
    %5160 = vdwg.mxu0
    %v5162 = vsel %vm3774, %v901, 0
    %5164 = vmatprep.subr.mxu0 0.0
    %v5165 = vand.u32 %v3569, 4294901760
    %5166 = vmatpush1.msra.mxu0 %v5165
    %5167 = vmatprep.subr.mxu0 0.0
    %v5168 = vand.u32 %v3637, 4294901760
    %5169 = vmatpush1.msra.mxu0 %v5168
    %5170 = vmatprep.subr.mxu0 0.0
    %5171 = vmatpush1.msra.mxu0 0.0
    %5172 = vmatprep.subr.mxu0 0.0
    %5173 = vmatpush1.msra.mxu0 0.0
    %5174 = vmatprep.subr.mxu0 0.0
    %5175 = vmatpush1.msra.mxu0 0.0
    %5176 = vmatprep.subr.mxu0 0.0
    %5177 = vmatpush1.msra.mxu0 0.0
    %5178 = vmatprep.subr.mxu0 0.0
    %5179 = vmatpush1.msra.mxu0 0.0
    %5180 = vmatprep.subr.mxu0 0.0
    %5181 = vmatpush1.msra.mxu0 0.0
    %5182 = vmatprep.subr.mxu0 0.0
    %5183 = vmatpush1.msra.mxu0 0.0
    %5184 = vmatprep.subr.mxu0 0.0
    %5185 = vmatpush1.msra.mxu0 0.0
    %5186 = vmatprep.subr.mxu0 0.0
    %5187 = vmatpush1.msra.mxu0 0.0
    %5188 = vmatprep.subr.mxu0 0.0
    %5189 = vmatpush1.msra.mxu0 0.0
    %5190 = vmatprep.subr.mxu0 0.0
    %5191 = vmatpush1.msra.mxu0 0.0
    %5192 = vmatprep.subr.mxu0 0.0
    %5193 = vmatpush1.msra.mxu0 0.0
    %5194 = vmatprep.subr.mxu0 0.0
    %5195 = vmatpush1.msra.mxu0 0.0
    %5196 = vmatprep.subr.mxu0 0.0
    %5197 = vmatpush1.msra.mxu0 0.0
    %5198 = vmatprep.subr.mxu0 0.0
    %5199 = vmatpush1.msra.mxu0 0.0
    %5200 = vmatprep.subr.mxu0 0.0
    %5201 = vmatpush1.msra.mxu0 0.0
    %5202 = vmatprep.subr.mxu0 0.0
    %5203 = vmatpush1.msra.mxu0 0.0
    %5204 = vmatprep.subr.mxu0 0.0
    %5205 = vmatpush1.msra.mxu0 0.0
    %5206 = vmatprep.subr.mxu0 0.0
    %5207 = vmatpush1.msra.mxu0 0.0
    %5208 = vmatprep.subr.mxu0 0.0
    %5209 = vmatpush1.msra.mxu0 0.0
    %5210 = vmatprep.subr.mxu0 0.0
    %5211 = vmatpush1.msra.mxu0 0.0
    %5212 = vmatprep.subr.mxu0 0.0
    %5213 = vmatpush1.msra.mxu0 0.0
    %5214 = vmatprep.subr.mxu0 0.0
    %5215 = vmatpush1.msra.mxu0 0.0
    %5216 = vmatprep.subr.mxu0 0.0
    %5217 = vmatpush1.msra.mxu0 0.0
    %5218 = vmatprep.subr.mxu0 0.0
    %5219 = vmatpush1.msra.mxu0 0.0
    %5220 = vmatprep.subr.mxu0 0.0
    %5221 = vmatpush1.msra.mxu0 0.0
    %5222 = vmatprep.subr.mxu0 0.0
    %5223 = vmatpush1.msra.mxu0 0.0
    %5224 = vmatprep.subr.mxu0 0.0
    %5225 = vmatpush1.msra.mxu0 0.0
    %5226 = vmatprep.subr.mxu0 0.0
    %5227 = vmatpush1.msra.mxu0 0.0
    %5228 = vmatprep.subr.mxu0 0.0
    %5229 = vmatpush1.msra.mxu0 0.0
    %5230 = vmatprep.mubr.f32.mxu0 0.0
    %v5231 = vand.u32 %v5162, 4294901760
    %v5232 = vsub.f32 %v5162, %v5231
    %v5233 = vand.u32 %v5232, 4294901760
    %v5234 = vsub.f32 %v5232, %v5233
    %v5235 = vand.u32 %v5234, 4294901760
    %5236 = vmatmul.mubr.f32.gmra.mrb[0].mxu0 %v5235
    %v5237 = vpop.f32.mrb[0].mxu0
    %v5238 = vadd.f32 0.0, %v5237
    %v5239 = vpop.f32.mrb[0].mxu0
    %5240 = vdwg.mxu0
    %5241 = vmatprep.subr.mxu0 0.0
    %v5242 = vand.u32 %v3569, 4294901760
    %v5243 = vsub.f32 %v3569, %v5242
    %v5244 = vand.u32 %v5243, 4294901760
    %v5245 = vsub.f32 %v5243, %v5244
    %v5246 = vand.u32 %v5245, 4294901760
    %5247 = vmatpush1.msra.mxu0 %v5246
    %5248 = vmatprep.subr.mxu0 0.0
    %v5249 = vand.u32 %v3637, 4294901760
    %v5250 = vsub.f32 %v3637, %v5249
    %v5251 = vand.u32 %v5250, 4294901760
    %v5252 = vsub.f32 %v5250, %v5251
    %v5253 = vand.u32 %v5252, 4294901760
    %5254 = vmatpush1.msra.mxu0 %v5253
    %5255 = vmatprep.subr.mxu0 0.0
    %5256 = vmatpush1.msra.mxu0 0.0
    %5257 = vmatprep.subr.mxu0 0.0
    %5258 = vmatpush1.msra.mxu0 0.0
    %5259 = vmatprep.subr.mxu0 0.0
    %5260 = vmatpush1.msra.mxu0 0.0
    %5261 = vmatprep.subr.mxu0 0.0
    %5262 = vmatpush1.msra.mxu0 0.0
    %5263 = vmatprep.subr.mxu0 0.0
    %5264 = vmatpush1.msra.mxu0 0.0
    %5265 = vmatprep.subr.mxu0 0.0
    %5266 = vmatpush1.msra.mxu0 0.0
    %5267 = vmatprep.subr.mxu0 0.0
    %5268 = vmatpush1.msra.mxu0 0.0
    %5269 = vmatprep.subr.mxu0 0.0
    %5270 = vmatpush1.msra.mxu0 0.0
    %5271 = vmatprep.subr.mxu0 0.0
    %5272 = vmatpush1.msra.mxu0 0.0
    %5273 = vmatprep.subr.mxu0 0.0
    %5274 = vmatpush1.msra.mxu0 0.0
    %5275 = vmatprep.subr.mxu0 0.0
    %5276 = vmatpush1.msra.mxu0 0.0
    %5277 = vmatprep.subr.mxu0 0.0
    %5278 = vmatpush1.msra.mxu0 0.0
    %5279 = vmatprep.subr.mxu0 0.0
    %5280 = vmatpush1.msra.mxu0 0.0
    %5281 = vmatprep.subr.mxu0 0.0
    %5282 = vmatpush1.msra.mxu0 0.0
    %5283 = vmatprep.subr.mxu0 0.0
    %5284 = vmatpush1.msra.mxu0 0.0
    %5285 = vmatprep.subr.mxu0 0.0
    %5286 = vmatpush1.msra.mxu0 0.0
    %5287 = vmatprep.subr.mxu0 0.0
    %5288 = vmatpush1.msra.mxu0 0.0
    %5289 = vmatprep.subr.mxu0 0.0
    %5290 = vmatpush1.msra.mxu0 0.0
    %5291 = vmatprep.subr.mxu0 0.0
    %5292 = vmatpush1.msra.mxu0 0.0
    %5293 = vmatprep.subr.mxu0 0.0
    %5294 = vmatpush1.msra.mxu0 0.0
    %5295 = vmatprep.subr.mxu0 0.0
    %5296 = vmatpush1.msra.mxu0 0.0
    %5297 = vmatprep.subr.mxu0 0.0
    %5298 = vmatpush1.msra.mxu0 0.0
    %5299 = vmatprep.subr.mxu0 0.0
    %5300 = vmatpush1.msra.mxu0 0.0
    %5301 = vmatprep.subr.mxu0 0.0
    %5302 = vmatpush1.msra.mxu0 0.0
    %5303 = vmatprep.subr.mxu0 0.0
    %5304 = vmatpush1.msra.mxu0 0.0
    %5305 = vmatprep.subr.mxu0 0.0
    %5306 = vmatpush1.msra.mxu0 0.0
    %5307 = vmatprep.subr.mxu0 0.0
    %5308 = vmatpush1.msra.mxu0 0.0
    %5309 = vmatprep.subr.mxu0 0.0
    %5310 = vmatpush1.msra.mxu0 0.0
    %5311 = vmatprep.subr.mxu0 0.0
    %5312 = vmatpush1.msra.mxu0 0.0
    %5313 = vmatprep.subr.mxu0 0.0
    %5314 = vmatpush1.msra.mxu0 0.0
    %5315 = vmatprep.mubr.f32.mxu0 0.0
    %v5316 = vand.u32 %v5162, 4294901760
    %5317 = vmatmul.mubr.f32.gmra.mrb[0].mxu0 %v5316
    %v5318 = vpop.f32.mrb[0].mxu0
    %v5319 = vadd.f32 %v5238, %v5318
    %v5320 = vpop.f32.mrb[0].mxu0
    %5321 = vdwg.mxu0
    %5322 = vmatprep.subr.mxu0 0.0
    %v5323 = vand.u32 %v3569, 4294901760
    %v5324 = vsub.f32 %v3569, %v5323
    %5325 = vmatpush1.msra.mxu0 %v5324
    %5326 = vmatprep.subr.mxu0 0.0
    %v5327 = vand.u32 %v3637, 4294901760
    %v5328 = vsub.f32 %v3637, %v5327
    %5329 = vmatpush1.msra.mxu0 %v5328
    %5330 = vmatprep.subr.mxu0 0.0
    %5331 = vmatpush1.msra.mxu0 0.0
    %5332 = vmatprep.subr.mxu0 0.0
    %5333 = vmatpush1.msra.mxu0 0.0
    %5334 = vmatprep.subr.mxu0 0.0
    %5335 = vmatpush1.msra.mxu0 0.0
    %5336 = vmatprep.subr.mxu0 0.0
    %5337 = vmatpush1.msra.mxu0 0.0
    %5338 = vmatprep.subr.mxu0 0.0
    %5339 = vmatpush1.msra.mxu0 0.0
    %5340 = vmatprep.subr.mxu0 0.0
    %5341 = vmatpush1.msra.mxu0 0.0
    %5342 = vmatprep.subr.mxu0 0.0
    %5343 = vmatpush1.msra.mxu0 0.0
    %5344 = vmatprep.subr.mxu0 0.0
    %5345 = vmatpush1.msra.mxu0 0.0
    %5346 = vmatprep.subr.mxu0 0.0
    %5347 = vmatpush1.msra.mxu0 0.0
    %5348 = vmatprep.subr.mxu0 0.0
    %5349 = vmatpush1.msra.mxu0 0.0
    %5350 = vmatprep.subr.mxu0 0.0
    %5351 = vmatpush1.msra.mxu0 0.0
    %5352 = vmatprep.subr.mxu0 0.0
    %5353 = vmatpush1.msra.mxu0 0.0
    %5354 = vmatprep.subr.mxu0 0.0
    %5355 = vmatpush1.msra.mxu0 0.0
    %5356 = vmatprep.subr.mxu0 0.0
    %5357 = vmatpush1.msra.mxu0 0.0
    %5358 = vmatprep.subr.mxu0 0.0
    %5359 = vmatpush1.msra.mxu0 0.0
    %5360 = vmatprep.subr.mxu0 0.0
    %5361 = vmatpush1.msra.mxu0 0.0
    %5362 = vmatprep.subr.mxu0 0.0
    %5363 = vmatpush1.msra.mxu0 0.0
    %5364 = vmatprep.subr.mxu0 0.0
    %5365 = vmatpush1.msra.mxu0 0.0
    %5366 = vmatprep.subr.mxu0 0.0
    %5367 = vmatpush1.msra.mxu0 0.0
    %5368 = vmatprep.subr.mxu0 0.0
    %5369 = vmatpush1.msra.mxu0 0.0
    %5370 = vmatprep.subr.mxu0 0.0
    %5371 = vmatpush1.msra.mxu0 0.0
    %5372 = vmatprep.subr.mxu0 0.0
    %5373 = vmatpush1.msra.mxu0 0.0
    %5374 = vmatprep.subr.mxu0 0.0
    %5375 = vmatpush1.msra.mxu0 0.0
    %5376 = vmatprep.subr.mxu0 0.0
    %5377 = vmatpush1.msra.mxu0 0.0
    %5378 = vmatprep.subr.mxu0 0.0
    %5379 = vmatpush1.msra.mxu0 0.0
    %5380 = vmatprep.subr.mxu0 0.0
    %5381 = vmatpush1.msra.mxu0 0.0
    %5382 = vmatprep.subr.mxu0 0.0
    %5383 = vmatpush1.msra.mxu0 0.0
    %5384 = vmatprep.subr.mxu0 0.0
    %5385 = vmatpush1.msra.mxu0 0.0
    %5386 = vmatprep.subr.mxu0 0.0
    %5387 = vmatpush1.msra.mxu0 0.0
    %5388 = vmatprep.subr.mxu0 0.0
    %5389 = vmatpush1.msra.mxu0 0.0
    %5390 = vmatprep.mubr.f32.mxu0 0.0
    %v5391 = vand.u32 %v5162, 4294901760
    %v5392 = vsub.f32 %v5162, %v5391
    %5393 = vmatmul.mubr.f32.gmra.mrb[0].mxu0 %v5392
    %v5394 = vpop.f32.mrb[0].mxu0
    %v5395 = vadd.f32 %v5319, %v5394
    %v5396 = vpop.f32.mrb[0].mxu0
    %5397 = vdwg.mxu0
    %5398 = vmatprep.subr.mxu0 0.0
    %v5399 = vand.u32 %v3569, 4294901760
    %5400 = vmatpush1.msra.mxu0 %v5399
    %5401 = vmatprep.subr.mxu0 0.0
    %v5402 = vand.u32 %v3637, 4294901760
    %5403 = vmatpush1.msra.mxu0 %v5402
    %5404 = vmatprep.subr.mxu0 0.0
    %5405 = vmatpush1.msra.mxu0 0.0
    %5406 = vmatprep.subr.mxu0 0.0
    %5407 = vmatpush1.msra.mxu0 0.0
    %5408 = vmatprep.subr.mxu0 0.0
    %5409 = vmatpush1.msra.mxu0 0.0
    %5410 = vmatprep.subr.mxu0 0.0
    %5411 = vmatpush1.msra.mxu0 0.0
    %5412 = vmatprep.subr.mxu0 0.0
    %5413 = vmatpush1.msra.mxu0 0.0
    %5414 = vmatprep.subr.mxu0 0.0
    %5415 = vmatpush1.msra.mxu0 0.0
    %5416 = vmatprep.subr.mxu0 0.0
    %5417 = vmatpush1.msra.mxu0 0.0
    %5418 = vmatprep.subr.mxu0 0.0
    %5419 = vmatpush1.msra.mxu0 0.0
    %5420 = vmatprep.subr.mxu0 0.0
    %5421 = vmatpush1.msra.mxu0 0.0
    %5422 = vmatprep.subr.mxu0 0.0
    %5423 = vmatpush1.msra.mxu0 0.0
    %5424 = vmatprep.subr.mxu0 0.0
    %5425 = vmatpush1.msra.mxu0 0.0
    %5426 = vmatprep.subr.mxu0 0.0
    %5427 = vmatpush1.msra.mxu0 0.0
    %5428 = vmatprep.subr.mxu0 0.0
    %5429 = vmatpush1.msra.mxu0 0.0
    %5430 = vmatprep.subr.mxu0 0.0
    %5431 = vmatpush1.msra.mxu0 0.0
    %5432 = vmatprep.subr.mxu0 0.0
    %5433 = vmatpush1.msra.mxu0 0.0
    %5434 = vmatprep.subr.mxu0 0.0
    %5435 = vmatpush1.msra.mxu0 0.0
    %5436 = vmatprep.subr.mxu0 0.0
    %5437 = vmatpush1.msra.mxu0 0.0
    %5438 = vmatprep.subr.mxu0 0.0
    %5439 = vmatpush1.msra.mxu0 0.0
    %5440 = vmatprep.subr.mxu0 0.0
    %5441 = vmatpush1.msra.mxu0 0.0
    %5442 = vmatprep.subr.mxu0 0.0
    %5443 = vmatpush1.msra.mxu0 0.0
    %5444 = vmatprep.subr.mxu0 0.0
    %5445 = vmatpush1.msra.mxu0 0.0
    %5446 = vmatprep.subr.mxu0 0.0
    %5447 = vmatpush1.msra.mxu0 0.0
    %5448 = vmatprep.subr.mxu0 0.0
    %5449 = vmatpush1.msra.mxu0 0.0
    %5450 = vmatprep.subr.mxu0 0.0
    %5451 = vmatpush1.msra.mxu0 0.0
    %5452 = vmatprep.subr.mxu0 0.0
    %5453 = vmatpush1.msra.mxu0 0.0
    %5454 = vmatprep.subr.mxu0 0.0
    %5455 = vmatpush1.msra.mxu0 0.0
    %5456 = vmatprep.subr.mxu0 0.0
    %5457 = vmatpush1.msra.mxu0 0.0
    %5458 = vmatprep.subr.mxu0 0.0
    %5459 = vmatpush1.msra.mxu0 0.0
    %5460 = vmatprep.subr.mxu0 0.0
    %5461 = vmatpush1.msra.mxu0 0.0
    %5462 = vmatprep.subr.mxu0 0.0
    %5463 = vmatpush1.msra.mxu0 0.0
    %5464 = vmatprep.mubr.f32.mxu0 0.0
    %v5465 = vand.u32 %v5162, 4294901760
    %v5466 = vsub.f32 %v5162, %v5465
    %v5467 = vand.u32 %v5466, 4294901760
    %5468 = vmatmul.mubr.f32.gmra.mrb[0].mxu0 %v5467
    %v5469 = vpop.f32.mrb[0].mxu0
    %v5470 = vadd.f32 %v5395, %v5469
    %v5471 = vpop.f32.mrb[0].mxu0
    %5472 = vdwg.mxu0
    %5473 = vmatprep.subr.mxu0 0.0
    %v5474 = vand.u32 %v3569, 4294901760
    %v5475 = vsub.f32 %v3569, %v5474
    %v5476 = vand.u32 %v5475, 4294901760
    %5477 = vmatpush1.msra.mxu0 %v5476
    %5478 = vmatprep.subr.mxu0 0.0
    %v5479 = vand.u32 %v3637, 4294901760
    %v5480 = vsub.f32 %v3637, %v5479
    %v5481 = vand.u32 %v5480, 4294901760
    %5482 = vmatpush1.msra.mxu0 %v5481
    %5483 = vmatprep.subr.mxu0 0.0
    %5484 = vmatpush1.msra.mxu0 0.0
    %5485 = vmatprep.subr.mxu0 0.0
    %5486 = vmatpush1.msra.mxu0 0.0
    %5487 = vmatprep.subr.mxu0 0.0
    %5488 = vmatpush1.msra.mxu0 0.0
    %5489 = vmatprep.subr.mxu0 0.0
    %5490 = vmatpush1.msra.mxu0 0.0
    %5491 = vmatprep.subr.mxu0 0.0
    %5492 = vmatpush1.msra.mxu0 0.0
    %5493 = vmatprep.subr.mxu0 0.0
    %5494 = vmatpush1.msra.mxu0 0.0
    %5495 = vmatprep.subr.mxu0 0.0
    %5496 = vmatpush1.msra.mxu0 0.0
    %5497 = vmatprep.subr.mxu0 0.0
    %5498 = vmatpush1.msra.mxu0 0.0
    %5499 = vmatprep.subr.mxu0 0.0
    %5500 = vmatpush1.msra.mxu0 0.0
    %5501 = vmatprep.subr.mxu0 0.0
    %5502 = vmatpush1.msra.mxu0 0.0
    %5503 = vmatprep.subr.mxu0 0.0
    %5504 = vmatpush1.msra.mxu0 0.0
    %5505 = vmatprep.subr.mxu0 0.0
    %5506 = vmatpush1.msra.mxu0 0.0
    %5507 = vmatprep.subr.mxu0 0.0
    %5508 = vmatpush1.msra.mxu0 0.0
    %5509 = vmatprep.subr.mxu0 0.0
    %5510 = vmatpush1.msra.mxu0 0.0
    %5511 = vmatprep.subr.mxu0 0.0
    %5512 = vmatpush1.msra.mxu0 0.0
    %5513 = vmatprep.subr.mxu0 0.0
    %5514 = vmatpush1.msra.mxu0 0.0
    %5515 = vmatprep.subr.mxu0 0.0
    %5516 = vmatpush1.msra.mxu0 0.0
    %5517 = vmatprep.subr.mxu0 0.0
    %5518 = vmatpush1.msra.mxu0 0.0
    %5519 = vmatprep.subr.mxu0 0.0
    %5520 = vmatpush1.msra.mxu0 0.0
    %5521 = vmatprep.subr.mxu0 0.0
    %5522 = vmatpush1.msra.mxu0 0.0
    %5523 = vmatprep.subr.mxu0 0.0
    %5524 = vmatpush1.msra.mxu0 0.0
    %5525 = vmatprep.subr.mxu0 0.0
    %5526 = vmatpush1.msra.mxu0 0.0
    %5527 = vmatprep.subr.mxu0 0.0
    %5528 = vmatpush1.msra.mxu0 0.0
    %5529 = vmatprep.subr.mxu0 0.0
    %5530 = vmatpush1.msra.mxu0 0.0
    %5531 = vmatprep.subr.mxu0 0.0
    %5532 = vmatpush1.msra.mxu0 0.0
    %5533 = vmatprep.subr.mxu0 0.0
    %5534 = vmatpush1.msra.mxu0 0.0
    %5535 = vmatprep.subr.mxu0 0.0
    %5536 = vmatpush1.msra.mxu0 0.0
    %5537 = vmatprep.subr.mxu0 0.0
    %5538 = vmatpush1.msra.mxu0 0.0
    %5539 = vmatprep.subr.mxu0 0.0
    %5540 = vmatpush1.msra.mxu0 0.0
    %5541 = vmatprep.subr.mxu0 0.0
    %5542 = vmatpush1.msra.mxu0 0.0
    %5543 = vmatprep.mubr.f32.mxu0 0.0
    %v5544 = vand.u32 %v5162, 4294901760
    %5545 = vmatmul.mubr.f32.gmra.mrb[0].mxu0 %v5544
    %v5546 = vpop.f32.mrb[0].mxu0
    %v5547 = vadd.f32 %v5470, %v5546
    %v5548 = vpop.f32.mrb[0].mxu0
    %5549 = vdwg.mxu0
    %5550 = vmatprep.subr.mxu0 0.0
    %v5551 = vand.u32 %v3569, 4294901760
    %5552 = vmatpush1.msra.mxu0 %v5551
    %5553 = vmatprep.subr.mxu0 0.0
    %v5554 = vand.u32 %v3637, 4294901760
    %5555 = vmatpush1.msra.mxu0 %v5554
    %5556 = vmatprep.subr.mxu0 0.0
    %5557 = vmatpush1.msra.mxu0 0.0
    %5558 = vmatprep.subr.mxu0 0.0
    %5559 = vmatpush1.msra.mxu0 0.0
    %5560 = vmatprep.subr.mxu0 0.0
    %5561 = vmatpush1.msra.mxu0 0.0
    %5562 = vmatprep.subr.mxu0 0.0
    %5563 = vmatpush1.msra.mxu0 0.0
    %5564 = vmatprep.subr.mxu0 0.0
    %5565 = vmatpush1.msra.mxu0 0.0
    %5566 = vmatprep.subr.mxu0 0.0
    %5567 = vmatpush1.msra.mxu0 0.0
    %5568 = vmatprep.subr.mxu0 0.0
    %5569 = vmatpush1.msra.mxu0 0.0
    %5570 = vmatprep.subr.mxu0 0.0
    %5571 = vmatpush1.msra.mxu0 0.0
    %5572 = vmatprep.subr.mxu0 0.0
    %5573 = vmatpush1.msra.mxu0 0.0
    %5574 = vmatprep.subr.mxu0 0.0
    %5575 = vmatpush1.msra.mxu0 0.0
    %5576 = vmatprep.subr.mxu0 0.0
    %5577 = vmatpush1.msra.mxu0 0.0
    %5578 = vmatprep.subr.mxu0 0.0
    %5579 = vmatpush1.msra.mxu0 0.0
    %5580 = vmatprep.subr.mxu0 0.0
    %5581 = vmatpush1.msra.mxu0 0.0
    %5582 = vmatprep.subr.mxu0 0.0
    %5583 = vmatpush1.msra.mxu0 0.0
    %5584 = vmatprep.subr.mxu0 0.0
    %5585 = vmatpush1.msra.mxu0 0.0
    %5586 = vmatprep.subr.mxu0 0.0
    %5587 = vmatpush1.msra.mxu0 0.0
    %5588 = vmatprep.subr.mxu0 0.0
    %5589 = vmatpush1.msra.mxu0 0.0
    %5590 = vmatprep.subr.mxu0 0.0
    %5591 = vmatpush1.msra.mxu0 0.0
    %5592 = vmatprep.subr.mxu0 0.0
    %5593 = vmatpush1.msra.mxu0 0.0
    %5594 = vmatprep.subr.mxu0 0.0
    %5595 = vmatpush1.msra.mxu0 0.0
    %5596 = vmatprep.subr.mxu0 0.0
    %5597 = vmatpush1.msra.mxu0 0.0
    %5598 = vmatprep.subr.mxu0 0.0
    %5599 = vmatpush1.msra.mxu0 0.0
    %5600 = vmatprep.subr.mxu0 0.0
    %5601 = vmatpush1.msra.mxu0 0.0
    %5602 = vmatprep.subr.mxu0 0.0
    %5603 = vmatpush1.msra.mxu0 0.0
    %5604 = vmatprep.subr.mxu0 0.0
    %5605 = vmatpush1.msra.mxu0 0.0
    %5606 = vmatprep.subr.mxu0 0.0
    %5607 = vmatpush1.msra.mxu0 0.0
    %5608 = vmatprep.subr.mxu0 0.0
    %5609 = vmatpush1.msra.mxu0 0.0
    %5610 = vmatprep.subr.mxu0 0.0
    %5611 = vmatpush1.msra.mxu0 0.0
    %5612 = vmatprep.subr.mxu0 0.0
    %5613 = vmatpush1.msra.mxu0 0.0
    %5614 = vmatprep.subr.mxu0 0.0
    %5615 = vmatpush1.msra.mxu0 0.0
    %5616 = vmatprep.mubr.f32.mxu0 0.0
    %v5617 = vand.u32 %v5162, 4294901760
    %5618 = vmatmul.mubr.f32.gmra.mrb[0].mxu0 %v5617
    %v5619 = vpop.f32.mrb[0].mxu0
    %v5620 = vadd.f32 %v5547, %v5619
    %v5621 = vpop.f32.mrb[0].mxu0
    %5622 = vdwg.mxu0
    %v5624 = vsel %vm3774, %v966, 0
    %5626 = vmatprep.subr.mxu0 0.0
    %v5627 = vand.u32 %v3702, 4294901760
    %5628 = vmatpush1.msra.mxu0 %v5627
    %5629 = vmatprep.subr.mxu0 0.0
    %v5630 = vand.u32 %v3770, 4294901760
    %5631 = vmatpush1.msra.mxu0 %v5630
    %5632 = vmatprep.subr.mxu0 0.0
    %5633 = vmatpush1.msra.mxu0 0.0
    %5634 = vmatprep.subr.mxu0 0.0
    %5635 = vmatpush1.msra.mxu0 0.0
    %5636 = vmatprep.subr.mxu0 0.0
    %5637 = vmatpush1.msra.mxu0 0.0
    %5638 = vmatprep.subr.mxu0 0.0
    %5639 = vmatpush1.msra.mxu0 0.0
    %5640 = vmatprep.subr.mxu0 0.0
    %5641 = vmatpush1.msra.mxu0 0.0
    %5642 = vmatprep.subr.mxu0 0.0
    %5643 = vmatpush1.msra.mxu0 0.0
    %5644 = vmatprep.subr.mxu0 0.0
    %5645 = vmatpush1.msra.mxu0 0.0
    %5646 = vmatprep.subr.mxu0 0.0
    %5647 = vmatpush1.msra.mxu0 0.0
    %5648 = vmatprep.subr.mxu0 0.0
    %5649 = vmatpush1.msra.mxu0 0.0
    %5650 = vmatprep.subr.mxu0 0.0
    %5651 = vmatpush1.msra.mxu0 0.0
    %5652 = vmatprep.subr.mxu0 0.0
    %5653 = vmatpush1.msra.mxu0 0.0
    %5654 = vmatprep.subr.mxu0 0.0
    %5655 = vmatpush1.msra.mxu0 0.0
    %5656 = vmatprep.subr.mxu0 0.0
    %5657 = vmatpush1.msra.mxu0 0.0
    %5658 = vmatprep.subr.mxu0 0.0
    %5659 = vmatpush1.msra.mxu0 0.0
    %5660 = vmatprep.subr.mxu0 0.0
    %5661 = vmatpush1.msra.mxu0 0.0
    %5662 = vmatprep.subr.mxu0 0.0
    %5663 = vmatpush1.msra.mxu0 0.0
    %5664 = vmatprep.subr.mxu0 0.0
    %5665 = vmatpush1.msra.mxu0 0.0
    %5666 = vmatprep.subr.mxu0 0.0
    %5667 = vmatpush1.msra.mxu0 0.0
    %5668 = vmatprep.subr.mxu0 0.0
    %5669 = vmatpush1.msra.mxu0 0.0
    %5670 = vmatprep.subr.mxu0 0.0
    %5671 = vmatpush1.msra.mxu0 0.0
    %5672 = vmatprep.subr.mxu0 0.0
    %5673 = vmatpush1.msra.mxu0 0.0
    %5674 = vmatprep.subr.mxu0 0.0
    %5675 = vmatpush1.msra.mxu0 0.0
    %5676 = vmatprep.subr.mxu0 0.0
    %5677 = vmatpush1.msra.mxu0 0.0
    %5678 = vmatprep.subr.mxu0 0.0
    %5679 = vmatpush1.msra.mxu0 0.0
    %5680 = vmatprep.subr.mxu0 0.0
    %5681 = vmatpush1.msra.mxu0 0.0
    %5682 = vmatprep.subr.mxu0 0.0
    %5683 = vmatpush1.msra.mxu0 0.0
    %5684 = vmatprep.subr.mxu0 0.0
    %5685 = vmatpush1.msra.mxu0 0.0
    %5686 = vmatprep.subr.mxu0 0.0
    %5687 = vmatpush1.msra.mxu0 0.0
    %5688 = vmatprep.subr.mxu0 0.0
    %5689 = vmatpush1.msra.mxu0 0.0
    %5690 = vmatprep.subr.mxu0 0.0
    %5691 = vmatpush1.msra.mxu0 0.0
    %5692 = vmatprep.mubr.f32.mxu0 0.0
    %v5693 = vand.u32 %v5624, 4294901760
    %v5694 = vsub.f32 %v5624, %v5693
    %v5695 = vand.u32 %v5694, 4294901760
    %v5696 = vsub.f32 %v5694, %v5695
    %v5697 = vand.u32 %v5696, 4294901760
    %5698 = vmatmul.mubr.f32.gmra.mrb[0].mxu0 %v5697
    %v5699 = vpop.f32.mrb[0].mxu0
    %v5700 = vadd.f32 0.0, %v5699
    %v5701 = vpop.f32.mrb[0].mxu0
    %5702 = vdwg.mxu0
    %5703 = vmatprep.subr.mxu0 0.0
    %v5704 = vand.u32 %v3702, 4294901760
    %v5705 = vsub.f32 %v3702, %v5704
    %v5706 = vand.u32 %v5705, 4294901760
    %v5707 = vsub.f32 %v5705, %v5706
    %v5708 = vand.u32 %v5707, 4294901760
    %5709 = vmatpush1.msra.mxu0 %v5708
    %5710 = vmatprep.subr.mxu0 0.0
    %v5711 = vand.u32 %v3770, 4294901760
    %v5712 = vsub.f32 %v3770, %v5711
    %v5713 = vand.u32 %v5712, 4294901760
    %v5714 = vsub.f32 %v5712, %v5713
    %v5715 = vand.u32 %v5714, 4294901760
    %5716 = vmatpush1.msra.mxu0 %v5715
    %5717 = vmatprep.subr.mxu0 0.0
    %5718 = vmatpush1.msra.mxu0 0.0
    %5719 = vmatprep.subr.mxu0 0.0
    %5720 = vmatpush1.msra.mxu0 0.0
    %5721 = vmatprep.subr.mxu0 0.0
    %5722 = vmatpush1.msra.mxu0 0.0
    %5723 = vmatprep.subr.mxu0 0.0
    %5724 = vmatpush1.msra.mxu0 0.0
    %5725 = vmatprep.subr.mxu0 0.0
    %5726 = vmatpush1.msra.mxu0 0.0
    %5727 = vmatprep.subr.mxu0 0.0
    %5728 = vmatpush1.msra.mxu0 0.0
    %5729 = vmatprep.subr.mxu0 0.0
    %5730 = vmatpush1.msra.mxu0 0.0
    %5731 = vmatprep.subr.mxu0 0.0
    %5732 = vmatpush1.msra.mxu0 0.0
    %5733 = vmatprep.subr.mxu0 0.0
    %5734 = vmatpush1.msra.mxu0 0.0
    %5735 = vmatprep.subr.mxu0 0.0
    %5736 = vmatpush1.msra.mxu0 0.0
    %5737 = vmatprep.subr.mxu0 0.0
    %5738 = vmatpush1.msra.mxu0 0.0
    %5739 = vmatprep.subr.mxu0 0.0
    %5740 = vmatpush1.msra.mxu0 0.0
    %5741 = vmatprep.subr.mxu0 0.0
    %5742 = vmatpush1.msra.mxu0 0.0
    %5743 = vmatprep.subr.mxu0 0.0
    %5744 = vmatpush1.msra.mxu0 0.0
    %5745 = vmatprep.subr.mxu0 0.0
    %5746 = vmatpush1.msra.mxu0 0.0
    %5747 = vmatprep.subr.mxu0 0.0
    %5748 = vmatpush1.msra.mxu0 0.0
    %5749 = vmatprep.subr.mxu0 0.0
    %5750 = vmatpush1.msra.mxu0 0.0
    %5751 = vmatprep.subr.mxu0 0.0
    %5752 = vmatpush1.msra.mxu0 0.0
    %5753 = vmatprep.subr.mxu0 0.0
    %5754 = vmatpush1.msra.mxu0 0.0
    %5755 = vmatprep.subr.mxu0 0.0
    %5756 = vmatpush1.msra.mxu0 0.0
    %5757 = vmatprep.subr.mxu0 0.0
    %5758 = vmatpush1.msra.mxu0 0.0
    %5759 = vmatprep.subr.mxu0 0.0
    %5760 = vmatpush1.msra.mxu0 0.0
    %5761 = vmatprep.subr.mxu0 0.0
    %5762 = vmatpush1.msra.mxu0 0.0
    %5763 = vmatprep.subr.mxu0 0.0
    %5764 = vmatpush1.msra.mxu0 0.0
    %5765 = vmatprep.subr.mxu0 0.0
    %5766 = vmatpush1.msra.mxu0 0.0
    %5767 = vmatprep.subr.mxu0 0.0
    %5768 = vmatpush1.msra.mxu0 0.0
    %5769 = vmatprep.subr.mxu0 0.0
    %5770 = vmatpush1.msra.mxu0 0.0
    %5771 = vmatprep.subr.mxu0 0.0
    %5772 = vmatpush1.msra.mxu0 0.0
    %5773 = vmatprep.subr.mxu0 0.0
    %5774 = vmatpush1.msra.mxu0 0.0
    %5775 = vmatprep.subr.mxu0 0.0
    %5776 = vmatpush1.msra.mxu0 0.0
    %5777 = vmatprep.mubr.f32.mxu0 0.0
    %v5778 = vand.u32 %v5624, 4294901760
    %5779 = vmatmul.mubr.f32.gmra.mrb[0].mxu0 %v5778
    %v5780 = vpop.f32.mrb[0].mxu0
    %v5781 = vadd.f32 %v5700, %v5780
    %v5782 = vpop.f32.mrb[0].mxu0
    %5783 = vdwg.mxu0
    %5784 = vmatprep.subr.mxu0 0.0
    %v5785 = vand.u32 %v3702, 4294901760
    %v5786 = vsub.f32 %v3702, %v5785
    %5787 = vmatpush1.msra.mxu0 %v5786
    %5788 = vmatprep.subr.mxu0 0.0
    %v5789 = vand.u32 %v3770, 4294901760
    %v5790 = vsub.f32 %v3770, %v5789
    %5791 = vmatpush1.msra.mxu0 %v5790
    %5792 = vmatprep.subr.mxu0 0.0
    %5793 = vmatpush1.msra.mxu0 0.0
    %5794 = vmatprep.subr.mxu0 0.0
    %5795 = vmatpush1.msra.mxu0 0.0
    %5796 = vmatprep.subr.mxu0 0.0
    %5797 = vmatpush1.msra.mxu0 0.0
    %5798 = vmatprep.subr.mxu0 0.0
    %5799 = vmatpush1.msra.mxu0 0.0
    %5800 = vmatprep.subr.mxu0 0.0
    %5801 = vmatpush1.msra.mxu0 0.0
    %5802 = vmatprep.subr.mxu0 0.0
    %5803 = vmatpush1.msra.mxu0 0.0
    %5804 = vmatprep.subr.mxu0 0.0
    %5805 = vmatpush1.msra.mxu0 0.0
    %5806 = vmatprep.subr.mxu0 0.0
    %5807 = vmatpush1.msra.mxu0 0.0
    %5808 = vmatprep.subr.mxu0 0.0
    %5809 = vmatpush1.msra.mxu0 0.0
    %5810 = vmatprep.subr.mxu0 0.0
    %5811 = vmatpush1.msra.mxu0 0.0
    %5812 = vmatprep.subr.mxu0 0.0
    %5813 = vmatpush1.msra.mxu0 0.0
    %5814 = vmatprep.subr.mxu0 0.0
    %5815 = vmatpush1.msra.mxu0 0.0
    %5816 = vmatprep.subr.mxu0 0.0
    %5817 = vmatpush1.msra.mxu0 0.0
    %5818 = vmatprep.subr.mxu0 0.0
    %5819 = vmatpush1.msra.mxu0 0.0
    %5820 = vmatprep.subr.mxu0 0.0
    %5821 = vmatpush1.msra.mxu0 0.0
    %5822 = vmatprep.subr.mxu0 0.0
    %5823 = vmatpush1.msra.mxu0 0.0
    %5824 = vmatprep.subr.mxu0 0.0
    %5825 = vmatpush1.msra.mxu0 0.0
    %5826 = vmatprep.subr.mxu0 0.0
    %5827 = vmatpush1.msra.mxu0 0.0
    %5828 = vmatprep.subr.mxu0 0.0
    %5829 = vmatpush1.msra.mxu0 0.0
    %5830 = vmatprep.subr.mxu0 0.0
    %5831 = vmatpush1.msra.mxu0 0.0
    %5832 = vmatprep.subr.mxu0 0.0
    %5833 = vmatpush1.msra.mxu0 0.0
    %5834 = vmatprep.subr.mxu0 0.0
    %5835 = vmatpush1.msra.mxu0 0.0
    %5836 = vmatprep.subr.mxu0 0.0
    %5837 = vmatpush1.msra.mxu0 0.0
    %5838 = vmatprep.subr.mxu0 0.0
    %5839 = vmatpush1.msra.mxu0 0.0
    %5840 = vmatprep.subr.mxu0 0.0
    %5841 = vmatpush1.msra.mxu0 0.0
    %5842 = vmatprep.subr.mxu0 0.0
    %5843 = vmatpush1.msra.mxu0 0.0
    %5844 = vmatprep.subr.mxu0 0.0
    %5845 = vmatpush1.msra.mxu0 0.0
    %5846 = vmatprep.subr.mxu0 0.0
    %5847 = vmatpush1.msra.mxu0 0.0
    %5848 = vmatprep.subr.mxu0 0.0
    %5849 = vmatpush1.msra.mxu0 0.0
    %5850 = vmatprep.subr.mxu0 0.0
    %5851 = vmatpush1.msra.mxu0 0.0
    %5852 = vmatprep.mubr.f32.mxu0 0.0
    %v5853 = vand.u32 %v5624, 4294901760
    %v5854 = vsub.f32 %v5624, %v5853
    %5855 = vmatmul.mubr.f32.gmra.mrb[0].mxu0 %v5854
    %v5856 = vpop.f32.mrb[0].mxu0
    %v5857 = vadd.f32 %v5781, %v5856
    %v5858 = vpop.f32.mrb[0].mxu0
    %5859 = vdwg.mxu0
    %5860 = vmatprep.subr.mxu0 0.0
    %v5861 = vand.u32 %v3702, 4294901760
    %5862 = vmatpush1.msra.mxu0 %v5861
    %5863 = vmatprep.subr.mxu0 0.0
    %v5864 = vand.u32 %v3770, 4294901760
    %5865 = vmatpush1.msra.mxu0 %v5864
    %5866 = vmatprep.subr.mxu0 0.0
    %5867 = vmatpush1.msra.mxu0 0.0
    %5868 = vmatprep.subr.mxu0 0.0
    %5869 = vmatpush1.msra.mxu0 0.0
    %5870 = vmatprep.subr.mxu0 0.0
    %5871 = vmatpush1.msra.mxu0 0.0
    %5872 = vmatprep.subr.mxu0 0.0
    %5873 = vmatpush1.msra.mxu0 0.0
    %5874 = vmatprep.subr.mxu0 0.0
    %5875 = vmatpush1.msra.mxu0 0.0
    %5876 = vmatprep.subr.mxu0 0.0
    %5877 = vmatpush1.msra.mxu0 0.0
    %5878 = vmatprep.subr.mxu0 0.0
    %5879 = vmatpush1.msra.mxu0 0.0
    %5880 = vmatprep.subr.mxu0 0.0
    %5881 = vmatpush1.msra.mxu0 0.0
    %5882 = vmatprep.subr.mxu0 0.0
    %5883 = vmatpush1.msra.mxu0 0.0
    %5884 = vmatprep.subr.mxu0 0.0
    %5885 = vmatpush1.msra.mxu0 0.0
    %5886 = vmatprep.subr.mxu0 0.0
    %5887 = vmatpush1.msra.mxu0 0.0
    %5888 = vmatprep.subr.mxu0 0.0
    %5889 = vmatpush1.msra.mxu0 0.0
    %5890 = vmatprep.subr.mxu0 0.0
    %5891 = vmatpush1.msra.mxu0 0.0
    %5892 = vmatprep.subr.mxu0 0.0
    %5893 = vmatpush1.msra.mxu0 0.0
    %5894 = vmatprep.subr.mxu0 0.0
    %5895 = vmatpush1.msra.mxu0 0.0
    %5896 = vmatprep.subr.mxu0 0.0
    %5897 = vmatpush1.msra.mxu0 0.0
    %5898 = vmatprep.subr.mxu0 0.0
    %5899 = vmatpush1.msra.mxu0 0.0
    %5900 = vmatprep.subr.mxu0 0.0
    %5901 = vmatpush1.msra.mxu0 0.0
    %5902 = vmatprep.subr.mxu0 0.0
    %5903 = vmatpush1.msra.mxu0 0.0
    %5904 = vmatprep.subr.mxu0 0.0
    %5905 = vmatpush1.msra.mxu0 0.0
    %5906 = vmatprep.subr.mxu0 0.0
    %5907 = vmatpush1.msra.mxu0 0.0
    %5908 = vmatprep.subr.mxu0 0.0
    %5909 = vmatpush1.msra.mxu0 0.0
    %5910 = vmatprep.subr.mxu0 0.0
    %5911 = vmatpush1.msra.mxu0 0.0
    %5912 = vmatprep.subr.mxu0 0.0
    %5913 = vmatpush1.msra.mxu0 0.0
    %5914 = vmatprep.subr.mxu0 0.0
    %5915 = vmatpush1.msra.mxu0 0.0
    %5916 = vmatprep.subr.mxu0 0.0
    %5917 = vmatpush1.msra.mxu0 0.0
    %5918 = vmatprep.subr.mxu0 0.0
    %5919 = vmatpush1.msra.mxu0 0.0
    %5920 = vmatprep.subr.mxu0 0.0
    %5921 = vmatpush1.msra.mxu0 0.0
    %5922 = vmatprep.subr.mxu0 0.0
    %5923 = vmatpush1.msra.mxu0 0.0
    %5924 = vmatprep.subr.mxu0 0.0
    %5925 = vmatpush1.msra.mxu0 0.0
    %5926 = vmatprep.mubr.f32.mxu0 0.0
    %v5927 = vand.u32 %v5624, 4294901760
    %v5928 = vsub.f32 %v5624, %v5927
    %v5929 = vand.u32 %v5928, 4294901760
    %5930 = vmatmul.mubr.f32.gmra.mrb[0].mxu0 %v5929
    %v5931 = vpop.f32.mrb[0].mxu0
    %v5932 = vadd.f32 %v5857, %v5931
    %v5933 = vpop.f32.mrb[0].mxu0
    %5934 = vdwg.mxu0
    %5935 = vmatprep.subr.mxu0 0.0
    %v5936 = vand.u32 %v3702, 4294901760
    %v5937 = vsub.f32 %v3702, %v5936
    %v5938 = vand.u32 %v5937, 4294901760
    %5939 = vmatpush1.msra.mxu0 %v5938
    %5940 = vmatprep.subr.mxu0 0.0
    %v5941 = vand.u32 %v3770, 4294901760
    %v5942 = vsub.f32 %v3770, %v5941
    %v5943 = vand.u32 %v5942, 4294901760
    %5944 = vmatpush1.msra.mxu0 %v5943
    %5945 = vmatprep.subr.mxu0 0.0
    %5946 = vmatpush1.msra.mxu0 0.0
    %5947 = vmatprep.subr.mxu0 0.0
    %5948 = vmatpush1.msra.mxu0 0.0
    %5949 = vmatprep.subr.mxu0 0.0
    %5950 = vmatpush1.msra.mxu0 0.0
    %5951 = vmatprep.subr.mxu0 0.0
    %5952 = vmatpush1.msra.mxu0 0.0
    %5953 = vmatprep.subr.mxu0 0.0
    %5954 = vmatpush1.msra.mxu0 0.0
    %5955 = vmatprep.subr.mxu0 0.0
    %5956 = vmatpush1.msra.mxu0 0.0
    %5957 = vmatprep.subr.mxu0 0.0
    %5958 = vmatpush1.msra.mxu0 0.0
    %5959 = vmatprep.subr.mxu0 0.0
    %5960 = vmatpush1.msra.mxu0 0.0
    %5961 = vmatprep.subr.mxu0 0.0
    %5962 = vmatpush1.msra.mxu0 0.0
    %5963 = vmatprep.subr.mxu0 0.0
    %5964 = vmatpush1.msra.mxu0 0.0
    %5965 = vmatprep.subr.mxu0 0.0
    %5966 = vmatpush1.msra.mxu0 0.0
    %5967 = vmatprep.subr.mxu0 0.0
    %5968 = vmatpush1.msra.mxu0 0.0
    %5969 = vmatprep.subr.mxu0 0.0
    %5970 = vmatpush1.msra.mxu0 0.0
    %5971 = vmatprep.subr.mxu0 0.0
    %5972 = vmatpush1.msra.mxu0 0.0
    %5973 = vmatprep.subr.mxu0 0.0
    %5974 = vmatpush1.msra.mxu0 0.0
    %5975 = vmatprep.subr.mxu0 0.0
    %5976 = vmatpush1.msra.mxu0 0.0
    %5977 = vmatprep.subr.mxu0 0.0
    %5978 = vmatpush1.msra.mxu0 0.0
    %5979 = vmatprep.subr.mxu0 0.0
    %5980 = vmatpush1.msra.mxu0 0.0
    %5981 = vmatprep.subr.mxu0 0.0
    %5982 = vmatpush1.msra.mxu0 0.0
    %5983 = vmatprep.subr.mxu0 0.0
    %5984 = vmatpush1.msra.mxu0 0.0
    %5985 = vmatprep.subr.mxu0 0.0
    %5986 = vmatpush1.msra.mxu0 0.0
    %5987 = vmatprep.subr.mxu0 0.0
    %5988 = vmatpush1.msra.mxu0 0.0
    %5989 = vmatprep.subr.mxu0 0.0
    %5990 = vmatpush1.msra.mxu0 0.0
    %5991 = vmatprep.subr.mxu0 0.0
    %5992 = vmatpush1.msra.mxu0 0.0
    %5993 = vmatprep.subr.mxu0 0.0
    %5994 = vmatpush1.msra.mxu0 0.0
    %5995 = vmatprep.subr.mxu0 0.0
    %5996 = vmatpush1.msra.mxu0 0.0
    %5997 = vmatprep.subr.mxu0 0.0
    %5998 = vmatpush1.msra.mxu0 0.0
    %5999 = vmatprep.subr.mxu0 0.0
    %6000 = vmatpush1.msra.mxu0 0.0
    %6001 = vmatprep.subr.mxu0 0.0
    %6002 = vmatpush1.msra.mxu0 0.0
    %6003 = vmatprep.subr.mxu0 0.0
    %6004 = vmatpush1.msra.mxu0 0.0
    %6005 = vmatprep.mubr.f32.mxu0 0.0
    %v6006 = vand.u32 %v5624, 4294901760
    %6007 = vmatmul.mubr.f32.gmra.mrb[0].mxu0 %v6006
    %v6008 = vpop.f32.mrb[0].mxu0
    %v6009 = vadd.f32 %v5932, %v6008
    %v6010 = vpop.f32.mrb[0].mxu0
    %6011 = vdwg.mxu0
    %6012 = vmatprep.subr.mxu0 0.0
    %v6013 = vand.u32 %v3702, 4294901760
    %6014 = vmatpush1.msra.mxu0 %v6013
    %6015 = vmatprep.subr.mxu0 0.0
    %v6016 = vand.u32 %v3770, 4294901760
    %6017 = vmatpush1.msra.mxu0 %v6016
    %6018 = vmatprep.subr.mxu0 0.0
    %6019 = vmatpush1.msra.mxu0 0.0
    %6020 = vmatprep.subr.mxu0 0.0
    %6021 = vmatpush1.msra.mxu0 0.0
    %6022 = vmatprep.subr.mxu0 0.0
    %6023 = vmatpush1.msra.mxu0 0.0
    %6024 = vmatprep.subr.mxu0 0.0
    %6025 = vmatpush1.msra.mxu0 0.0
    %6026 = vmatprep.subr.mxu0 0.0
    %6027 = vmatpush1.msra.mxu0 0.0
    %6028 = vmatprep.subr.mxu0 0.0
    %6029 = vmatpush1.msra.mxu0 0.0
    %6030 = vmatprep.subr.mxu0 0.0
    %6031 = vmatpush1.msra.mxu0 0.0
    %6032 = vmatprep.subr.mxu0 0.0
    %6033 = vmatpush1.msra.mxu0 0.0
    %6034 = vmatprep.subr.mxu0 0.0
    %6035 = vmatpush1.msra.mxu0 0.0
    %6036 = vmatprep.subr.mxu0 0.0
    %6037 = vmatpush1.msra.mxu0 0.0
    %6038 = vmatprep.subr.mxu0 0.0
    %6039 = vmatpush1.msra.mxu0 0.0
    %6040 = vmatprep.subr.mxu0 0.0
    %6041 = vmatpush1.msra.mxu0 0.0
    %6042 = vmatprep.subr.mxu0 0.0
    %6043 = vmatpush1.msra.mxu0 0.0
    %6044 = vmatprep.subr.mxu0 0.0
    %6045 = vmatpush1.msra.mxu0 0.0
    %6046 = vmatprep.subr.mxu0 0.0
    %6047 = vmatpush1.msra.mxu0 0.0
    %6048 = vmatprep.subr.mxu0 0.0
    %6049 = vmatpush1.msra.mxu0 0.0
    %6050 = vmatprep.subr.mxu0 0.0
    %6051 = vmatpush1.msra.mxu0 0.0
    %6052 = vmatprep.subr.mxu0 0.0
    %6053 = vmatpush1.msra.mxu0 0.0
    %6054 = vmatprep.subr.mxu0 0.0
    %6055 = vmatpush1.msra.mxu0 0.0
    %6056 = vmatprep.subr.mxu0 0.0
    %6057 = vmatpush1.msra.mxu0 0.0
    %6058 = vmatprep.subr.mxu0 0.0
    %6059 = vmatpush1.msra.mxu0 0.0
    %6060 = vmatprep.subr.mxu0 0.0
    %6061 = vmatpush1.msra.mxu0 0.0
    %6062 = vmatprep.subr.mxu0 0.0
    %6063 = vmatpush1.msra.mxu0 0.0
    %6064 = vmatprep.subr.mxu0 0.0
    %6065 = vmatpush1.msra.mxu0 0.0
    %6066 = vmatprep.subr.mxu0 0.0
    %6067 = vmatpush1.msra.mxu0 0.0
    %6068 = vmatprep.subr.mxu0 0.0
    %6069 = vmatpush1.msra.mxu0 0.0
    %6070 = vmatprep.subr.mxu0 0.0
    %6071 = vmatpush1.msra.mxu0 0.0
    %6072 = vmatprep.subr.mxu0 0.0
    %6073 = vmatpush1.msra.mxu0 0.0
    %6074 = vmatprep.subr.mxu0 0.0
    %6075 = vmatpush1.msra.mxu0 0.0
    %6076 = vmatprep.subr.mxu0 0.0
    %6077 = vmatpush1.msra.mxu0 0.0
    %6078 = vmatprep.mubr.f32.mxu0 0.0
    %v6079 = vand.u32 %v5624, 4294901760
    %6080 = vmatmul.mubr.f32.gmra.mrb[0].mxu0 %v6079
    %v6081 = vpop.f32.mrb[0].mxu0
    %v6082 = vadd.f32 %v6009, %v6081
    %v6083 = vpop.f32.mrb[0].mxu0
    %6084 = vdwg.mxu0
    %v6086 = vsel %vm3774, %v967, 0
    %6088 = vmatprep.subr.mxu0 0.0
    %v6089 = vand.u32 %v3703, 4294901760
    %6090 = vmatpush1.msra.mxu0 %v6089
    %6091 = vmatprep.subr.mxu0 0.0
    %v6092 = vand.u32 %v3771, 4294901760
    %6093 = vmatpush1.msra.mxu0 %v6092
    %6094 = vmatprep.subr.mxu0 0.0
    %6095 = vmatpush1.msra.mxu0 0.0
    %6096 = vmatprep.subr.mxu0 0.0
    %6097 = vmatpush1.msra.mxu0 0.0
    %6098 = vmatprep.subr.mxu0 0.0
    %6099 = vmatpush1.msra.mxu0 0.0
    %6100 = vmatprep.subr.mxu0 0.0
    %6101 = vmatpush1.msra.mxu0 0.0
    %6102 = vmatprep.subr.mxu0 0.0
    %6103 = vmatpush1.msra.mxu0 0.0
    %6104 = vmatprep.subr.mxu0 0.0
    %6105 = vmatpush1.msra.mxu0 0.0
    %6106 = vmatprep.subr.mxu0 0.0
    %6107 = vmatpush1.msra.mxu0 0.0
    %6108 = vmatprep.subr.mxu0 0.0
    %6109 = vmatpush1.msra.mxu0 0.0
    %6110 = vmatprep.subr.mxu0 0.0
    %6111 = vmatpush1.msra.mxu0 0.0
    %6112 = vmatprep.subr.mxu0 0.0
    %6113 = vmatpush1.msra.mxu0 0.0
    %6114 = vmatprep.subr.mxu0 0.0
    %6115 = vmatpush1.msra.mxu0 0.0
    %6116 = vmatprep.subr.mxu0 0.0
    %6117 = vmatpush1.msra.mxu0 0.0
    %6118 = vmatprep.subr.mxu0 0.0
    %6119 = vmatpush1.msra.mxu0 0.0
    %6120 = vmatprep.subr.mxu0 0.0
    %6121 = vmatpush1.msra.mxu0 0.0
    %6122 = vmatprep.subr.mxu0 0.0
    %6123 = vmatpush1.msra.mxu0 0.0
    %6124 = vmatprep.subr.mxu0 0.0
    %6125 = vmatpush1.msra.mxu0 0.0
    %6126 = vmatprep.subr.mxu0 0.0
    %6127 = vmatpush1.msra.mxu0 0.0
    %6128 = vmatprep.subr.mxu0 0.0
    %6129 = vmatpush1.msra.mxu0 0.0
    %6130 = vmatprep.subr.mxu0 0.0
    %6131 = vmatpush1.msra.mxu0 0.0
    %6132 = vmatprep.subr.mxu0 0.0
    %6133 = vmatpush1.msra.mxu0 0.0
    %6134 = vmatprep.subr.mxu0 0.0
    %6135 = vmatpush1.msra.mxu0 0.0
    %6136 = vmatprep.subr.mxu0 0.0
    %6137 = vmatpush1.msra.mxu0 0.0
    %6138 = vmatprep.subr.mxu0 0.0
    %6139 = vmatpush1.msra.mxu0 0.0
    %6140 = vmatprep.subr.mxu0 0.0
    %6141 = vmatpush1.msra.mxu0 0.0
    %6142 = vmatprep.subr.mxu0 0.0
    %6143 = vmatpush1.msra.mxu0 0.0
    %6144 = vmatprep.subr.mxu0 0.0
    %6145 = vmatpush1.msra.mxu0 0.0
    %6146 = vmatprep.subr.mxu0 0.0
    %6147 = vmatpush1.msra.mxu0 0.0
    %6148 = vmatprep.subr.mxu0 0.0
    %6149 = vmatpush1.msra.mxu0 0.0
    %6150 = vmatprep.subr.mxu0 0.0
    %6151 = vmatpush1.msra.mxu0 0.0
    %6152 = vmatprep.subr.mxu0 0.0
    %6153 = vmatpush1.msra.mxu0 0.0
    %6154 = vmatprep.mubr.f32.mxu0 0.0
    %v6155 = vand.u32 %v6086, 4294901760
    %v6156 = vsub.f32 %v6086, %v6155
    %v6157 = vand.u32 %v6156, 4294901760
    %v6158 = vsub.f32 %v6156, %v6157
    %v6159 = vand.u32 %v6158, 4294901760
    %6160 = vmatmul.mubr.f32.gmra.mrb[0].mxu0 %v6159
    %v6161 = vpop.f32.mrb[0].mxu0
    %v6162 = vadd.f32 0.0, %v6161
    %v6163 = vpop.f32.mrb[0].mxu0
    %6164 = vdwg.mxu0
    %6165 = vmatprep.subr.mxu0 0.0
    %v6166 = vand.u32 %v3703, 4294901760
    %v6167 = vsub.f32 %v3703, %v6166
    %v6168 = vand.u32 %v6167, 4294901760
    %v6169 = vsub.f32 %v6167, %v6168
    %v6170 = vand.u32 %v6169, 4294901760
    %6171 = vmatpush1.msra.mxu0 %v6170
    %6172 = vmatprep.subr.mxu0 0.0
    %v6173 = vand.u32 %v3771, 4294901760
    %v6174 = vsub.f32 %v3771, %v6173
    %v6175 = vand.u32 %v6174, 4294901760
    %v6176 = vsub.f32 %v6174, %v6175
    %v6177 = vand.u32 %v6176, 4294901760
    %6178 = vmatpush1.msra.mxu0 %v6177
    %6179 = vmatprep.subr.mxu0 0.0
    %6180 = vmatpush1.msra.mxu0 0.0
    %6181 = vmatprep.subr.mxu0 0.0
    %6182 = vmatpush1.msra.mxu0 0.0
    %6183 = vmatprep.subr.mxu0 0.0
    %6184 = vmatpush1.msra.mxu0 0.0
    %6185 = vmatprep.subr.mxu0 0.0
    %6186 = vmatpush1.msra.mxu0 0.0
    %6187 = vmatprep.subr.mxu0 0.0
    %6188 = vmatpush1.msra.mxu0 0.0
    %6189 = vmatprep.subr.mxu0 0.0
    %6190 = vmatpush1.msra.mxu0 0.0
    %6191 = vmatprep.subr.mxu0 0.0
    %6192 = vmatpush1.msra.mxu0 0.0
    %6193 = vmatprep.subr.mxu0 0.0
    %6194 = vmatpush1.msra.mxu0 0.0
    %6195 = vmatprep.subr.mxu0 0.0
    %6196 = vmatpush1.msra.mxu0 0.0
    %6197 = vmatprep.subr.mxu0 0.0
    %6198 = vmatpush1.msra.mxu0 0.0
    %6199 = vmatprep.subr.mxu0 0.0
    %6200 = vmatpush1.msra.mxu0 0.0
    %6201 = vmatprep.subr.mxu0 0.0
    %6202 = vmatpush1.msra.mxu0 0.0
    %6203 = vmatprep.subr.mxu0 0.0
    %6204 = vmatpush1.msra.mxu0 0.0
    %6205 = vmatprep.subr.mxu0 0.0
    %6206 = vmatpush1.msra.mxu0 0.0
    %6207 = vmatprep.subr.mxu0 0.0
    %6208 = vmatpush1.msra.mxu0 0.0
    %6209 = vmatprep.subr.mxu0 0.0
    %6210 = vmatpush1.msra.mxu0 0.0
    %6211 = vmatprep.subr.mxu0 0.0
    %6212 = vmatpush1.msra.mxu0 0.0
    %6213 = vmatprep.subr.mxu0 0.0
    %6214 = vmatpush1.msra.mxu0 0.0
    %6215 = vmatprep.subr.mxu0 0.0
    %6216 = vmatpush1.msra.mxu0 0.0
    %6217 = vmatprep.subr.mxu0 0.0
    %6218 = vmatpush1.msra.mxu0 0.0
    %6219 = vmatprep.subr.mxu0 0.0
    %6220 = vmatpush1.msra.mxu0 0.0
    %6221 = vmatprep.subr.mxu0 0.0
    %6222 = vmatpush1.msra.mxu0 0.0
    %6223 = vmatprep.subr.mxu0 0.0
    %6224 = vmatpush1.msra.mxu0 0.0
    %6225 = vmatprep.subr.mxu0 0.0
    %6226 = vmatpush1.msra.mxu0 0.0
    %6227 = vmatprep.subr.mxu0 0.0
    %6228 = vmatpush1.msra.mxu0 0.0
    %6229 = vmatprep.subr.mxu0 0.0
    %6230 = vmatpush1.msra.mxu0 0.0
    %6231 = vmatprep.subr.mxu0 0.0
    %6232 = vmatpush1.msra.mxu0 0.0
    %6233 = vmatprep.subr.mxu0 0.0
    %6234 = vmatpush1.msra.mxu0 0.0
    %6235 = vmatprep.subr.mxu0 0.0
    %6236 = vmatpush1.msra.mxu0 0.0
    %6237 = vmatprep.subr.mxu0 0.0
    %6238 = vmatpush1.msra.mxu0 0.0
    %6239 = vmatprep.mubr.f32.mxu0 0.0
    %v6240 = vand.u32 %v6086, 4294901760
    %6241 = vmatmul.mubr.f32.gmra.mrb[0].mxu0 %v6240
    %v6242 = vpop.f32.mrb[0].mxu0
    %v6243 = vadd.f32 %v6162, %v6242
    %v6244 = vpop.f32.mrb[0].mxu0
    %6245 = vdwg.mxu0
    %6246 = vmatprep.subr.mxu0 0.0
    %v6247 = vand.u32 %v3703, 4294901760
    %v6248 = vsub.f32 %v3703, %v6247
    %6249 = vmatpush1.msra.mxu0 %v6248
    %6250 = vmatprep.subr.mxu0 0.0
    %v6251 = vand.u32 %v3771, 4294901760
    %v6252 = vsub.f32 %v3771, %v6251
    %6253 = vmatpush1.msra.mxu0 %v6252
    %6254 = vmatprep.subr.mxu0 0.0
    %6255 = vmatpush1.msra.mxu0 0.0
    %6256 = vmatprep.subr.mxu0 0.0
    %6257 = vmatpush1.msra.mxu0 0.0
    %6258 = vmatprep.subr.mxu0 0.0
    %6259 = vmatpush1.msra.mxu0 0.0
    %6260 = vmatprep.subr.mxu0 0.0
    %6261 = vmatpush1.msra.mxu0 0.0
    %6262 = vmatprep.subr.mxu0 0.0
    %6263 = vmatpush1.msra.mxu0 0.0
    %6264 = vmatprep.subr.mxu0 0.0
    %6265 = vmatpush1.msra.mxu0 0.0
    %6266 = vmatprep.subr.mxu0 0.0
    %6267 = vmatpush1.msra.mxu0 0.0
    %6268 = vmatprep.subr.mxu0 0.0
    %6269 = vmatpush1.msra.mxu0 0.0
    %6270 = vmatprep.subr.mxu0 0.0
    %6271 = vmatpush1.msra.mxu0 0.0
    %6272 = vmatprep.subr.mxu0 0.0
    %6273 = vmatpush1.msra.mxu0 0.0
    %6274 = vmatprep.subr.mxu0 0.0
    %6275 = vmatpush1.msra.mxu0 0.0
    %6276 = vmatprep.subr.mxu0 0.0
    %6277 = vmatpush1.msra.mxu0 0.0
    %6278 = vmatprep.subr.mxu0 0.0
    %6279 = vmatpush1.msra.mxu0 0.0
    %6280 = vmatprep.subr.mxu0 0.0
    %6281 = vmatpush1.msra.mxu0 0.0
    %6282 = vmatprep.subr.mxu0 0.0
    %6283 = vmatpush1.msra.mxu0 0.0
    %6284 = vmatprep.subr.mxu0 0.0
    %6285 = vmatpush1.msra.mxu0 0.0
    %6286 = vmatprep.subr.mxu0 0.0
    %6287 = vmatpush1.msra.mxu0 0.0
    %6288 = vmatprep.subr.mxu0 0.0
    %6289 = vmatpush1.msra.mxu0 0.0
    %6290 = vmatprep.subr.mxu0 0.0
    %6291 = vmatpush1.msra.mxu0 0.0
    %6292 = vmatprep.subr.mxu0 0.0
    %6293 = vmatpush1.msra.mxu0 0.0
    %6294 = vmatprep.subr.mxu0 0.0
    %6295 = vmatpush1.msra.mxu0 0.0
    %6296 = vmatprep.subr.mxu0 0.0
    %6297 = vmatpush1.msra.mxu0 0.0
    %6298 = vmatprep.subr.mxu0 0.0
    %6299 = vmatpush1.msra.mxu0 0.0
    %6300 = vmatprep.subr.mxu0 0.0
    %6301 = vmatpush1.msra.mxu0 0.0
    %6302 = vmatprep.subr.mxu0 0.0
    %6303 = vmatpush1.msra.mxu0 0.0
    %6304 = vmatprep.subr.mxu0 0.0
    %6305 = vmatpush1.msra.mxu0 0.0
    %6306 = vmatprep.subr.mxu0 0.0
    %6307 = vmatpush1.msra.mxu0 0.0
    %6308 = vmatprep.subr.mxu0 0.0
    %6309 = vmatpush1.msra.mxu0 0.0
    %6310 = vmatprep.subr.mxu0 0.0
    %6311 = vmatpush1.msra.mxu0 0.0
    %6312 = vmatprep.subr.mxu0 0.0
    %6313 = vmatpush1.msra.mxu0 0.0
    %6314 = vmatprep.mubr.f32.mxu0 0.0
    %v6315 = vand.u32 %v6086, 4294901760
    %v6316 = vsub.f32 %v6086, %v6315
    %6317 = vmatmul.mubr.f32.gmra.mrb[0].mxu0 %v6316
    %v6318 = vpop.f32.mrb[0].mxu0
    %v6319 = vadd.f32 %v6243, %v6318
    %v6320 = vpop.f32.mrb[0].mxu0
    %6321 = vdwg.mxu0
    %6322 = vmatprep.subr.mxu0 0.0
    %v6323 = vand.u32 %v3703, 4294901760
    %6324 = vmatpush1.msra.mxu0 %v6323
    %6325 = vmatprep.subr.mxu0 0.0
    %v6326 = vand.u32 %v3771, 4294901760
    %6327 = vmatpush1.msra.mxu0 %v6326
    %6328 = vmatprep.subr.mxu0 0.0
    %6329 = vmatpush1.msra.mxu0 0.0
    %6330 = vmatprep.subr.mxu0 0.0
    %6331 = vmatpush1.msra.mxu0 0.0
    %6332 = vmatprep.subr.mxu0 0.0
    %6333 = vmatpush1.msra.mxu0 0.0
    %6334 = vmatprep.subr.mxu0 0.0
    %6335 = vmatpush1.msra.mxu0 0.0
    %6336 = vmatprep.subr.mxu0 0.0
    %6337 = vmatpush1.msra.mxu0 0.0
    %6338 = vmatprep.subr.mxu0 0.0
    %6339 = vmatpush1.msra.mxu0 0.0
    %6340 = vmatprep.subr.mxu0 0.0
    %6341 = vmatpush1.msra.mxu0 0.0
    %6342 = vmatprep.subr.mxu0 0.0
    %6343 = vmatpush1.msra.mxu0 0.0
    %6344 = vmatprep.subr.mxu0 0.0
    %6345 = vmatpush1.msra.mxu0 0.0
    %6346 = vmatprep.subr.mxu0 0.0
    %6347 = vmatpush1.msra.mxu0 0.0
    %6348 = vmatprep.subr.mxu0 0.0
    %6349 = vmatpush1.msra.mxu0 0.0
    %6350 = vmatprep.subr.mxu0 0.0
    %6351 = vmatpush1.msra.mxu0 0.0
    %6352 = vmatprep.subr.mxu0 0.0
    %6353 = vmatpush1.msra.mxu0 0.0
    %6354 = vmatprep.subr.mxu0 0.0
    %6355 = vmatpush1.msra.mxu0 0.0
    %6356 = vmatprep.subr.mxu0 0.0
    %6357 = vmatpush1.msra.mxu0 0.0
    %6358 = vmatprep.subr.mxu0 0.0
    %6359 = vmatpush1.msra.mxu0 0.0
    %6360 = vmatprep.subr.mxu0 0.0
    %6361 = vmatpush1.msra.mxu0 0.0
    %6362 = vmatprep.subr.mxu0 0.0
    %6363 = vmatpush1.msra.mxu0 0.0
    %6364 = vmatprep.subr.mxu0 0.0
    %6365 = vmatpush1.msra.mxu0 0.0
    %6366 = vmatprep.subr.mxu0 0.0
    %6367 = vmatpush1.msra.mxu0 0.0
    %6368 = vmatprep.subr.mxu0 0.0
    %6369 = vmatpush1.msra.mxu0 0.0
    %6370 = vmatprep.subr.mxu0 0.0
    %6371 = vmatpush1.msra.mxu0 0.0
    %6372 = vmatprep.subr.mxu0 0.0
    %6373 = vmatpush1.msra.mxu0 0.0
    %6374 = vmatprep.subr.mxu0 0.0
    %6375 = vmatpush1.msra.mxu0 0.0
    %6376 = vmatprep.subr.mxu0 0.0
    %6377 = vmatpush1.msra.mxu0 0.0
    %6378 = vmatprep.subr.mxu0 0.0
    %6379 = vmatpush1.msra.mxu0 0.0
    %6380 = vmatprep.subr.mxu0 0.0
    %6381 = vmatpush1.msra.mxu0 0.0
    %6382 = vmatprep.subr.mxu0 0.0
    %6383 = vmatpush1.msra.mxu0 0.0
    %6384 = vmatprep.subr.mxu0 0.0
    %6385 = vmatpush1.msra.mxu0 0.0
    %6386 = vmatprep.subr.mxu0 0.0
    %6387 = vmatpush1.msra.mxu0 0.0
    %6388 = vmatprep.mubr.f32.mxu0 0.0
    %v6389 = vand.u32 %v6086, 4294901760
    %v6390 = vsub.f32 %v6086, %v6389
    %v6391 = vand.u32 %v6390, 4294901760
    %6392 = vmatmul.mubr.f32.gmra.mrb[0].mxu0 %v6391
    %v6393 = vpop.f32.mrb[0].mxu0
    %v6394 = vadd.f32 %v6319, %v6393
    %v6395 = vpop.f32.mrb[0].mxu0
    %6396 = vdwg.mxu0
    %6397 = vmatprep.subr.mxu0 0.0
    %v6398 = vand.u32 %v3703, 4294901760
    %v6399 = vsub.f32 %v3703, %v6398
    %v6400 = vand.u32 %v6399, 4294901760
    %6401 = vmatpush1.msra.mxu0 %v6400
    %6402 = vmatprep.subr.mxu0 0.0
    %v6403 = vand.u32 %v3771, 4294901760
    %v6404 = vsub.f32 %v3771, %v6403
    %v6405 = vand.u32 %v6404, 4294901760
    %6406 = vmatpush1.msra.mxu0 %v6405
    %6407 = vmatprep.subr.mxu0 0.0
    %6408 = vmatpush1.msra.mxu0 0.0
    %6409 = vmatprep.subr.mxu0 0.0
    %6410 = vmatpush1.msra.mxu0 0.0
    %6411 = vmatprep.subr.mxu0 0.0
    %6412 = vmatpush1.msra.mxu0 0.0
    %6413 = vmatprep.subr.mxu0 0.0
    %6414 = vmatpush1.msra.mxu0 0.0
    %6415 = vmatprep.subr.mxu0 0.0
    %6416 = vmatpush1.msra.mxu0 0.0
    %6417 = vmatprep.subr.mxu0 0.0
    %6418 = vmatpush1.msra.mxu0 0.0
    %6419 = vmatprep.subr.mxu0 0.0
    %6420 = vmatpush1.msra.mxu0 0.0
    %6421 = vmatprep.subr.mxu0 0.0
    %6422 = vmatpush1.msra.mxu0 0.0
    %6423 = vmatprep.subr.mxu0 0.0
    %6424 = vmatpush1.msra.mxu0 0.0
    %6425 = vmatprep.subr.mxu0 0.0
    %6426 = vmatpush1.msra.mxu0 0.0
    %6427 = vmatprep.subr.mxu0 0.0
    %6428 = vmatpush1.msra.mxu0 0.0
    %6429 = vmatprep.subr.mxu0 0.0
    %6430 = vmatpush1.msra.mxu0 0.0
    %6431 = vmatprep.subr.mxu0 0.0
    %6432 = vmatpush1.msra.mxu0 0.0
    %6433 = vmatprep.subr.mxu0 0.0
    %6434 = vmatpush1.msra.mxu0 0.0
    %6435 = vmatprep.subr.mxu0 0.0
    %6436 = vmatpush1.msra.mxu0 0.0
    %6437 = vmatprep.subr.mxu0 0.0
    %6438 = vmatpush1.msra.mxu0 0.0
    %6439 = vmatprep.subr.mxu0 0.0
    %6440 = vmatpush1.msra.mxu0 0.0
    %6441 = vmatprep.subr.mxu0 0.0
    %6442 = vmatpush1.msra.mxu0 0.0
    %6443 = vmatprep.subr.mxu0 0.0
    %6444 = vmatpush1.msra.mxu0 0.0
    %6445 = vmatprep.subr.mxu0 0.0
    %6446 = vmatpush1.msra.mxu0 0.0
    %6447 = vmatprep.subr.mxu0 0.0
    %6448 = vmatpush1.msra.mxu0 0.0
    %6449 = vmatprep.subr.mxu0 0.0
    %6450 = vmatpush1.msra.mxu0 0.0
    %6451 = vmatprep.subr.mxu0 0.0
    %6452 = vmatpush1.msra.mxu0 0.0
    %6453 = vmatprep.subr.mxu0 0.0
    %6454 = vmatpush1.msra.mxu0 0.0
    %6455 = vmatprep.subr.mxu0 0.0
    %6456 = vmatpush1.msra.mxu0 0.0
    %6457 = vmatprep.subr.mxu0 0.0
    %6458 = vmatpush1.msra.mxu0 0.0
    %6459 = vmatprep.subr.mxu0 0.0
    %6460 = vmatpush1.msra.mxu0 0.0
    %6461 = vmatprep.subr.mxu0 0.0
    %6462 = vmatpush1.msra.mxu0 0.0
    %6463 = vmatprep.subr.mxu0 0.0
    %6464 = vmatpush1.msra.mxu0 0.0
    %6465 = vmatprep.subr.mxu0 0.0
    %6466 = vmatpush1.msra.mxu0 0.0
    %6467 = vmatprep.mubr.f32.mxu0 0.0
    %v6468 = vand.u32 %v6086, 4294901760
    %6469 = vmatmul.mubr.f32.gmra.mrb[0].mxu0 %v6468
    %v6470 = vpop.f32.mrb[0].mxu0
    %v6471 = vadd.f32 %v6394, %v6470
    %v6472 = vpop.f32.mrb[0].mxu0
    %6473 = vdwg.mxu0
    %6474 = vmatprep.subr.mxu0 0.0
    %v6475 = vand.u32 %v3703, 4294901760
    %6476 = vmatpush1.msra.mxu0 %v6475
    %6477 = vmatprep.subr.mxu0 0.0
    %v6478 = vand.u32 %v3771, 4294901760
    %6479 = vmatpush1.msra.mxu0 %v6478
    %6480 = vmatprep.subr.mxu0 0.0
    %6481 = vmatpush1.msra.mxu0 0.0
    %6482 = vmatprep.subr.mxu0 0.0
    %6483 = vmatpush1.msra.mxu0 0.0
    %6484 = vmatprep.subr.mxu0 0.0
    %6485 = vmatpush1.msra.mxu0 0.0
    %6486 = vmatprep.subr.mxu0 0.0
    %6487 = vmatpush1.msra.mxu0 0.0
    %6488 = vmatprep.subr.mxu0 0.0
    %6489 = vmatpush1.msra.mxu0 0.0
    %6490 = vmatprep.subr.mxu0 0.0
    %6491 = vmatpush1.msra.mxu0 0.0
    %6492 = vmatprep.subr.mxu0 0.0
    %6493 = vmatpush1.msra.mxu0 0.0
    %6494 = vmatprep.subr.mxu0 0.0
    %6495 = vmatpush1.msra.mxu0 0.0
    %6496 = vmatprep.subr.mxu0 0.0
    %6497 = vmatpush1.msra.mxu0 0.0
    %6498 = vmatprep.subr.mxu0 0.0
    %6499 = vmatpush1.msra.mxu0 0.0
    %6500 = vmatprep.subr.mxu0 0.0
    %6501 = vmatpush1.msra.mxu0 0.0
    %6502 = vmatprep.subr.mxu0 0.0
    %6503 = vmatpush1.msra.mxu0 0.0
    %6504 = vmatprep.subr.mxu0 0.0
    %6505 = vmatpush1.msra.mxu0 0.0
    %6506 = vmatprep.subr.mxu0 0.0
    %6507 = vmatpush1.msra.mxu0 0.0
    %6508 = vmatprep.subr.mxu0 0.0
    %6509 = vmatpush1.msra.mxu0 0.0
    %6510 = vmatprep.subr.mxu0 0.0
    %6511 = vmatpush1.msra.mxu0 0.0
    %6512 = vmatprep.subr.mxu0 0.0
    %6513 = vmatpush1.msra.mxu0 0.0
    %6514 = vmatprep.subr.mxu0 0.0
    %6515 = vmatpush1.msra.mxu0 0.0
    %6516 = vmatprep.subr.mxu0 0.0
    %6517 = vmatpush1.msra.mxu0 0.0
    %6518 = vmatprep.subr.mxu0 0.0
    %6519 = vmatpush1.msra.mxu0 0.0
    %6520 = vmatprep.subr.mxu0 0.0
    %6521 = vmatpush1.msra.mxu0 0.0
    %6522 = vmatprep.subr.mxu0 0.0
    %6523 = vmatpush1.msra.mxu0 0.0
    %6524 = vmatprep.subr.mxu0 0.0
    %6525 = vmatpush1.msra.mxu0 0.0
    %6526 = vmatprep.subr.mxu0 0.0
    %6527 = vmatpush1.msra.mxu0 0.0
    %6528 = vmatprep.subr.mxu0 0.0
    %6529 = vmatpush1.msra.mxu0 0.0
    %6530 = vmatprep.subr.mxu0 0.0
    %6531 = vmatpush1.msra.mxu0 0.0
    %6532 = vmatprep.subr.mxu0 0.0
    %6533 = vmatpush1.msra.mxu0 0.0
    %6534 = vmatprep.subr.mxu0 0.0
    %6535 = vmatpush1.msra.mxu0 0.0
    %6536 = vmatprep.subr.mxu0 0.0
    %6537 = vmatpush1.msra.mxu0 0.0
    %6538 = vmatprep.subr.mxu0 0.0
    %6539 = vmatpush1.msra.mxu0 0.0
    %6540 = vmatprep.mubr.f32.mxu0 0.0
    %v6541 = vand.u32 %v6086, 4294901760
    %6542 = vmatmul.mubr.f32.gmra.mrb[0].mxu0 %v6541
    %v6543 = vpop.f32.mrb[0].mxu0
    %v6544 = vadd.f32 %v6471, %v6543
    %v6545 = vpop.f32.mrb[0].mxu0
    %6546 = vdwg.mxu0
    %v6548 = vsel %vm3774, %v968, 0
    %6550 = vmatprep.subr.mxu0 0.0
    %v6551 = vand.u32 %v3704, 4294901760
    %6552 = vmatpush1.msra.mxu0 %v6551
    %6553 = vmatprep.subr.mxu0 0.0
    %v6554 = vand.u32 %v3772, 4294901760
    %6555 = vmatpush1.msra.mxu0 %v6554
    %6556 = vmatprep.subr.mxu0 0.0
    %6557 = vmatpush1.msra.mxu0 0.0
    %6558 = vmatprep.subr.mxu0 0.0
    %6559 = vmatpush1.msra.mxu0 0.0
    %6560 = vmatprep.subr.mxu0 0.0
    %6561 = vmatpush1.msra.mxu0 0.0
    %6562 = vmatprep.subr.mxu0 0.0
    %6563 = vmatpush1.msra.mxu0 0.0
    %6564 = vmatprep.subr.mxu0 0.0
    %6565 = vmatpush1.msra.mxu0 0.0
    %6566 = vmatprep.subr.mxu0 0.0
    %6567 = vmatpush1.msra.mxu0 0.0
    %6568 = vmatprep.subr.mxu0 0.0
    %6569 = vmatpush1.msra.mxu0 0.0
    %6570 = vmatprep.subr.mxu0 0.0
    %6571 = vmatpush1.msra.mxu0 0.0
    %6572 = vmatprep.subr.mxu0 0.0
    %6573 = vmatpush1.msra.mxu0 0.0
    %6574 = vmatprep.subr.mxu0 0.0
    %6575 = vmatpush1.msra.mxu0 0.0
    %6576 = vmatprep.subr.mxu0 0.0
    %6577 = vmatpush1.msra.mxu0 0.0
    %6578 = vmatprep.subr.mxu0 0.0
    %6579 = vmatpush1.msra.mxu0 0.0
    %6580 = vmatprep.subr.mxu0 0.0
    %6581 = vmatpush1.msra.mxu0 0.0
    %6582 = vmatprep.subr.mxu0 0.0
    %6583 = vmatpush1.msra.mxu0 0.0
    %6584 = vmatprep.subr.mxu0 0.0
    %6585 = vmatpush1.msra.mxu0 0.0
    %6586 = vmatprep.subr.mxu0 0.0
    %6587 = vmatpush1.msra.mxu0 0.0
    %6588 = vmatprep.subr.mxu0 0.0
    %6589 = vmatpush1.msra.mxu0 0.0
    %6590 = vmatprep.subr.mxu0 0.0
    %6591 = vmatpush1.msra.mxu0 0.0
    %6592 = vmatprep.subr.mxu0 0.0
    %6593 = vmatpush1.msra.mxu0 0.0
    %6594 = vmatprep.subr.mxu0 0.0
    %6595 = vmatpush1.msra.mxu0 0.0
    %6596 = vmatprep.subr.mxu0 0.0
    %6597 = vmatpush1.msra.mxu0 0.0
    %6598 = vmatprep.subr.mxu0 0.0
    %6599 = vmatpush1.msra.mxu0 0.0
    %6600 = vmatprep.subr.mxu0 0.0
    %6601 = vmatpush1.msra.mxu0 0.0
    %6602 = vmatprep.subr.mxu0 0.0
    %6603 = vmatpush1.msra.mxu0 0.0
    %6604 = vmatprep.subr.mxu0 0.0
    %6605 = vmatpush1.msra.mxu0 0.0
    %6606 = vmatprep.subr.mxu0 0.0
    %6607 = vmatpush1.msra.mxu0 0.0
    %6608 = vmatprep.subr.mxu0 0.0
    %6609 = vmatpush1.msra.mxu0 0.0
    %6610 = vmatprep.subr.mxu0 0.0
    %6611 = vmatpush1.msra.mxu0 0.0
    %6612 = vmatprep.subr.mxu0 0.0
    %6613 = vmatpush1.msra.mxu0 0.0
    %6614 = vmatprep.subr.mxu0 0.0
    %6615 = vmatpush1.msra.mxu0 0.0
    %6616 = vmatprep.mubr.f32.mxu0 0.0
    %v6617 = vand.u32 %v6548, 4294901760
    %v6618 = vsub.f32 %v6548, %v6617
    %v6619 = vand.u32 %v6618, 4294901760
    %v6620 = vsub.f32 %v6618, %v6619
    %v6621 = vand.u32 %v6620, 4294901760
    %6622 = vmatmul.mubr.f32.gmra.mrb[0].mxu0 %v6621
    %v6623 = vpop.f32.mrb[0].mxu0
    %v6624 = vadd.f32 0.0, %v6623
    %v6625 = vpop.f32.mrb[0].mxu0
    %6626 = vdwg.mxu0
    %6627 = vmatprep.subr.mxu0 0.0
    %v6628 = vand.u32 %v3704, 4294901760
    %v6629 = vsub.f32 %v3704, %v6628
    %v6630 = vand.u32 %v6629, 4294901760
    %v6631 = vsub.f32 %v6629, %v6630
    %v6632 = vand.u32 %v6631, 4294901760
    %6633 = vmatpush1.msra.mxu0 %v6632
    %6634 = vmatprep.subr.mxu0 0.0
    %v6635 = vand.u32 %v3772, 4294901760
    %v6636 = vsub.f32 %v3772, %v6635
    %v6637 = vand.u32 %v6636, 4294901760
    %v6638 = vsub.f32 %v6636, %v6637
    %v6639 = vand.u32 %v6638, 4294901760
    %6640 = vmatpush1.msra.mxu0 %v6639
    %6641 = vmatprep.subr.mxu0 0.0
    %6642 = vmatpush1.msra.mxu0 0.0
    %6643 = vmatprep.subr.mxu0 0.0
    %6644 = vmatpush1.msra.mxu0 0.0
    %6645 = vmatprep.subr.mxu0 0.0
    %6646 = vmatpush1.msra.mxu0 0.0
    %6647 = vmatprep.subr.mxu0 0.0
    %6648 = vmatpush1.msra.mxu0 0.0
    %6649 = vmatprep.subr.mxu0 0.0
    %6650 = vmatpush1.msra.mxu0 0.0
    %6651 = vmatprep.subr.mxu0 0.0
    %6652 = vmatpush1.msra.mxu0 0.0
    %6653 = vmatprep.subr.mxu0 0.0
    %6654 = vmatpush1.msra.mxu0 0.0
    %6655 = vmatprep.subr.mxu0 0.0
    %6656 = vmatpush1.msra.mxu0 0.0
    %6657 = vmatprep.subr.mxu0 0.0
    %6658 = vmatpush1.msra.mxu0 0.0
    %6659 = vmatprep.subr.mxu0 0.0
    %6660 = vmatpush1.msra.mxu0 0.0
    %6661 = vmatprep.subr.mxu0 0.0
    %6662 = vmatpush1.msra.mxu0 0.0
    %6663 = vmatprep.subr.mxu0 0.0
    %6664 = vmatpush1.msra.mxu0 0.0
    %6665 = vmatprep.subr.mxu0 0.0
    %6666 = vmatpush1.msra.mxu0 0.0
    %6667 = vmatprep.subr.mxu0 0.0
    %6668 = vmatpush1.msra.mxu0 0.0
    %6669 = vmatprep.subr.mxu0 0.0
    %6670 = vmatpush1.msra.mxu0 0.0
    %6671 = vmatprep.subr.mxu0 0.0
    %6672 = vmatpush1.msra.mxu0 0.0
    %6673 = vmatprep.subr.mxu0 0.0
    %6674 = vmatpush1.msra.mxu0 0.0
    %6675 = vmatprep.subr.mxu0 0.0
    %6676 = vmatpush1.msra.mxu0 0.0
    %6677 = vmatprep.subr.mxu0 0.0
    %6678 = vmatpush1.msra.mxu0 0.0
    %6679 = vmatprep.subr.mxu0 0.0
    %6680 = vmatpush1.msra.mxu0 0.0
    %6681 = vmatprep.subr.mxu0 0.0
    %6682 = vmatpush1.msra.mxu0 0.0
    %6683 = vmatprep.subr.mxu0 0.0
    %6684 = vmatpush1.msra.mxu0 0.0
    %6685 = vmatprep.subr.mxu0 0.0
    %6686 = vmatpush1.msra.mxu0 0.0
    %6687 = vmatprep.subr.mxu0 0.0
    %6688 = vmatpush1.msra.mxu0 0.0
    %6689 = vmatprep.subr.mxu0 0.0
    %6690 = vmatpush1.msra.mxu0 0.0
    %6691 = vmatprep.subr.mxu0 0.0
    %6692 = vmatpush1.msra.mxu0 0.0
    %6693 = vmatprep.subr.mxu0 0.0
    %6694 = vmatpush1.msra.mxu0 0.0
    %6695 = vmatprep.subr.mxu0 0.0
    %6696 = vmatpush1.msra.mxu0 0.0
    %6697 = vmatprep.subr.mxu0 0.0
    %6698 = vmatpush1.msra.mxu0 0.0
    %6699 = vmatprep.subr.mxu0 0.0
    %6700 = vmatpush1.msra.mxu0 0.0
    %6701 = vmatprep.mubr.f32.mxu0 0.0
    %v6702 = vand.u32 %v6548, 4294901760
    %6703 = vmatmul.mubr.f32.gmra.mrb[0].mxu0 %v6702
    %v6704 = vpop.f32.mrb[0].mxu0
    %v6705 = vadd.f32 %v6624, %v6704
    %v6706 = vpop.f32.mrb[0].mxu0
    %6707 = vdwg.mxu0
    %6708 = vmatprep.subr.mxu0 0.0
    %v6709 = vand.u32 %v3704, 4294901760
    %v6710 = vsub.f32 %v3704, %v6709
    %6711 = vmatpush1.msra.mxu0 %v6710
    %6712 = vmatprep.subr.mxu0 0.0
    %v6713 = vand.u32 %v3772, 4294901760
    %v6714 = vsub.f32 %v3772, %v6713
    %6715 = vmatpush1.msra.mxu0 %v6714
    %6716 = vmatprep.subr.mxu0 0.0
    %6717 = vmatpush1.msra.mxu0 0.0
    %6718 = vmatprep.subr.mxu0 0.0
    %6719 = vmatpush1.msra.mxu0 0.0
    %6720 = vmatprep.subr.mxu0 0.0
    %6721 = vmatpush1.msra.mxu0 0.0
    %6722 = vmatprep.subr.mxu0 0.0
    %6723 = vmatpush1.msra.mxu0 0.0
    %6724 = vmatprep.subr.mxu0 0.0
    %6725 = vmatpush1.msra.mxu0 0.0
    %6726 = vmatprep.subr.mxu0 0.0
    %6727 = vmatpush1.msra.mxu0 0.0
    %6728 = vmatprep.subr.mxu0 0.0
    %6729 = vmatpush1.msra.mxu0 0.0
    %6730 = vmatprep.subr.mxu0 0.0
    %6731 = vmatpush1.msra.mxu0 0.0
    %6732 = vmatprep.subr.mxu0 0.0
    %6733 = vmatpush1.msra.mxu0 0.0
    %6734 = vmatprep.subr.mxu0 0.0
    %6735 = vmatpush1.msra.mxu0 0.0
    %6736 = vmatprep.subr.mxu0 0.0
    %6737 = vmatpush1.msra.mxu0 0.0
    %6738 = vmatprep.subr.mxu0 0.0
    %6739 = vmatpush1.msra.mxu0 0.0
    %6740 = vmatprep.subr.mxu0 0.0
    %6741 = vmatpush1.msra.mxu0 0.0
    %6742 = vmatprep.subr.mxu0 0.0
    %6743 = vmatpush1.msra.mxu0 0.0
    %6744 = vmatprep.subr.mxu0 0.0
    %6745 = vmatpush1.msra.mxu0 0.0
    %6746 = vmatprep.subr.mxu0 0.0
    %6747 = vmatpush1.msra.mxu0 0.0
    %6748 = vmatprep.subr.mxu0 0.0
    %6749 = vmatpush1.msra.mxu0 0.0
    %6750 = vmatprep.subr.mxu0 0.0
    %6751 = vmatpush1.msra.mxu0 0.0
    %6752 = vmatprep.subr.mxu0 0.0
    %6753 = vmatpush1.msra.mxu0 0.0
    %6754 = vmatprep.subr.mxu0 0.0
    %6755 = vmatpush1.msra.mxu0 0.0
    %6756 = vmatprep.subr.mxu0 0.0
    %6757 = vmatpush1.msra.mxu0 0.0
    %6758 = vmatprep.subr.mxu0 0.0
    %6759 = vmatpush1.msra.mxu0 0.0
    %6760 = vmatprep.subr.mxu0 0.0
    %6761 = vmatpush1.msra.mxu0 0.0
    %6762 = vmatprep.subr.mxu0 0.0
    %6763 = vmatpush1.msra.mxu0 0.0
    %6764 = vmatprep.subr.mxu0 0.0
    %6765 = vmatpush1.msra.mxu0 0.0
    %6766 = vmatprep.subr.mxu0 0.0
    %6767 = vmatpush1.msra.mxu0 0.0
    %6768 = vmatprep.subr.mxu0 0.0
    %6769 = vmatpush1.msra.mxu0 0.0
    %6770 = vmatprep.subr.mxu0 0.0
    %6771 = vmatpush1.msra.mxu0 0.0
    %6772 = vmatprep.subr.mxu0 0.0
    %6773 = vmatpush1.msra.mxu0 0.0
    %6774 = vmatprep.subr.mxu0 0.0
    %6775 = vmatpush1.msra.mxu0 0.0
    %6776 = vmatprep.mubr.f32.mxu0 0.0
    %v6777 = vand.u32 %v6548, 4294901760
    %v6778 = vsub.f32 %v6548, %v6777
    %6779 = vmatmul.mubr.f32.gmra.mrb[0].mxu0 %v6778
    %v6780 = vpop.f32.mrb[0].mxu0
    %v6781 = vadd.f32 %v6705, %v6780
    %v6782 = vpop.f32.mrb[0].mxu0
    %6783 = vdwg.mxu0
    %6784 = vmatprep.subr.mxu0 0.0
    %v6785 = vand.u32 %v3704, 4294901760
    %6786 = vmatpush1.msra.mxu0 %v6785
    %6787 = vmatprep.subr.mxu0 0.0
    %v6788 = vand.u32 %v3772, 4294901760
    %6789 = vmatpush1.msra.mxu0 %v6788
    %6790 = vmatprep.subr.mxu0 0.0
    %6791 = vmatpush1.msra.mxu0 0.0
    %6792 = vmatprep.subr.mxu0 0.0
    %6793 = vmatpush1.msra.mxu0 0.0
    %6794 = vmatprep.subr.mxu0 0.0
    %6795 = vmatpush1.msra.mxu0 0.0
    %6796 = vmatprep.subr.mxu0 0.0
    %6797 = vmatpush1.msra.mxu0 0.0
    %6798 = vmatprep.subr.mxu0 0.0
    %6799 = vmatpush1.msra.mxu0 0.0
    %6800 = vmatprep.subr.mxu0 0.0
    %6801 = vmatpush1.msra.mxu0 0.0
    %6802 = vmatprep.subr.mxu0 0.0
    %6803 = vmatpush1.msra.mxu0 0.0
    %6804 = vmatprep.subr.mxu0 0.0
    %6805 = vmatpush1.msra.mxu0 0.0
    %6806 = vmatprep.subr.mxu0 0.0
    %6807 = vmatpush1.msra.mxu0 0.0
    %6808 = vmatprep.subr.mxu0 0.0
    %6809 = vmatpush1.msra.mxu0 0.0
    %6810 = vmatprep.subr.mxu0 0.0
    %6811 = vmatpush1.msra.mxu0 0.0
    %6812 = vmatprep.subr.mxu0 0.0
    %6813 = vmatpush1.msra.mxu0 0.0
    %6814 = vmatprep.subr.mxu0 0.0
    %6815 = vmatpush1.msra.mxu0 0.0
    %6816 = vmatprep.subr.mxu0 0.0
    %6817 = vmatpush1.msra.mxu0 0.0
    %6818 = vmatprep.subr.mxu0 0.0
    %6819 = vmatpush1.msra.mxu0 0.0
    %6820 = vmatprep.subr.mxu0 0.0
    %6821 = vmatpush1.msra.mxu0 0.0
    %6822 = vmatprep.subr.mxu0 0.0
    %6823 = vmatpush1.msra.mxu0 0.0
    %6824 = vmatprep.subr.mxu0 0.0
    %6825 = vmatpush1.msra.mxu0 0.0
    %6826 = vmatprep.subr.mxu0 0.0
    %6827 = vmatpush1.msra.mxu0 0.0
    %6828 = vmatprep.subr.mxu0 0.0
    %6829 = vmatpush1.msra.mxu0 0.0
    %6830 = vmatprep.subr.mxu0 0.0
    %6831 = vmatpush1.msra.mxu0 0.0
    %6832 = vmatprep.subr.mxu0 0.0
    %6833 = vmatpush1.msra.mxu0 0.0
    %6834 = vmatprep.subr.mxu0 0.0
    %6835 = vmatpush1.msra.mxu0 0.0
    %6836 = vmatprep.subr.mxu0 0.0
    %6837 = vmatpush1.msra.mxu0 0.0
    %6838 = vmatprep.subr.mxu0 0.0
    %6839 = vmatpush1.msra.mxu0 0.0
    %6840 = vmatprep.subr.mxu0 0.0
    %6841 = vmatpush1.msra.mxu0 0.0
    %6842 = vmatprep.subr.mxu0 0.0
    %6843 = vmatpush1.msra.mxu0 0.0
    %6844 = vmatprep.subr.mxu0 0.0
    %6845 = vmatpush1.msra.mxu0 0.0
    %6846 = vmatprep.subr.mxu0 0.0
    %6847 = vmatpush1.msra.mxu0 0.0
    %6848 = vmatprep.subr.mxu0 0.0
    %6849 = vmatpush1.msra.mxu0 0.0
    %6850 = vmatprep.mubr.f32.mxu0 0.0
    %v6851 = vand.u32 %v6548, 4294901760
    %v6852 = vsub.f32 %v6548, %v6851
    %v6853 = vand.u32 %v6852, 4294901760
    %6854 = vmatmul.mubr.f32.gmra.mrb[0].mxu0 %v6853
    %v6855 = vpop.f32.mrb[0].mxu0
    %v6856 = vadd.f32 %v6781, %v6855
    %v6857 = vpop.f32.mrb[0].mxu0
    %6858 = vdwg.mxu0
    %6859 = vmatprep.subr.mxu0 0.0
    %v6860 = vand.u32 %v3704, 4294901760
    %v6861 = vsub.f32 %v3704, %v6860
    %v6862 = vand.u32 %v6861, 4294901760
    %6863 = vmatpush1.msra.mxu0 %v6862
    %6864 = vmatprep.subr.mxu0 0.0
    %v6865 = vand.u32 %v3772, 4294901760
    %v6866 = vsub.f32 %v3772, %v6865
    %v6867 = vand.u32 %v6866, 4294901760
    %6868 = vmatpush1.msra.mxu0 %v6867
    %6869 = vmatprep.subr.mxu0 0.0
    %6870 = vmatpush1.msra.mxu0 0.0
    %6871 = vmatprep.subr.mxu0 0.0
    %6872 = vmatpush1.msra.mxu0 0.0
    %6873 = vmatprep.subr.mxu0 0.0
    %6874 = vmatpush1.msra.mxu0 0.0
    %6875 = vmatprep.subr.mxu0 0.0
    %6876 = vmatpush1.msra.mxu0 0.0
    %6877 = vmatprep.subr.mxu0 0.0
    %6878 = vmatpush1.msra.mxu0 0.0
    %6879 = vmatprep.subr.mxu0 0.0
    %6880 = vmatpush1.msra.mxu0 0.0
    %6881 = vmatprep.subr.mxu0 0.0
    %6882 = vmatpush1.msra.mxu0 0.0
    %6883 = vmatprep.subr.mxu0 0.0
    %6884 = vmatpush1.msra.mxu0 0.0
    %6885 = vmatprep.subr.mxu0 0.0
    %6886 = vmatpush1.msra.mxu0 0.0
    %6887 = vmatprep.subr.mxu0 0.0
    %6888 = vmatpush1.msra.mxu0 0.0
    %6889 = vmatprep.subr.mxu0 0.0
    %6890 = vmatpush1.msra.mxu0 0.0
    %6891 = vmatprep.subr.mxu0 0.0
    %6892 = vmatpush1.msra.mxu0 0.0
    %6893 = vmatprep.subr.mxu0 0.0
    %6894 = vmatpush1.msra.mxu0 0.0
    %6895 = vmatprep.subr.mxu0 0.0
    %6896 = vmatpush1.msra.mxu0 0.0
    %6897 = vmatprep.subr.mxu0 0.0
    %6898 = vmatpush1.msra.mxu0 0.0
    %6899 = vmatprep.subr.mxu0 0.0
    %6900 = vmatpush1.msra.mxu0 0.0
    %6901 = vmatprep.subr.mxu0 0.0
    %6902 = vmatpush1.msra.mxu0 0.0
    %6903 = vmatprep.subr.mxu0 0.0
    %6904 = vmatpush1.msra.mxu0 0.0
    %6905 = vmatprep.subr.mxu0 0.0
    %6906 = vmatpush1.msra.mxu0 0.0
    %6907 = vmatprep.subr.mxu0 0.0
    %6908 = vmatpush1.msra.mxu0 0.0
    %6909 = vmatprep.subr.mxu0 0.0
    %6910 = vmatpush1.msra.mxu0 0.0
    %6911 = vmatprep.subr.mxu0 0.0
    %6912 = vmatpush1.msra.mxu0 0.0
    %6913 = vmatprep.subr.mxu0 0.0
    %6914 = vmatpush1.msra.mxu0 0.0
    %6915 = vmatprep.subr.mxu0 0.0
    %6916 = vmatpush1.msra.mxu0 0.0
    %6917 = vmatprep.subr.mxu0 0.0
    %6918 = vmatpush1.msra.mxu0 0.0
    %6919 = vmatprep.subr.mxu0 0.0
    %6920 = vmatpush1.msra.mxu0 0.0
    %6921 = vmatprep.subr.mxu0 0.0
    %6922 = vmatpush1.msra.mxu0 0.0
    %6923 = vmatprep.subr.mxu0 0.0
    %6924 = vmatpush1.msra.mxu0 0.0
    %6925 = vmatprep.subr.mxu0 0.0
    %6926 = vmatpush1.msra.mxu0 0.0
    %6927 = vmatprep.subr.mxu0 0.0
    %6928 = vmatpush1.msra.mxu0 0.0
    %6929 = vmatprep.mubr.f32.mxu0 0.0
    %v6930 = vand.u32 %v6548, 4294901760
    %6931 = vmatmul.mubr.f32.gmra.mrb[0].mxu0 %v6930
    %v6932 = vpop.f32.mrb[0].mxu0
    %v6933 = vadd.f32 %v6856, %v6932
    %v6934 = vpop.f32.mrb[0].mxu0
    %6935 = vdwg.mxu0
    %6936 = vmatprep.subr.mxu0 0.0
    %v6937 = vand.u32 %v3704, 4294901760
    %6938 = vmatpush1.msra.mxu0 %v6937
    %6939 = vmatprep.subr.mxu0 0.0
    %v6940 = vand.u32 %v3772, 4294901760
    %6941 = vmatpush1.msra.mxu0 %v6940
    %6942 = vmatprep.subr.mxu0 0.0
    %6943 = vmatpush1.msra.mxu0 0.0
    %6944 = vmatprep.subr.mxu0 0.0
    %6945 = vmatpush1.msra.mxu0 0.0
    %6946 = vmatprep.subr.mxu0 0.0
    %6947 = vmatpush1.msra.mxu0 0.0
    %6948 = vmatprep.subr.mxu0 0.0
    %6949 = vmatpush1.msra.mxu0 0.0
    %6950 = vmatprep.subr.mxu0 0.0
    %6951 = vmatpush1.msra.mxu0 0.0
    %6952 = vmatprep.subr.mxu0 0.0
    %6953 = vmatpush1.msra.mxu0 0.0
    %6954 = vmatprep.subr.mxu0 0.0
    %6955 = vmatpush1.msra.mxu0 0.0
    %6956 = vmatprep.subr.mxu0 0.0
    %6957 = vmatpush1.msra.mxu0 0.0
    %6958 = vmatprep.subr.mxu0 0.0
    %6959 = vmatpush1.msra.mxu0 0.0
    %6960 = vmatprep.subr.mxu0 0.0
    %6961 = vmatpush1.msra.mxu0 0.0
    %6962 = vmatprep.subr.mxu0 0.0
    %6963 = vmatpush1.msra.mxu0 0.0
    %6964 = vmatprep.subr.mxu0 0.0
    %6965 = vmatpush1.msra.mxu0 0.0
    %6966 = vmatprep.subr.mxu0 0.0
    %6967 = vmatpush1.msra.mxu0 0.0
    %6968 = vmatprep.subr.mxu0 0.0
    %6969 = vmatpush1.msra.mxu0 0.0
    %6970 = vmatprep.subr.mxu0 0.0
    %6971 = vmatpush1.msra.mxu0 0.0
    %6972 = vmatprep.subr.mxu0 0.0
    %6973 = vmatpush1.msra.mxu0 0.0
    %6974 = vmatprep.subr.mxu0 0.0
    %6975 = vmatpush1.msra.mxu0 0.0
    %6976 = vmatprep.subr.mxu0 0.0
    %6977 = vmatpush1.msra.mxu0 0.0
    %6978 = vmatprep.subr.mxu0 0.0
    %6979 = vmatpush1.msra.mxu0 0.0
    %6980 = vmatprep.subr.mxu0 0.0
    %6981 = vmatpush1.msra.mxu0 0.0
    %6982 = vmatprep.subr.mxu0 0.0
    %6983 = vmatpush1.msra.mxu0 0.0
    %6984 = vmatprep.subr.mxu0 0.0
    %6985 = vmatpush1.msra.mxu0 0.0
    %6986 = vmatprep.subr.mxu0 0.0
    %6987 = vmatpush1.msra.mxu0 0.0
    %6988 = vmatprep.subr.mxu0 0.0
    %6989 = vmatpush1.msra.mxu0 0.0
    %6990 = vmatprep.subr.mxu0 0.0
    %6991 = vmatpush1.msra.mxu0 0.0
    %6992 = vmatprep.subr.mxu0 0.0
    %6993 = vmatpush1.msra.mxu0 0.0
    %6994 = vmatprep.subr.mxu0 0.0
    %6995 = vmatpush1.msra.mxu0 0.0
    %6996 = vmatprep.subr.mxu0 0.0
    %6997 = vmatpush1.msra.mxu0 0.0
    %6998 = vmatprep.subr.mxu0 0.0
    %6999 = vmatpush1.msra.mxu0 0.0
    %7000 = vmatprep.subr.mxu0 0.0
    %7001 = vmatpush1.msra.mxu0 0.0
    %7002 = vmatprep.mubr.f32.mxu0 0.0
    %v7003 = vand.u32 %v6548, 4294901760
    %7004 = vmatmul.mubr.f32.gmra.mrb[0].mxu0 %v7003
    %v7005 = vpop.f32.mrb[0].mxu0
    %v7006 = vadd.f32 %v6933, %v7005
    %v7007 = vpop.f32.mrb[0].mxu0
    %7008 = vdwg.mxu0
    %v7010 = vsel %vm3774, %v969, 0
    %7012 = vmatprep.subr.mxu0 0.0
    %v7013 = vand.u32 %v3705, 4294901760
    %7014 = vmatpush1.msra.mxu0 %v7013
    %7015 = vmatprep.subr.mxu0 0.0
    %v7016 = vand.u32 %v3773, 4294901760
    %7017 = vmatpush1.msra.mxu0 %v7016
    %7018 = vmatprep.subr.mxu0 0.0
    %7019 = vmatpush1.msra.mxu0 0.0
    %7020 = vmatprep.subr.mxu0 0.0
    %7021 = vmatpush1.msra.mxu0 0.0
    %7022 = vmatprep.subr.mxu0 0.0
    %7023 = vmatpush1.msra.mxu0 0.0
    %7024 = vmatprep.subr.mxu0 0.0
    %7025 = vmatpush1.msra.mxu0 0.0
    %7026 = vmatprep.subr.mxu0 0.0
    %7027 = vmatpush1.msra.mxu0 0.0
    %7028 = vmatprep.subr.mxu0 0.0
    %7029 = vmatpush1.msra.mxu0 0.0
    %7030 = vmatprep.subr.mxu0 0.0
    %7031 = vmatpush1.msra.mxu0 0.0
    %7032 = vmatprep.subr.mxu0 0.0
    %7033 = vmatpush1.msra.mxu0 0.0
    %7034 = vmatprep.subr.mxu0 0.0
    %7035 = vmatpush1.msra.mxu0 0.0
    %7036 = vmatprep.subr.mxu0 0.0
    %7037 = vmatpush1.msra.mxu0 0.0
    %7038 = vmatprep.subr.mxu0 0.0
    %7039 = vmatpush1.msra.mxu0 0.0
    %7040 = vmatprep.subr.mxu0 0.0
    %7041 = vmatpush1.msra.mxu0 0.0
    %7042 = vmatprep.subr.mxu0 0.0
    %7043 = vmatpush1.msra.mxu0 0.0
    %7044 = vmatprep.subr.mxu0 0.0
    %7045 = vmatpush1.msra.mxu0 0.0
    %7046 = vmatprep.subr.mxu0 0.0
    %7047 = vmatpush1.msra.mxu0 0.0
    %7048 = vmatprep.subr.mxu0 0.0
    %7049 = vmatpush1.msra.mxu0 0.0
    %7050 = vmatprep.subr.mxu0 0.0
    %7051 = vmatpush1.msra.mxu0 0.0
    %7052 = vmatprep.subr.mxu0 0.0
    %7053 = vmatpush1.msra.mxu0 0.0
    %7054 = vmatprep.subr.mxu0 0.0
    %7055 = vmatpush1.msra.mxu0 0.0
    %7056 = vmatprep.subr.mxu0 0.0
    %7057 = vmatpush1.msra.mxu0 0.0
    %7058 = vmatprep.subr.mxu0 0.0
    %7059 = vmatpush1.msra.mxu0 0.0
    %7060 = vmatprep.subr.mxu0 0.0
    %7061 = vmatpush1.msra.mxu0 0.0
    %7062 = vmatprep.subr.mxu0 0.0
    %7063 = vmatpush1.msra.mxu0 0.0
    %7064 = vmatprep.subr.mxu0 0.0
    %7065 = vmatpush1.msra.mxu0 0.0
    %7066 = vmatprep.subr.mxu0 0.0
    %7067 = vmatpush1.msra.mxu0 0.0
    %7068 = vmatprep.subr.mxu0 0.0
    %7069 = vmatpush1.msra.mxu0 0.0
    %7070 = vmatprep.subr.mxu0 0.0
    %7071 = vmatpush1.msra.mxu0 0.0
    %7072 = vmatprep.subr.mxu0 0.0
    %7073 = vmatpush1.msra.mxu0 0.0
    %7074 = vmatprep.subr.mxu0 0.0
    %7075 = vmatpush1.msra.mxu0 0.0
    %7076 = vmatprep.subr.mxu0 0.0
    %7077 = vmatpush1.msra.mxu0 0.0
    %7078 = vmatprep.mubr.f32.mxu0 0.0
    %v7079 = vand.u32 %v7010, 4294901760
    %v7080 = vsub.f32 %v7010, %v7079
    %v7081 = vand.u32 %v7080, 4294901760
    %v7082 = vsub.f32 %v7080, %v7081
    %v7083 = vand.u32 %v7082, 4294901760
    %7084 = vmatmul.mubr.f32.gmra.mrb[0].mxu0 %v7083
    %v7085 = vpop.f32.mrb[0].mxu0
    %v7086 = vadd.f32 0.0, %v7085
    %v7087 = vpop.f32.mrb[0].mxu0
    %7088 = vdwg.mxu0
    %7089 = vmatprep.subr.mxu0 0.0
    %v7090 = vand.u32 %v3705, 4294901760
    %v7091 = vsub.f32 %v3705, %v7090
    %v7092 = vand.u32 %v7091, 4294901760
    %v7093 = vsub.f32 %v7091, %v7092
    %v7094 = vand.u32 %v7093, 4294901760
    %7095 = vmatpush1.msra.mxu0 %v7094
    %7096 = vmatprep.subr.mxu0 0.0
    %v7097 = vand.u32 %v3773, 4294901760
    %v7098 = vsub.f32 %v3773, %v7097
    %v7099 = vand.u32 %v7098, 4294901760
    %v7100 = vsub.f32 %v7098, %v7099
    %v7101 = vand.u32 %v7100, 4294901760
    %7102 = vmatpush1.msra.mxu0 %v7101
    %7103 = vmatprep.subr.mxu0 0.0
    %7104 = vmatpush1.msra.mxu0 0.0
    %7105 = vmatprep.subr.mxu0 0.0
    %7106 = vmatpush1.msra.mxu0 0.0
    %7107 = vmatprep.subr.mxu0 0.0
    %7108 = vmatpush1.msra.mxu0 0.0
    %7109 = vmatprep.subr.mxu0 0.0
    %7110 = vmatpush1.msra.mxu0 0.0
    %7111 = vmatprep.subr.mxu0 0.0
    %7112 = vmatpush1.msra.mxu0 0.0
    %7113 = vmatprep.subr.mxu0 0.0
    %7114 = vmatpush1.msra.mxu0 0.0
    %7115 = vmatprep.subr.mxu0 0.0
    %7116 = vmatpush1.msra.mxu0 0.0
    %7117 = vmatprep.subr.mxu0 0.0
    %7118 = vmatpush1.msra.mxu0 0.0
    %7119 = vmatprep.subr.mxu0 0.0
    %7120 = vmatpush1.msra.mxu0 0.0
    %7121 = vmatprep.subr.mxu0 0.0
    %7122 = vmatpush1.msra.mxu0 0.0
    %7123 = vmatprep.subr.mxu0 0.0
    %7124 = vmatpush1.msra.mxu0 0.0
    %7125 = vmatprep.subr.mxu0 0.0
    %7126 = vmatpush1.msra.mxu0 0.0
    %7127 = vmatprep.subr.mxu0 0.0
    %7128 = vmatpush1.msra.mxu0 0.0
    %7129 = vmatprep.subr.mxu0 0.0
    %7130 = vmatpush1.msra.mxu0 0.0
    %7131 = vmatprep.subr.mxu0 0.0
    %7132 = vmatpush1.msra.mxu0 0.0
    %7133 = vmatprep.subr.mxu0 0.0
    %7134 = vmatpush1.msra.mxu0 0.0
    %7135 = vmatprep.subr.mxu0 0.0
    %7136 = vmatpush1.msra.mxu0 0.0
    %7137 = vmatprep.subr.mxu0 0.0
    %7138 = vmatpush1.msra.mxu0 0.0
    %7139 = vmatprep.subr.mxu0 0.0
    %7140 = vmatpush1.msra.mxu0 0.0
    %7141 = vmatprep.subr.mxu0 0.0
    %7142 = vmatpush1.msra.mxu0 0.0
    %7143 = vmatprep.subr.mxu0 0.0
    %7144 = vmatpush1.msra.mxu0 0.0
    %7145 = vmatprep.subr.mxu0 0.0
    %7146 = vmatpush1.msra.mxu0 0.0
    %7147 = vmatprep.subr.mxu0 0.0
    %7148 = vmatpush1.msra.mxu0 0.0
    %7149 = vmatprep.subr.mxu0 0.0
    %7150 = vmatpush1.msra.mxu0 0.0
    %7151 = vmatprep.subr.mxu0 0.0
    %7152 = vmatpush1.msra.mxu0 0.0
    %7153 = vmatprep.subr.mxu0 0.0
    %7154 = vmatpush1.msra.mxu0 0.0
    %7155 = vmatprep.subr.mxu0 0.0
    %7156 = vmatpush1.msra.mxu0 0.0
    %7157 = vmatprep.subr.mxu0 0.0
    %7158 = vmatpush1.msra.mxu0 0.0
    %7159 = vmatprep.subr.mxu0 0.0
    %7160 = vmatpush1.msra.mxu0 0.0
    %7161 = vmatprep.subr.mxu0 0.0
    %7162 = vmatpush1.msra.mxu0 0.0
    %7163 = vmatprep.mubr.f32.mxu0 0.0
    %v7164 = vand.u32 %v7010, 4294901760
    %7165 = vmatmul.mubr.f32.gmra.mrb[0].mxu0 %v7164
    %v7166 = vpop.f32.mrb[0].mxu0
    %v7167 = vadd.f32 %v7086, %v7166
    %v7168 = vpop.f32.mrb[0].mxu0
    %7169 = vdwg.mxu0
    %7170 = vmatprep.subr.mxu0 0.0
    %v7171 = vand.u32 %v3705, 4294901760
    %v7172 = vsub.f32 %v3705, %v7171
    %7173 = vmatpush1.msra.mxu0 %v7172
    %7174 = vmatprep.subr.mxu0 0.0
    %v7175 = vand.u32 %v3773, 4294901760
    %v7176 = vsub.f32 %v3773, %v7175
    %7177 = vmatpush1.msra.mxu0 %v7176
    %7178 = vmatprep.subr.mxu0 0.0
    %7179 = vmatpush1.msra.mxu0 0.0
    %7180 = vmatprep.subr.mxu0 0.0
    %7181 = vmatpush1.msra.mxu0 0.0
    %7182 = vmatprep.subr.mxu0 0.0
    %7183 = vmatpush1.msra.mxu0 0.0
    %7184 = vmatprep.subr.mxu0 0.0
    %7185 = vmatpush1.msra.mxu0 0.0
    %7186 = vmatprep.subr.mxu0 0.0
    %7187 = vmatpush1.msra.mxu0 0.0
    %7188 = vmatprep.subr.mxu0 0.0
    %7189 = vmatpush1.msra.mxu0 0.0
    %7190 = vmatprep.subr.mxu0 0.0
    %7191 = vmatpush1.msra.mxu0 0.0
    %7192 = vmatprep.subr.mxu0 0.0
    %7193 = vmatpush1.msra.mxu0 0.0
    %7194 = vmatprep.subr.mxu0 0.0
    %7195 = vmatpush1.msra.mxu0 0.0
    %7196 = vmatprep.subr.mxu0 0.0
    %7197 = vmatpush1.msra.mxu0 0.0
    %7198 = vmatprep.subr.mxu0 0.0
    %7199 = vmatpush1.msra.mxu0 0.0
    %7200 = vmatprep.subr.mxu0 0.0
    %7201 = vmatpush1.msra.mxu0 0.0
    %7202 = vmatprep.subr.mxu0 0.0
    %7203 = vmatpush1.msra.mxu0 0.0
    %7204 = vmatprep.subr.mxu0 0.0
    %7205 = vmatpush1.msra.mxu0 0.0
    %7206 = vmatprep.subr.mxu0 0.0
    %7207 = vmatpush1.msra.mxu0 0.0
    %7208 = vmatprep.subr.mxu0 0.0
    %7209 = vmatpush1.msra.mxu0 0.0
    %7210 = vmatprep.subr.mxu0 0.0
    %7211 = vmatpush1.msra.mxu0 0.0
    %7212 = vmatprep.subr.mxu0 0.0
    %7213 = vmatpush1.msra.mxu0 0.0
    %7214 = vmatprep.subr.mxu0 0.0
    %7215 = vmatpush1.msra.mxu0 0.0
    %7216 = vmatprep.subr.mxu0 0.0
    %7217 = vmatpush1.msra.mxu0 0.0
    %7218 = vmatprep.subr.mxu0 0.0
    %7219 = vmatpush1.msra.mxu0 0.0
    %7220 = vmatprep.subr.mxu0 0.0
    %7221 = vmatpush1.msra.mxu0 0.0
    %7222 = vmatprep.subr.mxu0 0.0
    %7223 = vmatpush1.msra.mxu0 0.0
    %7224 = vmatprep.subr.mxu0 0.0
    %7225 = vmatpush1.msra.mxu0 0.0
    %7226 = vmatprep.subr.mxu0 0.0
    %7227 = vmatpush1.msra.mxu0 0.0
    %7228 = vmatprep.subr.mxu0 0.0
    %7229 = vmatpush1.msra.mxu0 0.0
    %7230 = vmatprep.subr.mxu0 0.0
    %7231 = vmatpush1.msra.mxu0 0.0
    %7232 = vmatprep.subr.mxu0 0.0
    %7233 = vmatpush1.msra.mxu0 0.0
    %7234 = vmatprep.subr.mxu0 0.0
    %7235 = vmatpush1.msra.mxu0 0.0
    %7236 = vmatprep.subr.mxu0 0.0
    %7237 = vmatpush1.msra.mxu0 0.0
    %7238 = vmatprep.mubr.f32.mxu0 0.0
    %v7239 = vand.u32 %v7010, 4294901760
    %v7240 = vsub.f32 %v7010, %v7239
    %7241 = vmatmul.mubr.f32.gmra.mrb[0].mxu0 %v7240
    %v7242 = vpop.f32.mrb[0].mxu0
    %v7243 = vadd.f32 %v7167, %v7242
    %v7244 = vpop.f32.mrb[0].mxu0
    %7245 = vdwg.mxu0
    %7246 = vmatprep.subr.mxu0 0.0
    %v7247 = vand.u32 %v3705, 4294901760
    %7248 = vmatpush1.msra.mxu0 %v7247
    %7249 = vmatprep.subr.mxu0 0.0
    %v7250 = vand.u32 %v3773, 4294901760
    %7251 = vmatpush1.msra.mxu0 %v7250
    %7252 = vmatprep.subr.mxu0 0.0
    %7253 = vmatpush1.msra.mxu0 0.0
    %7254 = vmatprep.subr.mxu0 0.0
    %7255 = vmatpush1.msra.mxu0 0.0
    %7256 = vmatprep.subr.mxu0 0.0
    %7257 = vmatpush1.msra.mxu0 0.0
    %7258 = vmatprep.subr.mxu0 0.0
    %7259 = vmatpush1.msra.mxu0 0.0
    %7260 = vmatprep.subr.mxu0 0.0
    %7261 = vmatpush1.msra.mxu0 0.0
    %7262 = vmatprep.subr.mxu0 0.0
    %7263 = vmatpush1.msra.mxu0 0.0
    %7264 = vmatprep.subr.mxu0 0.0
    %7265 = vmatpush1.msra.mxu0 0.0
    %7266 = vmatprep.subr.mxu0 0.0
    %7267 = vmatpush1.msra.mxu0 0.0
    %7268 = vmatprep.subr.mxu0 0.0
    %7269 = vmatpush1.msra.mxu0 0.0
    %7270 = vmatprep.subr.mxu0 0.0
    %7271 = vmatpush1.msra.mxu0 0.0
    %7272 = vmatprep.subr.mxu0 0.0
    %7273 = vmatpush1.msra.mxu0 0.0
    %7274 = vmatprep.subr.mxu0 0.0
    %7275 = vmatpush1.msra.mxu0 0.0
    %7276 = vmatprep.subr.mxu0 0.0
    %7277 = vmatpush1.msra.mxu0 0.0
    %7278 = vmatprep.subr.mxu0 0.0
    %7279 = vmatpush1.msra.mxu0 0.0
    %7280 = vmatprep.subr.mxu0 0.0
    %7281 = vmatpush1.msra.mxu0 0.0
    %7282 = vmatprep.subr.mxu0 0.0
    %7283 = vmatpush1.msra.mxu0 0.0
    %7284 = vmatprep.subr.mxu0 0.0
    %7285 = vmatpush1.msra.mxu0 0.0
    %7286 = vmatprep.subr.mxu0 0.0
    %7287 = vmatpush1.msra.mxu0 0.0
    %7288 = vmatprep.subr.mxu0 0.0
    %7289 = vmatpush1.msra.mxu0 0.0
    %7290 = vmatprep.subr.mxu0 0.0
    %7291 = vmatpush1.msra.mxu0 0.0
    %7292 = vmatprep.subr.mxu0 0.0
    %7293 = vmatpush1.msra.mxu0 0.0
    %7294 = vmatprep.subr.mxu0 0.0
    %7295 = vmatpush1.msra.mxu0 0.0
    %7296 = vmatprep.subr.mxu0 0.0
    %7297 = vmatpush1.msra.mxu0 0.0
    %7298 = vmatprep.subr.mxu0 0.0
    %7299 = vmatpush1.msra.mxu0 0.0
    %7300 = vmatprep.subr.mxu0 0.0
    %7301 = vmatpush1.msra.mxu0 0.0
    %7302 = vmatprep.subr.mxu0 0.0
    %7303 = vmatpush1.msra.mxu0 0.0
    %7304 = vmatprep.subr.mxu0 0.0
    %7305 = vmatpush1.msra.mxu0 0.0
    %7306 = vmatprep.subr.mxu0 0.0
    %7307 = vmatpush1.msra.mxu0 0.0
    %7308 = vmatprep.subr.mxu0 0.0
    %7309 = vmatpush1.msra.mxu0 0.0
    %7310 = vmatprep.subr.mxu0 0.0
    %7311 = vmatpush1.msra.mxu0 0.0
    %7312 = vmatprep.mubr.f32.mxu0 0.0
    %v7313 = vand.u32 %v7010, 4294901760
    %v7314 = vsub.f32 %v7010, %v7313
    %v7315 = vand.u32 %v7314, 4294901760
    %7316 = vmatmul.mubr.f32.gmra.mrb[0].mxu0 %v7315
    %v7317 = vpop.f32.mrb[0].mxu0
    %v7318 = vadd.f32 %v7243, %v7317
    %v7319 = vpop.f32.mrb[0].mxu0
    %7320 = vdwg.mxu0
    %7321 = vmatprep.subr.mxu0 0.0
    %v7322 = vand.u32 %v3705, 4294901760
    %v7323 = vsub.f32 %v3705, %v7322
    %v7324 = vand.u32 %v7323, 4294901760
    %7325 = vmatpush1.msra.mxu0 %v7324
    %7326 = vmatprep.subr.mxu0 0.0
    %v7327 = vand.u32 %v3773, 4294901760
    %v7328 = vsub.f32 %v3773, %v7327
    %v7329 = vand.u32 %v7328, 4294901760
    %7330 = vmatpush1.msra.mxu0 %v7329
    %7331 = vmatprep.subr.mxu0 0.0
    %7332 = vmatpush1.msra.mxu0 0.0
    %7333 = vmatprep.subr.mxu0 0.0
    %7334 = vmatpush1.msra.mxu0 0.0
    %7335 = vmatprep.subr.mxu0 0.0
    %7336 = vmatpush1.msra.mxu0 0.0
    %7337 = vmatprep.subr.mxu0 0.0
    %7338 = vmatpush1.msra.mxu0 0.0
    %7339 = vmatprep.subr.mxu0 0.0
    %7340 = vmatpush1.msra.mxu0 0.0
    %7341 = vmatprep.subr.mxu0 0.0
    %7342 = vmatpush1.msra.mxu0 0.0
    %7343 = vmatprep.subr.mxu0 0.0
    %7344 = vmatpush1.msra.mxu0 0.0
    %7345 = vmatprep.subr.mxu0 0.0
    %7346 = vmatpush1.msra.mxu0 0.0
    %7347 = vmatprep.subr.mxu0 0.0
    %7348 = vmatpush1.msra.mxu0 0.0
    %7349 = vmatprep.subr.mxu0 0.0
    %7350 = vmatpush1.msra.mxu0 0.0
    %7351 = vmatprep.subr.mxu0 0.0
    %7352 = vmatpush1.msra.mxu0 0.0
    %7353 = vmatprep.subr.mxu0 0.0
    %7354 = vmatpush1.msra.mxu0 0.0
    %7355 = vmatprep.subr.mxu0 0.0
    %7356 = vmatpush1.msra.mxu0 0.0
    %7357 = vmatprep.subr.mxu0 0.0
    %7358 = vmatpush1.msra.mxu0 0.0
    %7359 = vmatprep.subr.mxu0 0.0
    %7360 = vmatpush1.msra.mxu0 0.0
    %7361 = vmatprep.subr.mxu0 0.0
    %7362 = vmatpush1.msra.mxu0 0.0
    %7363 = vmatprep.subr.mxu0 0.0
    %7364 = vmatpush1.msra.mxu0 0.0
    %7365 = vmatprep.subr.mxu0 0.0
    %7366 = vmatpush1.msra.mxu0 0.0
    %7367 = vmatprep.subr.mxu0 0.0
    %7368 = vmatpush1.msra.mxu0 0.0
    %7369 = vmatprep.subr.mxu0 0.0
    %7370 = vmatpush1.msra.mxu0 0.0
    %7371 = vmatprep.subr.mxu0 0.0
    %7372 = vmatpush1.msra.mxu0 0.0
    %7373 = vmatprep.subr.mxu0 0.0
    %7374 = vmatpush1.msra.mxu0 0.0
    %7375 = vmatprep.subr.mxu0 0.0
    %7376 = vmatpush1.msra.mxu0 0.0
    %7377 = vmatprep.subr.mxu0 0.0
    %7378 = vmatpush1.msra.mxu0 0.0
    %7379 = vmatprep.subr.mxu0 0.0
    %7380 = vmatpush1.msra.mxu0 0.0
    %7381 = vmatprep.subr.mxu0 0.0
    %7382 = vmatpush1.msra.mxu0 0.0
    %7383 = vmatprep.subr.mxu0 0.0
    %7384 = vmatpush1.msra.mxu0 0.0
    %7385 = vmatprep.subr.mxu0 0.0
    %7386 = vmatpush1.msra.mxu0 0.0
    %7387 = vmatprep.subr.mxu0 0.0
    %7388 = vmatpush1.msra.mxu0 0.0
    %7389 = vmatprep.subr.mxu0 0.0
    %7390 = vmatpush1.msra.mxu0 0.0
    %7391 = vmatprep.mubr.f32.mxu0 0.0
    %v7392 = vand.u32 %v7010, 4294901760
    %7393 = vmatmul.mubr.f32.gmra.mrb[0].mxu0 %v7392
    %v7394 = vpop.f32.mrb[0].mxu0
    %v7395 = vadd.f32 %v7318, %v7394
    %v7396 = vpop.f32.mrb[0].mxu0
    %7397 = vdwg.mxu0
    %7398 = vmatprep.subr.mxu0 0.0
    %v7399 = vand.u32 %v3705, 4294901760
    %7400 = vmatpush1.msra.mxu0 %v7399
    %7401 = vmatprep.subr.mxu0 0.0
    %v7402 = vand.u32 %v3773, 4294901760
    %7403 = vmatpush1.msra.mxu0 %v7402
    %7404 = vmatprep.subr.mxu0 0.0
    %7405 = vmatpush1.msra.mxu0 0.0
    %7406 = vmatprep.subr.mxu0 0.0
    %7407 = vmatpush1.msra.mxu0 0.0
    %7408 = vmatprep.subr.mxu0 0.0
    %7409 = vmatpush1.msra.mxu0 0.0
    %7410 = vmatprep.subr.mxu0 0.0
    %7411 = vmatpush1.msra.mxu0 0.0
    %7412 = vmatprep.subr.mxu0 0.0
    %7413 = vmatpush1.msra.mxu0 0.0
    %7414 = vmatprep.subr.mxu0 0.0
    %7415 = vmatpush1.msra.mxu0 0.0
    %7416 = vmatprep.subr.mxu0 0.0
    %7417 = vmatpush1.msra.mxu0 0.0
    %7418 = vmatprep.subr.mxu0 0.0
    %7419 = vmatpush1.msra.mxu0 0.0
    %7420 = vmatprep.subr.mxu0 0.0
    %7421 = vmatpush1.msra.mxu0 0.0
    %7422 = vmatprep.subr.mxu0 0.0
    %7423 = vmatpush1.msra.mxu0 0.0
    %7424 = vmatprep.subr.mxu0 0.0
    %7425 = vmatpush1.msra.mxu0 0.0
    %7426 = vmatprep.subr.mxu0 0.0
    %7427 = vmatpush1.msra.mxu0 0.0
    %7428 = vmatprep.subr.mxu0 0.0
    %7429 = vmatpush1.msra.mxu0 0.0
    %7430 = vmatprep.subr.mxu0 0.0
    %7431 = vmatpush1.msra.mxu0 0.0
    %7432 = vmatprep.subr.mxu0 0.0
    %7433 = vmatpush1.msra.mxu0 0.0
    %7434 = vmatprep.subr.mxu0 0.0
    %7435 = vmatpush1.msra.mxu0 0.0
    %7436 = vmatprep.subr.mxu0 0.0
    %7437 = vmatpush1.msra.mxu0 0.0
    %7438 = vmatprep.subr.mxu0 0.0
    %7439 = vmatpush1.msra.mxu0 0.0
    %7440 = vmatprep.subr.mxu0 0.0
    %7441 = vmatpush1.msra.mxu0 0.0
    %7442 = vmatprep.subr.mxu0 0.0
    %7443 = vmatpush1.msra.mxu0 0.0
    %7444 = vmatprep.subr.mxu0 0.0
    %7445 = vmatpush1.msra.mxu0 0.0
    %7446 = vmatprep.subr.mxu0 0.0
    %7447 = vmatpush1.msra.mxu0 0.0
    %7448 = vmatprep.subr.mxu0 0.0
    %7449 = vmatpush1.msra.mxu0 0.0
    %7450 = vmatprep.subr.mxu0 0.0
    %7451 = vmatpush1.msra.mxu0 0.0
    %7452 = vmatprep.subr.mxu0 0.0
    %7453 = vmatpush1.msra.mxu0 0.0
    %7454 = vmatprep.subr.mxu0 0.0
    %7455 = vmatpush1.msra.mxu0 0.0
    %7456 = vmatprep.subr.mxu0 0.0
    %7457 = vmatpush1.msra.mxu0 0.0
    %7458 = vmatprep.subr.mxu0 0.0
    %7459 = vmatpush1.msra.mxu0 0.0
    %7460 = vmatprep.subr.mxu0 0.0
    %7461 = vmatpush1.msra.mxu0 0.0
    %7462 = vmatprep.subr.mxu0 0.0
    %7463 = vmatpush1.msra.mxu0 0.0
    %7464 = vmatprep.mubr.f32.mxu0 0.0
    %v7465 = vand.u32 %v7010, 4294901760
    %7466 = vmatmul.mubr.f32.gmra.mrb[0].mxu0 %v7465
    %v7467 = vpop.f32.mrb[0].mxu0
    %v7468 = vadd.f32 %v7395, %v7467
    %v7469 = vpop.f32.mrb[0].mxu0
    %7470 = vdwg.mxu0
    %vm7471 = vcmask 64512
    %v7472 = vsel %vm7471, %v4234, -inf
    %7473 = vmax.xlane.f32.xlu0 %v7472
    %v7474 = vpop.xlane.xlu0 %7473
    %v7475 = vsel %vm7471, %v4696, -inf
    %7476 = vmax.xlane.f32.xlu0 %v7475
    %v7477 = vpop.xlane.xlu0 %7476
    %v7478 = vsel %vm7471, %v5158, -inf
    %7479 = vmax.xlane.f32.xlu0 %v7478
    %v7480 = vpop.xlane.xlu0 %7479
    %v7481 = vsel %vm7471, %v5620, -inf
    %7482 = vmax.xlane.f32.xlu0 %v7481
    %v7483 = vpop.xlane.xlu0 %7482
    %v7484 = vsel %vm7471, %v6082, -inf
    %7485 = vmax.xlane.f32.xlu0 %v7484
    %v7486 = vpop.xlane.xlu0 %7485
    %v7487 = vsel %vm7471, %v6544, -inf
    %7488 = vmax.xlane.f32.xlu0 %v7487
    %v7489 = vpop.xlane.xlu0 %7488
    %v7490 = vsel %vm7471, %v7006, -inf
    %7491 = vmax.xlane.f32.xlu0 %v7490
    %v7492 = vpop.xlane.xlu0 %7491
    %v7493 = vsel %vm7471, %v7468, -inf
    %7494 = vmax.xlane.f32.xlu0 %v7493
    %v7495 = vpop.xlane.xlu0 %7494
    %v7496 = vsub.f32 %v4234, %v7474
    %v7497 = vsub.f32 %v4696, %v7477
    %v7498 = vsub.f32 %v5158, %v7480
    %v7499 = vsub.f32 %v5620, %v7483
    %v7500 = vsub.f32 %v6082, %v7486
    %v7501 = vsub.f32 %v6544, %v7489
    %v7502 = vsub.f32 %v7006, %v7492
    %v7503 = vsub.f32 %v7468, %v7495
    %v7504 = vmul.f32 %v7496, 1.442695
    %v7505 = vpow.pop %v7504
    %v7506 = vmul.f32 %v7497, 1.442695
    %v7507 = vpow.pop %v7506
    %v7508 = vmul.f32 %v7498, 1.442695
    %v7509 = vpow.pop %v7508
    %v7510 = vmul.f32 %v7499, 1.442695
    %v7511 = vpow.pop %v7510
    %v7512 = vmul.f32 %v7500, 1.442695
    %v7513 = vpow.pop %v7512
    %v7514 = vmul.f32 %v7501, 1.442695
    %v7515 = vpow.pop %v7514
    %v7516 = vmul.f32 %v7502, 1.442695
    %v7517 = vpow.pop %v7516
    %v7518 = vmul.f32 %v7503, 1.442695
    %v7519 = vpow.pop %v7518
    %v7520 = vsel %vm7471, %v7505, 0.0
    %7521 = vadd.xlane.f32.xlu0 %v7520
    %v7522 = vpop.xlane.xlu0 %7521
    %v7523 = vsel %vm7471, %v7507, 0.0
    %7524 = vadd.xlane.f32.xlu0 %v7523
    %v7525 = vpop.xlane.xlu0 %7524
    %v7526 = vsel %vm7471, %v7509, 0.0
    %7527 = vadd.xlane.f32.xlu0 %v7526
    %v7528 = vpop.xlane.xlu0 %7527
    %v7529 = vsel %vm7471, %v7511, 0.0
    %7530 = vadd.xlane.f32.xlu0 %v7529
    %v7531 = vpop.xlane.xlu0 %7530
    %v7532 = vsel %vm7471, %v7513, 0.0
    %7533 = vadd.xlane.f32.xlu0 %v7532
    %v7534 = vpop.xlane.xlu0 %7533
    %v7535 = vsel %vm7471, %v7515, 0.0
    %7536 = vadd.xlane.f32.xlu0 %v7535
    %v7537 = vpop.xlane.xlu0 %7536
    %v7538 = vsel %vm7471, %v7517, 0.0
    %7539 = vadd.xlane.f32.xlu0 %v7538
    %v7540 = vpop.xlane.xlu0 %7539
    %v7541 = vsel %vm7471, %v7519, 0.0
    %7542 = vadd.xlane.f32.xlu0 %v7541
    %v7543 = vpop.xlane.xlu0 %7542
    %v7544 = vrcp.pop %v7522
    %v7545 = vmul.f32 %v7505, %v7544
    %v7546 = vrcp.pop %v7525
    %v7547 = vmul.f32 %v7507, %v7546
    %v7548 = vrcp.pop %v7528
    %v7549 = vmul.f32 %v7509, %v7548
    %v7550 = vrcp.pop %v7531
    %v7551 = vmul.f32 %v7511, %v7550
    %v7552 = vrcp.pop %v7534
    %v7553 = vmul.f32 %v7513, %v7552
    %v7554 = vrcp.pop %v7537
    %v7555 = vmul.f32 %v7515, %v7554
    %v7556 = vrcp.pop %v7540
    %v7557 = vmul.f32 %v7517, %v7556
    %v7558 = vrcp.pop %v7543
    %v7559 = vmul.f32 %v7519, %v7558
    %v7561 = vsel %vm7471, %v7545, 0
    %7563 = vmatprep.subr.mxu0 0.0
    %v7564 = vand.u32 %v1190, 4294901760
    %7565 = vmatpush1.msra.mxu0 %v7564
    %7566 = vmatprep.subr.mxu0 0.0
    %7567 = vmatpush1.msra.mxu0 0.0
    %7568 = vmatprep.subr.mxu0 0.0
    %7569 = vmatpush1.msra.mxu0 0.0
    %7570 = vmatprep.subr.mxu0 0.0
    %7571 = vmatpush1.msra.mxu0 0.0
    %7572 = vmatprep.subr.mxu0 0.0
    %7573 = vmatpush1.msra.mxu0 0.0
    %7574 = vmatprep.subr.mxu0 0.0
    %7575 = vmatpush1.msra.mxu0 0.0
    %7576 = vmatprep.subr.mxu0 0.0
    %7577 = vmatpush1.msra.mxu0 0.0
    %7578 = vmatprep.subr.mxu0 0.0
    %7579 = vmatpush1.msra.mxu0 0.0
    %7580 = vmatprep.subr.mxu0 0.0
    %7581 = vmatpush1.msra.mxu0 0.0
    %7582 = vmatprep.subr.mxu0 0.0
    %7583 = vmatpush1.msra.mxu0 0.0
    %7584 = vmatprep.subr.mxu0 0.0
    %7585 = vmatpush1.msra.mxu0 0.0
    %7586 = vmatprep.subr.mxu0 0.0
    %7587 = vmatpush1.msra.mxu0 0.0
    %7588 = vmatprep.subr.mxu0 0.0
    %7589 = vmatpush1.msra.mxu0 0.0
    %7590 = vmatprep.subr.mxu0 0.0
    %7591 = vmatpush1.msra.mxu0 0.0
    %7592 = vmatprep.subr.mxu0 0.0
    %7593 = vmatpush1.msra.mxu0 0.0
    %7594 = vmatprep.subr.mxu0 0.0
    %7595 = vmatpush1.msra.mxu0 0.0
    %7596 = vmatprep.subr.mxu0 0.0
    %7597 = vmatpush1.msra.mxu0 0.0
    %7598 = vmatprep.subr.mxu0 0.0
    %7599 = vmatpush1.msra.mxu0 0.0
    %7600 = vmatprep.subr.mxu0 0.0
    %7601 = vmatpush1.msra.mxu0 0.0
    %7602 = vmatprep.subr.mxu0 0.0
    %7603 = vmatpush1.msra.mxu0 0.0
    %7604 = vmatprep.subr.mxu0 0.0
    %7605 = vmatpush1.msra.mxu0 0.0
    %7606 = vmatprep.subr.mxu0 0.0
    %7607 = vmatpush1.msra.mxu0 0.0
    %7608 = vmatprep.subr.mxu0 0.0
    %7609 = vmatpush1.msra.mxu0 0.0
    %7610 = vmatprep.subr.mxu0 0.0
    %7611 = vmatpush1.msra.mxu0 0.0
    %7612 = vmatprep.subr.mxu0 0.0
    %7613 = vmatpush1.msra.mxu0 0.0
    %7614 = vmatprep.subr.mxu0 0.0
    %7615 = vmatpush1.msra.mxu0 0.0
    %7616 = vmatprep.subr.mxu0 0.0
    %7617 = vmatpush1.msra.mxu0 0.0
    %7618 = vmatprep.subr.mxu0 0.0
    %7619 = vmatpush1.msra.mxu0 0.0
    %7620 = vmatprep.subr.mxu0 0.0
    %7621 = vmatpush1.msra.mxu0 0.0
    %7622 = vmatprep.subr.mxu0 0.0
    %7623 = vmatpush1.msra.mxu0 0.0
    %7624 = vmatprep.subr.mxu0 0.0
    %7625 = vmatpush1.msra.mxu0 0.0
    %7626 = vmatprep.subr.mxu0 0.0
    %7627 = vmatpush1.msra.mxu0 0.0
    %7628 = vmatprep.mubr.f32.mxu0 0.0
    %v7629 = vand.u32 %v7561, 4294901760
    %v7630 = vsub.f32 %v7561, %v7629
    %v7631 = vand.u32 %v7630, 4294901760
    %v7632 = vsub.f32 %v7630, %v7631
    %v7633 = vand.u32 %v7632, 4294901760
    %7634 = vmatmul.mubr.f32.gmra.mrb[0].mxu0 %v7633
    %v7635 = vpop.f32.mrb[0].mxu0
    %v7636 = vadd.f32 0.0, %v7635
    %v7637 = vpop.f32.mrb[0].mxu0
    %7638 = vdwg.mxu0
    %7639 = vmatprep.subr.mxu0 0.0
    %v7640 = vand.u32 %v1190, 4294901760
    %v7641 = vsub.f32 %v1190, %v7640
    %v7642 = vand.u32 %v7641, 4294901760
    %v7643 = vsub.f32 %v7641, %v7642
    %v7644 = vand.u32 %v7643, 4294901760
    %7645 = vmatpush1.msra.mxu0 %v7644
    %7646 = vmatprep.subr.mxu0 0.0
    %7647 = vmatpush1.msra.mxu0 0.0
    %7648 = vmatprep.subr.mxu0 0.0
    %7649 = vmatpush1.msra.mxu0 0.0
    %7650 = vmatprep.subr.mxu0 0.0
    %7651 = vmatpush1.msra.mxu0 0.0
    %7652 = vmatprep.subr.mxu0 0.0
    %7653 = vmatpush1.msra.mxu0 0.0
    %7654 = vmatprep.subr.mxu0 0.0
    %7655 = vmatpush1.msra.mxu0 0.0
    %7656 = vmatprep.subr.mxu0 0.0
    %7657 = vmatpush1.msra.mxu0 0.0
    %7658 = vmatprep.subr.mxu0 0.0
    %7659 = vmatpush1.msra.mxu0 0.0
    %7660 = vmatprep.subr.mxu0 0.0
    %7661 = vmatpush1.msra.mxu0 0.0
    %7662 = vmatprep.subr.mxu0 0.0
    %7663 = vmatpush1.msra.mxu0 0.0
    %7664 = vmatprep.subr.mxu0 0.0
    %7665 = vmatpush1.msra.mxu0 0.0
    %7666 = vmatprep.subr.mxu0 0.0
    %7667 = vmatpush1.msra.mxu0 0.0
    %7668 = vmatprep.subr.mxu0 0.0
    %7669 = vmatpush1.msra.mxu0 0.0
    %7670 = vmatprep.subr.mxu0 0.0
    %7671 = vmatpush1.msra.mxu0 0.0
    %7672 = vmatprep.subr.mxu0 0.0
    %7673 = vmatpush1.msra.mxu0 0.0
    %7674 = vmatprep.subr.mxu0 0.0
    %7675 = vmatpush1.msra.mxu0 0.0
    %7676 = vmatprep.subr.mxu0 0.0
    %7677 = vmatpush1.msra.mxu0 0.0
    %7678 = vmatprep.subr.mxu0 0.0
    %7679 = vmatpush1.msra.mxu0 0.0
    %7680 = vmatprep.subr.mxu0 0.0
    %7681 = vmatpush1.msra.mxu0 0.0
    %7682 = vmatprep.subr.mxu0 0.0
    %7683 = vmatpush1.msra.mxu0 0.0
    %7684 = vmatprep.subr.mxu0 0.0
    %7685 = vmatpush1.msra.mxu0 0.0
    %7686 = vmatprep.subr.mxu0 0.0
    %7687 = vmatpush1.msra.mxu0 0.0
    %7688 = vmatprep.subr.mxu0 0.0
    %7689 = vmatpush1.msra.mxu0 0.0
    %7690 = vmatprep.subr.mxu0 0.0
    %7691 = vmatpush1.msra.mxu0 0.0
    %7692 = vmatprep.subr.mxu0 0.0
    %7693 = vmatpush1.msra.mxu0 0.0
    %7694 = vmatprep.subr.mxu0 0.0
    %7695 = vmatpush1.msra.mxu0 0.0
    %7696 = vmatprep.subr.mxu0 0.0
    %7697 = vmatpush1.msra.mxu0 0.0
    %7698 = vmatprep.subr.mxu0 0.0
    %7699 = vmatpush1.msra.mxu0 0.0
    %7700 = vmatprep.subr.mxu0 0.0
    %7701 = vmatpush1.msra.mxu0 0.0
    %7702 = vmatprep.subr.mxu0 0.0
    %7703 = vmatpush1.msra.mxu0 0.0
    %7704 = vmatprep.subr.mxu0 0.0
    %7705 = vmatpush1.msra.mxu0 0.0
    %7706 = vmatprep.subr.mxu0 0.0
    %7707 = vmatpush1.msra.mxu0 0.0
    %7708 = vmatprep.mubr.f32.mxu0 0.0
    %v7709 = vand.u32 %v7561, 4294901760
    %7710 = vmatmul.mubr.f32.gmra.mrb[0].mxu0 %v7709
    %v7711 = vpop.f32.mrb[0].mxu0
    %v7712 = vadd.f32 %v7636, %v7711
    %v7713 = vpop.f32.mrb[0].mxu0
    %7714 = vdwg.mxu0
    %7715 = vmatprep.subr.mxu0 0.0
    %v7716 = vand.u32 %v1190, 4294901760
    %v7717 = vsub.f32 %v1190, %v7716
    %7718 = vmatpush1.msra.mxu0 %v7717
    %7719 = vmatprep.subr.mxu0 0.0
    %7720 = vmatpush1.msra.mxu0 0.0
    %7721 = vmatprep.subr.mxu0 0.0
    %7722 = vmatpush1.msra.mxu0 0.0
    %7723 = vmatprep.subr.mxu0 0.0
    %7724 = vmatpush1.msra.mxu0 0.0
    %7725 = vmatprep.subr.mxu0 0.0
    %7726 = vmatpush1.msra.mxu0 0.0
    %7727 = vmatprep.subr.mxu0 0.0
    %7728 = vmatpush1.msra.mxu0 0.0
    %7729 = vmatprep.subr.mxu0 0.0
    %7730 = vmatpush1.msra.mxu0 0.0
    %7731 = vmatprep.subr.mxu0 0.0
    %7732 = vmatpush1.msra.mxu0 0.0
    %7733 = vmatprep.subr.mxu0 0.0
    %7734 = vmatpush1.msra.mxu0 0.0
    %7735 = vmatprep.subr.mxu0 0.0
    %7736 = vmatpush1.msra.mxu0 0.0
    %7737 = vmatprep.subr.mxu0 0.0
    %7738 = vmatpush1.msra.mxu0 0.0
    %7739 = vmatprep.subr.mxu0 0.0
    %7740 = vmatpush1.msra.mxu0 0.0
    %7741 = vmatprep.subr.mxu0 0.0
    %7742 = vmatpush1.msra.mxu0 0.0
    %7743 = vmatprep.subr.mxu0 0.0
    %7744 = vmatpush1.msra.mxu0 0.0
    %7745 = vmatprep.subr.mxu0 0.0
    %7746 = vmatpush1.msra.mxu0 0.0
    %7747 = vmatprep.subr.mxu0 0.0
    %7748 = vmatpush1.msra.mxu0 0.0
    %7749 = vmatprep.subr.mxu0 0.0
    %7750 = vmatpush1.msra.mxu0 0.0
    %7751 = vmatprep.subr.mxu0 0.0
    %7752 = vmatpush1.msra.mxu0 0.0
    %7753 = vmatprep.subr.mxu0 0.0
    %7754 = vmatpush1.msra.mxu0 0.0
    %7755 = vmatprep.subr.mxu0 0.0
    %7756 = vmatpush1.msra.mxu0 0.0
    %7757 = vmatprep.subr.mxu0 0.0
    %7758 = vmatpush1.msra.mxu0 0.0
    %7759 = vmatprep.subr.mxu0 0.0
    %7760 = vmatpush1.msra.mxu0 0.0
    %7761 = vmatprep.subr.mxu0 0.0
    %7762 = vmatpush1.msra.mxu0 0.0
    %7763 = vmatprep.subr.mxu0 0.0
    %7764 = vmatpush1.msra.mxu0 0.0
    %7765 = vmatprep.subr.mxu0 0.0
    %7766 = vmatpush1.msra.mxu0 0.0
    %7767 = vmatprep.subr.mxu0 0.0
    %7768 = vmatpush1.msra.mxu0 0.0
    %7769 = vmatprep.subr.mxu0 0.0
    %7770 = vmatpush1.msra.mxu0 0.0
    %7771 = vmatprep.subr.mxu0 0.0
    %7772 = vmatpush1.msra.mxu0 0.0
    %7773 = vmatprep.subr.mxu0 0.0
    %7774 = vmatpush1.msra.mxu0 0.0
    %7775 = vmatprep.subr.mxu0 0.0
    %7776 = vmatpush1.msra.mxu0 0.0
    %7777 = vmatprep.subr.mxu0 0.0
    %7778 = vmatpush1.msra.mxu0 0.0
    %7779 = vmatprep.subr.mxu0 0.0
    %7780 = vmatpush1.msra.mxu0 0.0
    %7781 = vmatprep.mubr.f32.mxu0 0.0
    %v7782 = vand.u32 %v7561, 4294901760
    %v7783 = vsub.f32 %v7561, %v7782
    %7784 = vmatmul.mubr.f32.gmra.mrb[0].mxu0 %v7783
    %v7785 = vpop.f32.mrb[0].mxu0
    %v7786 = vadd.f32 %v7712, %v7785
    %v7787 = vpop.f32.mrb[0].mxu0
    %7788 = vdwg.mxu0
    %7789 = vmatprep.subr.mxu0 0.0
    %v7790 = vand.u32 %v1190, 4294901760
    %7791 = vmatpush1.msra.mxu0 %v7790
    %7792 = vmatprep.subr.mxu0 0.0
    %7793 = vmatpush1.msra.mxu0 0.0
    %7794 = vmatprep.subr.mxu0 0.0
    %7795 = vmatpush1.msra.mxu0 0.0
    %7796 = vmatprep.subr.mxu0 0.0
    %7797 = vmatpush1.msra.mxu0 0.0
    %7798 = vmatprep.subr.mxu0 0.0
    %7799 = vmatpush1.msra.mxu0 0.0
    %7800 = vmatprep.subr.mxu0 0.0
    %7801 = vmatpush1.msra.mxu0 0.0
    %7802 = vmatprep.subr.mxu0 0.0
    %7803 = vmatpush1.msra.mxu0 0.0
    %7804 = vmatprep.subr.mxu0 0.0
    %7805 = vmatpush1.msra.mxu0 0.0
    %7806 = vmatprep.subr.mxu0 0.0
    %7807 = vmatpush1.msra.mxu0 0.0
    %7808 = vmatprep.subr.mxu0 0.0
    %7809 = vmatpush1.msra.mxu0 0.0
    %7810 = vmatprep.subr.mxu0 0.0
    %7811 = vmatpush1.msra.mxu0 0.0
    %7812 = vmatprep.subr.mxu0 0.0
    %7813 = vmatpush1.msra.mxu0 0.0
    %7814 = vmatprep.subr.mxu0 0.0
    %7815 = vmatpush1.msra.mxu0 0.0
    %7816 = vmatprep.subr.mxu0 0.0
    %7817 = vmatpush1.msra.mxu0 0.0
    %7818 = vmatprep.subr.mxu0 0.0
    %7819 = vmatpush1.msra.mxu0 0.0
    %7820 = vmatprep.subr.mxu0 0.0
    %7821 = vmatpush1.msra.mxu0 0.0
    %7822 = vmatprep.subr.mxu0 0.0
    %7823 = vmatpush1.msra.mxu0 0.0
    %7824 = vmatprep.subr.mxu0 0.0
    %7825 = vmatpush1.msra.mxu0 0.0
    %7826 = vmatprep.subr.mxu0 0.0
    %7827 = vmatpush1.msra.mxu0 0.0
    %7828 = vmatprep.subr.mxu0 0.0
    %7829 = vmatpush1.msra.mxu0 0.0
    %7830 = vmatprep.subr.mxu0 0.0
    %7831 = vmatpush1.msra.mxu0 0.0
    %7832 = vmatprep.subr.mxu0 0.0
    %7833 = vmatpush1.msra.mxu0 0.0
    %7834 = vmatprep.subr.mxu0 0.0
    %7835 = vmatpush1.msra.mxu0 0.0
    %7836 = vmatprep.subr.mxu0 0.0
    %7837 = vmatpush1.msra.mxu0 0.0
    %7838 = vmatprep.subr.mxu0 0.0
    %7839 = vmatpush1.msra.mxu0 0.0
    %7840 = vmatprep.subr.mxu0 0.0
    %7841 = vmatpush1.msra.mxu0 0.0
    %7842 = vmatprep.subr.mxu0 0.0
    %7843 = vmatpush1.msra.mxu0 0.0
    %7844 = vmatprep.subr.mxu0 0.0
    %7845 = vmatpush1.msra.mxu0 0.0
    %7846 = vmatprep.subr.mxu0 0.0
    %7847 = vmatpush1.msra.mxu0 0.0
    %7848 = vmatprep.subr.mxu0 0.0
    %7849 = vmatpush1.msra.mxu0 0.0
    %7850 = vmatprep.subr.mxu0 0.0
    %7851 = vmatpush1.msra.mxu0 0.0
    %7852 = vmatprep.subr.mxu0 0.0
    %7853 = vmatpush1.msra.mxu0 0.0
    %7854 = vmatprep.mubr.f32.mxu0 0.0
    %v7855 = vand.u32 %v7561, 4294901760
    %v7856 = vsub.f32 %v7561, %v7855
    %v7857 = vand.u32 %v7856, 4294901760
    %7858 = vmatmul.mubr.f32.gmra.mrb[0].mxu0 %v7857
    %v7859 = vpop.f32.mrb[0].mxu0
    %v7860 = vadd.f32 %v7786, %v7859
    %v7861 = vpop.f32.mrb[0].mxu0
    %7862 = vdwg.mxu0
    %7863 = vmatprep.subr.mxu0 0.0
    %v7864 = vand.u32 %v1190, 4294901760
    %v7865 = vsub.f32 %v1190, %v7864
    %v7866 = vand.u32 %v7865, 4294901760
    %7867 = vmatpush1.msra.mxu0 %v7866
    %7868 = vmatprep.subr.mxu0 0.0
    %7869 = vmatpush1.msra.mxu0 0.0
    %7870 = vmatprep.subr.mxu0 0.0
    %7871 = vmatpush1.msra.mxu0 0.0
    %7872 = vmatprep.subr.mxu0 0.0
    %7873 = vmatpush1.msra.mxu0 0.0
    %7874 = vmatprep.subr.mxu0 0.0
    %7875 = vmatpush1.msra.mxu0 0.0
    %7876 = vmatprep.subr.mxu0 0.0
    %7877 = vmatpush1.msra.mxu0 0.0
    %7878 = vmatprep.subr.mxu0 0.0
    %7879 = vmatpush1.msra.mxu0 0.0
    %7880 = vmatprep.subr.mxu0 0.0
    %7881 = vmatpush1.msra.mxu0 0.0
    %7882 = vmatprep.subr.mxu0 0.0
    %7883 = vmatpush1.msra.mxu0 0.0
    %7884 = vmatprep.subr.mxu0 0.0
    %7885 = vmatpush1.msra.mxu0 0.0
    %7886 = vmatprep.subr.mxu0 0.0
    %7887 = vmatpush1.msra.mxu0 0.0
    %7888 = vmatprep.subr.mxu0 0.0
    %7889 = vmatpush1.msra.mxu0 0.0
    %7890 = vmatprep.subr.mxu0 0.0
    %7891 = vmatpush1.msra.mxu0 0.0
    %7892 = vmatprep.subr.mxu0 0.0
    %7893 = vmatpush1.msra.mxu0 0.0
    %7894 = vmatprep.subr.mxu0 0.0
    %7895 = vmatpush1.msra.mxu0 0.0
    %7896 = vmatprep.subr.mxu0 0.0
    %7897 = vmatpush1.msra.mxu0 0.0
    %7898 = vmatprep.subr.mxu0 0.0
    %7899 = vmatpush1.msra.mxu0 0.0
    %7900 = vmatprep.subr.mxu0 0.0
    %7901 = vmatpush1.msra.mxu0 0.0
    %7902 = vmatprep.subr.mxu0 0.0
    %7903 = vmatpush1.msra.mxu0 0.0
    %7904 = vmatprep.subr.mxu0 0.0
    %7905 = vmatpush1.msra.mxu0 0.0
    %7906 = vmatprep.subr.mxu0 0.0
    %7907 = vmatpush1.msra.mxu0 0.0
    %7908 = vmatprep.subr.mxu0 0.0
    %7909 = vmatpush1.msra.mxu0 0.0
    %7910 = vmatprep.subr.mxu0 0.0
    %7911 = vmatpush1.msra.mxu0 0.0
    %7912 = vmatprep.subr.mxu0 0.0
    %7913 = vmatpush1.msra.mxu0 0.0
    %7914 = vmatprep.subr.mxu0 0.0
    %7915 = vmatpush1.msra.mxu0 0.0
    %7916 = vmatprep.subr.mxu0 0.0
    %7917 = vmatpush1.msra.mxu0 0.0
    %7918 = vmatprep.subr.mxu0 0.0
    %7919 = vmatpush1.msra.mxu0 0.0
    %7920 = vmatprep.subr.mxu0 0.0
    %7921 = vmatpush1.msra.mxu0 0.0
    %7922 = vmatprep.subr.mxu0 0.0
    %7923 = vmatpush1.msra.mxu0 0.0
    %7924 = vmatprep.subr.mxu0 0.0
    %7925 = vmatpush1.msra.mxu0 0.0
    %7926 = vmatprep.subr.mxu0 0.0
    %7927 = vmatpush1.msra.mxu0 0.0
    %7928 = vmatprep.subr.mxu0 0.0
    %7929 = vmatpush1.msra.mxu0 0.0
    %7930 = vmatprep.mubr.f32.mxu0 0.0
    %v7931 = vand.u32 %v7561, 4294901760
    %7932 = vmatmul.mubr.f32.gmra.mrb[0].mxu0 %v7931
    %v7933 = vpop.f32.mrb[0].mxu0
    %v7934 = vadd.f32 %v7860, %v7933
    %v7935 = vpop.f32.mrb[0].mxu0
    %7936 = vdwg.mxu0
    %7937 = vmatprep.subr.mxu0 0.0
    %v7938 = vand.u32 %v1190, 4294901760
    %7939 = vmatpush1.msra.mxu0 %v7938
    %7940 = vmatprep.subr.mxu0 0.0
    %7941 = vmatpush1.msra.mxu0 0.0
    %7942 = vmatprep.subr.mxu0 0.0
    %7943 = vmatpush1.msra.mxu0 0.0
    %7944 = vmatprep.subr.mxu0 0.0
    %7945 = vmatpush1.msra.mxu0 0.0
    %7946 = vmatprep.subr.mxu0 0.0
    %7947 = vmatpush1.msra.mxu0 0.0
    %7948 = vmatprep.subr.mxu0 0.0
    %7949 = vmatpush1.msra.mxu0 0.0
    %7950 = vmatprep.subr.mxu0 0.0
    %7951 = vmatpush1.msra.mxu0 0.0
    %7952 = vmatprep.subr.mxu0 0.0
    %7953 = vmatpush1.msra.mxu0 0.0
    %7954 = vmatprep.subr.mxu0 0.0
    %7955 = vmatpush1.msra.mxu0 0.0
    %7956 = vmatprep.subr.mxu0 0.0
    %7957 = vmatpush1.msra.mxu0 0.0
    %7958 = vmatprep.subr.mxu0 0.0
    %7959 = vmatpush1.msra.mxu0 0.0
    %7960 = vmatprep.subr.mxu0 0.0
    %7961 = vmatpush1.msra.mxu0 0.0
    %7962 = vmatprep.subr.mxu0 0.0
    %7963 = vmatpush1.msra.mxu0 0.0
    %7964 = vmatprep.subr.mxu0 0.0
    %7965 = vmatpush1.msra.mxu0 0.0
    %7966 = vmatprep.subr.mxu0 0.0
    %7967 = vmatpush1.msra.mxu0 0.0
    %7968 = vmatprep.subr.mxu0 0.0
    %7969 = vmatpush1.msra.mxu0 0.0
    %7970 = vmatprep.subr.mxu0 0.0
    %7971 = vmatpush1.msra.mxu0 0.0
    %7972 = vmatprep.subr.mxu0 0.0
    %7973 = vmatpush1.msra.mxu0 0.0
    %7974 = vmatprep.subr.mxu0 0.0
    %7975 = vmatpush1.msra.mxu0 0.0
    %7976 = vmatprep.subr.mxu0 0.0
    %7977 = vmatpush1.msra.mxu0 0.0
    %7978 = vmatprep.subr.mxu0 0.0
    %7979 = vmatpush1.msra.mxu0 0.0
    %7980 = vmatprep.subr.mxu0 0.0
    %7981 = vmatpush1.msra.mxu0 0.0
    %7982 = vmatprep.subr.mxu0 0.0
    %7983 = vmatpush1.msra.mxu0 0.0
    %7984 = vmatprep.subr.mxu0 0.0
    %7985 = vmatpush1.msra.mxu0 0.0
    %7986 = vmatprep.subr.mxu0 0.0
    %7987 = vmatpush1.msra.mxu0 0.0
    %7988 = vmatprep.subr.mxu0 0.0
    %7989 = vmatpush1.msra.mxu0 0.0
    %7990 = vmatprep.subr.mxu0 0.0
    %7991 = vmatpush1.msra.mxu0 0.0
    %7992 = vmatprep.subr.mxu0 0.0
    %7993 = vmatpush1.msra.mxu0 0.0
    %7994 = vmatprep.subr.mxu0 0.0
    %7995 = vmatpush1.msra.mxu0 0.0
    %7996 = vmatprep.subr.mxu0 0.0
    %7997 = vmatpush1.msra.mxu0 0.0
    %7998 = vmatprep.subr.mxu0 0.0
    %7999 = vmatpush1.msra.mxu0 0.0
    %8000 = vmatprep.subr.mxu0 0.0
    %8001 = vmatpush1.msra.mxu0 0.0
    %8002 = vmatprep.mubr.f32.mxu0 0.0
    %v8003 = vand.u32 %v7561, 4294901760
    %8004 = vmatmul.mubr.f32.gmra.mrb[0].mxu0 %v8003
    %v8005 = vpop.f32.mrb[0].mxu0
    %v8006 = vadd.f32 %v7934, %v8005
    %v8007 = vpop.f32.mrb[0].mxu0
    %8008 = vdwg.mxu0
    %v8010 = vsel %vm7471, %v7547, 0
    %8012 = vmatprep.subr.mxu0 0.0
    %v8013 = vand.u32 %v1191, 4294901760
    %8014 = vmatpush1.msra.mxu0 %v8013
    %8015 = vmatprep.subr.mxu0 0.0
    %8016 = vmatpush1.msra.mxu0 0.0
    %8017 = vmatprep.subr.mxu0 0.0
    %8018 = vmatpush1.msra.mxu0 0.0
    %8019 = vmatprep.subr.mxu0 0.0
    %8020 = vmatpush1.msra.mxu0 0.0
    %8021 = vmatprep.subr.mxu0 0.0
    %8022 = vmatpush1.msra.mxu0 0.0
    %8023 = vmatprep.subr.mxu0 0.0
    %8024 = vmatpush1.msra.mxu0 0.0
    %8025 = vmatprep.subr.mxu0 0.0
    %8026 = vmatpush1.msra.mxu0 0.0
    %8027 = vmatprep.subr.mxu0 0.0
    %8028 = vmatpush1.msra.mxu0 0.0
    %8029 = vmatprep.subr.mxu0 0.0
    %8030 = vmatpush1.msra.mxu0 0.0
    %8031 = vmatprep.subr.mxu0 0.0
    %8032 = vmatpush1.msra.mxu0 0.0
    %8033 = vmatprep.subr.mxu0 0.0
    %8034 = vmatpush1.msra.mxu0 0.0
    %8035 = vmatprep.subr.mxu0 0.0
    %8036 = vmatpush1.msra.mxu0 0.0
    %8037 = vmatprep.subr.mxu0 0.0
    %8038 = vmatpush1.msra.mxu0 0.0
    %8039 = vmatprep.subr.mxu0 0.0
    %8040 = vmatpush1.msra.mxu0 0.0
    %8041 = vmatprep.subr.mxu0 0.0
    %8042 = vmatpush1.msra.mxu0 0.0
    %8043 = vmatprep.subr.mxu0 0.0
    %8044 = vmatpush1.msra.mxu0 0.0
    %8045 = vmatprep.subr.mxu0 0.0
    %8046 = vmatpush1.msra.mxu0 0.0
    %8047 = vmatprep.subr.mxu0 0.0
    %8048 = vmatpush1.msra.mxu0 0.0
    %8049 = vmatprep.subr.mxu0 0.0
    %8050 = vmatpush1.msra.mxu0 0.0
    %8051 = vmatprep.subr.mxu0 0.0
    %8052 = vmatpush1.msra.mxu0 0.0
    %8053 = vmatprep.subr.mxu0 0.0
    %8054 = vmatpush1.msra.mxu0 0.0
    %8055 = vmatprep.subr.mxu0 0.0
    %8056 = vmatpush1.msra.mxu0 0.0
    %8057 = vmatprep.subr.mxu0 0.0
    %8058 = vmatpush1.msra.mxu0 0.0
    %8059 = vmatprep.subr.mxu0 0.0
    %8060 = vmatpush1.msra.mxu0 0.0
    %8061 = vmatprep.subr.mxu0 0.0
    %8062 = vmatpush1.msra.mxu0 0.0
    %8063 = vmatprep.subr.mxu0 0.0
    %8064 = vmatpush1.msra.mxu0 0.0
    %8065 = vmatprep.subr.mxu0 0.0
    %8066 = vmatpush1.msra.mxu0 0.0
    %8067 = vmatprep.subr.mxu0 0.0
    %8068 = vmatpush1.msra.mxu0 0.0
    %8069 = vmatprep.subr.mxu0 0.0
    %8070 = vmatpush1.msra.mxu0 0.0
    %8071 = vmatprep.subr.mxu0 0.0
    %8072 = vmatpush1.msra.mxu0 0.0
    %8073 = vmatprep.subr.mxu0 0.0
    %8074 = vmatpush1.msra.mxu0 0.0
    %8075 = vmatprep.subr.mxu0 0.0
    %8076 = vmatpush1.msra.mxu0 0.0
    %8077 = vmatprep.mubr.f32.mxu0 0.0
    %v8078 = vand.u32 %v8010, 4294901760
    %v8079 = vsub.f32 %v8010, %v8078
    %v8080 = vand.u32 %v8079, 4294901760
    %v8081 = vsub.f32 %v8079, %v8080
    %v8082 = vand.u32 %v8081, 4294901760
    %8083 = vmatmul.mubr.f32.gmra.mrb[0].mxu0 %v8082
    %v8084 = vpop.f32.mrb[0].mxu0
    %v8085 = vadd.f32 0.0, %v8084
    %v8086 = vpop.f32.mrb[0].mxu0
    %8087 = vdwg.mxu0
    %8088 = vmatprep.subr.mxu0 0.0
    %v8089 = vand.u32 %v1191, 4294901760
    %v8090 = vsub.f32 %v1191, %v8089
    %v8091 = vand.u32 %v8090, 4294901760
    %v8092 = vsub.f32 %v8090, %v8091
    %v8093 = vand.u32 %v8092, 4294901760
    %8094 = vmatpush1.msra.mxu0 %v8093
    %8095 = vmatprep.subr.mxu0 0.0
    %8096 = vmatpush1.msra.mxu0 0.0
    %8097 = vmatprep.subr.mxu0 0.0
    %8098 = vmatpush1.msra.mxu0 0.0
    %8099 = vmatprep.subr.mxu0 0.0
    %8100 = vmatpush1.msra.mxu0 0.0
    %8101 = vmatprep.subr.mxu0 0.0
    %8102 = vmatpush1.msra.mxu0 0.0
    %8103 = vmatprep.subr.mxu0 0.0
    %8104 = vmatpush1.msra.mxu0 0.0
    %8105 = vmatprep.subr.mxu0 0.0
    %8106 = vmatpush1.msra.mxu0 0.0
    %8107 = vmatprep.subr.mxu0 0.0
    %8108 = vmatpush1.msra.mxu0 0.0
    %8109 = vmatprep.subr.mxu0 0.0
    %8110 = vmatpush1.msra.mxu0 0.0
    %8111 = vmatprep.subr.mxu0 0.0
    %8112 = vmatpush1.msra.mxu0 0.0
    %8113 = vmatprep.subr.mxu0 0.0
    %8114 = vmatpush1.msra.mxu0 0.0
    %8115 = vmatprep.subr.mxu0 0.0
    %8116 = vmatpush1.msra.mxu0 0.0
    %8117 = vmatprep.subr.mxu0 0.0
    %8118 = vmatpush1.msra.mxu0 0.0
    %8119 = vmatprep.subr.mxu0 0.0
    %8120 = vmatpush1.msra.mxu0 0.0
    %8121 = vmatprep.subr.mxu0 0.0
    %8122 = vmatpush1.msra.mxu0 0.0
    %8123 = vmatprep.subr.mxu0 0.0
    %8124 = vmatpush1.msra.mxu0 0.0
    %8125 = vmatprep.subr.mxu0 0.0
    %8126 = vmatpush1.msra.mxu0 0.0
    %8127 = vmatprep.subr.mxu0 0.0
    %8128 = vmatpush1.msra.mxu0 0.0
    %8129 = vmatprep.subr.mxu0 0.0
    %8130 = vmatpush1.msra.mxu0 0.0
    %8131 = vmatprep.subr.mxu0 0.0
    %8132 = vmatpush1.msra.mxu0 0.0
    %8133 = vmatprep.subr.mxu0 0.0
    %8134 = vmatpush1.msra.mxu0 0.0
    %8135 = vmatprep.subr.mxu0 0.0
    %8136 = vmatpush1.msra.mxu0 0.0
    %8137 = vmatprep.subr.mxu0 0.0
    %8138 = vmatpush1.msra.mxu0 0.0
    %8139 = vmatprep.subr.mxu0 0.0
    %8140 = vmatpush1.msra.mxu0 0.0
    %8141 = vmatprep.subr.mxu0 0.0
    %8142 = vmatpush1.msra.mxu0 0.0
    %8143 = vmatprep.subr.mxu0 0.0
    %8144 = vmatpush1.msra.mxu0 0.0
    %8145 = vmatprep.subr.mxu0 0.0
    %8146 = vmatpush1.msra.mxu0 0.0
    %8147 = vmatprep.subr.mxu0 0.0
    %8148 = vmatpush1.msra.mxu0 0.0
    %8149 = vmatprep.subr.mxu0 0.0
    %8150 = vmatpush1.msra.mxu0 0.0
    %8151 = vmatprep.subr.mxu0 0.0
    %8152 = vmatpush1.msra.mxu0 0.0
    %8153 = vmatprep.subr.mxu0 0.0
    %8154 = vmatpush1.msra.mxu0 0.0
    %8155 = vmatprep.subr.mxu0 0.0
    %8156 = vmatpush1.msra.mxu0 0.0
    %8157 = vmatprep.mubr.f32.mxu0 0.0
    %v8158 = vand.u32 %v8010, 4294901760
    %8159 = vmatmul.mubr.f32.gmra.mrb[0].mxu0 %v8158
    %v8160 = vpop.f32.mrb[0].mxu0
    %v8161 = vadd.f32 %v8085, %v8160
    %v8162 = vpop.f32.mrb[0].mxu0
    %8163 = vdwg.mxu0
    %8164 = vmatprep.subr.mxu0 0.0
    %v8165 = vand.u32 %v1191, 4294901760
    %v8166 = vsub.f32 %v1191, %v8165
    %8167 = vmatpush1.msra.mxu0 %v8166
    %8168 = vmatprep.subr.mxu0 0.0
    %8169 = vmatpush1.msra.mxu0 0.0
    %8170 = vmatprep.subr.mxu0 0.0
    %8171 = vmatpush1.msra.mxu0 0.0
    %8172 = vmatprep.subr.mxu0 0.0
    %8173 = vmatpush1.msra.mxu0 0.0
    %8174 = vmatprep.subr.mxu0 0.0
    %8175 = vmatpush1.msra.mxu0 0.0
    %8176 = vmatprep.subr.mxu0 0.0
    %8177 = vmatpush1.msra.mxu0 0.0
    %8178 = vmatprep.subr.mxu0 0.0
    %8179 = vmatpush1.msra.mxu0 0.0
    %8180 = vmatprep.subr.mxu0 0.0
    %8181 = vmatpush1.msra.mxu0 0.0
    %8182 = vmatprep.subr.mxu0 0.0
    %8183 = vmatpush1.msra.mxu0 0.0
    %8184 = vmatprep.subr.mxu0 0.0
    %8185 = vmatpush1.msra.mxu0 0.0
    %8186 = vmatprep.subr.mxu0 0.0
    %8187 = vmatpush1.msra.mxu0 0.0
    %8188 = vmatprep.subr.mxu0 0.0
    %8189 = vmatpush1.msra.mxu0 0.0
    %8190 = vmatprep.subr.mxu0 0.0
    %8191 = vmatpush1.msra.mxu0 0.0
    %8192 = vmatprep.subr.mxu0 0.0
    %8193 = vmatpush1.msra.mxu0 0.0
    %8194 = vmatprep.subr.mxu0 0.0
    %8195 = vmatpush1.msra.mxu0 0.0
    %8196 = vmatprep.subr.mxu0 0.0
    %8197 = vmatpush1.msra.mxu0 0.0
    %8198 = vmatprep.subr.mxu0 0.0
    %8199 = vmatpush1.msra.mxu0 0.0
    %8200 = vmatprep.subr.mxu0 0.0
    %8201 = vmatpush1.msra.mxu0 0.0
    %8202 = vmatprep.subr.mxu0 0.0
    %8203 = vmatpush1.msra.mxu0 0.0
    %8204 = vmatprep.subr.mxu0 0.0
    %8205 = vmatpush1.msra.mxu0 0.0
    %8206 = vmatprep.subr.mxu0 0.0
    %8207 = vmatpush1.msra.mxu0 0.0
    %8208 = vmatprep.subr.mxu0 0.0
    %8209 = vmatpush1.msra.mxu0 0.0
    %8210 = vmatprep.subr.mxu0 0.0
    %8211 = vmatpush1.msra.mxu0 0.0
    %8212 = vmatprep.subr.mxu0 0.0
    %8213 = vmatpush1.msra.mxu0 0.0
    %8214 = vmatprep.subr.mxu0 0.0
    %8215 = vmatpush1.msra.mxu0 0.0
    %8216 = vmatprep.subr.mxu0 0.0
    %8217 = vmatpush1.msra.mxu0 0.0
    %8218 = vmatprep.subr.mxu0 0.0
    %8219 = vmatpush1.msra.mxu0 0.0
    %8220 = vmatprep.subr.mxu0 0.0
    %8221 = vmatpush1.msra.mxu0 0.0
    %8222 = vmatprep.subr.mxu0 0.0
    %8223 = vmatpush1.msra.mxu0 0.0
    %8224 = vmatprep.subr.mxu0 0.0
    %8225 = vmatpush1.msra.mxu0 0.0
    %8226 = vmatprep.subr.mxu0 0.0
    %8227 = vmatpush1.msra.mxu0 0.0
    %8228 = vmatprep.subr.mxu0 0.0
    %8229 = vmatpush1.msra.mxu0 0.0
    %8230 = vmatprep.mubr.f32.mxu0 0.0
    %v8231 = vand.u32 %v8010, 4294901760
    %v8232 = vsub.f32 %v8010, %v8231
    %8233 = vmatmul.mubr.f32.gmra.mrb[0].mxu0 %v8232
    %v8234 = vpop.f32.mrb[0].mxu0
    %v8235 = vadd.f32 %v8161, %v8234
    %v8236 = vpop.f32.mrb[0].mxu0
    %8237 = vdwg.mxu0
    %8238 = vmatprep.subr.mxu0 0.0
    %v8239 = vand.u32 %v1191, 4294901760
    %8240 = vmatpush1.msra.mxu0 %v8239
    %8241 = vmatprep.subr.mxu0 0.0
    %8242 = vmatpush1.msra.mxu0 0.0
    %8243 = vmatprep.subr.mxu0 0.0
    %8244 = vmatpush1.msra.mxu0 0.0
    %8245 = vmatprep.subr.mxu0 0.0
    %8246 = vmatpush1.msra.mxu0 0.0
    %8247 = vmatprep.subr.mxu0 0.0
    %8248 = vmatpush1.msra.mxu0 0.0
    %8249 = vmatprep.subr.mxu0 0.0
    %8250 = vmatpush1.msra.mxu0 0.0
    %8251 = vmatprep.subr.mxu0 0.0
    %8252 = vmatpush1.msra.mxu0 0.0
    %8253 = vmatprep.subr.mxu0 0.0
    %8254 = vmatpush1.msra.mxu0 0.0
    %8255 = vmatprep.subr.mxu0 0.0
    %8256 = vmatpush1.msra.mxu0 0.0
    %8257 = vmatprep.subr.mxu0 0.0
    %8258 = vmatpush1.msra.mxu0 0.0
    %8259 = vmatprep.subr.mxu0 0.0
    %8260 = vmatpush1.msra.mxu0 0.0
    %8261 = vmatprep.subr.mxu0 0.0
    %8262 = vmatpush1.msra.mxu0 0.0
    %8263 = vmatprep.subr.mxu0 0.0
    %8264 = vmatpush1.msra.mxu0 0.0
    %8265 = vmatprep.subr.mxu0 0.0
    %8266 = vmatpush1.msra.mxu0 0.0
    %8267 = vmatprep.subr.mxu0 0.0
    %8268 = vmatpush1.msra.mxu0 0.0
    %8269 = vmatprep.subr.mxu0 0.0
    %8270 = vmatpush1.msra.mxu0 0.0
    %8271 = vmatprep.subr.mxu0 0.0
    %8272 = vmatpush1.msra.mxu0 0.0
    %8273 = vmatprep.subr.mxu0 0.0
    %8274 = vmatpush1.msra.mxu0 0.0
    %8275 = vmatprep.subr.mxu0 0.0
    %8276 = vmatpush1.msra.mxu0 0.0
    %8277 = vmatprep.subr.mxu0 0.0
    %8278 = vmatpush1.msra.mxu0 0.0
    %8279 = vmatprep.subr.mxu0 0.0
    %8280 = vmatpush1.msra.mxu0 0.0
    %8281 = vmatprep.subr.mxu0 0.0
    %8282 = vmatpush1.msra.mxu0 0.0
    %8283 = vmatprep.subr.mxu0 0.0
    %8284 = vmatpush1.msra.mxu0 0.0
    %8285 = vmatprep.subr.mxu0 0.0
    %8286 = vmatpush1.msra.mxu0 0.0
    %8287 = vmatprep.subr.mxu0 0.0
    %8288 = vmatpush1.msra.mxu0 0.0
    %8289 = vmatprep.subr.mxu0 0.0
    %8290 = vmatpush1.msra.mxu0 0.0
    %8291 = vmatprep.subr.mxu0 0.0
    %8292 = vmatpush1.msra.mxu0 0.0
    %8293 = vmatprep.subr.mxu0 0.0
    %8294 = vmatpush1.msra.mxu0 0.0
    %8295 = vmatprep.subr.mxu0 0.0
    %8296 = vmatpush1.msra.mxu0 0.0
    %8297 = vmatprep.subr.mxu0 0.0
    %8298 = vmatpush1.msra.mxu0 0.0
    %8299 = vmatprep.subr.mxu0 0.0
    %8300 = vmatpush1.msra.mxu0 0.0
    %8301 = vmatprep.subr.mxu0 0.0
    %8302 = vmatpush1.msra.mxu0 0.0
    %8303 = vmatprep.mubr.f32.mxu0 0.0
    %v8304 = vand.u32 %v8010, 4294901760
    %v8305 = vsub.f32 %v8010, %v8304
    %v8306 = vand.u32 %v8305, 4294901760
    %8307 = vmatmul.mubr.f32.gmra.mrb[0].mxu0 %v8306
    %v8308 = vpop.f32.mrb[0].mxu0
    %v8309 = vadd.f32 %v8235, %v8308
    %v8310 = vpop.f32.mrb[0].mxu0
    %8311 = vdwg.mxu0
    %8312 = vmatprep.subr.mxu0 0.0
    %v8313 = vand.u32 %v1191, 4294901760
    %v8314 = vsub.f32 %v1191, %v8313
    %v8315 = vand.u32 %v8314, 4294901760
    %8316 = vmatpush1.msra.mxu0 %v8315
    %8317 = vmatprep.subr.mxu0 0.0
    %8318 = vmatpush1.msra.mxu0 0.0
    %8319 = vmatprep.subr.mxu0 0.0
    %8320 = vmatpush1.msra.mxu0 0.0
    %8321 = vmatprep.subr.mxu0 0.0
    %8322 = vmatpush1.msra.mxu0 0.0
    %8323 = vmatprep.subr.mxu0 0.0
    %8324 = vmatpush1.msra.mxu0 0.0
    %8325 = vmatprep.subr.mxu0 0.0
    %8326 = vmatpush1.msra.mxu0 0.0
    %8327 = vmatprep.subr.mxu0 0.0
    %8328 = vmatpush1.msra.mxu0 0.0
    %8329 = vmatprep.subr.mxu0 0.0
    %8330 = vmatpush1.msra.mxu0 0.0
    %8331 = vmatprep.subr.mxu0 0.0
    %8332 = vmatpush1.msra.mxu0 0.0
    %8333 = vmatprep.subr.mxu0 0.0
    %8334 = vmatpush1.msra.mxu0 0.0
    %8335 = vmatprep.subr.mxu0 0.0
    %8336 = vmatpush1.msra.mxu0 0.0
    %8337 = vmatprep.subr.mxu0 0.0
    %8338 = vmatpush1.msra.mxu0 0.0
    %8339 = vmatprep.subr.mxu0 0.0
    %8340 = vmatpush1.msra.mxu0 0.0
    %8341 = vmatprep.subr.mxu0 0.0
    %8342 = vmatpush1.msra.mxu0 0.0
    %8343 = vmatprep.subr.mxu0 0.0
    %8344 = vmatpush1.msra.mxu0 0.0
    %8345 = vmatprep.subr.mxu0 0.0
    %8346 = vmatpush1.msra.mxu0 0.0
    %8347 = vmatprep.subr.mxu0 0.0
    %8348 = vmatpush1.msra.mxu0 0.0
    %8349 = vmatprep.subr.mxu0 0.0
    %8350 = vmatpush1.msra.mxu0 0.0
    %8351 = vmatprep.subr.mxu0 0.0
    %8352 = vmatpush1.msra.mxu0 0.0
    %8353 = vmatprep.subr.mxu0 0.0
    %8354 = vmatpush1.msra.mxu0 0.0
    %8355 = vmatprep.subr.mxu0 0.0
    %8356 = vmatpush1.msra.mxu0 0.0
    %8357 = vmatprep.subr.mxu0 0.0
    %8358 = vmatpush1.msra.mxu0 0.0
    %8359 = vmatprep.subr.mxu0 0.0
    %8360 = vmatpush1.msra.mxu0 0.0
    %8361 = vmatprep.subr.mxu0 0.0
    %8362 = vmatpush1.msra.mxu0 0.0
    %8363 = vmatprep.subr.mxu0 0.0
    %8364 = vmatpush1.msra.mxu0 0.0
    %8365 = vmatprep.subr.mxu0 0.0
    %8366 = vmatpush1.msra.mxu0 0.0
    %8367 = vmatprep.subr.mxu0 0.0
    %8368 = vmatpush1.msra.mxu0 0.0
    %8369 = vmatprep.subr.mxu0 0.0
    %8370 = vmatpush1.msra.mxu0 0.0
    %8371 = vmatprep.subr.mxu0 0.0
    %8372 = vmatpush1.msra.mxu0 0.0
    %8373 = vmatprep.subr.mxu0 0.0
    %8374 = vmatpush1.msra.mxu0 0.0
    %8375 = vmatprep.subr.mxu0 0.0
    %8376 = vmatpush1.msra.mxu0 0.0
    %8377 = vmatprep.subr.mxu0 0.0
    %8378 = vmatpush1.msra.mxu0 0.0
    %8379 = vmatprep.mubr.f32.mxu0 0.0
    %v8380 = vand.u32 %v8010, 4294901760
    %8381 = vmatmul.mubr.f32.gmra.mrb[0].mxu0 %v8380
    %v8382 = vpop.f32.mrb[0].mxu0
    %v8383 = vadd.f32 %v8309, %v8382
    %v8384 = vpop.f32.mrb[0].mxu0
    %8385 = vdwg.mxu0
    %8386 = vmatprep.subr.mxu0 0.0
    %v8387 = vand.u32 %v1191, 4294901760
    %8388 = vmatpush1.msra.mxu0 %v8387
    %8389 = vmatprep.subr.mxu0 0.0
    %8390 = vmatpush1.msra.mxu0 0.0
    %8391 = vmatprep.subr.mxu0 0.0
    %8392 = vmatpush1.msra.mxu0 0.0
    %8393 = vmatprep.subr.mxu0 0.0
    %8394 = vmatpush1.msra.mxu0 0.0
    %8395 = vmatprep.subr.mxu0 0.0
    %8396 = vmatpush1.msra.mxu0 0.0
    %8397 = vmatprep.subr.mxu0 0.0
    %8398 = vmatpush1.msra.mxu0 0.0
    %8399 = vmatprep.subr.mxu0 0.0
    %8400 = vmatpush1.msra.mxu0 0.0
    %8401 = vmatprep.subr.mxu0 0.0
    %8402 = vmatpush1.msra.mxu0 0.0
    %8403 = vmatprep.subr.mxu0 0.0
    %8404 = vmatpush1.msra.mxu0 0.0
    %8405 = vmatprep.subr.mxu0 0.0
    %8406 = vmatpush1.msra.mxu0 0.0
    %8407 = vmatprep.subr.mxu0 0.0
    %8408 = vmatpush1.msra.mxu0 0.0
    %8409 = vmatprep.subr.mxu0 0.0
    %8410 = vmatpush1.msra.mxu0 0.0
    %8411 = vmatprep.subr.mxu0 0.0
    %8412 = vmatpush1.msra.mxu0 0.0
    %8413 = vmatprep.subr.mxu0 0.0
    %8414 = vmatpush1.msra.mxu0 0.0
    %8415 = vmatprep.subr.mxu0 0.0
    %8416 = vmatpush1.msra.mxu0 0.0
    %8417 = vmatprep.subr.mxu0 0.0
    %8418 = vmatpush1.msra.mxu0 0.0
    %8419 = vmatprep.subr.mxu0 0.0
    %8420 = vmatpush1.msra.mxu0 0.0
    %8421 = vmatprep.subr.mxu0 0.0
    %8422 = vmatpush1.msra.mxu0 0.0
    %8423 = vmatprep.subr.mxu0 0.0
    %8424 = vmatpush1.msra.mxu0 0.0
    %8425 = vmatprep.subr.mxu0 0.0
    %8426 = vmatpush1.msra.mxu0 0.0
    %8427 = vmatprep.subr.mxu0 0.0
    %8428 = vmatpush1.msra.mxu0 0.0
    %8429 = vmatprep.subr.mxu0 0.0
    %8430 = vmatpush1.msra.mxu0 0.0
    %8431 = vmatprep.subr.mxu0 0.0
    %8432 = vmatpush1.msra.mxu0 0.0
    %8433 = vmatprep.subr.mxu0 0.0
    %8434 = vmatpush1.msra.mxu0 0.0
    %8435 = vmatprep.subr.mxu0 0.0
    %8436 = vmatpush1.msra.mxu0 0.0
    %8437 = vmatprep.subr.mxu0 0.0
    %8438 = vmatpush1.msra.mxu0 0.0
    %8439 = vmatprep.subr.mxu0 0.0
    %8440 = vmatpush1.msra.mxu0 0.0
    %8441 = vmatprep.subr.mxu0 0.0
    %8442 = vmatpush1.msra.mxu0 0.0
    %8443 = vmatprep.subr.mxu0 0.0
    %8444 = vmatpush1.msra.mxu0 0.0
    %8445 = vmatprep.subr.mxu0 0.0
    %8446 = vmatpush1.msra.mxu0 0.0
    %8447 = vmatprep.subr.mxu0 0.0
    %8448 = vmatpush1.msra.mxu0 0.0
    %8449 = vmatprep.subr.mxu0 0.0
    %8450 = vmatpush1.msra.mxu0 0.0
    %8451 = vmatprep.mubr.f32.mxu0 0.0
    %v8452 = vand.u32 %v8010, 4294901760
    %8453 = vmatmul.mubr.f32.gmra.mrb[0].mxu0 %v8452
    %v8454 = vpop.f32.mrb[0].mxu0
    %v8455 = vadd.f32 %v8383, %v8454
    %v8456 = vpop.f32.mrb[0].mxu0
    %8457 = vdwg.mxu0
    %v8459 = vsel %vm7471, %v7549, 0
    %8461 = vmatprep.subr.mxu0 0.0
    %v8462 = vand.u32 %v1192, 4294901760
    %8463 = vmatpush1.msra.mxu0 %v8462
    %8464 = vmatprep.subr.mxu0 0.0
    %8465 = vmatpush1.msra.mxu0 0.0
    %8466 = vmatprep.subr.mxu0 0.0
    %8467 = vmatpush1.msra.mxu0 0.0
    %8468 = vmatprep.subr.mxu0 0.0
    %8469 = vmatpush1.msra.mxu0 0.0
    %8470 = vmatprep.subr.mxu0 0.0
    %8471 = vmatpush1.msra.mxu0 0.0
    %8472 = vmatprep.subr.mxu0 0.0
    %8473 = vmatpush1.msra.mxu0 0.0
    %8474 = vmatprep.subr.mxu0 0.0
    %8475 = vmatpush1.msra.mxu0 0.0
    %8476 = vmatprep.subr.mxu0 0.0
    %8477 = vmatpush1.msra.mxu0 0.0
    %8478 = vmatprep.subr.mxu0 0.0
    %8479 = vmatpush1.msra.mxu0 0.0
    %8480 = vmatprep.subr.mxu0 0.0
    %8481 = vmatpush1.msra.mxu0 0.0
    %8482 = vmatprep.subr.mxu0 0.0
    %8483 = vmatpush1.msra.mxu0 0.0
    %8484 = vmatprep.subr.mxu0 0.0
    %8485 = vmatpush1.msra.mxu0 0.0
    %8486 = vmatprep.subr.mxu0 0.0
    %8487 = vmatpush1.msra.mxu0 0.0
    %8488 = vmatprep.subr.mxu0 0.0
    %8489 = vmatpush1.msra.mxu0 0.0
    %8490 = vmatprep.subr.mxu0 0.0
    %8491 = vmatpush1.msra.mxu0 0.0
    %8492 = vmatprep.subr.mxu0 0.0
    %8493 = vmatpush1.msra.mxu0 0.0
    %8494 = vmatprep.subr.mxu0 0.0
    %8495 = vmatpush1.msra.mxu0 0.0
    %8496 = vmatprep.subr.mxu0 0.0
    %8497 = vmatpush1.msra.mxu0 0.0
    %8498 = vmatprep.subr.mxu0 0.0
    %8499 = vmatpush1.msra.mxu0 0.0
    %8500 = vmatprep.subr.mxu0 0.0
    %8501 = vmatpush1.msra.mxu0 0.0
    %8502 = vmatprep.subr.mxu0 0.0
    %8503 = vmatpush1.msra.mxu0 0.0
    %8504 = vmatprep.subr.mxu0 0.0
    %8505 = vmatpush1.msra.mxu0 0.0
    %8506 = vmatprep.subr.mxu0 0.0
    %8507 = vmatpush1.msra.mxu0 0.0
    %8508 = vmatprep.subr.mxu0 0.0
    %8509 = vmatpush1.msra.mxu0 0.0
    %8510 = vmatprep.subr.mxu0 0.0
    %8511 = vmatpush1.msra.mxu0 0.0
    %8512 = vmatprep.subr.mxu0 0.0
    %8513 = vmatpush1.msra.mxu0 0.0
    %8514 = vmatprep.subr.mxu0 0.0
    %8515 = vmatpush1.msra.mxu0 0.0
    %8516 = vmatprep.subr.mxu0 0.0
    %8517 = vmatpush1.msra.mxu0 0.0
    %8518 = vmatprep.subr.mxu0 0.0
    %8519 = vmatpush1.msra.mxu0 0.0
    %8520 = vmatprep.subr.mxu0 0.0
    %8521 = vmatpush1.msra.mxu0 0.0
    %8522 = vmatprep.subr.mxu0 0.0
    %8523 = vmatpush1.msra.mxu0 0.0
    %8524 = vmatprep.subr.mxu0 0.0
    %8525 = vmatpush1.msra.mxu0 0.0
    %8526 = vmatprep.mubr.f32.mxu0 0.0
    %v8527 = vand.u32 %v8459, 4294901760
    %v8528 = vsub.f32 %v8459, %v8527
    %v8529 = vand.u32 %v8528, 4294901760
    %v8530 = vsub.f32 %v8528, %v8529
    %v8531 = vand.u32 %v8530, 4294901760
    %8532 = vmatmul.mubr.f32.gmra.mrb[0].mxu0 %v8531
    %v8533 = vpop.f32.mrb[0].mxu0
    %v8534 = vadd.f32 0.0, %v8533
    %v8535 = vpop.f32.mrb[0].mxu0
    %8536 = vdwg.mxu0
    %8537 = vmatprep.subr.mxu0 0.0
    %v8538 = vand.u32 %v1192, 4294901760
    %v8539 = vsub.f32 %v1192, %v8538
    %v8540 = vand.u32 %v8539, 4294901760
    %v8541 = vsub.f32 %v8539, %v8540
    %v8542 = vand.u32 %v8541, 4294901760
    %8543 = vmatpush1.msra.mxu0 %v8542
    %8544 = vmatprep.subr.mxu0 0.0
    %8545 = vmatpush1.msra.mxu0 0.0
    %8546 = vmatprep.subr.mxu0 0.0
    %8547 = vmatpush1.msra.mxu0 0.0
    %8548 = vmatprep.subr.mxu0 0.0
    %8549 = vmatpush1.msra.mxu0 0.0
    %8550 = vmatprep.subr.mxu0 0.0
    %8551 = vmatpush1.msra.mxu0 0.0
    %8552 = vmatprep.subr.mxu0 0.0
    %8553 = vmatpush1.msra.mxu0 0.0
    %8554 = vmatprep.subr.mxu0 0.0
    %8555 = vmatpush1.msra.mxu0 0.0
    %8556 = vmatprep.subr.mxu0 0.0
    %8557 = vmatpush1.msra.mxu0 0.0
    %8558 = vmatprep.subr.mxu0 0.0
    %8559 = vmatpush1.msra.mxu0 0.0
    %8560 = vmatprep.subr.mxu0 0.0
    %8561 = vmatpush1.msra.mxu0 0.0
    %8562 = vmatprep.subr.mxu0 0.0
    %8563 = vmatpush1.msra.mxu0 0.0
    %8564 = vmatprep.subr.mxu0 0.0
    %8565 = vmatpush1.msra.mxu0 0.0
    %8566 = vmatprep.subr.mxu0 0.0
    %8567 = vmatpush1.msra.mxu0 0.0
    %8568 = vmatprep.subr.mxu0 0.0
    %8569 = vmatpush1.msra.mxu0 0.0
    %8570 = vmatprep.subr.mxu0 0.0
    %8571 = vmatpush1.msra.mxu0 0.0
    %8572 = vmatprep.subr.mxu0 0.0
    %8573 = vmatpush1.msra.mxu0 0.0
    %8574 = vmatprep.subr.mxu0 0.0
    %8575 = vmatpush1.msra.mxu0 0.0
    %8576 = vmatprep.subr.mxu0 0.0
    %8577 = vmatpush1.msra.mxu0 0.0
    %8578 = vmatprep.subr.mxu0 0.0
    %8579 = vmatpush1.msra.mxu0 0.0
    %8580 = vmatprep.subr.mxu0 0.0
    %8581 = vmatpush1.msra.mxu0 0.0
    %8582 = vmatprep.subr.mxu0 0.0
    %8583 = vmatpush1.msra.mxu0 0.0
    %8584 = vmatprep.subr.mxu0 0.0
    %8585 = vmatpush1.msra.mxu0 0.0
    %8586 = vmatprep.subr.mxu0 0.0
    %8587 = vmatpush1.msra.mxu0 0.0
    %8588 = vmatprep.subr.mxu0 0.0
    %8589 = vmatpush1.msra.mxu0 0.0
    %8590 = vmatprep.subr.mxu0 0.0
    %8591 = vmatpush1.msra.mxu0 0.0
    %8592 = vmatprep.subr.mxu0 0.0
    %8593 = vmatpush1.msra.mxu0 0.0
    %8594 = vmatprep.subr.mxu0 0.0
    %8595 = vmatpush1.msra.mxu0 0.0
    %8596 = vmatprep.subr.mxu0 0.0
    %8597 = vmatpush1.msra.mxu0 0.0
    %8598 = vmatprep.subr.mxu0 0.0
    %8599 = vmatpush1.msra.mxu0 0.0
    %8600 = vmatprep.subr.mxu0 0.0
    %8601 = vmatpush1.msra.mxu0 0.0
    %8602 = vmatprep.subr.mxu0 0.0
    %8603 = vmatpush1.msra.mxu0 0.0
    %8604 = vmatprep.subr.mxu0 0.0
    %8605 = vmatpush1.msra.mxu0 0.0
    %8606 = vmatprep.mubr.f32.mxu0 0.0
    %v8607 = vand.u32 %v8459, 4294901760
    %8608 = vmatmul.mubr.f32.gmra.mrb[0].mxu0 %v8607
    %v8609 = vpop.f32.mrb[0].mxu0
    %v8610 = vadd.f32 %v8534, %v8609
    %v8611 = vpop.f32.mrb[0].mxu0
    %8612 = vdwg.mxu0
    %8613 = vmatprep.subr.mxu0 0.0
    %v8614 = vand.u32 %v1192, 4294901760
    %v8615 = vsub.f32 %v1192, %v8614
    %8616 = vmatpush1.msra.mxu0 %v8615
    %8617 = vmatprep.subr.mxu0 0.0
    %8618 = vmatpush1.msra.mxu0 0.0
    %8619 = vmatprep.subr.mxu0 0.0
    %8620 = vmatpush1.msra.mxu0 0.0
    %8621 = vmatprep.subr.mxu0 0.0
    %8622 = vmatpush1.msra.mxu0 0.0
    %8623 = vmatprep.subr.mxu0 0.0
    %8624 = vmatpush1.msra.mxu0 0.0
    %8625 = vmatprep.subr.mxu0 0.0
    %8626 = vmatpush1.msra.mxu0 0.0
    %8627 = vmatprep.subr.mxu0 0.0
    %8628 = vmatpush1.msra.mxu0 0.0
    %8629 = vmatprep.subr.mxu0 0.0
    %8630 = vmatpush1.msra.mxu0 0.0
    %8631 = vmatprep.subr.mxu0 0.0
    %8632 = vmatpush1.msra.mxu0 0.0
    %8633 = vmatprep.subr.mxu0 0.0
    %8634 = vmatpush1.msra.mxu0 0.0
    %8635 = vmatprep.subr.mxu0 0.0
    %8636 = vmatpush1.msra.mxu0 0.0
    %8637 = vmatprep.subr.mxu0 0.0
    %8638 = vmatpush1.msra.mxu0 0.0
    %8639 = vmatprep.subr.mxu0 0.0
    %8640 = vmatpush1.msra.mxu0 0.0
    %8641 = vmatprep.subr.mxu0 0.0
    %8642 = vmatpush1.msra.mxu0 0.0
    %8643 = vmatprep.subr.mxu0 0.0
    %8644 = vmatpush1.msra.mxu0 0.0
    %8645 = vmatprep.subr.mxu0 0.0
    %8646 = vmatpush1.msra.mxu0 0.0
    %8647 = vmatprep.subr.mxu0 0.0
    %8648 = vmatpush1.msra.mxu0 0.0
    %8649 = vmatprep.subr.mxu0 0.0
    %8650 = vmatpush1.msra.mxu0 0.0
    %8651 = vmatprep.subr.mxu0 0.0
    %8652 = vmatpush1.msra.mxu0 0.0
    %8653 = vmatprep.subr.mxu0 0.0
    %8654 = vmatpush1.msra.mxu0 0.0
    %8655 = vmatprep.subr.mxu0 0.0
    %8656 = vmatpush1.msra.mxu0 0.0
    %8657 = vmatprep.subr.mxu0 0.0
    %8658 = vmatpush1.msra.mxu0 0.0
    %8659 = vmatprep.subr.mxu0 0.0
    %8660 = vmatpush1.msra.mxu0 0.0
    %8661 = vmatprep.subr.mxu0 0.0
    %8662 = vmatpush1.msra.mxu0 0.0
    %8663 = vmatprep.subr.mxu0 0.0
    %8664 = vmatpush1.msra.mxu0 0.0
    %8665 = vmatprep.subr.mxu0 0.0
    %8666 = vmatpush1.msra.mxu0 0.0
    %8667 = vmatprep.subr.mxu0 0.0
    %8668 = vmatpush1.msra.mxu0 0.0
    %8669 = vmatprep.subr.mxu0 0.0
    %8670 = vmatpush1.msra.mxu0 0.0
    %8671 = vmatprep.subr.mxu0 0.0
    %8672 = vmatpush1.msra.mxu0 0.0
    %8673 = vmatprep.subr.mxu0 0.0
    %8674 = vmatpush1.msra.mxu0 0.0
    %8675 = vmatprep.subr.mxu0 0.0
    %8676 = vmatpush1.msra.mxu0 0.0
    %8677 = vmatprep.subr.mxu0 0.0
    %8678 = vmatpush1.msra.mxu0 0.0
    %8679 = vmatprep.mubr.f32.mxu0 0.0
    %v8680 = vand.u32 %v8459, 4294901760
    %v8681 = vsub.f32 %v8459, %v8680
    %8682 = vmatmul.mubr.f32.gmra.mrb[0].mxu0 %v8681
    %v8683 = vpop.f32.mrb[0].mxu0
    %v8684 = vadd.f32 %v8610, %v8683
    %v8685 = vpop.f32.mrb[0].mxu0
    %8686 = vdwg.mxu0
    %8687 = vmatprep.subr.mxu0 0.0
    %v8688 = vand.u32 %v1192, 4294901760
    %8689 = vmatpush1.msra.mxu0 %v8688
    %8690 = vmatprep.subr.mxu0 0.0
    %8691 = vmatpush1.msra.mxu0 0.0
    %8692 = vmatprep.subr.mxu0 0.0
    %8693 = vmatpush1.msra.mxu0 0.0
    %8694 = vmatprep.subr.mxu0 0.0
    %8695 = vmatpush1.msra.mxu0 0.0
    %8696 = vmatprep.subr.mxu0 0.0
    %8697 = vmatpush1.msra.mxu0 0.0
    %8698 = vmatprep.subr.mxu0 0.0
    %8699 = vmatpush1.msra.mxu0 0.0
    %8700 = vmatprep.subr.mxu0 0.0
    %8701 = vmatpush1.msra.mxu0 0.0
    %8702 = vmatprep.subr.mxu0 0.0
    %8703 = vmatpush1.msra.mxu0 0.0
    %8704 = vmatprep.subr.mxu0 0.0
    %8705 = vmatpush1.msra.mxu0 0.0
    %8706 = vmatprep.subr.mxu0 0.0
    %8707 = vmatpush1.msra.mxu0 0.0
    %8708 = vmatprep.subr.mxu0 0.0
    %8709 = vmatpush1.msra.mxu0 0.0
    %8710 = vmatprep.subr.mxu0 0.0
    %8711 = vmatpush1.msra.mxu0 0.0
    %8712 = vmatprep.subr.mxu0 0.0
    %8713 = vmatpush1.msra.mxu0 0.0
    %8714 = vmatprep.subr.mxu0 0.0
    %8715 = vmatpush1.msra.mxu0 0.0
    %8716 = vmatprep.subr.mxu0 0.0
    %8717 = vmatpush1.msra.mxu0 0.0
    %8718 = vmatprep.subr.mxu0 0.0
    %8719 = vmatpush1.msra.mxu0 0.0
    %8720 = vmatprep.subr.mxu0 0.0
    %8721 = vmatpush1.msra.mxu0 0.0
    %8722 = vmatprep.subr.mxu0 0.0
    %8723 = vmatpush1.msra.mxu0 0.0
    %8724 = vmatprep.subr.mxu0 0.0
    %8725 = vmatpush1.msra.mxu0 0.0
    %8726 = vmatprep.subr.mxu0 0.0
    %8727 = vmatpush1.msra.mxu0 0.0
    %8728 = vmatprep.subr.mxu0 0.0
    %8729 = vmatpush1.msra.mxu0 0.0
    %8730 = vmatprep.subr.mxu0 0.0
    %8731 = vmatpush1.msra.mxu0 0.0
    %8732 = vmatprep.subr.mxu0 0.0
    %8733 = vmatpush1.msra.mxu0 0.0
    %8734 = vmatprep.subr.mxu0 0.0
    %8735 = vmatpush1.msra.mxu0 0.0
    %8736 = vmatprep.subr.mxu0 0.0
    %8737 = vmatpush1.msra.mxu0 0.0
    %8738 = vmatprep.subr.mxu0 0.0
    %8739 = vmatpush1.msra.mxu0 0.0
    %8740 = vmatprep.subr.mxu0 0.0
    %8741 = vmatpush1.msra.mxu0 0.0
    %8742 = vmatprep.subr.mxu0 0.0
    %8743 = vmatpush1.msra.mxu0 0.0
    %8744 = vmatprep.subr.mxu0 0.0
    %8745 = vmatpush1.msra.mxu0 0.0
    %8746 = vmatprep.subr.mxu0 0.0
    %8747 = vmatpush1.msra.mxu0 0.0
    %8748 = vmatprep.subr.mxu0 0.0
    %8749 = vmatpush1.msra.mxu0 0.0
    %8750 = vmatprep.subr.mxu0 0.0
    %8751 = vmatpush1.msra.mxu0 0.0
    %8752 = vmatprep.mubr.f32.mxu0 0.0
    %v8753 = vand.u32 %v8459, 4294901760
    %v8754 = vsub.f32 %v8459, %v8753
    %v8755 = vand.u32 %v8754, 4294901760
    %8756 = vmatmul.mubr.f32.gmra.mrb[0].mxu0 %v8755
    %v8757 = vpop.f32.mrb[0].mxu0
    %v8758 = vadd.f32 %v8684, %v8757
    %v8759 = vpop.f32.mrb[0].mxu0
    %8760 = vdwg.mxu0
    %8761 = vmatprep.subr.mxu0 0.0
    %v8762 = vand.u32 %v1192, 4294901760
    %v8763 = vsub.f32 %v1192, %v8762
    %v8764 = vand.u32 %v8763, 4294901760
    %8765 = vmatpush1.msra.mxu0 %v8764
    %8766 = vmatprep.subr.mxu0 0.0
    %8767 = vmatpush1.msra.mxu0 0.0
    %8768 = vmatprep.subr.mxu0 0.0
    %8769 = vmatpush1.msra.mxu0 0.0
    %8770 = vmatprep.subr.mxu0 0.0
    %8771 = vmatpush1.msra.mxu0 0.0
    %8772 = vmatprep.subr.mxu0 0.0
    %8773 = vmatpush1.msra.mxu0 0.0
    %8774 = vmatprep.subr.mxu0 0.0
    %8775 = vmatpush1.msra.mxu0 0.0
    %8776 = vmatprep.subr.mxu0 0.0
    %8777 = vmatpush1.msra.mxu0 0.0
    %8778 = vmatprep.subr.mxu0 0.0
    %8779 = vmatpush1.msra.mxu0 0.0
    %8780 = vmatprep.subr.mxu0 0.0
    %8781 = vmatpush1.msra.mxu0 0.0
    %8782 = vmatprep.subr.mxu0 0.0
    %8783 = vmatpush1.msra.mxu0 0.0
    %8784 = vmatprep.subr.mxu0 0.0
    %8785 = vmatpush1.msra.mxu0 0.0
    %8786 = vmatprep.subr.mxu0 0.0
    %8787 = vmatpush1.msra.mxu0 0.0
    %8788 = vmatprep.subr.mxu0 0.0
    %8789 = vmatpush1.msra.mxu0 0.0
    %8790 = vmatprep.subr.mxu0 0.0
    %8791 = vmatpush1.msra.mxu0 0.0
    %8792 = vmatprep.subr.mxu0 0.0
    %8793 = vmatpush1.msra.mxu0 0.0
    %8794 = vmatprep.subr.mxu0 0.0
    %8795 = vmatpush1.msra.mxu0 0.0
    %8796 = vmatprep.subr.mxu0 0.0
    %8797 = vmatpush1.msra.mxu0 0.0
    %8798 = vmatprep.subr.mxu0 0.0
    %8799 = vmatpush1.msra.mxu0 0.0
    %8800 = vmatprep.subr.mxu0 0.0
    %8801 = vmatpush1.msra.mxu0 0.0
    %8802 = vmatprep.subr.mxu0 0.0
    %8803 = vmatpush1.msra.mxu0 0.0
    %8804 = vmatprep.subr.mxu0 0.0
    %8805 = vmatpush1.msra.mxu0 0.0
    %8806 = vmatprep.subr.mxu0 0.0
    %8807 = vmatpush1.msra.mxu0 0.0
    %8808 = vmatprep.subr.mxu0 0.0
    %8809 = vmatpush1.msra.mxu0 0.0
    %8810 = vmatprep.subr.mxu0 0.0
    %8811 = vmatpush1.msra.mxu0 0.0
    %8812 = vmatprep.subr.mxu0 0.0
    %8813 = vmatpush1.msra.mxu0 0.0
    %8814 = vmatprep.subr.mxu0 0.0
    %8815 = vmatpush1.msra.mxu0 0.0
    %8816 = vmatprep.subr.mxu0 0.0
    %8817 = vmatpush1.msra.mxu0 0.0
    %8818 = vmatprep.subr.mxu0 0.0
    %8819 = vmatpush1.msra.mxu0 0.0
    %8820 = vmatprep.subr.mxu0 0.0
    %8821 = vmatpush1.msra.mxu0 0.0
    %8822 = vmatprep.subr.mxu0 0.0
    %8823 = vmatpush1.msra.mxu0 0.0
    %8824 = vmatprep.subr.mxu0 0.0
    %8825 = vmatpush1.msra.mxu0 0.0
    %8826 = vmatprep.subr.mxu0 0.0
    %8827 = vmatpush1.msra.mxu0 0.0
    %8828 = vmatprep.mubr.f32.mxu0 0.0
    %v8829 = vand.u32 %v8459, 4294901760
    %8830 = vmatmul.mubr.f32.gmra.mrb[0].mxu0 %v8829
    %v8831 = vpop.f32.mrb[0].mxu0
    %v8832 = vadd.f32 %v8758, %v8831
    %v8833 = vpop.f32.mrb[0].mxu0
    %8834 = vdwg.mxu0
    %8835 = vmatprep.subr.mxu0 0.0
    %v8836 = vand.u32 %v1192, 4294901760
    %8837 = vmatpush1.msra.mxu0 %v8836
    %8838 = vmatprep.subr.mxu0 0.0
    %8839 = vmatpush1.msra.mxu0 0.0
    %8840 = vmatprep.subr.mxu0 0.0
    %8841 = vmatpush1.msra.mxu0 0.0
    %8842 = vmatprep.subr.mxu0 0.0
    %8843 = vmatpush1.msra.mxu0 0.0
    %8844 = vmatprep.subr.mxu0 0.0
    %8845 = vmatpush1.msra.mxu0 0.0
    %8846 = vmatprep.subr.mxu0 0.0
    %8847 = vmatpush1.msra.mxu0 0.0
    %8848 = vmatprep.subr.mxu0 0.0
    %8849 = vmatpush1.msra.mxu0 0.0
    %8850 = vmatprep.subr.mxu0 0.0
    %8851 = vmatpush1.msra.mxu0 0.0
    %8852 = vmatprep.subr.mxu0 0.0
    %8853 = vmatpush1.msra.mxu0 0.0
    %8854 = vmatprep.subr.mxu0 0.0
    %8855 = vmatpush1.msra.mxu0 0.0
    %8856 = vmatprep.subr.mxu0 0.0
    %8857 = vmatpush1.msra.mxu0 0.0
    %8858 = vmatprep.subr.mxu0 0.0
    %8859 = vmatpush1.msra.mxu0 0.0
    %8860 = vmatprep.subr.mxu0 0.0
    %8861 = vmatpush1.msra.mxu0 0.0
    %8862 = vmatprep.subr.mxu0 0.0
    %8863 = vmatpush1.msra.mxu0 0.0
    %8864 = vmatprep.subr.mxu0 0.0
    %8865 = vmatpush1.msra.mxu0 0.0
    %8866 = vmatprep.subr.mxu0 0.0
    %8867 = vmatpush1.msra.mxu0 0.0
    %8868 = vmatprep.subr.mxu0 0.0
    %8869 = vmatpush1.msra.mxu0 0.0
    %8870 = vmatprep.subr.mxu0 0.0
    %8871 = vmatpush1.msra.mxu0 0.0
    %8872 = vmatprep.subr.mxu0 0.0
    %8873 = vmatpush1.msra.mxu0 0.0
    %8874 = vmatprep.subr.mxu0 0.0
    %8875 = vmatpush1.msra.mxu0 0.0
    %8876 = vmatprep.subr.mxu0 0.0
    %8877 = vmatpush1.msra.mxu0 0.0
    %8878 = vmatprep.subr.mxu0 0.0
    %8879 = vmatpush1.msra.mxu0 0.0
    %8880 = vmatprep.subr.mxu0 0.0
    %8881 = vmatpush1.msra.mxu0 0.0
    %8882 = vmatprep.subr.mxu0 0.0
    %8883 = vmatpush1.msra.mxu0 0.0
    %8884 = vmatprep.subr.mxu0 0.0
    %8885 = vmatpush1.msra.mxu0 0.0
    %8886 = vmatprep.subr.mxu0 0.0
    %8887 = vmatpush1.msra.mxu0 0.0
    %8888 = vmatprep.subr.mxu0 0.0
    %8889 = vmatpush1.msra.mxu0 0.0
    %8890 = vmatprep.subr.mxu0 0.0
    %8891 = vmatpush1.msra.mxu0 0.0
    %8892 = vmatprep.subr.mxu0 0.0
    %8893 = vmatpush1.msra.mxu0 0.0
    %8894 = vmatprep.subr.mxu0 0.0
    %8895 = vmatpush1.msra.mxu0 0.0
    %8896 = vmatprep.subr.mxu0 0.0
    %8897 = vmatpush1.msra.mxu0 0.0
    %8898 = vmatprep.subr.mxu0 0.0
    %8899 = vmatpush1.msra.mxu0 0.0
    %8900 = vmatprep.mubr.f32.mxu0 0.0
    %v8901 = vand.u32 %v8459, 4294901760
    %8902 = vmatmul.mubr.f32.gmra.mrb[0].mxu0 %v8901
    %v8903 = vpop.f32.mrb[0].mxu0
    %v8904 = vadd.f32 %v8832, %v8903
    %v8905 = vpop.f32.mrb[0].mxu0
    %8906 = vdwg.mxu0
    %v8908 = vsel %vm7471, %v7551, 0
    %8910 = vmatprep.subr.mxu0 0.0
    %v8911 = vand.u32 %v1193, 4294901760
    %8912 = vmatpush1.msra.mxu0 %v8911
    %8913 = vmatprep.subr.mxu0 0.0
    %8914 = vmatpush1.msra.mxu0 0.0
    %8915 = vmatprep.subr.mxu0 0.0
    %8916 = vmatpush1.msra.mxu0 0.0
    %8917 = vmatprep.subr.mxu0 0.0
    %8918 = vmatpush1.msra.mxu0 0.0
    %8919 = vmatprep.subr.mxu0 0.0
    %8920 = vmatpush1.msra.mxu0 0.0
    %8921 = vmatprep.subr.mxu0 0.0
    %8922 = vmatpush1.msra.mxu0 0.0
    %8923 = vmatprep.subr.mxu0 0.0
    %8924 = vmatpush1.msra.mxu0 0.0
    %8925 = vmatprep.subr.mxu0 0.0
    %8926 = vmatpush1.msra.mxu0 0.0
    %8927 = vmatprep.subr.mxu0 0.0
    %8928 = vmatpush1.msra.mxu0 0.0
    %8929 = vmatprep.subr.mxu0 0.0
    %8930 = vmatpush1.msra.mxu0 0.0
    %8931 = vmatprep.subr.mxu0 0.0
    %8932 = vmatpush1.msra.mxu0 0.0
    %8933 = vmatprep.subr.mxu0 0.0
    %8934 = vmatpush1.msra.mxu0 0.0
    %8935 = vmatprep.subr.mxu0 0.0
    %8936 = vmatpush1.msra.mxu0 0.0
    %8937 = vmatprep.subr.mxu0 0.0
    %8938 = vmatpush1.msra.mxu0 0.0
    %8939 = vmatprep.subr.mxu0 0.0
    %8940 = vmatpush1.msra.mxu0 0.0
    %8941 = vmatprep.subr.mxu0 0.0
    %8942 = vmatpush1.msra.mxu0 0.0
    %8943 = vmatprep.subr.mxu0 0.0
    %8944 = vmatpush1.msra.mxu0 0.0
    %8945 = vmatprep.subr.mxu0 0.0
    %8946 = vmatpush1.msra.mxu0 0.0
    %8947 = vmatprep.subr.mxu0 0.0
    %8948 = vmatpush1.msra.mxu0 0.0
    %8949 = vmatprep.subr.mxu0 0.0
    %8950 = vmatpush1.msra.mxu0 0.0
    %8951 = vmatprep.subr.mxu0 0.0
    %8952 = vmatpush1.msra.mxu0 0.0
    %8953 = vmatprep.subr.mxu0 0.0
    %8954 = vmatpush1.msra.mxu0 0.0
    %8955 = vmatprep.subr.mxu0 0.0
    %8956 = vmatpush1.msra.mxu0 0.0
    %8957 = vmatprep.subr.mxu0 0.0
    %8958 = vmatpush1.msra.mxu0 0.0
    %8959 = vmatprep.subr.mxu0 0.0
    %8960 = vmatpush1.msra.mxu0 0.0
    %8961 = vmatprep.subr.mxu0 0.0
    %8962 = vmatpush1.msra.mxu0 0.0
    %8963 = vmatprep.subr.mxu0 0.0
    %8964 = vmatpush1.msra.mxu0 0.0
    %8965 = vmatprep.subr.mxu0 0.0
    %8966 = vmatpush1.msra.mxu0 0.0
    %8967 = vmatprep.subr.mxu0 0.0
    %8968 = vmatpush1.msra.mxu0 0.0
    %8969 = vmatprep.subr.mxu0 0.0
    %8970 = vmatpush1.msra.mxu0 0.0
    %8971 = vmatprep.subr.mxu0 0.0
    %8972 = vmatpush1.msra.mxu0 0.0
    %8973 = vmatprep.subr.mxu0 0.0
    %8974 = vmatpush1.msra.mxu0 0.0
    %8975 = vmatprep.mubr.f32.mxu0 0.0
    %v8976 = vand.u32 %v8908, 4294901760
    %v8977 = vsub.f32 %v8908, %v8976
    %v8978 = vand.u32 %v8977, 4294901760
    %v8979 = vsub.f32 %v8977, %v8978
    %v8980 = vand.u32 %v8979, 4294901760
    %8981 = vmatmul.mubr.f32.gmra.mrb[0].mxu0 %v8980
    %v8982 = vpop.f32.mrb[0].mxu0
    %v8983 = vadd.f32 0.0, %v8982
    %v8984 = vpop.f32.mrb[0].mxu0
    %8985 = vdwg.mxu0
    %8986 = vmatprep.subr.mxu0 0.0
    %v8987 = vand.u32 %v1193, 4294901760
    %v8988 = vsub.f32 %v1193, %v8987
    %v8989 = vand.u32 %v8988, 4294901760
    %v8990 = vsub.f32 %v8988, %v8989
    %v8991 = vand.u32 %v8990, 4294901760
    %8992 = vmatpush1.msra.mxu0 %v8991
    %8993 = vmatprep.subr.mxu0 0.0
    %8994 = vmatpush1.msra.mxu0 0.0
    %8995 = vmatprep.subr.mxu0 0.0
    %8996 = vmatpush1.msra.mxu0 0.0
    %8997 = vmatprep.subr.mxu0 0.0
    %8998 = vmatpush1.msra.mxu0 0.0
    %8999 = vmatprep.subr.mxu0 0.0
    %9000 = vmatpush1.msra.mxu0 0.0
    %9001 = vmatprep.subr.mxu0 0.0
    %9002 = vmatpush1.msra.mxu0 0.0
    %9003 = vmatprep.subr.mxu0 0.0
    %9004 = vmatpush1.msra.mxu0 0.0
    %9005 = vmatprep.subr.mxu0 0.0
    %9006 = vmatpush1.msra.mxu0 0.0
    %9007 = vmatprep.subr.mxu0 0.0
    %9008 = vmatpush1.msra.mxu0 0.0
    %9009 = vmatprep.subr.mxu0 0.0
    %9010 = vmatpush1.msra.mxu0 0.0
    %9011 = vmatprep.subr.mxu0 0.0
    %9012 = vmatpush1.msra.mxu0 0.0
    %9013 = vmatprep.subr.mxu0 0.0
    %9014 = vmatpush1.msra.mxu0 0.0
    %9015 = vmatprep.subr.mxu0 0.0
    %9016 = vmatpush1.msra.mxu0 0.0
    %9017 = vmatprep.subr.mxu0 0.0
    %9018 = vmatpush1.msra.mxu0 0.0
    %9019 = vmatprep.subr.mxu0 0.0
    %9020 = vmatpush1.msra.mxu0 0.0
    %9021 = vmatprep.subr.mxu0 0.0
    %9022 = vmatpush1.msra.mxu0 0.0
    %9023 = vmatprep.subr.mxu0 0.0
    %9024 = vmatpush1.msra.mxu0 0.0
    %9025 = vmatprep.subr.mxu0 0.0
    %9026 = vmatpush1.msra.mxu0 0.0
    %9027 = vmatprep.subr.mxu0 0.0
    %9028 = vmatpush1.msra.mxu0 0.0
    %9029 = vmatprep.subr.mxu0 0.0
    %9030 = vmatpush1.msra.mxu0 0.0
    %9031 = vmatprep.subr.mxu0 0.0
    %9032 = vmatpush1.msra.mxu0 0.0
    %9033 = vmatprep.subr.mxu0 0.0
    %9034 = vmatpush1.msra.mxu0 0.0
    %9035 = vmatprep.subr.mxu0 0.0
    %9036 = vmatpush1.msra.mxu0 0.0
    %9037 = vmatprep.subr.mxu0 0.0
    %9038 = vmatpush1.msra.mxu0 0.0
    %9039 = vmatprep.subr.mxu0 0.0
    %9040 = vmatpush1.msra.mxu0 0.0
    %9041 = vmatprep.subr.mxu0 0.0
    %9042 = vmatpush1.msra.mxu0 0.0
    %9043 = vmatprep.subr.mxu0 0.0
    %9044 = vmatpush1.msra.mxu0 0.0
    %9045 = vmatprep.subr.mxu0 0.0
    %9046 = vmatpush1.msra.mxu0 0.0
    %9047 = vmatprep.subr.mxu0 0.0
    %9048 = vmatpush1.msra.mxu0 0.0
    %9049 = vmatprep.subr.mxu0 0.0
    %9050 = vmatpush1.msra.mxu0 0.0
    %9051 = vmatprep.subr.mxu0 0.0
    %9052 = vmatpush1.msra.mxu0 0.0
    %9053 = vmatprep.subr.mxu0 0.0
    %9054 = vmatpush1.msra.mxu0 0.0
    %9055 = vmatprep.mubr.f32.mxu0 0.0
    %v9056 = vand.u32 %v8908, 4294901760
    %9057 = vmatmul.mubr.f32.gmra.mrb[0].mxu0 %v9056
    %v9058 = vpop.f32.mrb[0].mxu0
    %v9059 = vadd.f32 %v8983, %v9058
    %v9060 = vpop.f32.mrb[0].mxu0
    %9061 = vdwg.mxu0
    %9062 = vmatprep.subr.mxu0 0.0
    %v9063 = vand.u32 %v1193, 4294901760
    %v9064 = vsub.f32 %v1193, %v9063
    %9065 = vmatpush1.msra.mxu0 %v9064
    %9066 = vmatprep.subr.mxu0 0.0
    %9067 = vmatpush1.msra.mxu0 0.0
    %9068 = vmatprep.subr.mxu0 0.0
    %9069 = vmatpush1.msra.mxu0 0.0
    %9070 = vmatprep.subr.mxu0 0.0
    %9071 = vmatpush1.msra.mxu0 0.0
    %9072 = vmatprep.subr.mxu0 0.0
    %9073 = vmatpush1.msra.mxu0 0.0
    %9074 = vmatprep.subr.mxu0 0.0
    %9075 = vmatpush1.msra.mxu0 0.0
    %9076 = vmatprep.subr.mxu0 0.0
    %9077 = vmatpush1.msra.mxu0 0.0
    %9078 = vmatprep.subr.mxu0 0.0
    %9079 = vmatpush1.msra.mxu0 0.0
    %9080 = vmatprep.subr.mxu0 0.0
    %9081 = vmatpush1.msra.mxu0 0.0
    %9082 = vmatprep.subr.mxu0 0.0
    %9083 = vmatpush1.msra.mxu0 0.0
    %9084 = vmatprep.subr.mxu0 0.0
    %9085 = vmatpush1.msra.mxu0 0.0
    %9086 = vmatprep.subr.mxu0 0.0
    %9087 = vmatpush1.msra.mxu0 0.0
    %9088 = vmatprep.subr.mxu0 0.0
    %9089 = vmatpush1.msra.mxu0 0.0
    %9090 = vmatprep.subr.mxu0 0.0
    %9091 = vmatpush1.msra.mxu0 0.0
    %9092 = vmatprep.subr.mxu0 0.0
    %9093 = vmatpush1.msra.mxu0 0.0
    %9094 = vmatprep.subr.mxu0 0.0
    %9095 = vmatpush1.msra.mxu0 0.0
    %9096 = vmatprep.subr.mxu0 0.0
    %9097 = vmatpush1.msra.mxu0 0.0
    %9098 = vmatprep.subr.mxu0 0.0
    %9099 = vmatpush1.msra.mxu0 0.0
    %9100 = vmatprep.subr.mxu0 0.0
    %9101 = vmatpush1.msra.mxu0 0.0
    %9102 = vmatprep.subr.mxu0 0.0
    %9103 = vmatpush1.msra.mxu0 0.0
    %9104 = vmatprep.subr.mxu0 0.0
    %9105 = vmatpush1.msra.mxu0 0.0
    %9106 = vmatprep.subr.mxu0 0.0
    %9107 = vmatpush1.msra.mxu0 0.0
    %9108 = vmatprep.subr.mxu0 0.0
    %9109 = vmatpush1.msra.mxu0 0.0
    %9110 = vmatprep.subr.mxu0 0.0
    %9111 = vmatpush1.msra.mxu0 0.0
    %9112 = vmatprep.subr.mxu0 0.0
    %9113 = vmatpush1.msra.mxu0 0.0
    %9114 = vmatprep.subr.mxu0 0.0
    %9115 = vmatpush1.msra.mxu0 0.0
    %9116 = vmatprep.subr.mxu0 0.0
    %9117 = vmatpush1.msra.mxu0 0.0
    %9118 = vmatprep.subr.mxu0 0.0
    %9119 = vmatpush1.msra.mxu0 0.0
    %9120 = vmatprep.subr.mxu0 0.0
    %9121 = vmatpush1.msra.mxu0 0.0
    %9122 = vmatprep.subr.mxu0 0.0
    %9123 = vmatpush1.msra.mxu0 0.0
    %9124 = vmatprep.subr.mxu0 0.0
    %9125 = vmatpush1.msra.mxu0 0.0
    %9126 = vmatprep.subr.mxu0 0.0
    %9127 = vmatpush1.msra.mxu0 0.0
    %9128 = vmatprep.mubr.f32.mxu0 0.0
    %v9129 = vand.u32 %v8908, 4294901760
    %v9130 = vsub.f32 %v8908, %v9129
    %9131 = vmatmul.mubr.f32.gmra.mrb[0].mxu0 %v9130
    %v9132 = vpop.f32.mrb[0].mxu0
    %v9133 = vadd.f32 %v9059, %v9132
    %v9134 = vpop.f32.mrb[0].mxu0
    %9135 = vdwg.mxu0
    %9136 = vmatprep.subr.mxu0 0.0
    %v9137 = vand.u32 %v1193, 4294901760
    %9138 = vmatpush1.msra.mxu0 %v9137
    %9139 = vmatprep.subr.mxu0 0.0
    %9140 = vmatpush1.msra.mxu0 0.0
    %9141 = vmatprep.subr.mxu0 0.0
    %9142 = vmatpush1.msra.mxu0 0.0
    %9143 = vmatprep.subr.mxu0 0.0
    %9144 = vmatpush1.msra.mxu0 0.0
    %9145 = vmatprep.subr.mxu0 0.0
    %9146 = vmatpush1.msra.mxu0 0.0
    %9147 = vmatprep.subr.mxu0 0.0
    %9148 = vmatpush1.msra.mxu0 0.0
    %9149 = vmatprep.subr.mxu0 0.0
    %9150 = vmatpush1.msra.mxu0 0.0
    %9151 = vmatprep.subr.mxu0 0.0
    %9152 = vmatpush1.msra.mxu0 0.0
    %9153 = vmatprep.subr.mxu0 0.0
    %9154 = vmatpush1.msra.mxu0 0.0
    %9155 = vmatprep.subr.mxu0 0.0
    %9156 = vmatpush1.msra.mxu0 0.0
    %9157 = vmatprep.subr.mxu0 0.0
    %9158 = vmatpush1.msra.mxu0 0.0
    %9159 = vmatprep.subr.mxu0 0.0
    %9160 = vmatpush1.msra.mxu0 0.0
    %9161 = vmatprep.subr.mxu0 0.0
    %9162 = vmatpush1.msra.mxu0 0.0
    %9163 = vmatprep.subr.mxu0 0.0
    %9164 = vmatpush1.msra.mxu0 0.0
    %9165 = vmatprep.subr.mxu0 0.0
    %9166 = vmatpush1.msra.mxu0 0.0
    %9167 = vmatprep.subr.mxu0 0.0
    %9168 = vmatpush1.msra.mxu0 0.0
    %9169 = vmatprep.subr.mxu0 0.0
    %9170 = vmatpush1.msra.mxu0 0.0
    %9171 = vmatprep.subr.mxu0 0.0
    %9172 = vmatpush1.msra.mxu0 0.0
    %9173 = vmatprep.subr.mxu0 0.0
    %9174 = vmatpush1.msra.mxu0 0.0
    %9175 = vmatprep.subr.mxu0 0.0
    %9176 = vmatpush1.msra.mxu0 0.0
    %9177 = vmatprep.subr.mxu0 0.0
    %9178 = vmatpush1.msra.mxu0 0.0
    %9179 = vmatprep.subr.mxu0 0.0
    %9180 = vmatpush1.msra.mxu0 0.0
    %9181 = vmatprep.subr.mxu0 0.0
    %9182 = vmatpush1.msra.mxu0 0.0
    %9183 = vmatprep.subr.mxu0 0.0
    %9184 = vmatpush1.msra.mxu0 0.0
    %9185 = vmatprep.subr.mxu0 0.0
    %9186 = vmatpush1.msra.mxu0 0.0
    %9187 = vmatprep.subr.mxu0 0.0
    %9188 = vmatpush1.msra.mxu0 0.0
    %9189 = vmatprep.subr.mxu0 0.0
    %9190 = vmatpush1.msra.mxu0 0.0
    %9191 = vmatprep.subr.mxu0 0.0
    %9192 = vmatpush1.msra.mxu0 0.0
    %9193 = vmatprep.subr.mxu0 0.0
    %9194 = vmatpush1.msra.mxu0 0.0
    %9195 = vmatprep.subr.mxu0 0.0
    %9196 = vmatpush1.msra.mxu0 0.0
    %9197 = vmatprep.subr.mxu0 0.0
    %9198 = vmatpush1.msra.mxu0 0.0
    %9199 = vmatprep.subr.mxu0 0.0
    %9200 = vmatpush1.msra.mxu0 0.0
    %9201 = vmatprep.mubr.f32.mxu0 0.0
    %v9202 = vand.u32 %v8908, 4294901760
    %v9203 = vsub.f32 %v8908, %v9202
    %v9204 = vand.u32 %v9203, 4294901760
    %9205 = vmatmul.mubr.f32.gmra.mrb[0].mxu0 %v9204
    %v9206 = vpop.f32.mrb[0].mxu0
    %v9207 = vadd.f32 %v9133, %v9206
    %v9208 = vpop.f32.mrb[0].mxu0
    %9209 = vdwg.mxu0
    %9210 = vmatprep.subr.mxu0 0.0
    %v9211 = vand.u32 %v1193, 4294901760
    %v9212 = vsub.f32 %v1193, %v9211
    %v9213 = vand.u32 %v9212, 4294901760
    %9214 = vmatpush1.msra.mxu0 %v9213
    %9215 = vmatprep.subr.mxu0 0.0
    %9216 = vmatpush1.msra.mxu0 0.0
    %9217 = vmatprep.subr.mxu0 0.0
    %9218 = vmatpush1.msra.mxu0 0.0
    %9219 = vmatprep.subr.mxu0 0.0
    %9220 = vmatpush1.msra.mxu0 0.0
    %9221 = vmatprep.subr.mxu0 0.0
    %9222 = vmatpush1.msra.mxu0 0.0
    %9223 = vmatprep.subr.mxu0 0.0
    %9224 = vmatpush1.msra.mxu0 0.0
    %9225 = vmatprep.subr.mxu0 0.0
    %9226 = vmatpush1.msra.mxu0 0.0
    %9227 = vmatprep.subr.mxu0 0.0
    %9228 = vmatpush1.msra.mxu0 0.0
    %9229 = vmatprep.subr.mxu0 0.0
    %9230 = vmatpush1.msra.mxu0 0.0
    %9231 = vmatprep.subr.mxu0 0.0
    %9232 = vmatpush1.msra.mxu0 0.0
    %9233 = vmatprep.subr.mxu0 0.0
    %9234 = vmatpush1.msra.mxu0 0.0
    %9235 = vmatprep.subr.mxu0 0.0
    %9236 = vmatpush1.msra.mxu0 0.0
    %9237 = vmatprep.subr.mxu0 0.0
    %9238 = vmatpush1.msra.mxu0 0.0
    %9239 = vmatprep.subr.mxu0 0.0
    %9240 = vmatpush1.msra.mxu0 0.0
    %9241 = vmatprep.subr.mxu0 0.0
    %9242 = vmatpush1.msra.mxu0 0.0
    %9243 = vmatprep.subr.mxu0 0.0
    %9244 = vmatpush1.msra.mxu0 0.0
    %9245 = vmatprep.subr.mxu0 0.0
    %9246 = vmatpush1.msra.mxu0 0.0
    %9247 = vmatprep.subr.mxu0 0.0
    %9248 = vmatpush1.msra.mxu0 0.0
    %9249 = vmatprep.subr.mxu0 0.0
    %9250 = vmatpush1.msra.mxu0 0.0
    %9251 = vmatprep.subr.mxu0 0.0
    %9252 = vmatpush1.msra.mxu0 0.0
    %9253 = vmatprep.subr.mxu0 0.0
    %9254 = vmatpush1.msra.mxu0 0.0
    %9255 = vmatprep.subr.mxu0 0.0
    %9256 = vmatpush1.msra.mxu0 0.0
    %9257 = vmatprep.subr.mxu0 0.0
    %9258 = vmatpush1.msra.mxu0 0.0
    %9259 = vmatprep.subr.mxu0 0.0
    %9260 = vmatpush1.msra.mxu0 0.0
    %9261 = vmatprep.subr.mxu0 0.0
    %9262 = vmatpush1.msra.mxu0 0.0
    %9263 = vmatprep.subr.mxu0 0.0
    %9264 = vmatpush1.msra.mxu0 0.0
    %9265 = vmatprep.subr.mxu0 0.0
    %9266 = vmatpush1.msra.mxu0 0.0
    %9267 = vmatprep.subr.mxu0 0.0
    %9268 = vmatpush1.msra.mxu0 0.0
    %9269 = vmatprep.subr.mxu0 0.0
    %9270 = vmatpush1.msra.mxu0 0.0
    %9271 = vmatprep.subr.mxu0 0.0
    %9272 = vmatpush1.msra.mxu0 0.0
    %9273 = vmatprep.subr.mxu0 0.0
    %9274 = vmatpush1.msra.mxu0 0.0
    %9275 = vmatprep.subr.mxu0 0.0
    %9276 = vmatpush1.msra.mxu0 0.0
    %9277 = vmatprep.mubr.f32.mxu0 0.0
    %v9278 = vand.u32 %v8908, 4294901760
    %9279 = vmatmul.mubr.f32.gmra.mrb[0].mxu0 %v9278
    %v9280 = vpop.f32.mrb[0].mxu0
    %v9281 = vadd.f32 %v9207, %v9280
    %v9282 = vpop.f32.mrb[0].mxu0
    %9283 = vdwg.mxu0
    %9284 = vmatprep.subr.mxu0 0.0
    %v9285 = vand.u32 %v1193, 4294901760
    %9286 = vmatpush1.msra.mxu0 %v9285
    %9287 = vmatprep.subr.mxu0 0.0
    %9288 = vmatpush1.msra.mxu0 0.0
    %9289 = vmatprep.subr.mxu0 0.0
    %9290 = vmatpush1.msra.mxu0 0.0
    %9291 = vmatprep.subr.mxu0 0.0
    %9292 = vmatpush1.msra.mxu0 0.0
    %9293 = vmatprep.subr.mxu0 0.0
    %9294 = vmatpush1.msra.mxu0 0.0
    %9295 = vmatprep.subr.mxu0 0.0
    %9296 = vmatpush1.msra.mxu0 0.0
    %9297 = vmatprep.subr.mxu0 0.0
    %9298 = vmatpush1.msra.mxu0 0.0
    %9299 = vmatprep.subr.mxu0 0.0
    %9300 = vmatpush1.msra.mxu0 0.0
    %9301 = vmatprep.subr.mxu0 0.0
    %9302 = vmatpush1.msra.mxu0 0.0
    %9303 = vmatprep.subr.mxu0 0.0
    %9304 = vmatpush1.msra.mxu0 0.0
    %9305 = vmatprep.subr.mxu0 0.0
    %9306 = vmatpush1.msra.mxu0 0.0
    %9307 = vmatprep.subr.mxu0 0.0
    %9308 = vmatpush1.msra.mxu0 0.0
    %9309 = vmatprep.subr.mxu0 0.0
    %9310 = vmatpush1.msra.mxu0 0.0
    %9311 = vmatprep.subr.mxu0 0.0
    %9312 = vmatpush1.msra.mxu0 0.0
    %9313 = vmatprep.subr.mxu0 0.0
    %9314 = vmatpush1.msra.mxu0 0.0
    %9315 = vmatprep.subr.mxu0 0.0
    %9316 = vmatpush1.msra.mxu0 0.0
    %9317 = vmatprep.subr.mxu0 0.0
    %9318 = vmatpush1.msra.mxu0 0.0
    %9319 = vmatprep.subr.mxu0 0.0
    %9320 = vmatpush1.msra.mxu0 0.0
    %9321 = vmatprep.subr.mxu0 0.0
    %9322 = vmatpush1.msra.mxu0 0.0
    %9323 = vmatprep.subr.mxu0 0.0
    %9324 = vmatpush1.msra.mxu0 0.0
    %9325 = vmatprep.subr.mxu0 0.0
    %9326 = vmatpush1.msra.mxu0 0.0
    %9327 = vmatprep.subr.mxu0 0.0
    %9328 = vmatpush1.msra.mxu0 0.0
    %9329 = vmatprep.subr.mxu0 0.0
    %9330 = vmatpush1.msra.mxu0 0.0
    %9331 = vmatprep.subr.mxu0 0.0
    %9332 = vmatpush1.msra.mxu0 0.0
    %9333 = vmatprep.subr.mxu0 0.0
    %9334 = vmatpush1.msra.mxu0 0.0
    %9335 = vmatprep.subr.mxu0 0.0
    %9336 = vmatpush1.msra.mxu0 0.0
    %9337 = vmatprep.subr.mxu0 0.0
    %9338 = vmatpush1.msra.mxu0 0.0
    %9339 = vmatprep.subr.mxu0 0.0
    %9340 = vmatpush1.msra.mxu0 0.0
    %9341 = vmatprep.subr.mxu0 0.0
    %9342 = vmatpush1.msra.mxu0 0.0
    %9343 = vmatprep.subr.mxu0 0.0
    %9344 = vmatpush1.msra.mxu0 0.0
    %9345 = vmatprep.subr.mxu0 0.0
    %9346 = vmatpush1.msra.mxu0 0.0
    %9347 = vmatprep.subr.mxu0 0.0
    %9348 = vmatpush1.msra.mxu0 0.0
    %9349 = vmatprep.mubr.f32.mxu0 0.0
    %v9350 = vand.u32 %v8908, 4294901760
    %9351 = vmatmul.mubr.f32.gmra.mrb[0].mxu0 %v9350
    %v9352 = vpop.f32.mrb[0].mxu0
    %v9353 = vadd.f32 %v9281, %v9352
    %v9354 = vpop.f32.mrb[0].mxu0
    %9355 = vdwg.mxu0
    %v9357 = vsel %vm7471, %v7553, 0
    %9359 = vmatprep.subr.mxu0 0.0
    %v9360 = vand.u32 %v1258, 4294901760
    %9361 = vmatpush1.msra.mxu0 %v9360
    %9362 = vmatprep.subr.mxu0 0.0
    %9363 = vmatpush1.msra.mxu0 0.0
    %9364 = vmatprep.subr.mxu0 0.0
    %9365 = vmatpush1.msra.mxu0 0.0
    %9366 = vmatprep.subr.mxu0 0.0
    %9367 = vmatpush1.msra.mxu0 0.0
    %9368 = vmatprep.subr.mxu0 0.0
    %9369 = vmatpush1.msra.mxu0 0.0
    %9370 = vmatprep.subr.mxu0 0.0
    %9371 = vmatpush1.msra.mxu0 0.0
    %9372 = vmatprep.subr.mxu0 0.0
    %9373 = vmatpush1.msra.mxu0 0.0
    %9374 = vmatprep.subr.mxu0 0.0
    %9375 = vmatpush1.msra.mxu0 0.0
    %9376 = vmatprep.subr.mxu0 0.0
    %9377 = vmatpush1.msra.mxu0 0.0
    %9378 = vmatprep.subr.mxu0 0.0
    %9379 = vmatpush1.msra.mxu0 0.0
    %9380 = vmatprep.subr.mxu0 0.0
    %9381 = vmatpush1.msra.mxu0 0.0
    %9382 = vmatprep.subr.mxu0 0.0
    %9383 = vmatpush1.msra.mxu0 0.0
    %9384 = vmatprep.subr.mxu0 0.0
    %9385 = vmatpush1.msra.mxu0 0.0
    %9386 = vmatprep.subr.mxu0 0.0
    %9387 = vmatpush1.msra.mxu0 0.0
    %9388 = vmatprep.subr.mxu0 0.0
    %9389 = vmatpush1.msra.mxu0 0.0
    %9390 = vmatprep.subr.mxu0 0.0
    %9391 = vmatpush1.msra.mxu0 0.0
    %9392 = vmatprep.subr.mxu0 0.0
    %9393 = vmatpush1.msra.mxu0 0.0
    %9394 = vmatprep.subr.mxu0 0.0
    %9395 = vmatpush1.msra.mxu0 0.0
    %9396 = vmatprep.subr.mxu0 0.0
    %9397 = vmatpush1.msra.mxu0 0.0
    %9398 = vmatprep.subr.mxu0 0.0
    %9399 = vmatpush1.msra.mxu0 0.0
    %9400 = vmatprep.subr.mxu0 0.0
    %9401 = vmatpush1.msra.mxu0 0.0
    %9402 = vmatprep.subr.mxu0 0.0
    %9403 = vmatpush1.msra.mxu0 0.0
    %9404 = vmatprep.subr.mxu0 0.0
    %9405 = vmatpush1.msra.mxu0 0.0
    %9406 = vmatprep.subr.mxu0 0.0
    %9407 = vmatpush1.msra.mxu0 0.0
    %9408 = vmatprep.subr.mxu0 0.0
    %9409 = vmatpush1.msra.mxu0 0.0
    %9410 = vmatprep.subr.mxu0 0.0
    %9411 = vmatpush1.msra.mxu0 0.0
    %9412 = vmatprep.subr.mxu0 0.0
    %9413 = vmatpush1.msra.mxu0 0.0
    %9414 = vmatprep.subr.mxu0 0.0
    %9415 = vmatpush1.msra.mxu0 0.0
    %9416 = vmatprep.subr.mxu0 0.0
    %9417 = vmatpush1.msra.mxu0 0.0
    %9418 = vmatprep.subr.mxu0 0.0
    %9419 = vmatpush1.msra.mxu0 0.0
    %9420 = vmatprep.subr.mxu0 0.0
    %9421 = vmatpush1.msra.mxu0 0.0
    %9422 = vmatprep.subr.mxu0 0.0
    %9423 = vmatpush1.msra.mxu0 0.0
    %9424 = vmatprep.mubr.f32.mxu0 0.0
    %v9425 = vand.u32 %v9357, 4294901760
    %v9426 = vsub.f32 %v9357, %v9425
    %v9427 = vand.u32 %v9426, 4294901760
    %v9428 = vsub.f32 %v9426, %v9427
    %v9429 = vand.u32 %v9428, 4294901760
    %9430 = vmatmul.mubr.f32.gmra.mrb[0].mxu0 %v9429
    %v9431 = vpop.f32.mrb[0].mxu0
    %v9432 = vadd.f32 0.0, %v9431
    %v9433 = vpop.f32.mrb[0].mxu0
    %9434 = vdwg.mxu0
    %9435 = vmatprep.subr.mxu0 0.0
    %v9436 = vand.u32 %v1258, 4294901760
    %v9437 = vsub.f32 %v1258, %v9436
    %v9438 = vand.u32 %v9437, 4294901760
    %v9439 = vsub.f32 %v9437, %v9438
    %v9440 = vand.u32 %v9439, 4294901760
    %9441 = vmatpush1.msra.mxu0 %v9440
    %9442 = vmatprep.subr.mxu0 0.0
    %9443 = vmatpush1.msra.mxu0 0.0
    %9444 = vmatprep.subr.mxu0 0.0
    %9445 = vmatpush1.msra.mxu0 0.0
    %9446 = vmatprep.subr.mxu0 0.0
    %9447 = vmatpush1.msra.mxu0 0.0
    %9448 = vmatprep.subr.mxu0 0.0
    %9449 = vmatpush1.msra.mxu0 0.0
    %9450 = vmatprep.subr.mxu0 0.0
    %9451 = vmatpush1.msra.mxu0 0.0
    %9452 = vmatprep.subr.mxu0 0.0
    %9453 = vmatpush1.msra.mxu0 0.0
    %9454 = vmatprep.subr.mxu0 0.0
    %9455 = vmatpush1.msra.mxu0 0.0
    %9456 = vmatprep.subr.mxu0 0.0
    %9457 = vmatpush1.msra.mxu0 0.0
    %9458 = vmatprep.subr.mxu0 0.0
    %9459 = vmatpush1.msra.mxu0 0.0
    %9460 = vmatprep.subr.mxu0 0.0
    %9461 = vmatpush1.msra.mxu0 0.0
    %9462 = vmatprep.subr.mxu0 0.0
    %9463 = vmatpush1.msra.mxu0 0.0
    %9464 = vmatprep.subr.mxu0 0.0
    %9465 = vmatpush1.msra.mxu0 0.0
    %9466 = vmatprep.subr.mxu0 0.0
    %9467 = vmatpush1.msra.mxu0 0.0
    %9468 = vmatprep.subr.mxu0 0.0
    %9469 = vmatpush1.msra.mxu0 0.0
    %9470 = vmatprep.subr.mxu0 0.0
    %9471 = vmatpush1.msra.mxu0 0.0
    %9472 = vmatprep.subr.mxu0 0.0
    %9473 = vmatpush1.msra.mxu0 0.0
    %9474 = vmatprep.subr.mxu0 0.0
    %9475 = vmatpush1.msra.mxu0 0.0
    %9476 = vmatprep.subr.mxu0 0.0
    %9477 = vmatpush1.msra.mxu0 0.0
    %9478 = vmatprep.subr.mxu0 0.0
    %9479 = vmatpush1.msra.mxu0 0.0
    %9480 = vmatprep.subr.mxu0 0.0
    %9481 = vmatpush1.msra.mxu0 0.0
    %9482 = vmatprep.subr.mxu0 0.0
    %9483 = vmatpush1.msra.mxu0 0.0
    %9484 = vmatprep.subr.mxu0 0.0
    %9485 = vmatpush1.msra.mxu0 0.0
    %9486 = vmatprep.subr.mxu0 0.0
    %9487 = vmatpush1.msra.mxu0 0.0
    %9488 = vmatprep.subr.mxu0 0.0
    %9489 = vmatpush1.msra.mxu0 0.0
    %9490 = vmatprep.subr.mxu0 0.0
    %9491 = vmatpush1.msra.mxu0 0.0
    %9492 = vmatprep.subr.mxu0 0.0
    %9493 = vmatpush1.msra.mxu0 0.0
    %9494 = vmatprep.subr.mxu0 0.0
    %9495 = vmatpush1.msra.mxu0 0.0
    %9496 = vmatprep.subr.mxu0 0.0
    %9497 = vmatpush1.msra.mxu0 0.0
    %9498 = vmatprep.subr.mxu0 0.0
    %9499 = vmatpush1.msra.mxu0 0.0
    %9500 = vmatprep.subr.mxu0 0.0
    %9501 = vmatpush1.msra.mxu0 0.0
    %9502 = vmatprep.subr.mxu0 0.0
    %9503 = vmatpush1.msra.mxu0 0.0
    %9504 = vmatprep.mubr.f32.mxu0 0.0
    %v9505 = vand.u32 %v9357, 4294901760
    %9506 = vmatmul.mubr.f32.gmra.mrb[0].mxu0 %v9505
    %v9507 = vpop.f32.mrb[0].mxu0
    %v9508 = vadd.f32 %v9432, %v9507
    %v9509 = vpop.f32.mrb[0].mxu0
    %9510 = vdwg.mxu0
    %9511 = vmatprep.subr.mxu0 0.0
    %v9512 = vand.u32 %v1258, 4294901760
    %v9513 = vsub.f32 %v1258, %v9512
    %9514 = vmatpush1.msra.mxu0 %v9513
    %9515 = vmatprep.subr.mxu0 0.0
    %9516 = vmatpush1.msra.mxu0 0.0
    %9517 = vmatprep.subr.mxu0 0.0
    %9518 = vmatpush1.msra.mxu0 0.0
    %9519 = vmatprep.subr.mxu0 0.0
    %9520 = vmatpush1.msra.mxu0 0.0
    %9521 = vmatprep.subr.mxu0 0.0
    %9522 = vmatpush1.msra.mxu0 0.0
    %9523 = vmatprep.subr.mxu0 0.0
    %9524 = vmatpush1.msra.mxu0 0.0
    %9525 = vmatprep.subr.mxu0 0.0
    %9526 = vmatpush1.msra.mxu0 0.0
    %9527 = vmatprep.subr.mxu0 0.0
    %9528 = vmatpush1.msra.mxu0 0.0
    %9529 = vmatprep.subr.mxu0 0.0
    %9530 = vmatpush1.msra.mxu0 0.0
    %9531 = vmatprep.subr.mxu0 0.0
    %9532 = vmatpush1.msra.mxu0 0.0
    %9533 = vmatprep.subr.mxu0 0.0
    %9534 = vmatpush1.msra.mxu0 0.0
    %9535 = vmatprep.subr.mxu0 0.0
    %9536 = vmatpush1.msra.mxu0 0.0
    %9537 = vmatprep.subr.mxu0 0.0
    %9538 = vmatpush1.msra.mxu0 0.0
    %9539 = vmatprep.subr.mxu0 0.0
    %9540 = vmatpush1.msra.mxu0 0.0
    %9541 = vmatprep.subr.mxu0 0.0
    %9542 = vmatpush1.msra.mxu0 0.0
    %9543 = vmatprep.subr.mxu0 0.0
    %9544 = vmatpush1.msra.mxu0 0.0
    %9545 = vmatprep.subr.mxu0 0.0
    %9546 = vmatpush1.msra.mxu0 0.0
    %9547 = vmatprep.subr.mxu0 0.0
    %9548 = vmatpush1.msra.mxu0 0.0
    %9549 = vmatprep.subr.mxu0 0.0
    %9550 = vmatpush1.msra.mxu0 0.0
    %9551 = vmatprep.subr.mxu0 0.0
    %9552 = vmatpush1.msra.mxu0 0.0
    %9553 = vmatprep.subr.mxu0 0.0
    %9554 = vmatpush1.msra.mxu0 0.0
    %9555 = vmatprep.subr.mxu0 0.0
    %9556 = vmatpush1.msra.mxu0 0.0
    %9557 = vmatprep.subr.mxu0 0.0
    %9558 = vmatpush1.msra.mxu0 0.0
    %9559 = vmatprep.subr.mxu0 0.0
    %9560 = vmatpush1.msra.mxu0 0.0
    %9561 = vmatprep.subr.mxu0 0.0
    %9562 = vmatpush1.msra.mxu0 0.0
    %9563 = vmatprep.subr.mxu0 0.0
    %9564 = vmatpush1.msra.mxu0 0.0
    %9565 = vmatprep.subr.mxu0 0.0
    %9566 = vmatpush1.msra.mxu0 0.0
    %9567 = vmatprep.subr.mxu0 0.0
    %9568 = vmatpush1.msra.mxu0 0.0
    %9569 = vmatprep.subr.mxu0 0.0
    %9570 = vmatpush1.msra.mxu0 0.0
    %9571 = vmatprep.subr.mxu0 0.0
    %9572 = vmatpush1.msra.mxu0 0.0
    %9573 = vmatprep.subr.mxu0 0.0
    %9574 = vmatpush1.msra.mxu0 0.0
    %9575 = vmatprep.subr.mxu0 0.0
    %9576 = vmatpush1.msra.mxu0 0.0
    %9577 = vmatprep.mubr.f32.mxu0 0.0
    %v9578 = vand.u32 %v9357, 4294901760
    %v9579 = vsub.f32 %v9357, %v9578
    %9580 = vmatmul.mubr.f32.gmra.mrb[0].mxu0 %v9579
    %v9581 = vpop.f32.mrb[0].mxu0
    %v9582 = vadd.f32 %v9508, %v9581
    %v9583 = vpop.f32.mrb[0].mxu0
    %9584 = vdwg.mxu0
    %9585 = vmatprep.subr.mxu0 0.0
    %v9586 = vand.u32 %v1258, 4294901760
    %9587 = vmatpush1.msra.mxu0 %v9586
    %9588 = vmatprep.subr.mxu0 0.0
    %9589 = vmatpush1.msra.mxu0 0.0
    %9590 = vmatprep.subr.mxu0 0.0
    %9591 = vmatpush1.msra.mxu0 0.0
    %9592 = vmatprep.subr.mxu0 0.0
    %9593 = vmatpush1.msra.mxu0 0.0
    %9594 = vmatprep.subr.mxu0 0.0
    %9595 = vmatpush1.msra.mxu0 0.0
    %9596 = vmatprep.subr.mxu0 0.0
    %9597 = vmatpush1.msra.mxu0 0.0
    %9598 = vmatprep.subr.mxu0 0.0
    %9599 = vmatpush1.msra.mxu0 0.0
    %9600 = vmatprep.subr.mxu0 0.0
    %9601 = vmatpush1.msra.mxu0 0.0
    %9602 = vmatprep.subr.mxu0 0.0
    %9603 = vmatpush1.msra.mxu0 0.0
    %9604 = vmatprep.subr.mxu0 0.0
    %9605 = vmatpush1.msra.mxu0 0.0
    %9606 = vmatprep.subr.mxu0 0.0
    %9607 = vmatpush1.msra.mxu0 0.0
    %9608 = vmatprep.subr.mxu0 0.0
    %9609 = vmatpush1.msra.mxu0 0.0
    %9610 = vmatprep.subr.mxu0 0.0
    %9611 = vmatpush1.msra.mxu0 0.0
    %9612 = vmatprep.subr.mxu0 0.0
    %9613 = vmatpush1.msra.mxu0 0.0
    %9614 = vmatprep.subr.mxu0 0.0
    %9615 = vmatpush1.msra.mxu0 0.0
    %9616 = vmatprep.subr.mxu0 0.0
    %9617 = vmatpush1.msra.mxu0 0.0
    %9618 = vmatprep.subr.mxu0 0.0
    %9619 = vmatpush1.msra.mxu0 0.0
    %9620 = vmatprep.subr.mxu0 0.0
    %9621 = vmatpush1.msra.mxu0 0.0
    %9622 = vmatprep.subr.mxu0 0.0
    %9623 = vmatpush1.msra.mxu0 0.0
    %9624 = vmatprep.subr.mxu0 0.0
    %9625 = vmatpush1.msra.mxu0 0.0
    %9626 = vmatprep.subr.mxu0 0.0
    %9627 = vmatpush1.msra.mxu0 0.0
    %9628 = vmatprep.subr.mxu0 0.0
    %9629 = vmatpush1.msra.mxu0 0.0
    %9630 = vmatprep.subr.mxu0 0.0
    %9631 = vmatpush1.msra.mxu0 0.0
    %9632 = vmatprep.subr.mxu0 0.0
    %9633 = vmatpush1.msra.mxu0 0.0
    %9634 = vmatprep.subr.mxu0 0.0
    %9635 = vmatpush1.msra.mxu0 0.0
    %9636 = vmatprep.subr.mxu0 0.0
    %9637 = vmatpush1.msra.mxu0 0.0
    %9638 = vmatprep.subr.mxu0 0.0
    %9639 = vmatpush1.msra.mxu0 0.0
    %9640 = vmatprep.subr.mxu0 0.0
    %9641 = vmatpush1.msra.mxu0 0.0
    %9642 = vmatprep.subr.mxu0 0.0
    %9643 = vmatpush1.msra.mxu0 0.0
    %9644 = vmatprep.subr.mxu0 0.0
    %9645 = vmatpush1.msra.mxu0 0.0
    %9646 = vmatprep.subr.mxu0 0.0
    %9647 = vmatpush1.msra.mxu0 0.0
    %9648 = vmatprep.subr.mxu0 0.0
    %9649 = vmatpush1.msra.mxu0 0.0
    %9650 = vmatprep.mubr.f32.mxu0 0.0
    %v9651 = vand.u32 %v9357, 4294901760
    %v9652 = vsub.f32 %v9357, %v9651
    %v9653 = vand.u32 %v9652, 4294901760
    %9654 = vmatmul.mubr.f32.gmra.mrb[0].mxu0 %v9653
    %v9655 = vpop.f32.mrb[0].mxu0
    %v9656 = vadd.f32 %v9582, %v9655
    %v9657 = vpop.f32.mrb[0].mxu0
    %9658 = vdwg.mxu0
    %9659 = vmatprep.subr.mxu0 0.0
    %v9660 = vand.u32 %v1258, 4294901760
    %v9661 = vsub.f32 %v1258, %v9660
    %v9662 = vand.u32 %v9661, 4294901760
    %9663 = vmatpush1.msra.mxu0 %v9662
    %9664 = vmatprep.subr.mxu0 0.0
    %9665 = vmatpush1.msra.mxu0 0.0
    %9666 = vmatprep.subr.mxu0 0.0
    %9667 = vmatpush1.msra.mxu0 0.0
    %9668 = vmatprep.subr.mxu0 0.0
    %9669 = vmatpush1.msra.mxu0 0.0
    %9670 = vmatprep.subr.mxu0 0.0
    %9671 = vmatpush1.msra.mxu0 0.0
    %9672 = vmatprep.subr.mxu0 0.0
    %9673 = vmatpush1.msra.mxu0 0.0
    %9674 = vmatprep.subr.mxu0 0.0
    %9675 = vmatpush1.msra.mxu0 0.0
    %9676 = vmatprep.subr.mxu0 0.0
    %9677 = vmatpush1.msra.mxu0 0.0
    %9678 = vmatprep.subr.mxu0 0.0
    %9679 = vmatpush1.msra.mxu0 0.0
    %9680 = vmatprep.subr.mxu0 0.0
    %9681 = vmatpush1.msra.mxu0 0.0
    %9682 = vmatprep.subr.mxu0 0.0
    %9683 = vmatpush1.msra.mxu0 0.0
    %9684 = vmatprep.subr.mxu0 0.0
    %9685 = vmatpush1.msra.mxu0 0.0
    %9686 = vmatprep.subr.mxu0 0.0
    %9687 = vmatpush1.msra.mxu0 0.0
    %9688 = vmatprep.subr.mxu0 0.0
    %9689 = vmatpush1.msra.mxu0 0.0
    %9690 = vmatprep.subr.mxu0 0.0
    %9691 = vmatpush1.msra.mxu0 0.0
    %9692 = vmatprep.subr.mxu0 0.0
    %9693 = vmatpush1.msra.mxu0 0.0
    %9694 = vmatprep.subr.mxu0 0.0
    %9695 = vmatpush1.msra.mxu0 0.0
    %9696 = vmatprep.subr.mxu0 0.0
    %9697 = vmatpush1.msra.mxu0 0.0
    %9698 = vmatprep.subr.mxu0 0.0
    %9699 = vmatpush1.msra.mxu0 0.0
    %9700 = vmatprep.subr.mxu0 0.0
    %9701 = vmatpush1.msra.mxu0 0.0
    %9702 = vmatprep.subr.mxu0 0.0
    %9703 = vmatpush1.msra.mxu0 0.0
    %9704 = vmatprep.subr.mxu0 0.0
    %9705 = vmatpush1.msra.mxu0 0.0
    %9706 = vmatprep.subr.mxu0 0.0
    %9707 = vmatpush1.msra.mxu0 0.0
    %9708 = vmatprep.subr.mxu0 0.0
    %9709 = vmatpush1.msra.mxu0 0.0
    %9710 = vmatprep.subr.mxu0 0.0
    %9711 = vmatpush1.msra.mxu0 0.0
    %9712 = vmatprep.subr.mxu0 0.0
    %9713 = vmatpush1.msra.mxu0 0.0
    %9714 = vmatprep.subr.mxu0 0.0
    %9715 = vmatpush1.msra.mxu0 0.0
    %9716 = vmatprep.subr.mxu0 0.0
    %9717 = vmatpush1.msra.mxu0 0.0
    %9718 = vmatprep.subr.mxu0 0.0
    %9719 = vmatpush1.msra.mxu0 0.0
    %9720 = vmatprep.subr.mxu0 0.0
    %9721 = vmatpush1.msra.mxu0 0.0
    %9722 = vmatprep.subr.mxu0 0.0
    %9723 = vmatpush1.msra.mxu0 0.0
    %9724 = vmatprep.subr.mxu0 0.0
    %9725 = vmatpush1.msra.mxu0 0.0
    %9726 = vmatprep.mubr.f32.mxu0 0.0
    %v9727 = vand.u32 %v9357, 4294901760
    %9728 = vmatmul.mubr.f32.gmra.mrb[0].mxu0 %v9727
    %v9729 = vpop.f32.mrb[0].mxu0
    %v9730 = vadd.f32 %v9656, %v9729
    %v9731 = vpop.f32.mrb[0].mxu0
    %9732 = vdwg.mxu0
    %9733 = vmatprep.subr.mxu0 0.0
    %v9734 = vand.u32 %v1258, 4294901760
    %9735 = vmatpush1.msra.mxu0 %v9734
    %9736 = vmatprep.subr.mxu0 0.0
    %9737 = vmatpush1.msra.mxu0 0.0
    %9738 = vmatprep.subr.mxu0 0.0
    %9739 = vmatpush1.msra.mxu0 0.0
    %9740 = vmatprep.subr.mxu0 0.0
    %9741 = vmatpush1.msra.mxu0 0.0
    %9742 = vmatprep.subr.mxu0 0.0
    %9743 = vmatpush1.msra.mxu0 0.0
    %9744 = vmatprep.subr.mxu0 0.0
    %9745 = vmatpush1.msra.mxu0 0.0
    %9746 = vmatprep.subr.mxu0 0.0
    %9747 = vmatpush1.msra.mxu0 0.0
    %9748 = vmatprep.subr.mxu0 0.0
    %9749 = vmatpush1.msra.mxu0 0.0
    %9750 = vmatprep.subr.mxu0 0.0
    %9751 = vmatpush1.msra.mxu0 0.0
    %9752 = vmatprep.subr.mxu0 0.0
    %9753 = vmatpush1.msra.mxu0 0.0
    %9754 = vmatprep.subr.mxu0 0.0
    %9755 = vmatpush1.msra.mxu0 0.0
    %9756 = vmatprep.subr.mxu0 0.0
    %9757 = vmatpush1.msra.mxu0 0.0
    %9758 = vmatprep.subr.mxu0 0.0
    %9759 = vmatpush1.msra.mxu0 0.0
    %9760 = vmatprep.subr.mxu0 0.0
    %9761 = vmatpush1.msra.mxu0 0.0
    %9762 = vmatprep.subr.mxu0 0.0
    %9763 = vmatpush1.msra.mxu0 0.0
    %9764 = vmatprep.subr.mxu0 0.0
    %9765 = vmatpush1.msra.mxu0 0.0
    %9766 = vmatprep.subr.mxu0 0.0
    %9767 = vmatpush1.msra.mxu0 0.0
    %9768 = vmatprep.subr.mxu0 0.0
    %9769 = vmatpush1.msra.mxu0 0.0
    %9770 = vmatprep.subr.mxu0 0.0
    %9771 = vmatpush1.msra.mxu0 0.0
    %9772 = vmatprep.subr.mxu0 0.0
    %9773 = vmatpush1.msra.mxu0 0.0
    %9774 = vmatprep.subr.mxu0 0.0
    %9775 = vmatpush1.msra.mxu0 0.0
    %9776 = vmatprep.subr.mxu0 0.0
    %9777 = vmatpush1.msra.mxu0 0.0
    %9778 = vmatprep.subr.mxu0 0.0
    %9779 = vmatpush1.msra.mxu0 0.0
    %9780 = vmatprep.subr.mxu0 0.0
    %9781 = vmatpush1.msra.mxu0 0.0
    %9782 = vmatprep.subr.mxu0 0.0
    %9783 = vmatpush1.msra.mxu0 0.0
    %9784 = vmatprep.subr.mxu0 0.0
    %9785 = vmatpush1.msra.mxu0 0.0
    %9786 = vmatprep.subr.mxu0 0.0
    %9787 = vmatpush1.msra.mxu0 0.0
    %9788 = vmatprep.subr.mxu0 0.0
    %9789 = vmatpush1.msra.mxu0 0.0
    %9790 = vmatprep.subr.mxu0 0.0
    %9791 = vmatpush1.msra.mxu0 0.0
    %9792 = vmatprep.subr.mxu0 0.0
    %9793 = vmatpush1.msra.mxu0 0.0
    %9794 = vmatprep.subr.mxu0 0.0
    %9795 = vmatpush1.msra.mxu0 0.0
    %9796 = vmatprep.subr.mxu0 0.0
    %9797 = vmatpush1.msra.mxu0 0.0
    %9798 = vmatprep.mubr.f32.mxu0 0.0
    %v9799 = vand.u32 %v9357, 4294901760
    %9800 = vmatmul.mubr.f32.gmra.mrb[0].mxu0 %v9799
    %v9801 = vpop.f32.mrb[0].mxu0
    %v9802 = vadd.f32 %v9730, %v9801
    %v9803 = vpop.f32.mrb[0].mxu0
    %9804 = vdwg.mxu0
    %v9806 = vsel %vm7471, %v7555, 0
    %9808 = vmatprep.subr.mxu0 0.0
    %v9809 = vand.u32 %v1259, 4294901760
    %9810 = vmatpush1.msra.mxu0 %v9809
    %9811 = vmatprep.subr.mxu0 0.0
    %9812 = vmatpush1.msra.mxu0 0.0
    %9813 = vmatprep.subr.mxu0 0.0
    %9814 = vmatpush1.msra.mxu0 0.0
    %9815 = vmatprep.subr.mxu0 0.0
    %9816 = vmatpush1.msra.mxu0 0.0
    %9817 = vmatprep.subr.mxu0 0.0
    %9818 = vmatpush1.msra.mxu0 0.0
    %9819 = vmatprep.subr.mxu0 0.0
    %9820 = vmatpush1.msra.mxu0 0.0
    %9821 = vmatprep.subr.mxu0 0.0
    %9822 = vmatpush1.msra.mxu0 0.0
    %9823 = vmatprep.subr.mxu0 0.0
    %9824 = vmatpush1.msra.mxu0 0.0
    %9825 = vmatprep.subr.mxu0 0.0
    %9826 = vmatpush1.msra.mxu0 0.0
    %9827 = vmatprep.subr.mxu0 0.0
    %9828 = vmatpush1.msra.mxu0 0.0
    %9829 = vmatprep.subr.mxu0 0.0
    %9830 = vmatpush1.msra.mxu0 0.0
    %9831 = vmatprep.subr.mxu0 0.0
    %9832 = vmatpush1.msra.mxu0 0.0
    %9833 = vmatprep.subr.mxu0 0.0
    %9834 = vmatpush1.msra.mxu0 0.0
    %9835 = vmatprep.subr.mxu0 0.0
    %9836 = vmatpush1.msra.mxu0 0.0
    %9837 = vmatprep.subr.mxu0 0.0
    %9838 = vmatpush1.msra.mxu0 0.0
    %9839 = vmatprep.subr.mxu0 0.0
    %9840 = vmatpush1.msra.mxu0 0.0
    %9841 = vmatprep.subr.mxu0 0.0
    %9842 = vmatpush1.msra.mxu0 0.0
    %9843 = vmatprep.subr.mxu0 0.0
    %9844 = vmatpush1.msra.mxu0 0.0
    %9845 = vmatprep.subr.mxu0 0.0
    %9846 = vmatpush1.msra.mxu0 0.0
    %9847 = vmatprep.subr.mxu0 0.0
    %9848 = vmatpush1.msra.mxu0 0.0
    %9849 = vmatprep.subr.mxu0 0.0
    %9850 = vmatpush1.msra.mxu0 0.0
    %9851 = vmatprep.subr.mxu0 0.0
    %9852 = vmatpush1.msra.mxu0 0.0
    %9853 = vmatprep.subr.mxu0 0.0
    %9854 = vmatpush1.msra.mxu0 0.0
    %9855 = vmatprep.subr.mxu0 0.0
    %9856 = vmatpush1.msra.mxu0 0.0
    %9857 = vmatprep.subr.mxu0 0.0
    %9858 = vmatpush1.msra.mxu0 0.0
    %9859 = vmatprep.subr.mxu0 0.0
    %9860 = vmatpush1.msra.mxu0 0.0
    %9861 = vmatprep.subr.mxu0 0.0
    %9862 = vmatpush1.msra.mxu0 0.0
    %9863 = vmatprep.subr.mxu0 0.0
    %9864 = vmatpush1.msra.mxu0 0.0
    %9865 = vmatprep.subr.mxu0 0.0
    %9866 = vmatpush1.msra.mxu0 0.0
    %9867 = vmatprep.subr.mxu0 0.0
    %9868 = vmatpush1.msra.mxu0 0.0
    %9869 = vmatprep.subr.mxu0 0.0
    %9870 = vmatpush1.msra.mxu0 0.0
    %9871 = vmatprep.subr.mxu0 0.0
    %9872 = vmatpush1.msra.mxu0 0.0
    %9873 = vmatprep.mubr.f32.mxu0 0.0
    %v9874 = vand.u32 %v9806, 4294901760
    %v9875 = vsub.f32 %v9806, %v9874
    %v9876 = vand.u32 %v9875, 4294901760
    %v9877 = vsub.f32 %v9875, %v9876
    %v9878 = vand.u32 %v9877, 4294901760
    %9879 = vmatmul.mubr.f32.gmra.mrb[0].mxu0 %v9878
    %v9880 = vpop.f32.mrb[0].mxu0
    %v9881 = vadd.f32 0.0, %v9880
    %v9882 = vpop.f32.mrb[0].mxu0
    %9883 = vdwg.mxu0
    %9884 = vmatprep.subr.mxu0 0.0
    %v9885 = vand.u32 %v1259, 4294901760
    %v9886 = vsub.f32 %v1259, %v9885
    %v9887 = vand.u32 %v9886, 4294901760
    %v9888 = vsub.f32 %v9886, %v9887
    %v9889 = vand.u32 %v9888, 4294901760
    %9890 = vmatpush1.msra.mxu0 %v9889
    %9891 = vmatprep.subr.mxu0 0.0
    %9892 = vmatpush1.msra.mxu0 0.0
    %9893 = vmatprep.subr.mxu0 0.0
    %9894 = vmatpush1.msra.mxu0 0.0
    %9895 = vmatprep.subr.mxu0 0.0
    %9896 = vmatpush1.msra.mxu0 0.0
    %9897 = vmatprep.subr.mxu0 0.0
    %9898 = vmatpush1.msra.mxu0 0.0
    %9899 = vmatprep.subr.mxu0 0.0
    %9900 = vmatpush1.msra.mxu0 0.0
    %9901 = vmatprep.subr.mxu0 0.0
    %9902 = vmatpush1.msra.mxu0 0.0
    %9903 = vmatprep.subr.mxu0 0.0
    %9904 = vmatpush1.msra.mxu0 0.0
    %9905 = vmatprep.subr.mxu0 0.0
    %9906 = vmatpush1.msra.mxu0 0.0
    %9907 = vmatprep.subr.mxu0 0.0
    %9908 = vmatpush1.msra.mxu0 0.0
    %9909 = vmatprep.subr.mxu0 0.0
    %9910 = vmatpush1.msra.mxu0 0.0
    %9911 = vmatprep.subr.mxu0 0.0
    %9912 = vmatpush1.msra.mxu0 0.0
    %9913 = vmatprep.subr.mxu0 0.0
    %9914 = vmatpush1.msra.mxu0 0.0
    %9915 = vmatprep.subr.mxu0 0.0
    %9916 = vmatpush1.msra.mxu0 0.0
    %9917 = vmatprep.subr.mxu0 0.0
    %9918 = vmatpush1.msra.mxu0 0.0
    %9919 = vmatprep.subr.mxu0 0.0
    %9920 = vmatpush1.msra.mxu0 0.0
    %9921 = vmatprep.subr.mxu0 0.0
    %9922 = vmatpush1.msra.mxu0 0.0
    %9923 = vmatprep.subr.mxu0 0.0
    %9924 = vmatpush1.msra.mxu0 0.0
    %9925 = vmatprep.subr.mxu0 0.0
    %9926 = vmatpush1.msra.mxu0 0.0
    %9927 = vmatprep.subr.mxu0 0.0
    %9928 = vmatpush1.msra.mxu0 0.0
    %9929 = vmatprep.subr.mxu0 0.0
    %9930 = vmatpush1.msra.mxu0 0.0
    %9931 = vmatprep.subr.mxu0 0.0
    %9932 = vmatpush1.msra.mxu0 0.0
    %9933 = vmatprep.subr.mxu0 0.0
    %9934 = vmatpush1.msra.mxu0 0.0
    %9935 = vmatprep.subr.mxu0 0.0
    %9936 = vmatpush1.msra.mxu0 0.0
    %9937 = vmatprep.subr.mxu0 0.0
    %9938 = vmatpush1.msra.mxu0 0.0
    %9939 = vmatprep.subr.mxu0 0.0
    %9940 = vmatpush1.msra.mxu0 0.0
    %9941 = vmatprep.subr.mxu0 0.0
    %9942 = vmatpush1.msra.mxu0 0.0
    %9943 = vmatprep.subr.mxu0 0.0
    %9944 = vmatpush1.msra.mxu0 0.0
    %9945 = vmatprep.subr.mxu0 0.0
    %9946 = vmatpush1.msra.mxu0 0.0
    %9947 = vmatprep.subr.mxu0 0.0
    %9948 = vmatpush1.msra.mxu0 0.0
    %9949 = vmatprep.subr.mxu0 0.0
    %9950 = vmatpush1.msra.mxu0 0.0
    %9951 = vmatprep.subr.mxu0 0.0
    %9952 = vmatpush1.msra.mxu0 0.0
    %9953 = vmatprep.mubr.f32.mxu0 0.0
    %v9954 = vand.u32 %v9806, 4294901760
    %9955 = vmatmul.mubr.f32.gmra.mrb[0].mxu0 %v9954
    %v9956 = vpop.f32.mrb[0].mxu0
    %v9957 = vadd.f32 %v9881, %v9956
    %v9958 = vpop.f32.mrb[0].mxu0
    %9959 = vdwg.mxu0
    %9960 = vmatprep.subr.mxu0 0.0
    %v9961 = vand.u32 %v1259, 4294901760
    %v9962 = vsub.f32 %v1259, %v9961
    %9963 = vmatpush1.msra.mxu0 %v9962
    %9964 = vmatprep.subr.mxu0 0.0
    %9965 = vmatpush1.msra.mxu0 0.0
    %9966 = vmatprep.subr.mxu0 0.0
    %9967 = vmatpush1.msra.mxu0 0.0
    %9968 = vmatprep.subr.mxu0 0.0
    %9969 = vmatpush1.msra.mxu0 0.0
    %9970 = vmatprep.subr.mxu0 0.0
    %9971 = vmatpush1.msra.mxu0 0.0
    %9972 = vmatprep.subr.mxu0 0.0
    %9973 = vmatpush1.msra.mxu0 0.0
    %9974 = vmatprep.subr.mxu0 0.0
    %9975 = vmatpush1.msra.mxu0 0.0
    %9976 = vmatprep.subr.mxu0 0.0
    %9977 = vmatpush1.msra.mxu0 0.0
    %9978 = vmatprep.subr.mxu0 0.0
    %9979 = vmatpush1.msra.mxu0 0.0
    %9980 = vmatprep.subr.mxu0 0.0
    %9981 = vmatpush1.msra.mxu0 0.0
    %9982 = vmatprep.subr.mxu0 0.0
    %9983 = vmatpush1.msra.mxu0 0.0
    %9984 = vmatprep.subr.mxu0 0.0
    %9985 = vmatpush1.msra.mxu0 0.0
    %9986 = vmatprep.subr.mxu0 0.0
    %9987 = vmatpush1.msra.mxu0 0.0
    %9988 = vmatprep.subr.mxu0 0.0
    %9989 = vmatpush1.msra.mxu0 0.0
    %9990 = vmatprep.subr.mxu0 0.0
    %9991 = vmatpush1.msra.mxu0 0.0
    %9992 = vmatprep.subr.mxu0 0.0
    %9993 = vmatpush1.msra.mxu0 0.0
    %9994 = vmatprep.subr.mxu0 0.0
    %9995 = vmatpush1.msra.mxu0 0.0
    %9996 = vmatprep.subr.mxu0 0.0
    %9997 = vmatpush1.msra.mxu0 0.0
    %9998 = vmatprep.subr.mxu0 0.0
    %9999 = vmatpush1.msra.mxu0 0.0
    %10000 = vmatprep.subr.mxu0 0.0
    %10001 = vmatpush1.msra.mxu0 0.0
    %10002 = vmatprep.subr.mxu0 0.0
    %10003 = vmatpush1.msra.mxu0 0.0
    %10004 = vmatprep.subr.mxu0 0.0
    %10005 = vmatpush1.msra.mxu0 0.0
    %10006 = vmatprep.subr.mxu0 0.0
    %10007 = vmatpush1.msra.mxu0 0.0
    %10008 = vmatprep.subr.mxu0 0.0
    %10009 = vmatpush1.msra.mxu0 0.0
    %10010 = vmatprep.subr.mxu0 0.0
    %10011 = vmatpush1.msra.mxu0 0.0
    %10012 = vmatprep.subr.mxu0 0.0
    %10013 = vmatpush1.msra.mxu0 0.0
    %10014 = vmatprep.subr.mxu0 0.0
    %10015 = vmatpush1.msra.mxu0 0.0
    %10016 = vmatprep.subr.mxu0 0.0
    %10017 = vmatpush1.msra.mxu0 0.0
    %10018 = vmatprep.subr.mxu0 0.0
    %10019 = vmatpush1.msra.mxu0 0.0
    %10020 = vmatprep.subr.mxu0 0.0
    %10021 = vmatpush1.msra.mxu0 0.0
    %10022 = vmatprep.subr.mxu0 0.0
    %10023 = vmatpush1.msra.mxu0 0.0
    %10024 = vmatprep.subr.mxu0 0.0
    %10025 = vmatpush1.msra.mxu0 0.0
    %10026 = vmatprep.mubr.f32.mxu0 0.0
    %v10027 = vand.u32 %v9806, 4294901760
    %v10028 = vsub.f32 %v9806, %v10027
    %10029 = vmatmul.mubr.f32.gmra.mrb[0].mxu0 %v10028
    %v10030 = vpop.f32.mrb[0].mxu0
    %v10031 = vadd.f32 %v9957, %v10030
    %v10032 = vpop.f32.mrb[0].mxu0
    %10033 = vdwg.mxu0
    %10034 = vmatprep.subr.mxu0 0.0
    %v10035 = vand.u32 %v1259, 4294901760
    %10036 = vmatpush1.msra.mxu0 %v10035
    %10037 = vmatprep.subr.mxu0 0.0
    %10038 = vmatpush1.msra.mxu0 0.0
    %10039 = vmatprep.subr.mxu0 0.0
    %10040 = vmatpush1.msra.mxu0 0.0
    %10041 = vmatprep.subr.mxu0 0.0
    %10042 = vmatpush1.msra.mxu0 0.0
    %10043 = vmatprep.subr.mxu0 0.0
    %10044 = vmatpush1.msra.mxu0 0.0
    %10045 = vmatprep.subr.mxu0 0.0
    %10046 = vmatpush1.msra.mxu0 0.0
    %10047 = vmatprep.subr.mxu0 0.0
    %10048 = vmatpush1.msra.mxu0 0.0
    %10049 = vmatprep.subr.mxu0 0.0
    %10050 = vmatpush1.msra.mxu0 0.0
    %10051 = vmatprep.subr.mxu0 0.0
    %10052 = vmatpush1.msra.mxu0 0.0
    %10053 = vmatprep.subr.mxu0 0.0
    %10054 = vmatpush1.msra.mxu0 0.0
    %10055 = vmatprep.subr.mxu0 0.0
    %10056 = vmatpush1.msra.mxu0 0.0
    %10057 = vmatprep.subr.mxu0 0.0
    %10058 = vmatpush1.msra.mxu0 0.0
    %10059 = vmatprep.subr.mxu0 0.0
    %10060 = vmatpush1.msra.mxu0 0.0
    %10061 = vmatprep.subr.mxu0 0.0
    %10062 = vmatpush1.msra.mxu0 0.0
    %10063 = vmatprep.subr.mxu0 0.0
    %10064 = vmatpush1.msra.mxu0 0.0
    %10065 = vmatprep.subr.mxu0 0.0
    %10066 = vmatpush1.msra.mxu0 0.0
    %10067 = vmatprep.subr.mxu0 0.0
    %10068 = vmatpush1.msra.mxu0 0.0
    %10069 = vmatprep.subr.mxu0 0.0
    %10070 = vmatpush1.msra.mxu0 0.0
    %10071 = vmatprep.subr.mxu0 0.0
    %10072 = vmatpush1.msra.mxu0 0.0
    %10073 = vmatprep.subr.mxu0 0.0
    %10074 = vmatpush1.msra.mxu0 0.0
    %10075 = vmatprep.subr.mxu0 0.0
    %10076 = vmatpush1.msra.mxu0 0.0
    %10077 = vmatprep.subr.mxu0 0.0
    %10078 = vmatpush1.msra.mxu0 0.0
    %10079 = vmatprep.subr.mxu0 0.0
    %10080 = vmatpush1.msra.mxu0 0.0
    %10081 = vmatprep.subr.mxu0 0.0
    %10082 = vmatpush1.msra.mxu0 0.0
    %10083 = vmatprep.subr.mxu0 0.0
    %10084 = vmatpush1.msra.mxu0 0.0
    %10085 = vmatprep.subr.mxu0 0.0
    %10086 = vmatpush1.msra.mxu0 0.0
    %10087 = vmatprep.subr.mxu0 0.0
    %10088 = vmatpush1.msra.mxu0 0.0
    %10089 = vmatprep.subr.mxu0 0.0
    %10090 = vmatpush1.msra.mxu0 0.0
    %10091 = vmatprep.subr.mxu0 0.0
    %10092 = vmatpush1.msra.mxu0 0.0
    %10093 = vmatprep.subr.mxu0 0.0
    %10094 = vmatpush1.msra.mxu0 0.0
    %10095 = vmatprep.subr.mxu0 0.0
    %10096 = vmatpush1.msra.mxu0 0.0
    %10097 = vmatprep.subr.mxu0 0.0
    %10098 = vmatpush1.msra.mxu0 0.0
    %10099 = vmatprep.mubr.f32.mxu0 0.0
    %v10100 = vand.u32 %v9806, 4294901760
    %v10101 = vsub.f32 %v9806, %v10100
    %v10102 = vand.u32 %v10101, 4294901760
    %10103 = vmatmul.mubr.f32.gmra.mrb[0].mxu0 %v10102
    %v10104 = vpop.f32.mrb[0].mxu0
    %v10105 = vadd.f32 %v10031, %v10104
    %v10106 = vpop.f32.mrb[0].mxu0
    %10107 = vdwg.mxu0
    %10108 = vmatprep.subr.mxu0 0.0
    %v10109 = vand.u32 %v1259, 4294901760
    %v10110 = vsub.f32 %v1259, %v10109
    %v10111 = vand.u32 %v10110, 4294901760
    %10112 = vmatpush1.msra.mxu0 %v10111
    %10113 = vmatprep.subr.mxu0 0.0
    %10114 = vmatpush1.msra.mxu0 0.0
    %10115 = vmatprep.subr.mxu0 0.0
    %10116 = vmatpush1.msra.mxu0 0.0
    %10117 = vmatprep.subr.mxu0 0.0
    %10118 = vmatpush1.msra.mxu0 0.0
    %10119 = vmatprep.subr.mxu0 0.0
    %10120 = vmatpush1.msra.mxu0 0.0
    %10121 = vmatprep.subr.mxu0 0.0
    %10122 = vmatpush1.msra.mxu0 0.0
    %10123 = vmatprep.subr.mxu0 0.0
    %10124 = vmatpush1.msra.mxu0 0.0
    %10125 = vmatprep.subr.mxu0 0.0
    %10126 = vmatpush1.msra.mxu0 0.0
    %10127 = vmatprep.subr.mxu0 0.0
    %10128 = vmatpush1.msra.mxu0 0.0
    %10129 = vmatprep.subr.mxu0 0.0
    %10130 = vmatpush1.msra.mxu0 0.0
    %10131 = vmatprep.subr.mxu0 0.0
    %10132 = vmatpush1.msra.mxu0 0.0
    %10133 = vmatprep.subr.mxu0 0.0
    %10134 = vmatpush1.msra.mxu0 0.0
    %10135 = vmatprep.subr.mxu0 0.0
    %10136 = vmatpush1.msra.mxu0 0.0
    %10137 = vmatprep.subr.mxu0 0.0
    %10138 = vmatpush1.msra.mxu0 0.0
    %10139 = vmatprep.subr.mxu0 0.0
    %10140 = vmatpush1.msra.mxu0 0.0
    %10141 = vmatprep.subr.mxu0 0.0
    %10142 = vmatpush1.msra.mxu0 0.0
    %10143 = vmatprep.subr.mxu0 0.0
    %10144 = vmatpush1.msra.mxu0 0.0
    %10145 = vmatprep.subr.mxu0 0.0
    %10146 = vmatpush1.msra.mxu0 0.0
    %10147 = vmatprep.subr.mxu0 0.0
    %10148 = vmatpush1.msra.mxu0 0.0
    %10149 = vmatprep.subr.mxu0 0.0
    %10150 = vmatpush1.msra.mxu0 0.0
    %10151 = vmatprep.subr.mxu0 0.0
    %10152 = vmatpush1.msra.mxu0 0.0
    %10153 = vmatprep.subr.mxu0 0.0
    %10154 = vmatpush1.msra.mxu0 0.0
    %10155 = vmatprep.subr.mxu0 0.0
    %10156 = vmatpush1.msra.mxu0 0.0
    %10157 = vmatprep.subr.mxu0 0.0
    %10158 = vmatpush1.msra.mxu0 0.0
    %10159 = vmatprep.subr.mxu0 0.0
    %10160 = vmatpush1.msra.mxu0 0.0
    %10161 = vmatprep.subr.mxu0 0.0
    %10162 = vmatpush1.msra.mxu0 0.0
    %10163 = vmatprep.subr.mxu0 0.0
    %10164 = vmatpush1.msra.mxu0 0.0
    %10165 = vmatprep.subr.mxu0 0.0
    %10166 = vmatpush1.msra.mxu0 0.0
    %10167 = vmatprep.subr.mxu0 0.0
    %10168 = vmatpush1.msra.mxu0 0.0
    %10169 = vmatprep.subr.mxu0 0.0
    %10170 = vmatpush1.msra.mxu0 0.0
    %10171 = vmatprep.subr.mxu0 0.0
    %10172 = vmatpush1.msra.mxu0 0.0
    %10173 = vmatprep.subr.mxu0 0.0
    %10174 = vmatpush1.msra.mxu0 0.0
    %10175 = vmatprep.mubr.f32.mxu0 0.0
    %v10176 = vand.u32 %v9806, 4294901760
    %10177 = vmatmul.mubr.f32.gmra.mrb[0].mxu0 %v10176
    %v10178 = vpop.f32.mrb[0].mxu0
    %v10179 = vadd.f32 %v10105, %v10178
    %v10180 = vpop.f32.mrb[0].mxu0
    %10181 = vdwg.mxu0
    %10182 = vmatprep.subr.mxu0 0.0
    %v10183 = vand.u32 %v1259, 4294901760
    %10184 = vmatpush1.msra.mxu0 %v10183
    %10185 = vmatprep.subr.mxu0 0.0
    %10186 = vmatpush1.msra.mxu0 0.0
    %10187 = vmatprep.subr.mxu0 0.0
    %10188 = vmatpush1.msra.mxu0 0.0
    %10189 = vmatprep.subr.mxu0 0.0
    %10190 = vmatpush1.msra.mxu0 0.0
    %10191 = vmatprep.subr.mxu0 0.0
    %10192 = vmatpush1.msra.mxu0 0.0
    %10193 = vmatprep.subr.mxu0 0.0
    %10194 = vmatpush1.msra.mxu0 0.0
    %10195 = vmatprep.subr.mxu0 0.0
    %10196 = vmatpush1.msra.mxu0 0.0
    %10197 = vmatprep.subr.mxu0 0.0
    %10198 = vmatpush1.msra.mxu0 0.0
    %10199 = vmatprep.subr.mxu0 0.0
    %10200 = vmatpush1.msra.mxu0 0.0
    %10201 = vmatprep.subr.mxu0 0.0
    %10202 = vmatpush1.msra.mxu0 0.0
    %10203 = vmatprep.subr.mxu0 0.0
    %10204 = vmatpush1.msra.mxu0 0.0
    %10205 = vmatprep.subr.mxu0 0.0
    %10206 = vmatpush1.msra.mxu0 0.0
    %10207 = vmatprep.subr.mxu0 0.0
    %10208 = vmatpush1.msra.mxu0 0.0
    %10209 = vmatprep.subr.mxu0 0.0
    %10210 = vmatpush1.msra.mxu0 0.0
    %10211 = vmatprep.subr.mxu0 0.0
    %10212 = vmatpush1.msra.mxu0 0.0
    %10213 = vmatprep.subr.mxu0 0.0
    %10214 = vmatpush1.msra.mxu0 0.0
    %10215 = vmatprep.subr.mxu0 0.0
    %10216 = vmatpush1.msra.mxu0 0.0
    %10217 = vmatprep.subr.mxu0 0.0
    %10218 = vmatpush1.msra.mxu0 0.0
    %10219 = vmatprep.subr.mxu0 0.0
    %10220 = vmatpush1.msra.mxu0 0.0
    %10221 = vmatprep.subr.mxu0 0.0
    %10222 = vmatpush1.msra.mxu0 0.0
    %10223 = vmatprep.subr.mxu0 0.0
    %10224 = vmatpush1.msra.mxu0 0.0
    %10225 = vmatprep.subr.mxu0 0.0
    %10226 = vmatpush1.msra.mxu0 0.0
    %10227 = vmatprep.subr.mxu0 0.0
    %10228 = vmatpush1.msra.mxu0 0.0
    %10229 = vmatprep.subr.mxu0 0.0
    %10230 = vmatpush1.msra.mxu0 0.0
    %10231 = vmatprep.subr.mxu0 0.0
    %10232 = vmatpush1.msra.mxu0 0.0
    %10233 = vmatprep.subr.mxu0 0.0
    %10234 = vmatpush1.msra.mxu0 0.0
    %10235 = vmatprep.subr.mxu0 0.0
    %10236 = vmatpush1.msra.mxu0 0.0
    %10237 = vmatprep.subr.mxu0 0.0
    %10238 = vmatpush1.msra.mxu0 0.0
    %10239 = vmatprep.subr.mxu0 0.0
    %10240 = vmatpush1.msra.mxu0 0.0
    %10241 = vmatprep.subr.mxu0 0.0
    %10242 = vmatpush1.msra.mxu0 0.0
    %10243 = vmatprep.subr.mxu0 0.0
    %10244 = vmatpush1.msra.mxu0 0.0
    %10245 = vmatprep.subr.mxu0 0.0
    %10246 = vmatpush1.msra.mxu0 0.0
    %10247 = vmatprep.mubr.f32.mxu0 0.0
    %v10248 = vand.u32 %v9806, 4294901760
    %10249 = vmatmul.mubr.f32.gmra.mrb[0].mxu0 %v10248
    %v10250 = vpop.f32.mrb[0].mxu0
    %v10251 = vadd.f32 %v10179, %v10250
    %v10252 = vpop.f32.mrb[0].mxu0
    %10253 = vdwg.mxu0
    %v10255 = vsel %vm7471, %v7557, 0
    %10257 = vmatprep.subr.mxu0 0.0
    %v10258 = vand.u32 %v1260, 4294901760
    %10259 = vmatpush1.msra.mxu0 %v10258
    %10260 = vmatprep.subr.mxu0 0.0
    %10261 = vmatpush1.msra.mxu0 0.0
    %10262 = vmatprep.subr.mxu0 0.0
    %10263 = vmatpush1.msra.mxu0 0.0
    %10264 = vmatprep.subr.mxu0 0.0
    %10265 = vmatpush1.msra.mxu0 0.0
    %10266 = vmatprep.subr.mxu0 0.0
    %10267 = vmatpush1.msra.mxu0 0.0
    %10268 = vmatprep.subr.mxu0 0.0
    %10269 = vmatpush1.msra.mxu0 0.0
    %10270 = vmatprep.subr.mxu0 0.0
    %10271 = vmatpush1.msra.mxu0 0.0
    %10272 = vmatprep.subr.mxu0 0.0
    %10273 = vmatpush1.msra.mxu0 0.0
    %10274 = vmatprep.subr.mxu0 0.0
    %10275 = vmatpush1.msra.mxu0 0.0
    %10276 = vmatprep.subr.mxu0 0.0
    %10277 = vmatpush1.msra.mxu0 0.0
    %10278 = vmatprep.subr.mxu0 0.0
    %10279 = vmatpush1.msra.mxu0 0.0
    %10280 = vmatprep.subr.mxu0 0.0
    %10281 = vmatpush1.msra.mxu0 0.0
    %10282 = vmatprep.subr.mxu0 0.0
    %10283 = vmatpush1.msra.mxu0 0.0
    %10284 = vmatprep.subr.mxu0 0.0
    %10285 = vmatpush1.msra.mxu0 0.0
    %10286 = vmatprep.subr.mxu0 0.0
    %10287 = vmatpush1.msra.mxu0 0.0
    %10288 = vmatprep.subr.mxu0 0.0
    %10289 = vmatpush1.msra.mxu0 0.0
    %10290 = vmatprep.subr.mxu0 0.0
    %10291 = vmatpush1.msra.mxu0 0.0
    %10292 = vmatprep.subr.mxu0 0.0
    %10293 = vmatpush1.msra.mxu0 0.0
    %10294 = vmatprep.subr.mxu0 0.0
    %10295 = vmatpush1.msra.mxu0 0.0
    %10296 = vmatprep.subr.mxu0 0.0
    %10297 = vmatpush1.msra.mxu0 0.0
    %10298 = vmatprep.subr.mxu0 0.0
    %10299 = vmatpush1.msra.mxu0 0.0
    %10300 = vmatprep.subr.mxu0 0.0
    %10301 = vmatpush1.msra.mxu0 0.0
    %10302 = vmatprep.subr.mxu0 0.0
    %10303 = vmatpush1.msra.mxu0 0.0
    %10304 = vmatprep.subr.mxu0 0.0
    %10305 = vmatpush1.msra.mxu0 0.0
    %10306 = vmatprep.subr.mxu0 0.0
    %10307 = vmatpush1.msra.mxu0 0.0
    %10308 = vmatprep.subr.mxu0 0.0
    %10309 = vmatpush1.msra.mxu0 0.0
    %10310 = vmatprep.subr.mxu0 0.0
    %10311 = vmatpush1.msra.mxu0 0.0
    %10312 = vmatprep.subr.mxu0 0.0
    %10313 = vmatpush1.msra.mxu0 0.0
    %10314 = vmatprep.subr.mxu0 0.0
    %10315 = vmatpush1.msra.mxu0 0.0
    %10316 = vmatprep.subr.mxu0 0.0
    %10317 = vmatpush1.msra.mxu0 0.0
    %10318 = vmatprep.subr.mxu0 0.0
    %10319 = vmatpush1.msra.mxu0 0.0
    %10320 = vmatprep.subr.mxu0 0.0
    %10321 = vmatpush1.msra.mxu0 0.0
    %10322 = vmatprep.mubr.f32.mxu0 0.0
    %v10323 = vand.u32 %v10255, 4294901760
    %v10324 = vsub.f32 %v10255, %v10323
    %v10325 = vand.u32 %v10324, 4294901760
    %v10326 = vsub.f32 %v10324, %v10325
    %v10327 = vand.u32 %v10326, 4294901760
    %10328 = vmatmul.mubr.f32.gmra.mrb[0].mxu0 %v10327
    %v10329 = vpop.f32.mrb[0].mxu0
    %v10330 = vadd.f32 0.0, %v10329
    %v10331 = vpop.f32.mrb[0].mxu0
    %10332 = vdwg.mxu0
    %10333 = vmatprep.subr.mxu0 0.0
    %v10334 = vand.u32 %v1260, 4294901760
    %v10335 = vsub.f32 %v1260, %v10334
    %v10336 = vand.u32 %v10335, 4294901760
    %v10337 = vsub.f32 %v10335, %v10336
    %v10338 = vand.u32 %v10337, 4294901760
    %10339 = vmatpush1.msra.mxu0 %v10338
    %10340 = vmatprep.subr.mxu0 0.0
    %10341 = vmatpush1.msra.mxu0 0.0
    %10342 = vmatprep.subr.mxu0 0.0
    %10343 = vmatpush1.msra.mxu0 0.0
    %10344 = vmatprep.subr.mxu0 0.0
    %10345 = vmatpush1.msra.mxu0 0.0
    %10346 = vmatprep.subr.mxu0 0.0
    %10347 = vmatpush1.msra.mxu0 0.0
    %10348 = vmatprep.subr.mxu0 0.0
    %10349 = vmatpush1.msra.mxu0 0.0
    %10350 = vmatprep.subr.mxu0 0.0
    %10351 = vmatpush1.msra.mxu0 0.0
    %10352 = vmatprep.subr.mxu0 0.0
    %10353 = vmatpush1.msra.mxu0 0.0
    %10354 = vmatprep.subr.mxu0 0.0
    %10355 = vmatpush1.msra.mxu0 0.0
    %10356 = vmatprep.subr.mxu0 0.0
    %10357 = vmatpush1.msra.mxu0 0.0
    %10358 = vmatprep.subr.mxu0 0.0
    %10359 = vmatpush1.msra.mxu0 0.0
    %10360 = vmatprep.subr.mxu0 0.0
    %10361 = vmatpush1.msra.mxu0 0.0
    %10362 = vmatprep.subr.mxu0 0.0
    %10363 = vmatpush1.msra.mxu0 0.0
    %10364 = vmatprep.subr.mxu0 0.0
    %10365 = vmatpush1.msra.mxu0 0.0
    %10366 = vmatprep.subr.mxu0 0.0
    %10367 = vmatpush1.msra.mxu0 0.0
    %10368 = vmatprep.subr.mxu0 0.0
    %10369 = vmatpush1.msra.mxu0 0.0
    %10370 = vmatprep.subr.mxu0 0.0
    %10371 = vmatpush1.msra.mxu0 0.0
    %10372 = vmatprep.subr.mxu0 0.0
    %10373 = vmatpush1.msra.mxu0 0.0
    %10374 = vmatprep.subr.mxu0 0.0
    %10375 = vmatpush1.msra.mxu0 0.0
    %10376 = vmatprep.subr.mxu0 0.0
    %10377 = vmatpush1.msra.mxu0 0.0
    %10378 = vmatprep.subr.mxu0 0.0
    %10379 = vmatpush1.msra.mxu0 0.0
    %10380 = vmatprep.subr.mxu0 0.0
    %10381 = vmatpush1.msra.mxu0 0.0
    %10382 = vmatprep.subr.mxu0 0.0
    %10383 = vmatpush1.msra.mxu0 0.0
    %10384 = vmatprep.subr.mxu0 0.0
    %10385 = vmatpush1.msra.mxu0 0.0
    %10386 = vmatprep.subr.mxu0 0.0
    %10387 = vmatpush1.msra.mxu0 0.0
    %10388 = vmatprep.subr.mxu0 0.0
    %10389 = vmatpush1.msra.mxu0 0.0
    %10390 = vmatprep.subr.mxu0 0.0
    %10391 = vmatpush1.msra.mxu0 0.0
    %10392 = vmatprep.subr.mxu0 0.0
    %10393 = vmatpush1.msra.mxu0 0.0
    %10394 = vmatprep.subr.mxu0 0.0
    %10395 = vmatpush1.msra.mxu0 0.0
    %10396 = vmatprep.subr.mxu0 0.0
    %10397 = vmatpush1.msra.mxu0 0.0
    %10398 = vmatprep.subr.mxu0 0.0
    %10399 = vmatpush1.msra.mxu0 0.0
    %10400 = vmatprep.subr.mxu0 0.0
    %10401 = vmatpush1.msra.mxu0 0.0
    %10402 = vmatprep.mubr.f32.mxu0 0.0
    %v10403 = vand.u32 %v10255, 4294901760
    %10404 = vmatmul.mubr.f32.gmra.mrb[0].mxu0 %v10403
    %v10405 = vpop.f32.mrb[0].mxu0
    %v10406 = vadd.f32 %v10330, %v10405
    %v10407 = vpop.f32.mrb[0].mxu0
    %10408 = vdwg.mxu0
    %10409 = vmatprep.subr.mxu0 0.0
    %v10410 = vand.u32 %v1260, 4294901760
    %v10411 = vsub.f32 %v1260, %v10410
    %10412 = vmatpush1.msra.mxu0 %v10411
    %10413 = vmatprep.subr.mxu0 0.0
    %10414 = vmatpush1.msra.mxu0 0.0
    %10415 = vmatprep.subr.mxu0 0.0
    %10416 = vmatpush1.msra.mxu0 0.0
    %10417 = vmatprep.subr.mxu0 0.0
    %10418 = vmatpush1.msra.mxu0 0.0
    %10419 = vmatprep.subr.mxu0 0.0
    %10420 = vmatpush1.msra.mxu0 0.0
    %10421 = vmatprep.subr.mxu0 0.0
    %10422 = vmatpush1.msra.mxu0 0.0
    %10423 = vmatprep.subr.mxu0 0.0
    %10424 = vmatpush1.msra.mxu0 0.0
    %10425 = vmatprep.subr.mxu0 0.0
    %10426 = vmatpush1.msra.mxu0 0.0
    %10427 = vmatprep.subr.mxu0 0.0
    %10428 = vmatpush1.msra.mxu0 0.0
    %10429 = vmatprep.subr.mxu0 0.0
    %10430 = vmatpush1.msra.mxu0 0.0
    %10431 = vmatprep.subr.mxu0 0.0
    %10432 = vmatpush1.msra.mxu0 0.0
    %10433 = vmatprep.subr.mxu0 0.0
    %10434 = vmatpush1.msra.mxu0 0.0
    %10435 = vmatprep.subr.mxu0 0.0
    %10436 = vmatpush1.msra.mxu0 0.0
    %10437 = vmatprep.subr.mxu0 0.0
    %10438 = vmatpush1.msra.mxu0 0.0
    %10439 = vmatprep.subr.mxu0 0.0
    %10440 = vmatpush1.msra.mxu0 0.0
    %10441 = vmatprep.subr.mxu0 0.0
    %10442 = vmatpush1.msra.mxu0 0.0
    %10443 = vmatprep.subr.mxu0 0.0
    %10444 = vmatpush1.msra.mxu0 0.0
    %10445 = vmatprep.subr.mxu0 0.0
    %10446 = vmatpush1.msra.mxu0 0.0
    %10447 = vmatprep.subr.mxu0 0.0
    %10448 = vmatpush1.msra.mxu0 0.0
    %10449 = vmatprep.subr.mxu0 0.0
    %10450 = vmatpush1.msra.mxu0 0.0
    %10451 = vmatprep.subr.mxu0 0.0
    %10452 = vmatpush1.msra.mxu0 0.0
    %10453 = vmatprep.subr.mxu0 0.0
    %10454 = vmatpush1.msra.mxu0 0.0
    %10455 = vmatprep.subr.mxu0 0.0
    %10456 = vmatpush1.msra.mxu0 0.0
    %10457 = vmatprep.subr.mxu0 0.0
    %10458 = vmatpush1.msra.mxu0 0.0
    %10459 = vmatprep.subr.mxu0 0.0
    %10460 = vmatpush1.msra.mxu0 0.0
    %10461 = vmatprep.subr.mxu0 0.0
    %10462 = vmatpush1.msra.mxu0 0.0
    %10463 = vmatprep.subr.mxu0 0.0
    %10464 = vmatpush1.msra.mxu0 0.0
    %10465 = vmatprep.subr.mxu0 0.0
    %10466 = vmatpush1.msra.mxu0 0.0
    %10467 = vmatprep.subr.mxu0 0.0
    %10468 = vmatpush1.msra.mxu0 0.0
    %10469 = vmatprep.subr.mxu0 0.0
    %10470 = vmatpush1.msra.mxu0 0.0
    %10471 = vmatprep.subr.mxu0 0.0
    %10472 = vmatpush1.msra.mxu0 0.0
    %10473 = vmatprep.subr.mxu0 0.0
    %10474 = vmatpush1.msra.mxu0 0.0
    %10475 = vmatprep.mubr.f32.mxu0 0.0
    %v10476 = vand.u32 %v10255, 4294901760
    %v10477 = vsub.f32 %v10255, %v10476
    %10478 = vmatmul.mubr.f32.gmra.mrb[0].mxu0 %v10477
    %v10479 = vpop.f32.mrb[0].mxu0
    %v10480 = vadd.f32 %v10406, %v10479
    %v10481 = vpop.f32.mrb[0].mxu0
    %10482 = vdwg.mxu0
    %10483 = vmatprep.subr.mxu0 0.0
    %v10484 = vand.u32 %v1260, 4294901760
    %10485 = vmatpush1.msra.mxu0 %v10484
    %10486 = vmatprep.subr.mxu0 0.0
    %10487 = vmatpush1.msra.mxu0 0.0
    %10488 = vmatprep.subr.mxu0 0.0
    %10489 = vmatpush1.msra.mxu0 0.0
    %10490 = vmatprep.subr.mxu0 0.0
    %10491 = vmatpush1.msra.mxu0 0.0
    %10492 = vmatprep.subr.mxu0 0.0
    %10493 = vmatpush1.msra.mxu0 0.0
    %10494 = vmatprep.subr.mxu0 0.0
    %10495 = vmatpush1.msra.mxu0 0.0
    %10496 = vmatprep.subr.mxu0 0.0
    %10497 = vmatpush1.msra.mxu0 0.0
    %10498 = vmatprep.subr.mxu0 0.0
    %10499 = vmatpush1.msra.mxu0 0.0
    %10500 = vmatprep.subr.mxu0 0.0
    %10501 = vmatpush1.msra.mxu0 0.0
    %10502 = vmatprep.subr.mxu0 0.0
    %10503 = vmatpush1.msra.mxu0 0.0
    %10504 = vmatprep.subr.mxu0 0.0
    %10505 = vmatpush1.msra.mxu0 0.0
    %10506 = vmatprep.subr.mxu0 0.0
    %10507 = vmatpush1.msra.mxu0 0.0
    %10508 = vmatprep.subr.mxu0 0.0
    %10509 = vmatpush1.msra.mxu0 0.0
    %10510 = vmatprep.subr.mxu0 0.0
    %10511 = vmatpush1.msra.mxu0 0.0
    %10512 = vmatprep.subr.mxu0 0.0
    %10513 = vmatpush1.msra.mxu0 0.0
    %10514 = vmatprep.subr.mxu0 0.0
    %10515 = vmatpush1.msra.mxu0 0.0
    %10516 = vmatprep.subr.mxu0 0.0
    %10517 = vmatpush1.msra.mxu0 0.0
    %10518 = vmatprep.subr.mxu0 0.0
    %10519 = vmatpush1.msra.mxu0 0.0
    %10520 = vmatprep.subr.mxu0 0.0
    %10521 = vmatpush1.msra.mxu0 0.0
    %10522 = vmatprep.subr.mxu0 0.0
    %10523 = vmatpush1.msra.mxu0 0.0
    %10524 = vmatprep.subr.mxu0 0.0
    %10525 = vmatpush1.msra.mxu0 0.0
    %10526 = vmatprep.subr.mxu0 0.0
    %10527 = vmatpush1.msra.mxu0 0.0
    %10528 = vmatprep.subr.mxu0 0.0
    %10529 = vmatpush1.msra.mxu0 0.0
    %10530 = vmatprep.subr.mxu0 0.0
    %10531 = vmatpush1.msra.mxu0 0.0
    %10532 = vmatprep.subr.mxu0 0.0
    %10533 = vmatpush1.msra.mxu0 0.0
    %10534 = vmatprep.subr.mxu0 0.0
    %10535 = vmatpush1.msra.mxu0 0.0
    %10536 = vmatprep.subr.mxu0 0.0
    %10537 = vmatpush1.msra.mxu0 0.0
    %10538 = vmatprep.subr.mxu0 0.0
    %10539 = vmatpush1.msra.mxu0 0.0
    %10540 = vmatprep.subr.mxu0 0.0
    %10541 = vmatpush1.msra.mxu0 0.0
    %10542 = vmatprep.subr.mxu0 0.0
    %10543 = vmatpush1.msra.mxu0 0.0
    %10544 = vmatprep.subr.mxu0 0.0
    %10545 = vmatpush1.msra.mxu0 0.0
    %10546 = vmatprep.subr.mxu0 0.0
    %10547 = vmatpush1.msra.mxu0 0.0
    %10548 = vmatprep.mubr.f32.mxu0 0.0
    %v10549 = vand.u32 %v10255, 4294901760
    %v10550 = vsub.f32 %v10255, %v10549
    %v10551 = vand.u32 %v10550, 4294901760
    %10552 = vmatmul.mubr.f32.gmra.mrb[0].mxu0 %v10551
    %v10553 = vpop.f32.mrb[0].mxu0
    %v10554 = vadd.f32 %v10480, %v10553
    %v10555 = vpop.f32.mrb[0].mxu0
    %10556 = vdwg.mxu0
    %10557 = vmatprep.subr.mxu0 0.0
    %v10558 = vand.u32 %v1260, 4294901760
    %v10559 = vsub.f32 %v1260, %v10558
    %v10560 = vand.u32 %v10559, 4294901760
    %10561 = vmatpush1.msra.mxu0 %v10560
    %10562 = vmatprep.subr.mxu0 0.0
    %10563 = vmatpush1.msra.mxu0 0.0
    %10564 = vmatprep.subr.mxu0 0.0
    %10565 = vmatpush1.msra.mxu0 0.0
    %10566 = vmatprep.subr.mxu0 0.0
    %10567 = vmatpush1.msra.mxu0 0.0
    %10568 = vmatprep.subr.mxu0 0.0
    %10569 = vmatpush1.msra.mxu0 0.0
    %10570 = vmatprep.subr.mxu0 0.0
    %10571 = vmatpush1.msra.mxu0 0.0
    %10572 = vmatprep.subr.mxu0 0.0
    %10573 = vmatpush1.msra.mxu0 0.0
    %10574 = vmatprep.subr.mxu0 0.0
    %10575 = vmatpush1.msra.mxu0 0.0
    %10576 = vmatprep.subr.mxu0 0.0
    %10577 = vmatpush1.msra.mxu0 0.0
    %10578 = vmatprep.subr.mxu0 0.0
    %10579 = vmatpush1.msra.mxu0 0.0
    %10580 = vmatprep.subr.mxu0 0.0
    %10581 = vmatpush1.msra.mxu0 0.0
    %10582 = vmatprep.subr.mxu0 0.0
    %10583 = vmatpush1.msra.mxu0 0.0
    %10584 = vmatprep.subr.mxu0 0.0
    %10585 = vmatpush1.msra.mxu0 0.0
    %10586 = vmatprep.subr.mxu0 0.0
    %10587 = vmatpush1.msra.mxu0 0.0
    %10588 = vmatprep.subr.mxu0 0.0
    %10589 = vmatpush1.msra.mxu0 0.0
    %10590 = vmatprep.subr.mxu0 0.0
    %10591 = vmatpush1.msra.mxu0 0.0
    %10592 = vmatprep.subr.mxu0 0.0
    %10593 = vmatpush1.msra.mxu0 0.0
    %10594 = vmatprep.subr.mxu0 0.0
    %10595 = vmatpush1.msra.mxu0 0.0
    %10596 = vmatprep.subr.mxu0 0.0
    %10597 = vmatpush1.msra.mxu0 0.0
    %10598 = vmatprep.subr.mxu0 0.0
    %10599 = vmatpush1.msra.mxu0 0.0
    %10600 = vmatprep.subr.mxu0 0.0
    %10601 = vmatpush1.msra.mxu0 0.0
    %10602 = vmatprep.subr.mxu0 0.0
    %10603 = vmatpush1.msra.mxu0 0.0
    %10604 = vmatprep.subr.mxu0 0.0
    %10605 = vmatpush1.msra.mxu0 0.0
    %10606 = vmatprep.subr.mxu0 0.0
    %10607 = vmatpush1.msra.mxu0 0.0
    %10608 = vmatprep.subr.mxu0 0.0
    %10609 = vmatpush1.msra.mxu0 0.0
    %10610 = vmatprep.subr.mxu0 0.0
    %10611 = vmatpush1.msra.mxu0 0.0
    %10612 = vmatprep.subr.mxu0 0.0
    %10613 = vmatpush1.msra.mxu0 0.0
    %10614 = vmatprep.subr.mxu0 0.0
    %10615 = vmatpush1.msra.mxu0 0.0
    %10616 = vmatprep.subr.mxu0 0.0
    %10617 = vmatpush1.msra.mxu0 0.0
    %10618 = vmatprep.subr.mxu0 0.0
    %10619 = vmatpush1.msra.mxu0 0.0
    %10620 = vmatprep.subr.mxu0 0.0
    %10621 = vmatpush1.msra.mxu0 0.0
    %10622 = vmatprep.subr.mxu0 0.0
    %10623 = vmatpush1.msra.mxu0 0.0
    %10624 = vmatprep.mubr.f32.mxu0 0.0
    %v10625 = vand.u32 %v10255, 4294901760
    %10626 = vmatmul.mubr.f32.gmra.mrb[0].mxu0 %v10625
    %v10627 = vpop.f32.mrb[0].mxu0
    %v10628 = vadd.f32 %v10554, %v10627
    %v10629 = vpop.f32.mrb[0].mxu0
    %10630 = vdwg.mxu0
    %10631 = vmatprep.subr.mxu0 0.0
    %v10632 = vand.u32 %v1260, 4294901760
    %10633 = vmatpush1.msra.mxu0 %v10632
    %10634 = vmatprep.subr.mxu0 0.0
    %10635 = vmatpush1.msra.mxu0 0.0
    %10636 = vmatprep.subr.mxu0 0.0
    %10637 = vmatpush1.msra.mxu0 0.0
    %10638 = vmatprep.subr.mxu0 0.0
    %10639 = vmatpush1.msra.mxu0 0.0
    %10640 = vmatprep.subr.mxu0 0.0
    %10641 = vmatpush1.msra.mxu0 0.0
    %10642 = vmatprep.subr.mxu0 0.0
    %10643 = vmatpush1.msra.mxu0 0.0
    %10644 = vmatprep.subr.mxu0 0.0
    %10645 = vmatpush1.msra.mxu0 0.0
    %10646 = vmatprep.subr.mxu0 0.0
    %10647 = vmatpush1.msra.mxu0 0.0
    %10648 = vmatprep.subr.mxu0 0.0
    %10649 = vmatpush1.msra.mxu0 0.0
    %10650 = vmatprep.subr.mxu0 0.0
    %10651 = vmatpush1.msra.mxu0 0.0
    %10652 = vmatprep.subr.mxu0 0.0
    %10653 = vmatpush1.msra.mxu0 0.0
    %10654 = vmatprep.subr.mxu0 0.0
    %10655 = vmatpush1.msra.mxu0 0.0
    %10656 = vmatprep.subr.mxu0 0.0
    %10657 = vmatpush1.msra.mxu0 0.0
    %10658 = vmatprep.subr.mxu0 0.0
    %10659 = vmatpush1.msra.mxu0 0.0
    %10660 = vmatprep.subr.mxu0 0.0
    %10661 = vmatpush1.msra.mxu0 0.0
    %10662 = vmatprep.subr.mxu0 0.0
    %10663 = vmatpush1.msra.mxu0 0.0
    %10664 = vmatprep.subr.mxu0 0.0
    %10665 = vmatpush1.msra.mxu0 0.0
    %10666 = vmatprep.subr.mxu0 0.0
    %10667 = vmatpush1.msra.mxu0 0.0
    %10668 = vmatprep.subr.mxu0 0.0
    %10669 = vmatpush1.msra.mxu0 0.0
    %10670 = vmatprep.subr.mxu0 0.0
    %10671 = vmatpush1.msra.mxu0 0.0
    %10672 = vmatprep.subr.mxu0 0.0
    %10673 = vmatpush1.msra.mxu0 0.0
    %10674 = vmatprep.subr.mxu0 0.0
    %10675 = vmatpush1.msra.mxu0 0.0
    %10676 = vmatprep.subr.mxu0 0.0
    %10677 = vmatpush1.msra.mxu0 0.0
    %10678 = vmatprep.subr.mxu0 0.0
    %10679 = vmatpush1.msra.mxu0 0.0
    %10680 = vmatprep.subr.mxu0 0.0
    %10681 = vmatpush1.msra.mxu0 0.0
    %10682 = vmatprep.subr.mxu0 0.0
    %10683 = vmatpush1.msra.mxu0 0.0
    %10684 = vmatprep.subr.mxu0 0.0
    %10685 = vmatpush1.msra.mxu0 0.0
    %10686 = vmatprep.subr.mxu0 0.0
    %10687 = vmatpush1.msra.mxu0 0.0
    %10688 = vmatprep.subr.mxu0 0.0
    %10689 = vmatpush1.msra.mxu0 0.0
    %10690 = vmatprep.subr.mxu0 0.0
    %10691 = vmatpush1.msra.mxu0 0.0
    %10692 = vmatprep.subr.mxu0 0.0
    %10693 = vmatpush1.msra.mxu0 0.0
    %10694 = vmatprep.subr.mxu0 0.0
    %10695 = vmatpush1.msra.mxu0 0.0
    %10696 = vmatprep.mubr.f32.mxu0 0.0
    %v10697 = vand.u32 %v10255, 4294901760
    %10698 = vmatmul.mubr.f32.gmra.mrb[0].mxu0 %v10697
    %v10699 = vpop.f32.mrb[0].mxu0
    %v10700 = vadd.f32 %v10628, %v10699
    %v10701 = vpop.f32.mrb[0].mxu0
    %10702 = vdwg.mxu0
    %v10704 = vsel %vm7471, %v7559, 0
    %10706 = vmatprep.subr.mxu0 0.0
    %v10707 = vand.u32 %v1261, 4294901760
    %10708 = vmatpush1.msra.mxu0 %v10707
    %10709 = vmatprep.subr.mxu0 0.0
    %10710 = vmatpush1.msra.mxu0 0.0
    %10711 = vmatprep.subr.mxu0 0.0
    %10712 = vmatpush1.msra.mxu0 0.0
    %10713 = vmatprep.subr.mxu0 0.0
    %10714 = vmatpush1.msra.mxu0 0.0
    %10715 = vmatprep.subr.mxu0 0.0
    %10716 = vmatpush1.msra.mxu0 0.0
    %10717 = vmatprep.subr.mxu0 0.0
    %10718 = vmatpush1.msra.mxu0 0.0
    %10719 = vmatprep.subr.mxu0 0.0
    %10720 = vmatpush1.msra.mxu0 0.0
    %10721 = vmatprep.subr.mxu0 0.0
    %10722 = vmatpush1.msra.mxu0 0.0
    %10723 = vmatprep.subr.mxu0 0.0
    %10724 = vmatpush1.msra.mxu0 0.0
    %10725 = vmatprep.subr.mxu0 0.0
    %10726 = vmatpush1.msra.mxu0 0.0
    %10727 = vmatprep.subr.mxu0 0.0
    %10728 = vmatpush1.msra.mxu0 0.0
    %10729 = vmatprep.subr.mxu0 0.0
    %10730 = vmatpush1.msra.mxu0 0.0
    %10731 = vmatprep.subr.mxu0 0.0
    %10732 = vmatpush1.msra.mxu0 0.0
    %10733 = vmatprep.subr.mxu0 0.0
    %10734 = vmatpush1.msra.mxu0 0.0
    %10735 = vmatprep.subr.mxu0 0.0
    %10736 = vmatpush1.msra.mxu0 0.0
    %10737 = vmatprep.subr.mxu0 0.0
    %10738 = vmatpush1.msra.mxu0 0.0
    %10739 = vmatprep.subr.mxu0 0.0
    %10740 = vmatpush1.msra.mxu0 0.0
    %10741 = vmatprep.subr.mxu0 0.0
    %10742 = vmatpush1.msra.mxu0 0.0
    %10743 = vmatprep.subr.mxu0 0.0
    %10744 = vmatpush1.msra.mxu0 0.0
    %10745 = vmatprep.subr.mxu0 0.0
    %10746 = vmatpush1.msra.mxu0 0.0
    %10747 = vmatprep.subr.mxu0 0.0
    %10748 = vmatpush1.msra.mxu0 0.0
    %10749 = vmatprep.subr.mxu0 0.0
    %10750 = vmatpush1.msra.mxu0 0.0
    %10751 = vmatprep.subr.mxu0 0.0
    %10752 = vmatpush1.msra.mxu0 0.0
    %10753 = vmatprep.subr.mxu0 0.0
    %10754 = vmatpush1.msra.mxu0 0.0
    %10755 = vmatprep.subr.mxu0 0.0
    %10756 = vmatpush1.msra.mxu0 0.0
    %10757 = vmatprep.subr.mxu0 0.0
    %10758 = vmatpush1.msra.mxu0 0.0
    %10759 = vmatprep.subr.mxu0 0.0
    %10760 = vmatpush1.msra.mxu0 0.0
    %10761 = vmatprep.subr.mxu0 0.0
    %10762 = vmatpush1.msra.mxu0 0.0
    %10763 = vmatprep.subr.mxu0 0.0
    %10764 = vmatpush1.msra.mxu0 0.0
    %10765 = vmatprep.subr.mxu0 0.0
    %10766 = vmatpush1.msra.mxu0 0.0
    %10767 = vmatprep.subr.mxu0 0.0
    %10768 = vmatpush1.msra.mxu0 0.0
    %10769 = vmatprep.subr.mxu0 0.0
    %10770 = vmatpush1.msra.mxu0 0.0
    %10771 = vmatprep.mubr.f32.mxu0 0.0
    %v10772 = vand.u32 %v10704, 4294901760
    %v10773 = vsub.f32 %v10704, %v10772
    %v10774 = vand.u32 %v10773, 4294901760
    %v10775 = vsub.f32 %v10773, %v10774
    %v10776 = vand.u32 %v10775, 4294901760
    %10777 = vmatmul.mubr.f32.gmra.mrb[0].mxu0 %v10776
    %v10778 = vpop.f32.mrb[0].mxu0
    %v10779 = vadd.f32 0.0, %v10778
    %v10780 = vpop.f32.mrb[0].mxu0
    %10781 = vdwg.mxu0
    %10782 = vmatprep.subr.mxu0 0.0
    %v10783 = vand.u32 %v1261, 4294901760
    %v10784 = vsub.f32 %v1261, %v10783
    %v10785 = vand.u32 %v10784, 4294901760
    %v10786 = vsub.f32 %v10784, %v10785
    %v10787 = vand.u32 %v10786, 4294901760
    %10788 = vmatpush1.msra.mxu0 %v10787
    %10789 = vmatprep.subr.mxu0 0.0
    %10790 = vmatpush1.msra.mxu0 0.0
    %10791 = vmatprep.subr.mxu0 0.0
    %10792 = vmatpush1.msra.mxu0 0.0
    %10793 = vmatprep.subr.mxu0 0.0
    %10794 = vmatpush1.msra.mxu0 0.0
    %10795 = vmatprep.subr.mxu0 0.0
    %10796 = vmatpush1.msra.mxu0 0.0
    %10797 = vmatprep.subr.mxu0 0.0
    %10798 = vmatpush1.msra.mxu0 0.0
    %10799 = vmatprep.subr.mxu0 0.0
    %10800 = vmatpush1.msra.mxu0 0.0
    %10801 = vmatprep.subr.mxu0 0.0
    %10802 = vmatpush1.msra.mxu0 0.0
    %10803 = vmatprep.subr.mxu0 0.0
    %10804 = vmatpush1.msra.mxu0 0.0
    %10805 = vmatprep.subr.mxu0 0.0
    %10806 = vmatpush1.msra.mxu0 0.0
    %10807 = vmatprep.subr.mxu0 0.0
    %10808 = vmatpush1.msra.mxu0 0.0
    %10809 = vmatprep.subr.mxu0 0.0
    %10810 = vmatpush1.msra.mxu0 0.0
    %10811 = vmatprep.subr.mxu0 0.0
    %10812 = vmatpush1.msra.mxu0 0.0
    %10813 = vmatprep.subr.mxu0 0.0
    %10814 = vmatpush1.msra.mxu0 0.0
    %10815 = vmatprep.subr.mxu0 0.0
    %10816 = vmatpush1.msra.mxu0 0.0
    %10817 = vmatprep.subr.mxu0 0.0
    %10818 = vmatpush1.msra.mxu0 0.0
    %10819 = vmatprep.subr.mxu0 0.0
    %10820 = vmatpush1.msra.mxu0 0.0
    %10821 = vmatprep.subr.mxu0 0.0
    %10822 = vmatpush1.msra.mxu0 0.0
    %10823 = vmatprep.subr.mxu0 0.0
    %10824 = vmatpush1.msra.mxu0 0.0
    %10825 = vmatprep.subr.mxu0 0.0
    %10826 = vmatpush1.msra.mxu0 0.0
    %10827 = vmatprep.subr.mxu0 0.0
    %10828 = vmatpush1.msra.mxu0 0.0
    %10829 = vmatprep.subr.mxu0 0.0
    %10830 = vmatpush1.msra.mxu0 0.0
    %10831 = vmatprep.subr.mxu0 0.0
    %10832 = vmatpush1.msra.mxu0 0.0
    %10833 = vmatprep.subr.mxu0 0.0
    %10834 = vmatpush1.msra.mxu0 0.0
    %10835 = vmatprep.subr.mxu0 0.0
    %10836 = vmatpush1.msra.mxu0 0.0
    %10837 = vmatprep.subr.mxu0 0.0
    %10838 = vmatpush1.msra.mxu0 0.0
    %10839 = vmatprep.subr.mxu0 0.0
    %10840 = vmatpush1.msra.mxu0 0.0
    %10841 = vmatprep.subr.mxu0 0.0
    %10842 = vmatpush1.msra.mxu0 0.0
    %10843 = vmatprep.subr.mxu0 0.0
    %10844 = vmatpush1.msra.mxu0 0.0
    %10845 = vmatprep.subr.mxu0 0.0
    %10846 = vmatpush1.msra.mxu0 0.0
    %10847 = vmatprep.subr.mxu0 0.0
    %10848 = vmatpush1.msra.mxu0 0.0
    %10849 = vmatprep.subr.mxu0 0.0
    %10850 = vmatpush1.msra.mxu0 0.0
    %10851 = vmatprep.mubr.f32.mxu0 0.0
    %v10852 = vand.u32 %v10704, 4294901760
    %10853 = vmatmul.mubr.f32.gmra.mrb[0].mxu0 %v10852
    %v10854 = vpop.f32.mrb[0].mxu0
    %v10855 = vadd.f32 %v10779, %v10854
    %v10856 = vpop.f32.mrb[0].mxu0
    %10857 = vdwg.mxu0
    %10858 = vmatprep.subr.mxu0 0.0
    %v10859 = vand.u32 %v1261, 4294901760
    %v10860 = vsub.f32 %v1261, %v10859
    %10861 = vmatpush1.msra.mxu0 %v10860
    %10862 = vmatprep.subr.mxu0 0.0
    %10863 = vmatpush1.msra.mxu0 0.0
    %10864 = vmatprep.subr.mxu0 0.0
    %10865 = vmatpush1.msra.mxu0 0.0
    %10866 = vmatprep.subr.mxu0 0.0
    %10867 = vmatpush1.msra.mxu0 0.0
    %10868 = vmatprep.subr.mxu0 0.0
    %10869 = vmatpush1.msra.mxu0 0.0
    %10870 = vmatprep.subr.mxu0 0.0
    %10871 = vmatpush1.msra.mxu0 0.0
    %10872 = vmatprep.subr.mxu0 0.0
    %10873 = vmatpush1.msra.mxu0 0.0
    %10874 = vmatprep.subr.mxu0 0.0
    %10875 = vmatpush1.msra.mxu0 0.0
    %10876 = vmatprep.subr.mxu0 0.0
    %10877 = vmatpush1.msra.mxu0 0.0
    %10878 = vmatprep.subr.mxu0 0.0
    %10879 = vmatpush1.msra.mxu0 0.0
    %10880 = vmatprep.subr.mxu0 0.0
    %10881 = vmatpush1.msra.mxu0 0.0
    %10882 = vmatprep.subr.mxu0 0.0
    %10883 = vmatpush1.msra.mxu0 0.0
    %10884 = vmatprep.subr.mxu0 0.0
    %10885 = vmatpush1.msra.mxu0 0.0
    %10886 = vmatprep.subr.mxu0 0.0
    %10887 = vmatpush1.msra.mxu0 0.0
    %10888 = vmatprep.subr.mxu0 0.0
    %10889 = vmatpush1.msra.mxu0 0.0
    %10890 = vmatprep.subr.mxu0 0.0
    %10891 = vmatpush1.msra.mxu0 0.0
    %10892 = vmatprep.subr.mxu0 0.0
    %10893 = vmatpush1.msra.mxu0 0.0
    %10894 = vmatprep.subr.mxu0 0.0
    %10895 = vmatpush1.msra.mxu0 0.0
    %10896 = vmatprep.subr.mxu0 0.0
    %10897 = vmatpush1.msra.mxu0 0.0
    %10898 = vmatprep.subr.mxu0 0.0
    %10899 = vmatpush1.msra.mxu0 0.0
    %10900 = vmatprep.subr.mxu0 0.0
    %10901 = vmatpush1.msra.mxu0 0.0
    %10902 = vmatprep.subr.mxu0 0.0
    %10903 = vmatpush1.msra.mxu0 0.0
    %10904 = vmatprep.subr.mxu0 0.0
    %10905 = vmatpush1.msra.mxu0 0.0
    %10906 = vmatprep.subr.mxu0 0.0
    %10907 = vmatpush1.msra.mxu0 0.0
    %10908 = vmatprep.subr.mxu0 0.0
    %10909 = vmatpush1.msra.mxu0 0.0
    %10910 = vmatprep.subr.mxu0 0.0
    %10911 = vmatpush1.msra.mxu0 0.0
    %10912 = vmatprep.subr.mxu0 0.0
    %10913 = vmatpush1.msra.mxu0 0.0
    %10914 = vmatprep.subr.mxu0 0.0
    %10915 = vmatpush1.msra.mxu0 0.0
    %10916 = vmatprep.subr.mxu0 0.0
    %10917 = vmatpush1.msra.mxu0 0.0
    %10918 = vmatprep.subr.mxu0 0.0
    %10919 = vmatpush1.msra.mxu0 0.0
    %10920 = vmatprep.subr.mxu0 0.0
    %10921 = vmatpush1.msra.mxu0 0.0
    %10922 = vmatprep.subr.mxu0 0.0
    %10923 = vmatpush1.msra.mxu0 0.0
    %10924 = vmatprep.mubr.f32.mxu0 0.0
    %v10925 = vand.u32 %v10704, 4294901760
    %v10926 = vsub.f32 %v10704, %v10925
    %10927 = vmatmul.mubr.f32.gmra.mrb[0].mxu0 %v10926
    %v10928 = vpop.f32.mrb[0].mxu0
    %v10929 = vadd.f32 %v10855, %v10928
    %v10930 = vpop.f32.mrb[0].mxu0
    %10931 = vdwg.mxu0
    %10932 = vmatprep.subr.mxu0 0.0
    %v10933 = vand.u32 %v1261, 4294901760
    %10934 = vmatpush1.msra.mxu0 %v10933
    %10935 = vmatprep.subr.mxu0 0.0
    %10936 = vmatpush1.msra.mxu0 0.0
    %10937 = vmatprep.subr.mxu0 0.0
    %10938 = vmatpush1.msra.mxu0 0.0
    %10939 = vmatprep.subr.mxu0 0.0
    %10940 = vmatpush1.msra.mxu0 0.0
    %10941 = vmatprep.subr.mxu0 0.0
    %10942 = vmatpush1.msra.mxu0 0.0
    %10943 = vmatprep.subr.mxu0 0.0
    %10944 = vmatpush1.msra.mxu0 0.0
    %10945 = vmatprep.subr.mxu0 0.0
    %10946 = vmatpush1.msra.mxu0 0.0
    %10947 = vmatprep.subr.mxu0 0.0
    %10948 = vmatpush1.msra.mxu0 0.0
    %10949 = vmatprep.subr.mxu0 0.0
    %10950 = vmatpush1.msra.mxu0 0.0
    %10951 = vmatprep.subr.mxu0 0.0
    %10952 = vmatpush1.msra.mxu0 0.0
    %10953 = vmatprep.subr.mxu0 0.0
    %10954 = vmatpush1.msra.mxu0 0.0
    %10955 = vmatprep.subr.mxu0 0.0
    %10956 = vmatpush1.msra.mxu0 0.0
    %10957 = vmatprep.subr.mxu0 0.0
    %10958 = vmatpush1.msra.mxu0 0.0
    %10959 = vmatprep.subr.mxu0 0.0
    %10960 = vmatpush1.msra.mxu0 0.0
    %10961 = vmatprep.subr.mxu0 0.0
    %10962 = vmatpush1.msra.mxu0 0.0
    %10963 = vmatprep.subr.mxu0 0.0
    %10964 = vmatpush1.msra.mxu0 0.0
    %10965 = vmatprep.subr.mxu0 0.0
    %10966 = vmatpush1.msra.mxu0 0.0
    %10967 = vmatprep.subr.mxu0 0.0
    %10968 = vmatpush1.msra.mxu0 0.0
    %10969 = vmatprep.subr.mxu0 0.0
    %10970 = vmatpush1.msra.mxu0 0.0
    %10971 = vmatprep.subr.mxu0 0.0
    %10972 = vmatpush1.msra.mxu0 0.0
    %10973 = vmatprep.subr.mxu0 0.0
    %10974 = vmatpush1.msra.mxu0 0.0
    %10975 = vmatprep.subr.mxu0 0.0
    %10976 = vmatpush1.msra.mxu0 0.0
    %10977 = vmatprep.subr.mxu0 0.0
    %10978 = vmatpush1.msra.mxu0 0.0
    %10979 = vmatprep.subr.mxu0 0.0
    %10980 = vmatpush1.msra.mxu0 0.0
    %10981 = vmatprep.subr.mxu0 0.0
    %10982 = vmatpush1.msra.mxu0 0.0
    %10983 = vmatprep.subr.mxu0 0.0
    %10984 = vmatpush1.msra.mxu0 0.0
    %10985 = vmatprep.subr.mxu0 0.0
    %10986 = vmatpush1.msra.mxu0 0.0
    %10987 = vmatprep.subr.mxu0 0.0
    %10988 = vmatpush1.msra.mxu0 0.0
    %10989 = vmatprep.subr.mxu0 0.0
    %10990 = vmatpush1.msra.mxu0 0.0
    %10991 = vmatprep.subr.mxu0 0.0
    %10992 = vmatpush1.msra.mxu0 0.0
    %10993 = vmatprep.subr.mxu0 0.0
    %10994 = vmatpush1.msra.mxu0 0.0
    %10995 = vmatprep.subr.mxu0 0.0
    %10996 = vmatpush1.msra.mxu0 0.0
    %10997 = vmatprep.mubr.f32.mxu0 0.0
    %v10998 = vand.u32 %v10704, 4294901760
    %v10999 = vsub.f32 %v10704, %v10998
    %v11000 = vand.u32 %v10999, 4294901760
    %11001 = vmatmul.mubr.f32.gmra.mrb[0].mxu0 %v11000
    %v11002 = vpop.f32.mrb[0].mxu0
    %v11003 = vadd.f32 %v10929, %v11002
    %v11004 = vpop.f32.mrb[0].mxu0
    %11005 = vdwg.mxu0
    %11006 = vmatprep.subr.mxu0 0.0
    %v11007 = vand.u32 %v1261, 4294901760
    %v11008 = vsub.f32 %v1261, %v11007
    %v11009 = vand.u32 %v11008, 4294901760
    %11010 = vmatpush1.msra.mxu0 %v11009
    %11011 = vmatprep.subr.mxu0 0.0
    %11012 = vmatpush1.msra.mxu0 0.0
    %11013 = vmatprep.subr.mxu0 0.0
    %11014 = vmatpush1.msra.mxu0 0.0
    %11015 = vmatprep.subr.mxu0 0.0
    %11016 = vmatpush1.msra.mxu0 0.0
    %11017 = vmatprep.subr.mxu0 0.0
    %11018 = vmatpush1.msra.mxu0 0.0
    %11019 = vmatprep.subr.mxu0 0.0
    %11020 = vmatpush1.msra.mxu0 0.0
    %11021 = vmatprep.subr.mxu0 0.0
    %11022 = vmatpush1.msra.mxu0 0.0
    %11023 = vmatprep.subr.mxu0 0.0
    %11024 = vmatpush1.msra.mxu0 0.0
    %11025 = vmatprep.subr.mxu0 0.0
    %11026 = vmatpush1.msra.mxu0 0.0
    %11027 = vmatprep.subr.mxu0 0.0
    %11028 = vmatpush1.msra.mxu0 0.0
    %11029 = vmatprep.subr.mxu0 0.0
    %11030 = vmatpush1.msra.mxu0 0.0
    %11031 = vmatprep.subr.mxu0 0.0
    %11032 = vmatpush1.msra.mxu0 0.0
    %11033 = vmatprep.subr.mxu0 0.0
    %11034 = vmatpush1.msra.mxu0 0.0
    %11035 = vmatprep.subr.mxu0 0.0
    %11036 = vmatpush1.msra.mxu0 0.0
    %11037 = vmatprep.subr.mxu0 0.0
    %11038 = vmatpush1.msra.mxu0 0.0
    %11039 = vmatprep.subr.mxu0 0.0
    %11040 = vmatpush1.msra.mxu0 0.0
    %11041 = vmatprep.subr.mxu0 0.0
    %11042 = vmatpush1.msra.mxu0 0.0
    %11043 = vmatprep.subr.mxu0 0.0
    %11044 = vmatpush1.msra.mxu0 0.0
    %11045 = vmatprep.subr.mxu0 0.0
    %11046 = vmatpush1.msra.mxu0 0.0
    %11047 = vmatprep.subr.mxu0 0.0
    %11048 = vmatpush1.msra.mxu0 0.0
    %11049 = vmatprep.subr.mxu0 0.0
    %11050 = vmatpush1.msra.mxu0 0.0
    %11051 = vmatprep.subr.mxu0 0.0
    %11052 = vmatpush1.msra.mxu0 0.0
    %11053 = vmatprep.subr.mxu0 0.0
    %11054 = vmatpush1.msra.mxu0 0.0
    %11055 = vmatprep.subr.mxu0 0.0
    %11056 = vmatpush1.msra.mxu0 0.0
    %11057 = vmatprep.subr.mxu0 0.0
    %11058 = vmatpush1.msra.mxu0 0.0
    %11059 = vmatprep.subr.mxu0 0.0
    %11060 = vmatpush1.msra.mxu0 0.0
    %11061 = vmatprep.subr.mxu0 0.0
    %11062 = vmatpush1.msra.mxu0 0.0
    %11063 = vmatprep.subr.mxu0 0.0
    %11064 = vmatpush1.msra.mxu0 0.0
    %11065 = vmatprep.subr.mxu0 0.0
    %11066 = vmatpush1.msra.mxu0 0.0
    %11067 = vmatprep.subr.mxu0 0.0
    %11068 = vmatpush1.msra.mxu0 0.0
    %11069 = vmatprep.subr.mxu0 0.0
    %11070 = vmatpush1.msra.mxu0 0.0
    %11071 = vmatprep.subr.mxu0 0.0
    %11072 = vmatpush1.msra.mxu0 0.0
    %11073 = vmatprep.mubr.f32.mxu0 0.0
    %v11074 = vand.u32 %v10704, 4294901760
    %11075 = vmatmul.mubr.f32.gmra.mrb[0].mxu0 %v11074
    %v11076 = vpop.f32.mrb[0].mxu0
    %v11077 = vadd.f32 %v11003, %v11076
    %v11078 = vpop.f32.mrb[0].mxu0
    %11079 = vdwg.mxu0
    %11080 = vmatprep.subr.mxu0 0.0
    %v11081 = vand.u32 %v1261, 4294901760
    %11082 = vmatpush1.msra.mxu0 %v11081
    %11083 = vmatprep.subr.mxu0 0.0
    %11084 = vmatpush1.msra.mxu0 0.0
    %11085 = vmatprep.subr.mxu0 0.0
    %11086 = vmatpush1.msra.mxu0 0.0
    %11087 = vmatprep.subr.mxu0 0.0
    %11088 = vmatpush1.msra.mxu0 0.0
    %11089 = vmatprep.subr.mxu0 0.0
    %11090 = vmatpush1.msra.mxu0 0.0
    %11091 = vmatprep.subr.mxu0 0.0
    %11092 = vmatpush1.msra.mxu0 0.0
    %11093 = vmatprep.subr.mxu0 0.0
    %11094 = vmatpush1.msra.mxu0 0.0
    %11095 = vmatprep.subr.mxu0 0.0
    %11096 = vmatpush1.msra.mxu0 0.0
    %11097 = vmatprep.subr.mxu0 0.0
    %11098 = vmatpush1.msra.mxu0 0.0
    %11099 = vmatprep.subr.mxu0 0.0
    %11100 = vmatpush1.msra.mxu0 0.0
    %11101 = vmatprep.subr.mxu0 0.0
    %11102 = vmatpush1.msra.mxu0 0.0
    %11103 = vmatprep.subr.mxu0 0.0
    %11104 = vmatpush1.msra.mxu0 0.0
    %11105 = vmatprep.subr.mxu0 0.0
    %11106 = vmatpush1.msra.mxu0 0.0
    %11107 = vmatprep.subr.mxu0 0.0
    %11108 = vmatpush1.msra.mxu0 0.0
    %11109 = vmatprep.subr.mxu0 0.0
    %11110 = vmatpush1.msra.mxu0 0.0
    %11111 = vmatprep.subr.mxu0 0.0
    %11112 = vmatpush1.msra.mxu0 0.0
    %11113 = vmatprep.subr.mxu0 0.0
    %11114 = vmatpush1.msra.mxu0 0.0
    %11115 = vmatprep.subr.mxu0 0.0
    %11116 = vmatpush1.msra.mxu0 0.0
    %11117 = vmatprep.subr.mxu0 0.0
    %11118 = vmatpush1.msra.mxu0 0.0
    %11119 = vmatprep.subr.mxu0 0.0
    %11120 = vmatpush1.msra.mxu0 0.0
    %11121 = vmatprep.subr.mxu0 0.0
    %11122 = vmatpush1.msra.mxu0 0.0
    %11123 = vmatprep.subr.mxu0 0.0
    %11124 = vmatpush1.msra.mxu0 0.0
    %11125 = vmatprep.subr.mxu0 0.0
    %11126 = vmatpush1.msra.mxu0 0.0
    %11127 = vmatprep.subr.mxu0 0.0
    %11128 = vmatpush1.msra.mxu0 0.0
    %11129 = vmatprep.subr.mxu0 0.0
    %11130 = vmatpush1.msra.mxu0 0.0
    %11131 = vmatprep.subr.mxu0 0.0
    %11132 = vmatpush1.msra.mxu0 0.0
    %11133 = vmatprep.subr.mxu0 0.0
    %11134 = vmatpush1.msra.mxu0 0.0
    %11135 = vmatprep.subr.mxu0 0.0
    %11136 = vmatpush1.msra.mxu0 0.0
    %11137 = vmatprep.subr.mxu0 0.0
    %11138 = vmatpush1.msra.mxu0 0.0
    %11139 = vmatprep.subr.mxu0 0.0
    %11140 = vmatpush1.msra.mxu0 0.0
    %11141 = vmatprep.subr.mxu0 0.0
    %11142 = vmatpush1.msra.mxu0 0.0
    %11143 = vmatprep.subr.mxu0 0.0
    %11144 = vmatpush1.msra.mxu0 0.0
    %11145 = vmatprep.mubr.f32.mxu0 0.0
    %v11146 = vand.u32 %v10704, 4294901760
    %11147 = vmatmul.mubr.f32.gmra.mrb[0].mxu0 %v11146
    %v11148 = vpop.f32.mrb[0].mxu0
    %v11149 = vadd.f32 %v11077, %v11148
    %v11150 = vpop.f32.mrb[0].mxu0
    %11151 = vdwg.mxu0
    %v11152 = vcombine.low %v8006, %v8904
    %v11153 = vcombine.high %v8006, %v8904
    %v11155 = vunpack.c.l.s4 1983009808
    %v11156 = vunpack.c.0.s8 %v11155
    %v11157 = vlaneseq
    %v11158 = vshrl.u32 %v11157, 7
    %v11159 = vsub.s32 %v11156, %v11158
    %v11160 = vrot.slane %v11152, %v11159
    %v11162 = vunpack.c.l.s4 1983009808
    %v11163 = vunpack.c.0.s8 %v11162
    %v11164 = vlaneseq
    %v11165 = vshrl.u32 %v11164, 7
    %v11166 = vsub.s32 %v11163, %v11165
    %v11167 = vrot.slane %v11153, %v11166
    %v11168 = vcombine.low %v8455, %v9353
    %v11169 = vcombine.high %v8455, %v9353
    %v11171 = vunpack.c.l.s4 1983009808
    %v11172 = vunpack.c.0.s8 %v11171
    %v11173 = vlaneseq
    %v11174 = vshrl.u32 %v11173, 7
    %v11175 = vsub.s32 %v11172, %v11174
    %v11176 = vrot.slane %v11168, %v11175
    %v11178 = vunpack.c.l.s4 1983009808
    %v11179 = vunpack.c.0.s8 %v11178
    %v11180 = vlaneseq
    %v11181 = vshrl.u32 %v11180, 7
    %v11182 = vsub.s32 %v11179, %v11181
    %v11183 = vrot.slane %v11169, %v11182
    %v11184 = vcombine.low %v11160, %v11176
    %v11185 = vcombine.high %v11160, %v11176
    %v11187 = vunpack.c.l.s4 1934713408
    %v11188 = vunpack.c.0.s8 %v11187
    %v11189 = vlaneseq
    %v11190 = vshrl.u32 %v11189, 7
    %v11191 = vsub.s32 %v11188, %v11190
    %v11192 = vrot.slane %v11184, %v11191
    %v11194 = vunpack.c.l.s4 1934713408
    %v11195 = vunpack.c.0.s8 %v11194
    %v11196 = vlaneseq
    %v11197 = vshrl.u32 %v11196, 7
    %v11198 = vsub.s32 %v11195, %v11197
    %v11199 = vrot.slane %v11185, %v11198
    %v11200 = vcombine.low %v11167, %v11183
    %v11201 = vcombine.high %v11167, %v11183
    %v11203 = vunpack.c.l.s4 1934713408
    %v11204 = vunpack.c.0.s8 %v11203
    %v11205 = vlaneseq
    %v11206 = vshrl.u32 %v11205, 7
    %v11207 = vsub.s32 %v11204, %v11206
    %v11208 = vrot.slane %v11200, %v11207
    %v11210 = vunpack.c.l.s4 1934713408
    %v11211 = vunpack.c.0.s8 %v11210
    %v11212 = vlaneseq
    %v11213 = vshrl.u32 %v11212, 7
    %v11214 = vsub.s32 %v11211, %v11213
    %v11215 = vrot.slane %v11201, %v11214
    %v11216 = vcombine.high %v11192, 0.0
    %v11217 = vcombine.high %v11199, 0.0
    %v11218 = vcombine.high %v11208, 0.0
    %v11219 = vcombine.high %v11215, 0.0
    %v11220 = vcombine.low %v9802, %v10700
    %v11221 = vcombine.high %v9802, %v10700
    %v11223 = vunpack.c.l.s4 1983009808
    %v11224 = vunpack.c.0.s8 %v11223
    %v11225 = vlaneseq
    %v11226 = vshrl.u32 %v11225, 7
    %v11227 = vsub.s32 %v11224, %v11226
    %v11228 = vrot.slane %v11220, %v11227
    %v11230 = vunpack.c.l.s4 1983009808
    %v11231 = vunpack.c.0.s8 %v11230
    %v11232 = vlaneseq
    %v11233 = vshrl.u32 %v11232, 7
    %v11234 = vsub.s32 %v11231, %v11233
    %v11235 = vrot.slane %v11221, %v11234
    %v11236 = vcombine.low %v10251, %v11149
    %v11237 = vcombine.high %v10251, %v11149
    %v11239 = vunpack.c.l.s4 1983009808
    %v11240 = vunpack.c.0.s8 %v11239
    %v11241 = vlaneseq
    %v11242 = vshrl.u32 %v11241, 7
    %v11243 = vsub.s32 %v11240, %v11242
    %v11244 = vrot.slane %v11236, %v11243
    %v11246 = vunpack.c.l.s4 1983009808
    %v11247 = vunpack.c.0.s8 %v11246
    %v11248 = vlaneseq
    %v11249 = vshrl.u32 %v11248, 7
    %v11250 = vsub.s32 %v11247, %v11249
    %v11251 = vrot.slane %v11237, %v11250
    %v11252 = vcombine.low %v11228, %v11244
    %v11253 = vcombine.high %v11228, %v11244
    %v11255 = vunpack.c.l.s4 1934713408
    %v11256 = vunpack.c.0.s8 %v11255
    %v11257 = vlaneseq
    %v11258 = vshrl.u32 %v11257, 7
    %v11259 = vsub.s32 %v11256, %v11258
    %v11260 = vrot.slane %v11252, %v11259
    %v11262 = vunpack.c.l.s4 1934713408
    %v11263 = vunpack.c.0.s8 %v11262
    %v11264 = vlaneseq
    %v11265 = vshrl.u32 %v11264, 7
    %v11266 = vsub.s32 %v11263, %v11265
    %v11267 = vrot.slane %v11253, %v11266
    %v11268 = vcombine.low %v11235, %v11251
    %v11269 = vcombine.high %v11235, %v11251
    %v11271 = vunpack.c.l.s4 1934713408
    %v11272 = vunpack.c.0.s8 %v11271
    %v11273 = vlaneseq
    %v11274 = vshrl.u32 %v11273, 7
    %v11275 = vsub.s32 %v11272, %v11274
    %v11276 = vrot.slane %v11268, %v11275
    %v11278 = vunpack.c.l.s4 1934713408
    %v11279 = vunpack.c.0.s8 %v11278
    %v11280 = vlaneseq
    %v11281 = vshrl.u32 %v11280, 7
    %v11282 = vsub.s32 %v11279, %v11281
    %v11283 = vrot.slane %v11269, %v11282
    %v11284 = vcombine.high %v11260, 0.0
    %v11285 = vcombine.high %v11267, 0.0
    %v11286 = vcombine.high %v11276, 0.0
    %v11287 = vcombine.high %v11283, 0.0
    %v11288 = vcombine.low %v11192, %v11199
    %v11290 = vunpack.c.l.s4 1983009808
    %v11291 = vunpack.c.0.s8 %v11290
    %v11292 = vlaneseq
    %v11293 = vshrl.u32 %v11292, 7
    %v11294 = vsub.s32 %v11291, %v11293
    %v11295 = vrot.slane %v11288, %v11294
    %v11296 = vcombine.low %v11216, %v11217
    %v11298 = vunpack.c.l.s4 1983009808
    %v11299 = vunpack.c.0.s8 %v11298
    %v11300 = vlaneseq
    %v11301 = vshrl.u32 %v11300, 7
    %v11302 = vsub.s32 %v11299, %v11301
    %v11303 = vrot.slane %v11296, %v11302
    %v11304 = vcombine.low %v11208, %v11215
    %v11306 = vunpack.c.l.s4 1983009808
    %v11307 = vunpack.c.0.s8 %v11306
    %v11308 = vlaneseq
    %v11309 = vshrl.u32 %v11308, 7
    %v11310 = vsub.s32 %v11307, %v11309
    %v11311 = vrot.slane %v11304, %v11310
    %v11312 = vcombine.low %v11218, %v11219
    %v11314 = vunpack.c.l.s4 1983009808
    %v11315 = vunpack.c.0.s8 %v11314
    %v11316 = vlaneseq
    %v11317 = vshrl.u32 %v11316, 7
    %v11318 = vsub.s32 %v11315, %v11317
    %v11319 = vrot.slane %v11312, %v11318
    %v11320 = vcombine.low %v11295, %v11303
    %v11321 = vcombine.high %v11295, %v11303
    %v11323 = vunpack.c.l.s4 1934713408
    %v11324 = vunpack.c.0.s8 %v11323
    %v11325 = vlaneseq
    %v11326 = vshrl.u32 %v11325, 7
    %v11327 = vsub.s32 %v11324, %v11326
    %v11328 = vrot.slane %v11320, %v11327
    %v11330 = vunpack.c.l.s4 1934713408
    %v11331 = vunpack.c.0.s8 %v11330
    %v11332 = vlaneseq
    %v11333 = vshrl.u32 %v11332, 7
    %v11334 = vsub.s32 %v11331, %v11333
    %v11335 = vrot.slane %v11321, %v11334
    %v11336 = vcombine.low %v11311, %v11319
    %v11337 = vcombine.high %v11311, %v11319
    %v11339 = vunpack.c.l.s4 1934713408
    %v11340 = vunpack.c.0.s8 %v11339
    %v11341 = vlaneseq
    %v11342 = vshrl.u32 %v11341, 7
    %v11343 = vsub.s32 %v11340, %v11342
    %v11344 = vrot.slane %v11336, %v11343
    %v11346 = vunpack.c.l.s4 1934713408
    %v11347 = vunpack.c.0.s8 %v11346
    %v11348 = vlaneseq
    %v11349 = vshrl.u32 %v11348, 7
    %v11350 = vsub.s32 %v11347, %v11349
    %v11351 = vrot.slane %v11337, %v11350
    %v11352 = vcombine.low %v11328, %v11344
    %v11353 = vcombine.high %v11328, %v11344
    %v11354 = vcombine.low %v11335, %v11351
    %v11355 = vcombine.high %v11335, %v11351
    %v11356 = vcombine.low %v11260, %v11267
    %v11358 = vunpack.c.l.s4 1983009808
    %v11359 = vunpack.c.0.s8 %v11358
    %v11360 = vlaneseq
    %v11361 = vshrl.u32 %v11360, 7
    %v11362 = vsub.s32 %v11359, %v11361
    %v11363 = vrot.slane %v11356, %v11362
    %v11364 = vcombine.low %v11284, %v11285
    %v11366 = vunpack.c.l.s4 1983009808
    %v11367 = vunpack.c.0.s8 %v11366
    %v11368 = vlaneseq
    %v11369 = vshrl.u32 %v11368, 7
    %v11370 = vsub.s32 %v11367, %v11369
    %v11371 = vrot.slane %v11364, %v11370
    %v11372 = vcombine.low %v11276, %v11283
    %v11374 = vunpack.c.l.s4 1983009808
    %v11375 = vunpack.c.0.s8 %v11374
    %v11376 = vlaneseq
    %v11377 = vshrl.u32 %v11376, 7
    %v11378 = vsub.s32 %v11375, %v11377
    %v11379 = vrot.slane %v11372, %v11378
    %v11380 = vcombine.low %v11286, %v11287
    %v11382 = vunpack.c.l.s4 1983009808
    %v11383 = vunpack.c.0.s8 %v11382
    %v11384 = vlaneseq
    %v11385 = vshrl.u32 %v11384, 7
    %v11386 = vsub.s32 %v11383, %v11385
    %v11387 = vrot.slane %v11380, %v11386
    %v11388 = vcombine.low %v11363, %v11371
    %v11389 = vcombine.high %v11363, %v11371
    %v11391 = vunpack.c.l.s4 1934713408
    %v11392 = vunpack.c.0.s8 %v11391
    %v11393 = vlaneseq
    %v11394 = vshrl.u32 %v11393, 7
    %v11395 = vsub.s32 %v11392, %v11394
    %v11396 = vrot.slane %v11388, %v11395
    %v11398 = vunpack.c.l.s4 1934713408
    %v11399 = vunpack.c.0.s8 %v11398
    %v11400 = vlaneseq
    %v11401 = vshrl.u32 %v11400, 7
    %v11402 = vsub.s32 %v11399, %v11401
    %v11403 = vrot.slane %v11389, %v11402
    %v11404 = vcombine.low %v11379, %v11387
    %v11405 = vcombine.high %v11379, %v11387
    %v11407 = vunpack.c.l.s4 1934713408
    %v11408 = vunpack.c.0.s8 %v11407
    %v11409 = vlaneseq
    %v11410 = vshrl.u32 %v11409, 7
    %v11411 = vsub.s32 %v11408, %v11410
    %v11412 = vrot.slane %v11404, %v11411
    %v11414 = vunpack.c.l.s4 1934713408
    %v11415 = vunpack.c.0.s8 %v11414
    %v11416 = vlaneseq
    %v11417 = vshrl.u32 %v11416, 7
    %v11418 = vsub.s32 %v11415, %v11417
    %v11419 = vrot.slane %v11405, %v11418
    %v11420 = vcombine.low %v11396, %v11412
    %v11421 = vcombine.high %v11396, %v11412
    %v11422 = vcombine.low %v11403, %v11419
    %v11423 = vcombine.high %v11403, %v11419
    %11426 = vrot.lane.b32.xlu0 %v11353, 16
    %v11427 = vpop.permute.xlu0 %11426
    %11428 = vrot.lane.b32.xlu0 %v11421, 16
    %v11429 = vpop.permute.xlu0 %11428
    %11434 = vrot.lane.b32.xlu0 %v11354, 32
    %v11435 = vpop.permute.xlu0 %11434
    %11436 = vrot.lane.b32.xlu0 %v11422, 32
    %v11437 = vpop.permute.xlu0 %11436
    %11442 = vrot.lane.b32.xlu0 %v11355, 48
    %v11443 = vpop.permute.xlu0 %11442
    %11444 = vrot.lane.b32.xlu0 %v11423, 48
    %v11445 = vpop.permute.xlu0 %11444
    %v11448 = vsel %vm3774, %v11352, %v11427
    %v11449 = vsel %vm3774, %v11420, %v11429
    %v11450 = vsel %vm26, %v11448, %v11435
    %v11451 = vsel %vm26, %v11449, %v11437
    %vm11452 = vcmask 392192
    %v11453 = vsel %vm11452, %v11450, %v11443
    %v11454 = vsel %vm11452, %v11451, %v11445
    %v11455 = vld [vmem:[%s4] sm:$0xff]
    %v11456 = vld [vmem:[%s4 + $0x8] sm:$0xff]
    %v11457 = vld [vmem:[%s4 + $0x10] sm:$0xff]
    %v11458 = vld [vmem:[%s4 + $0x18] sm:$0xff]
    %v11459 = vld [vmem:[%s4 + $0x20] sm:$0xff]
    %v11460 = vld [vmem:[%s4 + $0x28] sm:$0xff]
    %v11461 = vld [vmem:[%s4 + $0x30] sm:$0xff]
    %v11462 = vld [vmem:[%s4 + $0x38] sm:$0xff]
    %v11463 = vld [vmem:[%s5] sm:$0x1]
    %v11465 = vlaneseq
    %v11466 = vshrl.u32 %v11465, 7
    %v11467 = vsub.s32 0, %v11466
    %v11468 = vrot.slane %v11463, %v11467
    %vm11470 = vcmask 523264
    %v11472 = vsel %vm11470, %v11453, 0
    %v11475 = vsel %vm11470, %v11454, 0
    %11477 = vmatprep.subr.mxu0 0.0
    %v11478 = vand.u32 %v11455, 4294901760
    %11479 = vmatpush1.msra.mxu0 %v11478
    %11480 = vmatprep.subr.mxu0 0.0
    %v11481 = vand.u32 %v11456, 4294901760
    %11482 = vmatpush1.msra.mxu0 %v11481
    %11483 = vmatprep.subr.mxu0 0.0
    %v11484 = vand.u32 %v11457, 4294901760
    %11485 = vmatpush1.msra.mxu0 %v11484
    %11486 = vmatprep.subr.mxu0 0.0
    %v11487 = vand.u32 %v11458, 4294901760
    %11488 = vmatpush1.msra.mxu0 %v11487
    %11489 = vmatprep.subr.mxu0 0.0
    %v11490 = vand.u32 %v11459, 4294901760
    %11491 = vmatpush1.msra.mxu0 %v11490
    %11492 = vmatprep.subr.mxu0 0.0
    %v11493 = vand.u32 %v11460, 4294901760
    %11494 = vmatpush1.msra.mxu0 %v11493
    %11495 = vmatprep.subr.mxu0 0.0
    %v11496 = vand.u32 %v11461, 4294901760
    %11497 = vmatpush1.msra.mxu0 %v11496
    %11498 = vmatprep.subr.mxu0 0.0
    %v11499 = vand.u32 %v11462, 4294901760
    %11500 = vmatpush1.msra.mxu0 %v11499
    %11501 = vmatprep.subr.mxu0 0.0
    %11502 = vmatpush1.msra.mxu0 0.0
    %11503 = vmatprep.subr.mxu0 0.0
    %11504 = vmatpush1.msra.mxu0 0.0
    %11505 = vmatprep.subr.mxu0 0.0
    %11506 = vmatpush1.msra.mxu0 0.0
    %11507 = vmatprep.subr.mxu0 0.0
    %11508 = vmatpush1.msra.mxu0 0.0
    %11509 = vmatprep.subr.mxu0 0.0
    %11510 = vmatpush1.msra.mxu0 0.0
    %11511 = vmatprep.subr.mxu0 0.0
    %11512 = vmatpush1.msra.mxu0 0.0
    %11513 = vmatprep.subr.mxu0 0.0
    %11514 = vmatpush1.msra.mxu0 0.0
    %11515 = vmatprep.subr.mxu0 0.0
    %11516 = vmatpush1.msra.mxu0 0.0
    %11517 = vmatprep.subr.mxu0 0.0
    %11518 = vmatpush1.msra.mxu0 0.0
    %11519 = vmatprep.subr.mxu0 0.0
    %11520 = vmatpush1.msra.mxu0 0.0
    %11521 = vmatprep.subr.mxu0 0.0
    %11522 = vmatpush1.msra.mxu0 0.0
    %11523 = vmatprep.subr.mxu0 0.0
    %11524 = vmatpush1.msra.mxu0 0.0
    %11525 = vmatprep.subr.mxu0 0.0
    %11526 = vmatpush1.msra.mxu0 0.0
    %11527 = vmatprep.subr.mxu0 0.0
    %11528 = vmatpush1.msra.mxu0 0.0
    %11529 = vmatprep.subr.mxu0 0.0
    %11530 = vmatpush1.msra.mxu0 0.0
    %11531 = vmatprep.subr.mxu0 0.0
    %11532 = vmatpush1.msra.mxu0 0.0
    %11533 = vmatprep.subr.mxu0 0.0
    %11534 = vmatpush1.msra.mxu0 0.0
    %11535 = vmatprep.subr.mxu0 0.0
    %11536 = vmatpush1.msra.mxu0 0.0
    %11537 = vmatprep.subr.mxu0 0.0
    %11538 = vmatpush1.msra.mxu0 0.0
    %11539 = vmatprep.subr.mxu0 0.0
    %11540 = vmatpush1.msra.mxu0 0.0
    %11541 = vmatprep.subr.mxu0 0.0
    %11542 = vmatpush1.msra.mxu0 0.0
    %11543 = vmatprep.subr.mxu0 0.0
    %11544 = vmatpush1.msra.mxu0 0.0
    %11545 = vmatprep.subr.mxu0 0.0
    %11546 = vmatpush1.msra.mxu0 0.0
    %11547 = vmatprep.subr.mxu0 0.0
    %11548 = vmatpush1.msra.mxu0 0.0
    %11549 = vmatprep.mubr.f32.mxu0 0.0
    %v11550 = vand.u32 %v11472, 4294901760
    %v11551 = vsub.f32 %v11472, %v11550
    %v11552 = vand.u32 %v11551, 4294901760
    %v11553 = vsub.f32 %v11551, %v11552
    %v11554 = vand.u32 %v11553, 4294901760
    %11555 = vmatmul.mubr.f32.gmra.mrb[0].mxu0 %v11554
    %v11556 = vpop.f32.mrb[0].mxu0
    %v11557 = vadd.f32 %v11468, %v11556
    %v11558 = vpop.f32.mrb[0].mxu0
    %11559 = vmatprep.mubr.f32.mxu0 0.0
    %v11560 = vand.u32 %v11475, 4294901760
    %v11561 = vsub.f32 %v11475, %v11560
    %v11562 = vand.u32 %v11561, 4294901760
    %v11563 = vsub.f32 %v11561, %v11562
    %v11564 = vand.u32 %v11563, 4294901760
    %11565 = vmatmul.mubr.f32.gmra.mrb[0].mxu0 %v11564
    %v11566 = vpop.f32.mrb[0].mxu0
    %v11567 = vadd.f32 %v11468, %v11566
    %v11568 = vpop.f32.mrb[0].mxu0
    %11569 = vdwg.mxu0
    %11570 = vmatprep.subr.mxu0 0.0
    %v11571 = vand.u32 %v11455, 4294901760
    %v11572 = vsub.f32 %v11455, %v11571
    %v11573 = vand.u32 %v11572, 4294901760
    %v11574 = vsub.f32 %v11572, %v11573
    %v11575 = vand.u32 %v11574, 4294901760
    %11576 = vmatpush1.msra.mxu0 %v11575
    %11577 = vmatprep.subr.mxu0 0.0
    %v11578 = vand.u32 %v11456, 4294901760
    %v11579 = vsub.f32 %v11456, %v11578
    %v11580 = vand.u32 %v11579, 4294901760
    %v11581 = vsub.f32 %v11579, %v11580
    %v11582 = vand.u32 %v11581, 4294901760
    %11583 = vmatpush1.msra.mxu0 %v11582
    %11584 = vmatprep.subr.mxu0 0.0
    %v11585 = vand.u32 %v11457, 4294901760
    %v11586 = vsub.f32 %v11457, %v11585
    %v11587 = vand.u32 %v11586, 4294901760
    %v11588 = vsub.f32 %v11586, %v11587
    %v11589 = vand.u32 %v11588, 4294901760
    %11590 = vmatpush1.msra.mxu0 %v11589
    %11591 = vmatprep.subr.mxu0 0.0
    %v11592 = vand.u32 %v11458, 4294901760
    %v11593 = vsub.f32 %v11458, %v11592
    %v11594 = vand.u32 %v11593, 4294901760
    %v11595 = vsub.f32 %v11593, %v11594
    %v11596 = vand.u32 %v11595, 4294901760
    %11597 = vmatpush1.msra.mxu0 %v11596
    %11598 = vmatprep.subr.mxu0 0.0
    %v11599 = vand.u32 %v11459, 4294901760
    %v11600 = vsub.f32 %v11459, %v11599
    %v11601 = vand.u32 %v11600, 4294901760
    %v11602 = vsub.f32 %v11600, %v11601
    %v11603 = vand.u32 %v11602, 4294901760
    %11604 = vmatpush1.msra.mxu0 %v11603
    %11605 = vmatprep.subr.mxu0 0.0
    %v11606 = vand.u32 %v11460, 4294901760
    %v11607 = vsub.f32 %v11460, %v11606
    %v11608 = vand.u32 %v11607, 4294901760
    %v11609 = vsub.f32 %v11607, %v11608
    %v11610 = vand.u32 %v11609, 4294901760
    %11611 = vmatpush1.msra.mxu0 %v11610
    %11612 = vmatprep.subr.mxu0 0.0
    %v11613 = vand.u32 %v11461, 4294901760
    %v11614 = vsub.f32 %v11461, %v11613
    %v11615 = vand.u32 %v11614, 4294901760
    %v11616 = vsub.f32 %v11614, %v11615
    %v11617 = vand.u32 %v11616, 4294901760
    %11618 = vmatpush1.msra.mxu0 %v11617
    %11619 = vmatprep.subr.mxu0 0.0
    %v11620 = vand.u32 %v11462, 4294901760
    %v11621 = vsub.f32 %v11462, %v11620
    %v11622 = vand.u32 %v11621, 4294901760
    %v11623 = vsub.f32 %v11621, %v11622
    %v11624 = vand.u32 %v11623, 4294901760
    %11625 = vmatpush1.msra.mxu0 %v11624
    %11626 = vmatprep.subr.mxu0 0.0
    %11627 = vmatpush1.msra.mxu0 0.0
    %11628 = vmatprep.subr.mxu0 0.0
    %11629 = vmatpush1.msra.mxu0 0.0
    %11630 = vmatprep.subr.mxu0 0.0
    %11631 = vmatpush1.msra.mxu0 0.0
    %11632 = vmatprep.subr.mxu0 0.0
    %11633 = vmatpush1.msra.mxu0 0.0
    %11634 = vmatprep.subr.mxu0 0.0
    %11635 = vmatpush1.msra.mxu0 0.0
    %11636 = vmatprep.subr.mxu0 0.0
    %11637 = vmatpush1.msra.mxu0 0.0
    %11638 = vmatprep.subr.mxu0 0.0
    %11639 = vmatpush1.msra.mxu0 0.0
    %11640 = vmatprep.subr.mxu0 0.0
    %11641 = vmatpush1.msra.mxu0 0.0
    %11642 = vmatprep.subr.mxu0 0.0
    %11643 = vmatpush1.msra.mxu0 0.0
    %11644 = vmatprep.subr.mxu0 0.0
    %11645 = vmatpush1.msra.mxu0 0.0
    %11646 = vmatprep.subr.mxu0 0.0
    %11647 = vmatpush1.msra.mxu0 0.0
    %11648 = vmatprep.subr.mxu0 0.0
    %11649 = vmatpush1.msra.mxu0 0.0
    %11650 = vmatprep.subr.mxu0 0.0
    %11651 = vmatpush1.msra.mxu0 0.0
    %11652 = vmatprep.subr.mxu0 0.0
    %11653 = vmatpush1.msra.mxu0 0.0
    %11654 = vmatprep.subr.mxu0 0.0
    %11655 = vmatpush1.msra.mxu0 0.0
    %11656 = vmatprep.subr.mxu0 0.0
    %11657 = vmatpush1.msra.mxu0 0.0
    %11658 = vmatprep.subr.mxu0 0.0
    %11659 = vmatpush1.msra.mxu0 0.0
    %11660 = vmatprep.subr.mxu0 0.0
    %11661 = vmatpush1.msra.mxu0 0.0
    %11662 = vmatprep.subr.mxu0 0.0
    %11663 = vmatpush1.msra.mxu0 0.0
    %11664 = vmatprep.subr.mxu0 0.0
    %11665 = vmatpush1.msra.mxu0 0.0
    %11666 = vmatprep.subr.mxu0 0.0
    %11667 = vmatpush1.msra.mxu0 0.0
    %11668 = vmatprep.subr.mxu0 0.0
    %11669 = vmatpush1.msra.mxu0 0.0
    %11670 = vmatprep.subr.mxu0 0.0
    %11671 = vmatpush1.msra.mxu0 0.0
    %11672 = vmatprep.subr.mxu0 0.0
    %11673 = vmatpush1.msra.mxu0 0.0
    %11674 = vmatprep.mubr.f32.mxu0 0.0
    %v11675 = vand.u32 %v11472, 4294901760
    %11676 = vmatmul.mubr.f32.gmra.mrb[0].mxu0 %v11675
    %v11677 = vpop.f32.mrb[0].mxu0
    %v11678 = vadd.f32 %v11557, %v11677
    %v11679 = vpop.f32.mrb[0].mxu0
    %11680 = vmatprep.mubr.f32.mxu0 0.0
    %v11681 = vand.u32 %v11475, 4294901760
    %11682 = vmatmul.mubr.f32.gmra.mrb[0].mxu0 %v11681
    %v11683 = vpop.f32.mrb[0].mxu0
    %v11684 = vadd.f32 %v11567, %v11683
    %v11685 = vpop.f32.mrb[0].mxu0
    %11686 = vdwg.mxu0
    %11687 = vmatprep.subr.mxu0 0.0
    %v11688 = vand.u32 %v11455, 4294901760
    %v11689 = vsub.f32 %v11455, %v11688
    %11690 = vmatpush1.msra.mxu0 %v11689
    %11691 = vmatprep.subr.mxu0 0.0
    %v11692 = vand.u32 %v11456, 4294901760
    %v11693 = vsub.f32 %v11456, %v11692
    %11694 = vmatpush1.msra.mxu0 %v11693
    %11695 = vmatprep.subr.mxu0 0.0
    %v11696 = vand.u32 %v11457, 4294901760
    %v11697 = vsub.f32 %v11457, %v11696
    %11698 = vmatpush1.msra.mxu0 %v11697
    %11699 = vmatprep.subr.mxu0 0.0
    %v11700 = vand.u32 %v11458, 4294901760
    %v11701 = vsub.f32 %v11458, %v11700
    %11702 = vmatpush1.msra.mxu0 %v11701
    %11703 = vmatprep.subr.mxu0 0.0
    %v11704 = vand.u32 %v11459, 4294901760
    %v11705 = vsub.f32 %v11459, %v11704
    %11706 = vmatpush1.msra.mxu0 %v11705
    %11707 = vmatprep.subr.mxu0 0.0
    %v11708 = vand.u32 %v11460, 4294901760
    %v11709 = vsub.f32 %v11460, %v11708
    %11710 = vmatpush1.msra.mxu0 %v11709
    %11711 = vmatprep.subr.mxu0 0.0
    %v11712 = vand.u32 %v11461, 4294901760
    %v11713 = vsub.f32 %v11461, %v11712
    %11714 = vmatpush1.msra.mxu0 %v11713
    %11715 = vmatprep.subr.mxu0 0.0
    %v11716 = vand.u32 %v11462, 4294901760
    %v11717 = vsub.f32 %v11462, %v11716
    %11718 = vmatpush1.msra.mxu0 %v11717
    %11719 = vmatprep.subr.mxu0 0.0
    %11720 = vmatpush1.msra.mxu0 0.0
    %11721 = vmatprep.subr.mxu0 0.0
    %11722 = vmatpush1.msra.mxu0 0.0
    %11723 = vmatprep.subr.mxu0 0.0
    %11724 = vmatpush1.msra.mxu0 0.0
    %11725 = vmatprep.subr.mxu0 0.0
    %11726 = vmatpush1.msra.mxu0 0.0
    %11727 = vmatprep.subr.mxu0 0.0
    %11728 = vmatpush1.msra.mxu0 0.0
    %11729 = vmatprep.subr.mxu0 0.0
    %11730 = vmatpush1.msra.mxu0 0.0
    %11731 = vmatprep.subr.mxu0 0.0
    %11732 = vmatpush1.msra.mxu0 0.0
    %11733 = vmatprep.subr.mxu0 0.0
    %11734 = vmatpush1.msra.mxu0 0.0
    %11735 = vmatprep.subr.mxu0 0.0
    %11736 = vmatpush1.msra.mxu0 0.0
    %11737 = vmatprep.subr.mxu0 0.0
    %11738 = vmatpush1.msra.mxu0 0.0
    %11739 = vmatprep.subr.mxu0 0.0
    %11740 = vmatpush1.msra.mxu0 0.0
    %11741 = vmatprep.subr.mxu0 0.0
    %11742 = vmatpush1.msra.mxu0 0.0
    %11743 = vmatprep.subr.mxu0 0.0
    %11744 = vmatpush1.msra.mxu0 0.0
    %11745 = vmatprep.subr.mxu0 0.0
    %11746 = vmatpush1.msra.mxu0 0.0
    %11747 = vmatprep.subr.mxu0 0.0
    %11748 = vmatpush1.msra.mxu0 0.0
    %11749 = vmatprep.subr.mxu0 0.0
    %11750 = vmatpush1.msra.mxu0 0.0
    %11751 = vmatprep.subr.mxu0 0.0
    %11752 = vmatpush1.msra.mxu0 0.0
    %11753 = vmatprep.subr.mxu0 0.0
    %11754 = vmatpush1.msra.mxu0 0.0
    %11755 = vmatprep.subr.mxu0 0.0
    %11756 = vmatpush1.msra.mxu0 0.0
    %11757 = vmatprep.subr.mxu0 0.0
    %11758 = vmatpush1.msra.mxu0 0.0
    %11759 = vmatprep.subr.mxu0 0.0
    %11760 = vmatpush1.msra.mxu0 0.0
    %11761 = vmatprep.subr.mxu0 0.0
    %11762 = vmatpush1.msra.mxu0 0.0
    %11763 = vmatprep.subr.mxu0 0.0
    %11764 = vmatpush1.msra.mxu0 0.0
    %11765 = vmatprep.subr.mxu0 0.0
    %11766 = vmatpush1.msra.mxu0 0.0
    %11767 = vmatprep.mubr.f32.mxu0 0.0
    %v11768 = vand.u32 %v11472, 4294901760
    %v11769 = vsub.f32 %v11472, %v11768
    %11770 = vmatmul.mubr.f32.gmra.mrb[0].mxu0 %v11769
    %v11771 = vpop.f32.mrb[0].mxu0
    %v11772 = vadd.f32 %v11678, %v11771
    %v11773 = vpop.f32.mrb[0].mxu0
    %11774 = vmatprep.mubr.f32.mxu0 0.0
    %v11775 = vand.u32 %v11475, 4294901760
    %v11776 = vsub.f32 %v11475, %v11775
    %11777 = vmatmul.mubr.f32.gmra.mrb[0].mxu0 %v11776
    %v11778 = vpop.f32.mrb[0].mxu0
    %v11779 = vadd.f32 %v11684, %v11778
    %v11780 = vpop.f32.mrb[0].mxu0
    %11781 = vdwg.mxu0
    %11782 = vmatprep.subr.mxu0 0.0
    %v11783 = vand.u32 %v11455, 4294901760
    %11784 = vmatpush1.msra.mxu0 %v11783
    %11785 = vmatprep.subr.mxu0 0.0
    %v11786 = vand.u32 %v11456, 4294901760
    %11787 = vmatpush1.msra.mxu0 %v11786
    %11788 = vmatprep.subr.mxu0 0.0
    %v11789 = vand.u32 %v11457, 4294901760
    %11790 = vmatpush1.msra.mxu0 %v11789
    %11791 = vmatprep.subr.mxu0 0.0
    %v11792 = vand.u32 %v11458, 4294901760
    %11793 = vmatpush1.msra.mxu0 %v11792
    %11794 = vmatprep.subr.mxu0 0.0
    %v11795 = vand.u32 %v11459, 4294901760
    %11796 = vmatpush1.msra.mxu0 %v11795
    %11797 = vmatprep.subr.mxu0 0.0
    %v11798 = vand.u32 %v11460, 4294901760
    %11799 = vmatpush1.msra.mxu0 %v11798
    %11800 = vmatprep.subr.mxu0 0.0
    %v11801 = vand.u32 %v11461, 4294901760
    %11802 = vmatpush1.msra.mxu0 %v11801
    %11803 = vmatprep.subr.mxu0 0.0
    %v11804 = vand.u32 %v11462, 4294901760
    %11805 = vmatpush1.msra.mxu0 %v11804
    %11806 = vmatprep.subr.mxu0 0.0
    %11807 = vmatpush1.msra.mxu0 0.0
    %11808 = vmatprep.subr.mxu0 0.0
    %11809 = vmatpush1.msra.mxu0 0.0
    %11810 = vmatprep.subr.mxu0 0.0
    %11811 = vmatpush1.msra.mxu0 0.0
    %11812 = vmatprep.subr.mxu0 0.0
    %11813 = vmatpush1.msra.mxu0 0.0
    %11814 = vmatprep.subr.mxu0 0.0
    %11815 = vmatpush1.msra.mxu0 0.0
    %11816 = vmatprep.subr.mxu0 0.0
    %11817 = vmatpush1.msra.mxu0 0.0
    %11818 = vmatprep.subr.mxu0 0.0
    %11819 = vmatpush1.msra.mxu0 0.0
    %11820 = vmatprep.subr.mxu0 0.0
    %11821 = vmatpush1.msra.mxu0 0.0
    %11822 = vmatprep.subr.mxu0 0.0
    %11823 = vmatpush1.msra.mxu0 0.0
    %11824 = vmatprep.subr.mxu0 0.0
    %11825 = vmatpush1.msra.mxu0 0.0
    %11826 = vmatprep.subr.mxu0 0.0
    %11827 = vmatpush1.msra.mxu0 0.0
    %11828 = vmatprep.subr.mxu0 0.0
    %11829 = vmatpush1.msra.mxu0 0.0
    %11830 = vmatprep.subr.mxu0 0.0
    %11831 = vmatpush1.msra.mxu0 0.0
    %11832 = vmatprep.subr.mxu0 0.0
    %11833 = vmatpush1.msra.mxu0 0.0
    %11834 = vmatprep.subr.mxu0 0.0
    %11835 = vmatpush1.msra.mxu0 0.0
    %11836 = vmatprep.subr.mxu0 0.0
    %11837 = vmatpush1.msra.mxu0 0.0
    %11838 = vmatprep.subr.mxu0 0.0
    %11839 = vmatpush1.msra.mxu0 0.0
    %11840 = vmatprep.subr.mxu0 0.0
    %11841 = vmatpush1.msra.mxu0 0.0
    %11842 = vmatprep.subr.mxu0 0.0
    %11843 = vmatpush1.msra.mxu0 0.0
    %11844 = vmatprep.subr.mxu0 0.0
    %11845 = vmatpush1.msra.mxu0 0.0
    %11846 = vmatprep.subr.mxu0 0.0
    %11847 = vmatpush1.msra.mxu0 0.0
    %11848 = vmatprep.subr.mxu0 0.0
    %11849 = vmatpush1.msra.mxu0 0.0
    %11850 = vmatprep.subr.mxu0 0.0
    %11851 = vmatpush1.msra.mxu0 0.0
    %11852 = vmatprep.subr.mxu0 0.0
    %11853 = vmatpush1.msra.mxu0 0.0
    %11854 = vmatprep.mubr.f32.mxu0 0.0
    %v11855 = vand.u32 %v11472, 4294901760
    %v11856 = vsub.f32 %v11472, %v11855
    %v11857 = vand.u32 %v11856, 4294901760
    %11858 = vmatmul.mubr.f32.gmra.mrb[0].mxu0 %v11857
    %v11859 = vpop.f32.mrb[0].mxu0
    %v11860 = vadd.f32 %v11772, %v11859
    %v11861 = vpop.f32.mrb[0].mxu0
    %11862 = vmatprep.mubr.f32.mxu0 0.0
    %v11863 = vand.u32 %v11475, 4294901760
    %v11864 = vsub.f32 %v11475, %v11863
    %v11865 = vand.u32 %v11864, 4294901760
    %11866 = vmatmul.mubr.f32.gmra.mrb[0].mxu0 %v11865
    %v11867 = vpop.f32.mrb[0].mxu0
    %v11868 = vadd.f32 %v11779, %v11867
    %v11869 = vpop.f32.mrb[0].mxu0
    %11870 = vdwg.mxu0
    %11871 = vmatprep.subr.mxu0 0.0
    %v11872 = vand.u32 %v11455, 4294901760
    %v11873 = vsub.f32 %v11455, %v11872
    %v11874 = vand.u32 %v11873, 4294901760
    %11875 = vmatpush1.msra.mxu0 %v11874
    %11876 = vmatprep.subr.mxu0 0.0
    %v11877 = vand.u32 %v11456, 4294901760
    %v11878 = vsub.f32 %v11456, %v11877
    %v11879 = vand.u32 %v11878, 4294901760
    %11880 = vmatpush1.msra.mxu0 %v11879
    %11881 = vmatprep.subr.mxu0 0.0
    %v11882 = vand.u32 %v11457, 4294901760
    %v11883 = vsub.f32 %v11457, %v11882
    %v11884 = vand.u32 %v11883, 4294901760
    %11885 = vmatpush1.msra.mxu0 %v11884
    %11886 = vmatprep.subr.mxu0 0.0
    %v11887 = vand.u32 %v11458, 4294901760
    %v11888 = vsub.f32 %v11458, %v11887
    %v11889 = vand.u32 %v11888, 4294901760
    %11890 = vmatpush1.msra.mxu0 %v11889
    %11891 = vmatprep.subr.mxu0 0.0
    %v11892 = vand.u32 %v11459, 4294901760
    %v11893 = vsub.f32 %v11459, %v11892
    %v11894 = vand.u32 %v11893, 4294901760
    %11895 = vmatpush1.msra.mxu0 %v11894
    %11896 = vmatprep.subr.mxu0 0.0
    %v11897 = vand.u32 %v11460, 4294901760
    %v11898 = vsub.f32 %v11460, %v11897
    %v11899 = vand.u32 %v11898, 4294901760
    %11900 = vmatpush1.msra.mxu0 %v11899
    %11901 = vmatprep.subr.mxu0 0.0
    %v11902 = vand.u32 %v11461, 4294901760
    %v11903 = vsub.f32 %v11461, %v11902
    %v11904 = vand.u32 %v11903, 4294901760
    %11905 = vmatpush1.msra.mxu0 %v11904
    %11906 = vmatprep.subr.mxu0 0.0
    %v11907 = vand.u32 %v11462, 4294901760
    %v11908 = vsub.f32 %v11462, %v11907
    %v11909 = vand.u32 %v11908, 4294901760
    %11910 = vmatpush1.msra.mxu0 %v11909
    %11911 = vmatprep.subr.mxu0 0.0
    %11912 = vmatpush1.msra.mxu0 0.0
    %11913 = vmatprep.subr.mxu0 0.0
    %11914 = vmatpush1.msra.mxu0 0.0
    %11915 = vmatprep.subr.mxu0 0.0
    %11916 = vmatpush1.msra.mxu0 0.0
    %11917 = vmatprep.subr.mxu0 0.0
    %11918 = vmatpush1.msra.mxu0 0.0
    %11919 = vmatprep.subr.mxu0 0.0
    %11920 = vmatpush1.msra.mxu0 0.0
    %11921 = vmatprep.subr.mxu0 0.0
    %11922 = vmatpush1.msra.mxu0 0.0
    %11923 = vmatprep.subr.mxu0 0.0
    %11924 = vmatpush1.msra.mxu0 0.0
    %11925 = vmatprep.subr.mxu0 0.0
    %11926 = vmatpush1.msra.mxu0 0.0
    %11927 = vmatprep.subr.mxu0 0.0
    %11928 = vmatpush1.msra.mxu0 0.0
    %11929 = vmatprep.subr.mxu0 0.0
    %11930 = vmatpush1.msra.mxu0 0.0
    %11931 = vmatprep.subr.mxu0 0.0
    %11932 = vmatpush1.msra.mxu0 0.0
    %11933 = vmatprep.subr.mxu0 0.0
    %11934 = vmatpush1.msra.mxu0 0.0
    %11935 = vmatprep.subr.mxu0 0.0
    %11936 = vmatpush1.msra.mxu0 0.0
    %11937 = vmatprep.subr.mxu0 0.0
    %11938 = vmatpush1.msra.mxu0 0.0
    %11939 = vmatprep.subr.mxu0 0.0
    %11940 = vmatpush1.msra.mxu0 0.0
    %11941 = vmatprep.subr.mxu0 0.0
    %11942 = vmatpush1.msra.mxu0 0.0
    %11943 = vmatprep.subr.mxu0 0.0
    %11944 = vmatpush1.msra.mxu0 0.0
    %11945 = vmatprep.subr.mxu0 0.0
    %11946 = vmatpush1.msra.mxu0 0.0
    %11947 = vmatprep.subr.mxu0 0.0
    %11948 = vmatpush1.msra.mxu0 0.0
    %11949 = vmatprep.subr.mxu0 0.0
    %11950 = vmatpush1.msra.mxu0 0.0
    %11951 = vmatprep.subr.mxu0 0.0
    %11952 = vmatpush1.msra.mxu0 0.0
    %11953 = vmatprep.subr.mxu0 0.0
    %11954 = vmatpush1.msra.mxu0 0.0
    %11955 = vmatprep.subr.mxu0 0.0
    %11956 = vmatpush1.msra.mxu0 0.0
    %11957 = vmatprep.subr.mxu0 0.0
    %11958 = vmatpush1.msra.mxu0 0.0
    %11959 = vmatprep.mubr.f32.mxu0 0.0
    %v11960 = vand.u32 %v11472, 4294901760
    %11961 = vmatmul.mubr.f32.gmra.mrb[0].mxu0 %v11960
    %v11962 = vpop.f32.mrb[0].mxu0
    %v11963 = vadd.f32 %v11860, %v11962
    %v11964 = vpop.f32.mrb[0].mxu0
    %11965 = vmatprep.mubr.f32.mxu0 0.0
    %v11966 = vand.u32 %v11475, 4294901760
    %11967 = vmatmul.mubr.f32.gmra.mrb[0].mxu0 %v11966
    %v11968 = vpop.f32.mrb[0].mxu0
    %v11969 = vadd.f32 %v11868, %v11968
    %v11970 = vpop.f32.mrb[0].mxu0
    %11971 = vdwg.mxu0
    %11972 = vmatprep.subr.mxu0 0.0
    %v11973 = vand.u32 %v11455, 4294901760
    %11974 = vmatpush1.msra.mxu0 %v11973
    %11975 = vmatprep.subr.mxu0 0.0
    %v11976 = vand.u32 %v11456, 4294901760
    %11977 = vmatpush1.msra.mxu0 %v11976
    %11978 = vmatprep.subr.mxu0 0.0
    %v11979 = vand.u32 %v11457, 4294901760
    %11980 = vmatpush1.msra.mxu0 %v11979
    %11981 = vmatprep.subr.mxu0 0.0
    %v11982 = vand.u32 %v11458, 4294901760
    %11983 = vmatpush1.msra.mxu0 %v11982
    %11984 = vmatprep.subr.mxu0 0.0
    %v11985 = vand.u32 %v11459, 4294901760
    %11986 = vmatpush1.msra.mxu0 %v11985
    %11987 = vmatprep.subr.mxu0 0.0
    %v11988 = vand.u32 %v11460, 4294901760
    %11989 = vmatpush1.msra.mxu0 %v11988
    %11990 = vmatprep.subr.mxu0 0.0
    %v11991 = vand.u32 %v11461, 4294901760
    %11992 = vmatpush1.msra.mxu0 %v11991
    %11993 = vmatprep.subr.mxu0 0.0
    %v11994 = vand.u32 %v11462, 4294901760
    %11995 = vmatpush1.msra.mxu0 %v11994
    %11996 = vmatprep.subr.mxu0 0.0
    %11997 = vmatpush1.msra.mxu0 0.0
    %11998 = vmatprep.subr.mxu0 0.0
    %11999 = vmatpush1.msra.mxu0 0.0
    %12000 = vmatprep.subr.mxu0 0.0
    %12001 = vmatpush1.msra.mxu0 0.0
    %12002 = vmatprep.subr.mxu0 0.0
    %12003 = vmatpush1.msra.mxu0 0.0
    %12004 = vmatprep.subr.mxu0 0.0
    %12005 = vmatpush1.msra.mxu0 0.0
    %12006 = vmatprep.subr.mxu0 0.0
    %12007 = vmatpush1.msra.mxu0 0.0
    %12008 = vmatprep.subr.mxu0 0.0
    %12009 = vmatpush1.msra.mxu0 0.0
    %12010 = vmatprep.subr.mxu0 0.0
    %12011 = vmatpush1.msra.mxu0 0.0
    %12012 = vmatprep.subr.mxu0 0.0
    %12013 = vmatpush1.msra.mxu0 0.0
    %12014 = vmatprep.subr.mxu0 0.0
    %12015 = vmatpush1.msra.mxu0 0.0
    %12016 = vmatprep.subr.mxu0 0.0
    %12017 = vmatpush1.msra.mxu0 0.0
    %12018 = vmatprep.subr.mxu0 0.0
    %12019 = vmatpush1.msra.mxu0 0.0
    %12020 = vmatprep.subr.mxu0 0.0
    %12021 = vmatpush1.msra.mxu0 0.0
    %12022 = vmatprep.subr.mxu0 0.0
    %12023 = vmatpush1.msra.mxu0 0.0
    %12024 = vmatprep.subr.mxu0 0.0
    %12025 = vmatpush1.msra.mxu0 0.0
    %12026 = vmatprep.subr.mxu0 0.0
    %12027 = vmatpush1.msra.mxu0 0.0
    %12028 = vmatprep.subr.mxu0 0.0
    %12029 = vmatpush1.msra.mxu0 0.0
    %12030 = vmatprep.subr.mxu0 0.0
    %12031 = vmatpush1.msra.mxu0 0.0
    %12032 = vmatprep.subr.mxu0 0.0
    %12033 = vmatpush1.msra.mxu0 0.0
    %12034 = vmatprep.subr.mxu0 0.0
    %12035 = vmatpush1.msra.mxu0 0.0
    %12036 = vmatprep.subr.mxu0 0.0
    %12037 = vmatpush1.msra.mxu0 0.0
    %12038 = vmatprep.subr.mxu0 0.0
    %12039 = vmatpush1.msra.mxu0 0.0
    %12040 = vmatprep.subr.mxu0 0.0
    %12041 = vmatpush1.msra.mxu0 0.0
    %12042 = vmatprep.subr.mxu0 0.0
    %12043 = vmatpush1.msra.mxu0 0.0
    %12044 = vmatprep.mubr.f32.mxu0 0.0
    %v12045 = vand.u32 %v11472, 4294901760
    %12046 = vmatmul.mubr.f32.gmra.mrb[0].mxu0 %v12045
    %v12047 = vpop.f32.mrb[0].mxu0
    %v12048 = vadd.f32 %v11963, %v12047
    %v12049 = vpop.f32.mrb[0].mxu0
    %12050 = vmatprep.mubr.f32.mxu0 0.0
    %v12051 = vand.u32 %v11475, 4294901760
    %12052 = vmatmul.mubr.f32.gmra.mrb[0].mxu0 %v12051
    %v12053 = vpop.f32.mrb[0].mxu0
    %v12054 = vadd.f32 %v11969, %v12053
    %v12055 = vpop.f32.mrb[0].mxu0
    %12056 = vdwg.mxu0
    %12057 = vst.msk [vmem:[#allocation2] sm:$0xff] %vm26, %v12048
    %12058 = vst.msk [vmem:[#allocation2 + $0x8] sm:$0xff] %vm26, %v12054
    // Predicated region
    $region26: #{attention_forward.1} parent=1 // pred_check
      _
    $region27: #{attention_forward.1} parent=1 // pred_check_branch
      %12060 = sbr.rel (0) target = $region29
    $region28: #{attention_forward.1} parent=1 // pred_region
      %s12062 = ssub.s32 256, 256
      %12063 = vsyncadd [#allocation3], %s12062
      %s12064 = sshll.u32 [#allocation2], 4
      %s12065 = int_to_ptr.vmem [resolvable:$true] %s12064
      %12070 = dma.vmem_to_hbm [thread:$0]  %s12065, 256, %s6, [#allocation3], 128, 128, 8
    $region29: #{attention_forward.1} parent=1 // pred_fallthru
      _
    // Predicated region
    $region30: #{attention_forward.1} parent=1 // pred_check
      _
    $region31: #{attention_forward.1} parent=1 // pred_check_branch
      %12072 = sbr.rel (0) target = $region33
    $region32: #{attention_forward.1} parent=1 // pred_region
      %12073 = dma.done [#allocation3], 256
    $region33: #{attention_forward.1} parent=1 // pred_fallthru
      _
    %12074 = vsyncpa [#allocation3], 1

</llo_original>
